<compile_context>
chip_gen: v7x
topology: tpu7x:2x2x1
jax: 0.10.0
libtpu: 0.0.40
codegen_flags: <defaults>
</compile_context>

<pallas_src>
import functools

import numpy as np
import jax
import jax.numpy as jnp
from jax.experimental import pallas as pl
from jax.experimental.pallas import tpu as pltpu

BN_EPS = 1e-5

# Static geometry implied by nn.Linear(1152, 64): 1152 = 64 * 3 * 6 after two pools.
H1, W1 = 6, 18                       # conv1 input spatial
H2, W2 = H1 // 2 + 1, W1 // 2 + 1    # 4, 10   (MaxPool2d(2, 2, padding=1))
H3, W3 = H2 // 2 + 1, W2 // 2 + 1    # 3, 6
C0, C1, C2, C3 = 2, 16, 32, 64
HW1, HW2, HW3 = H1 * W1, H2 * W2, H3 * W3          # 108, 40, 18
G1, G2, G3 = W1 + 1, W2 + 1, W3 + 1                # row margins for the 3x3 taps


# --------------------------- trace-time constants --------------------------- #

def _conv_mask(h_img, w_img, n):
    """mask[row, tap] = 1 iff tap (dh,dw) reads an in-image pixel of the SAME sample."""
    hw = h_img * w_img
    r = np.arange(n * hw)
    h = (r % hw) // w_img
    w = r % w_img
    m = np.zeros((n * hw, 9), np.float32)
    for t in range(9):
        dh, dw = t // 3 - 1, t % 3 - 1
        m[:, t] = ((h + dh >= 0) & (h + dh < h_img) &
                   (w + dw >= 0) & (w + dw < w_img)).astype(np.float32)
    return m


def _pool_gather(h_img, w_img):
    """Batch-independent 0/1 corner gathers for MaxPool2d(2,2,padding=1).

    Returns (4*Ho*Wo, H*W); corner (a,b) occupies rows [ (2a+b)*Ho*Wo : ... ).
    Out-of-image corners are all-zero rows; since inputs are post-ReLU >= 0 the
    resulting 0 never exceeds the true window max.
    """
    ho, wo = h_img // 2 + 1, w_img // 2 + 1
    g = np.zeros((4, ho * wo, h_img * w_img), np.float32)
    for a in range(2):
        for b in range(2):
            for oh in range(ho):
                for ow in range(wo):
                    ih, iw = 2 * oh - 1 + a, 2 * ow - 1 + b
                    if 0 <= ih < h_img and 0 <= iw < w_img:
                        g[a * 2 + b, oh * wo + ow, ih * w_img + iw] = 1.0
    return g.reshape(4 * ho * wo, h_img * w_img)


# ------------------------------- fused kernel ------------------------------- #

def _bn_relu(y):
    inv_m = 1.0 / y.shape[0]
    mean = jnp.sum(y, axis=0, keepdims=True) * inv_m
    mean_sq = jnp.sum(y * y, axis=0, keepdims=True) * inv_m
    var = jnp.maximum(mean_sq - mean * mean, 0.0)        # one-pass, biased (train BN)
    return jnp.maximum((y - mean) * jax.lax.rsqrt(var + BN_EPS), 0.0)


def _conv_bn_relu(buf_ref, stage_ref, mask_ref, w_ref, margin, rows, img_w, cin):
    """3x3 'same' conv as ONE deep-K matmul over an im2col staging buffer."""
    for t in range(9):
        dh, dw = t // 3 - 1, t % 3 - 1
        s = dh * img_w + dw
        slab = buf_ref[margin + s:margin + s + rows, :]
        if not (dh == 0 and dw == 0):                    # center tap needs no mask
            slab = slab * mask_ref[:, t:t + 1]
        stage_ref[:, t * cin:(t + 1) * cin] = slab
    y = jnp.dot(stage_ref[...], w_ref[...].astype(jnp.float32),
                preferred_element_type=jnp.float32)
    return _bn_relu(y)


def _pool_into(y, gsel_ref, batch, hw_in, hw_out, dst_ref, dst_margin):
    """MaxPool2d(2,2,pad=1): per-sample corner-gather matmul + 4-way max."""
    gsel = gsel_ref[...].astype(jnp.float32)             # (4*hw_out, hw_in)
    for i in range(batch):
        yn = y[i * hw_in:(i + 1) * hw_in, :]
        g = jnp.dot(gsel, yn, preferred_element_type=jnp.float32)   # (4*hw_out, C)
        pooled = jnp.maximum(
            jnp.maximum(g[0:hw_out], g[hw_out:2 * hw_out]),
            jnp.maximum(g[2 * hw_out:3 * hw_out], g[3 * hw_out:4 * hw_out]))
        dst_ref[dst_margin + i * hw_out:dst_margin + (i + 1) * hw_out, :] = pooled


def _fused_kernel(batch,
                  x_ref, w1_ref, m1_ref, p1_ref,
                  w2_ref, m2_ref, p2_ref,
                  w3_ref, m3_ref,
                  fw1_ref, fb1_ref, fw2_ref,
                  out_ref,
                  x1_ref, s1_ref, a2_ref, s2_ref, a3_ref, s3_ref, fc_ref):
    n = batch
    r1, r2, r3 = HW1 * n, HW2 * n, HW3 * n

    # conv1 input buffer: zero ONLY the margin rows, copy x into the interior.
    x1_ref[0:G1, :] = jnp.zeros((G1, C0), jnp.float32)
    x1_ref[G1 + r1:G1 + r1 + G1, :] = jnp.zeros((G1, C0), jnp.float32)
    x1_ref[G1:G1 + r1, :] = x_ref[...]

    # conv1(2->16) + BN + ReLU (bias dropped: cancelled by train-mode BN), pool1.
    y = _conv_bn_relu(x1_ref, s1_ref, m1_ref, w1_ref, G1, r1, W1, C0)    # (r1, 16)
    a2_ref[0:G2, :] = jnp.zeros((G2, C1), jnp.float32)
    a2_ref[G2 + r2:G2 + r2 + G2, :] = jnp.zeros((G2, C1), jnp.float32)
    _pool_into(y, p1_ref, n, HW1, HW2, a2_ref, G2)

    # conv2(16->32) + BN + ReLU, pool2.
    y = _conv_bn_relu(a2_ref, s2_ref, m2_ref, w2_ref, G2, r2, W2, C1)    # (r2, 32)
    a3_ref[0:G3, :] = jnp.zeros((G3, C2), jnp.float32)
    a3_ref[G3 + r3:G3 + r3 + G3, :] = jnp.zeros((G3, C2), jnp.float32)
    _pool_into(y, p2_ref, n, HW2, HW3, a3_ref, G3)

    # conv3(32->64) + BN + ReLU.
    y3 = _conv_bn_relu(a3_ref, s3_ref, m3_ref, w3_ref, G3, r3, W3, C2)   # (r3, 64)

    # FC head.  The NCHW flatten order is folded into fw1p's row permutation at
    # init time, so we just lay each sample's 18 spatial rows side by side and
    # do ONE (N, 1152) x (1152, 64) matmul.
    for i in range(n):
        for p in range(HW3):
            r = i * HW3 + p
            fc_ref[i:i + 1, p * C3:(p + 1) * C3] = y3[r:r + 1, :]
    h = jnp.dot(fc_ref[...], fw1_ref[...].astype(jnp.float32),
                preferred_element_type=jnp.float32)
    h = jnp.maximum(h + fb1_ref[...], 0.0)                               # (N, 64)
    # Linear(64, 1, bias=False) as a lane reduction (no 1-wide MXU dot).
    out_ref[...] = jnp.sum(h * fw2_ref[...], axis=1, keepdims=True)      # (N, 1)


# --------------------------------- wrapper ---------------------------------- #

_VMEM = pl.BlockSpec(memory_space=pltpu.MemorySpace.VMEM)


@jax.jit
def forward(x_nchw, params):
    n = x_nchw.shape[0]
    r1, r2, r3 = HW1 * n, HW2 * n, HW3 * n

    # NCHW -> batch-outermost 2-D layout: row = n*H*W + h*W + w, cols = channels.
    x2d = jnp.transpose(x_nchw, (0, 2, 3, 1)).reshape(r1, C0)

    m1 = jnp.asarray(_conv_mask(H1, W1, n))
    m2 = jnp.asarray(_conv_mask(H2, W2, n))
    m3 = jnp.asarray(_conv_mask(H3, W3, n))
    p1 = jnp.asarray(_pool_gather(H1, W1), dtype=jnp.bfloat16)   # (160, 108)
    p2 = jnp.asarray(_pool_gather(H2, W2), dtype=jnp.bfloat16)   # (72, 40)

    flops = 2 * (r1 * 9 * C0 * C1 + r2 * 9 * C1 * C2 + r3 * 9 * C2 * C3
                 + n * (4 * HW2 * HW1 * C1 + 4 * HW3 * HW2 * C2)
                 + n * HW3 * C3 * 64 + n * 64)
    bytes_accessed = ((x2d.size + m1.size + m2.size + m3.size + 2 * 64 + n) * 4
                      + (p1.size + p2.size + params["w1"].size + params["w2"].size
                         + params["w3"].size + params["fw1p"].size) * 2)

    return pl.pallas_call(
        functools.partial(_fused_kernel, n),
        out_shape=jax.ShapeDtypeStruct((n, 1), jnp.float32),
        in_specs=[_VMEM] * 12,
        out_specs=_VMEM,
        scratch_shapes=[
            pltpu.VMEM((r1 + 2 * G1, C0), jnp.float32),    # conv1 input (+margins)
            pltpu.VMEM((r1, 9 * C0), jnp.float32),         # conv1 im2col staging
            pltpu.VMEM((r2 + 2 * G2, C1), jnp.float32),    # conv2 input (+margins)
            pltpu.VMEM((r2, 9 * C1), jnp.float32),         # conv2 im2col staging
            pltpu.VMEM((r3 + 2 * G3, C2), jnp.float32),    # conv3 input (+margins)
            pltpu.VMEM((r3, 9 * C2), jnp.float32),         # conv3 im2col staging
            pltpu.VMEM((n, HW3 * C3), jnp.float32),        # fc1 input staging
        ],
        cost_estimate=pl.CostEstimate(flops=int(flops),
                                      transcendentals=C1 + C2 + C3,
                                      bytes_accessed=int(bytes_accessed)),
    )(x2d, params["w1"], m1, p1,
      params["w2"], m2, p2,
      params["w3"], m3,
      params["fw1p"], params["fb1"].reshape(1, C3), params["fw2"])


# ------------------------------ parameter init ------------------------------ #

def init_params(key):
    ks = jax.random.split(key, 6)

    def conv_w(k, cin, cout):
        # kaiming_normal_(mode='fan_out', nonlinearity='relu'): std = sqrt(2/(cout*9))
        std = (2.0 / (cout * 9)) ** 0.5
        w = jax.random.normal(k, (3, 3, cin, cout), jnp.float32) * std
        return w.reshape(9 * cin, cout).astype(jnp.bfloat16)   # row = tap*cin + ci

    def linear_w(k, fin, fout):
        b = 1.0 / (fin ** 0.5)
        return jax.random.uniform(k, (fin, fout), jnp.float32, -b, b)

    # fc1 weight rows are in PyTorch flatten order (c*18 + p); permute ONCE here
    # so the kernel can flatten in (spatial, channel) order (row p*64 + c).
    fw1 = linear_w(ks[3], C3 * HW3, 64)                                  # (1152, 64)
    fw1p = jnp.transpose(fw1.reshape(C3, HW3, 64), (1, 0, 2)).reshape(C3 * HW3, 64)

    b1 = 1.0 / ((C3 * HW3) ** 0.5)
    return {
        "w1": conv_w(ks[0], C0, C1),
        "w2": conv_w(ks[1], C1, C2),
        "w3": conv_w(ks[2], C2, C3),
        "fw1p": fw1p.astype(jnp.bfloat16),
        "fb1": jax.random.uniform(ks[4], (64,), jnp.float32, -b1, b1),
        "fw2": linear_w(ks[5], 64, 1).reshape(1, 64),   # PyTorch (out=1, in=64) layout
    }


# ----------------------------------- main ------------------------------------ #

if __name__ == "__main__":
    # Input spatial (6, 18): 6 -> 4 -> 3 and 18 -> 10 -> 6 after the two maxpools,
    # so the flattened feature is 64*3*6 = 1152, matching nn.Linear(1152, 64).
    x = jax.random.normal(jax.random.PRNGKey(0), (2, C0, H1, W1), jnp.float32)  # NCHW
    params = init_params(jax.random.PRNGKey(42))

    out = jax.block_until_ready(forward(x, params))

    assert out.shape == (2, 1), out.shape
    assert bool(jnp.all(jnp.isfinite(out)))
    print("KERNEL_OK")
</pallas_src>

<mosaic_0001>
module attributes {stable_mosaic.version = 11 : i64} {
  func.func @_fused_kernel(%arg0: memref<216x2xf32, #tpu.memory_space<vmem>>, %arg1: memref<18x16xbf16, #tpu.memory_space<vmem>>, %arg2: memref<216x9xf32, #tpu.memory_space<vmem>>, %arg3: memref<160x108xbf16, #tpu.memory_space<vmem>>, %arg4: memref<144x32xbf16, #tpu.memory_space<vmem>>, %arg5: memref<80x9xf32, #tpu.memory_space<vmem>>, %arg6: memref<72x40xbf16, #tpu.memory_space<vmem>>, %arg7: memref<288x64xbf16, #tpu.memory_space<vmem>>, %arg8: memref<36x9xf32, #tpu.memory_space<vmem>>, %arg9: memref<1152x64xbf16, #tpu.memory_space<vmem>>, %arg10: memref<1x64xf32, #tpu.memory_space<vmem>>, %arg11: memref<1x64xf32, #tpu.memory_space<vmem>>, %arg12: memref<2x1xf32, #tpu.memory_space<vmem>>, %arg13: memref<254x2xf32, #tpu.memory_space<vmem>>, %arg14: memref<216x18xf32, #tpu.memory_space<vmem>>, %arg15: memref<102x16xf32, #tpu.memory_space<vmem>>, %arg16: memref<80x144xf32, #tpu.memory_space<vmem>>, %arg17: memref<50x32xf32, #tpu.memory_space<vmem>>, %arg18: memref<36x288xf32, #tpu.memory_space<vmem>>, %arg19: memref<2x1152xf32, #tpu.memory_space<vmem>>) attributes {dimension_semantics = [], scalar_prefetch = 0 : i64, scratch_operands = 7 : i64, tpu.core_type = #tpu.core_type<tc>} {
    %cst = arith.constant 0.000000e+00 : f32
    %0 = vector.broadcast %cst : f32 to vector<19x2xf32>
    %c0 = arith.constant 0 : index
    %c0_0 = arith.constant 0 : index
    %1 = vector.load %arg13[%c0, %c0_0] : memref<254x2xf32, #tpu.memory_space<vmem>>, vector<19x2xf32>
    tpu.vector_store %arg13[%c0, %c0_0], %0 {strides = array<i32>} : memref<254x2xf32, #tpu.memory_space<vmem>>, vector<19x2xf32>,
    %cst_1 = arith.constant 0.000000e+00 : f32
    %2 = vector.broadcast %cst_1 : f32 to vector<19x2xf32>
    %c235 = arith.constant 235 : index
    %c0_2 = arith.constant 0 : index
    %3 = vector.load %arg13[%c235, %c0_2] : memref<254x2xf32, #tpu.memory_space<vmem>>, vector<19x2xf32>
    tpu.vector_store %arg13[%c235, %c0_2], %2 {strides = array<i32>} : memref<254x2xf32, #tpu.memory_space<vmem>>, vector<19x2xf32>,
    %c0_3 = arith.constant 0 : index
    %c0_4 = arith.constant 0 : index
    %4 = vector.load %arg0[%c0_3, %c0_4] : memref<216x2xf32, #tpu.memory_space<vmem>>, vector<216x2xf32>
    %c19 = arith.constant 19 : index
    %c0_5 = arith.constant 0 : index
    %5 = vector.load %arg13[%c19, %c0_5] : memref<254x2xf32, #tpu.memory_space<vmem>>, vector<216x2xf32>
    tpu.vector_store %arg13[%c19, %c0_5], %4 {strides = array<i32>} : memref<254x2xf32, #tpu.memory_space<vmem>>, vector<216x2xf32>,
    %c0_6 = arith.constant 0 : index
    %c0_7 = arith.constant 0 : index
    %6 = vector.load %arg13[%c0_6, %c0_7] : memref<254x2xf32, #tpu.memory_space<vmem>>, vector<216x2xf32>
    %c0_8 = arith.constant 0 : index
    %c0_9 = arith.constant 0 : index
    %7 = vector.load %arg2[%c0_8, %c0_9] : memref<216x9xf32, #tpu.memory_space<vmem>>, vector<216x1xf32>
    %8 = vector.broadcast %7 : vector<216x1xf32> to vector<216x2xf32>
    %9 = arith.mulf %6, %8 : vector<216x2xf32>
    %c0_10 = arith.constant 0 : index
    %c0_11 = arith.constant 0 : index
    %10 = vector.load %arg14[%c0_10, %c0_11] : memref<216x18xf32, #tpu.memory_space<vmem>>, vector<216x2xf32>
    tpu.vector_store %arg14[%c0_10, %c0_11], %9 {strides = array<i32>} : memref<216x18xf32, #tpu.memory_space<vmem>>, vector<216x2xf32>,
    %c1 = arith.constant 1 : index
    %c0_12 = arith.constant 0 : index
    %11 = vector.load %arg13[%c1, %c0_12] : memref<254x2xf32, #tpu.memory_space<vmem>>, vector<216x2xf32>
    %c0_13 = arith.constant 0 : index
    %c1_14 = arith.constant 1 : index
    %12 = vector.load %arg2[%c0_13, %c1_14] : memref<216x9xf32, #tpu.memory_space<vmem>>, vector<216x1xf32>
    %13 = vector.broadcast %12 : vector<216x1xf32> to vector<216x2xf32>
    %14 = arith.mulf %11, %13 : vector<216x2xf32>
    %c0_15 = arith.constant 0 : index
    %c2 = arith.constant 2 : index
    %15 = vector.load %arg14[%c0_15, %c2] : memref<216x18xf32, #tpu.memory_space<vmem>>, vector<216x2xf32>
    tpu.vector_store %arg14[%c0_15, %c2], %14 {strides = array<i32>} : memref<216x18xf32, #tpu.memory_space<vmem>>, vector<216x2xf32>,
    %c2_16 = arith.constant 2 : index
    %c0_17 = arith.constant 0 : index
    %16 = vector.load %arg13[%c2_16, %c0_17] : memref<254x2xf32, #tpu.memory_space<vmem>>, vector<216x2xf32>
    %c0_18 = arith.constant 0 : index
    %c2_19 = arith.constant 2 : index
    %17 = vector.load %arg2[%c0_18, %c2_19] : memref<216x9xf32, #tpu.memory_space<vmem>>, vector<216x1xf32>
    %18 = vector.broadcast %17 : vector<216x1xf32> to vector<216x2xf32>
    %19 = arith.mulf %16, %18 : vector<216x2xf32>
    %c0_20 = arith.constant 0 : index
    %c4 = arith.constant 4 : index
    %20 = vector.load %arg14[%c0_20, %c4] : memref<216x18xf32, #tpu.memory_space<vmem>>, vector<216x2xf32>
    tpu.vector_store %arg14[%c0_20, %c4], %19 {strides = array<i32>} : memref<216x18xf32, #tpu.memory_space<vmem>>, vector<216x2xf32>,
    %c18 = arith.constant 18 : index
    %c0_21 = arith.constant 0 : index
    %21 = vector.load %arg13[%c18, %c0_21] : memref<254x2xf32, #tpu.memory_space<vmem>>, vector<216x2xf32>
    %c0_22 = arith.constant 0 : index
    %c3 = arith.constant 3 : index
    %22 = vector.load %arg2[%c0_22, %c3] : memref<216x9xf32, #tpu.memory_space<vmem>>, vector<216x1xf32>
    %23 = vector.broadcast %22 : vector<216x1xf32> to vector<216x2xf32>
    %24 = arith.mulf %21, %23 : vector<216x2xf32>
    %c0_23 = arith.constant 0 : index
    %c6 = arith.constant 6 : index
    %25 = vector.load %arg14[%c0_23, %c6] : memref<216x18xf32, #tpu.memory_space<vmem>>, vector<216x2xf32>
    tpu.vector_store %arg14[%c0_23, %c6], %24 {strides = array<i32>} : memref<216x18xf32, #tpu.memory_space<vmem>>, vector<216x2xf32>,
    %c19_24 = arith.constant 19 : index
    %c0_25 = arith.constant 0 : index
    %26 = vector.load %arg13[%c19_24, %c0_25] : memref<254x2xf32, #tpu.memory_space<vmem>>, vector<216x2xf32>
    %c0_26 = arith.constant 0 : index
    %c8 = arith.constant 8 : index
    %27 = vector.load %arg14[%c0_26, %c8] : memref<216x18xf32, #tpu.memory_space<vmem>>, vector<216x2xf32>
    tpu.vector_store %arg14[%c0_26, %c8], %26 {strides = array<i32>} : memref<216x18xf32, #tpu.memory_space<vmem>>, vector<216x2xf32>,
    %c20 = arith.constant 20 : index
    %c0_27 = arith.constant 0 : index
    %28 = vector.load %arg13[%c20, %c0_27] : memref<254x2xf32, #tpu.memory_space<vmem>>, vector<216x2xf32>
    %c0_28 = arith.constant 0 : index
    %c5 = arith.constant 5 : index
    %29 = vector.load %arg2[%c0_28, %c5] : memref<216x9xf32, #tpu.memory_space<vmem>>, vector<216x1xf32>
    %30 = vector.broadcast %29 : vector<216x1xf32> to vector<216x2xf32>
    %31 = arith.mulf %28, %30 : vector<216x2xf32>
    %c0_29 = arith.constant 0 : index
    %c10 = arith.constant 10 : index
    %32 = vector.load %arg14[%c0_29, %c10] : memref<216x18xf32, #tpu.memory_space<vmem>>, vector<216x2xf32>
    tpu.vector_store %arg14[%c0_29, %c10], %31 {strides = array<i32>} : memref<216x18xf32, #tpu.memory_space<vmem>>, vector<216x2xf32>,
    %c36 = arith.constant 36 : index
    %c0_30 = arith.constant 0 : index
    %33 = vector.load %arg13[%c36, %c0_30] : memref<254x2xf32, #tpu.memory_space<vmem>>, vector<216x2xf32>
    %c0_31 = arith.constant 0 : index
    %c6_32 = arith.constant 6 : index
    %34 = vector.load %arg2[%c0_31, %c6_32] : memref<216x9xf32, #tpu.memory_space<vmem>>, vector<216x1xf32>
    %35 = vector.broadcast %34 : vector<216x1xf32> to vector<216x2xf32>
    %36 = arith.mulf %33, %35 : vector<216x2xf32>
    %c0_33 = arith.constant 0 : index
    %c12 = arith.constant 12 : index
    %37 = vector.load %arg14[%c0_33, %c12] : memref<216x18xf32, #tpu.memory_space<vmem>>, vector<216x2xf32>
    tpu.vector_store %arg14[%c0_33, %c12], %36 {strides = array<i32>} : memref<216x18xf32, #tpu.memory_space<vmem>>, vector<216x2xf32>,
    %c37 = arith.constant 37 : index
    %c0_34 = arith.constant 0 : index
    %38 = vector.load %arg13[%c37, %c0_34] : memref<254x2xf32, #tpu.memory_space<vmem>>, vector<216x2xf32>
    %c0_35 = arith.constant 0 : index
    %c7 = arith.constant 7 : index
    %39 = vector.load %arg2[%c0_35, %c7] : memref<216x9xf32, #tpu.memory_space<vmem>>, vector<216x1xf32>
    %40 = vector.broadcast %39 : vector<216x1xf32> to vector<216x2xf32>
    %41 = arith.mulf %38, %40 : vector<216x2xf32>
    %c0_36 = arith.constant 0 : index
    %c14 = arith.constant 14 : index
    %42 = vector.load %arg14[%c0_36, %c14] : memref<216x18xf32, #tpu.memory_space<vmem>>, vector<216x2xf32>
    tpu.vector_store %arg14[%c0_36, %c14], %41 {strides = array<i32>} : memref<216x18xf32, #tpu.memory_space<vmem>>, vector<216x2xf32>,
    %c38 = arith.constant 38 : index
    %c0_37 = arith.constant 0 : index
    %43 = vector.load %arg13[%c38, %c0_37] : memref<254x2xf32, #tpu.memory_space<vmem>>, vector<216x2xf32>
    %c0_38 = arith.constant 0 : index
    %c8_39 = arith.constant 8 : index
    %44 = vector.load %arg2[%c0_38, %c8_39] : memref<216x9xf32, #tpu.memory_space<vmem>>, vector<216x1xf32>
    %45 = vector.broadcast %44 : vector<216x1xf32> to vector<216x2xf32>
    %46 = arith.mulf %43, %45 : vector<216x2xf32>
    %c0_40 = arith.constant 0 : index
    %c16 = arith.constant 16 : index
    %47 = vector.load %arg14[%c0_40, %c16] : memref<216x18xf32, #tpu.memory_space<vmem>>, vector<216x2xf32>
    tpu.vector_store %arg14[%c0_40, %c16], %46 {strides = array<i32>} : memref<216x18xf32, #tpu.memory_space<vmem>>, vector<216x2xf32>,
    %c0_41 = arith.constant 0 : index
    %c0_42 = arith.constant 0 : index
    %48 = vector.load %arg14[%c0_41, %c0_42] : memref<216x18xf32, #tpu.memory_space<vmem>>, vector<216x18xf32>
    %c0_43 = arith.constant 0 : index
    %c0_44 = arith.constant 0 : index
    %49 = vector.load %arg1[%c0_43, %c0_44] : memref<18x16xbf16, #tpu.memory_space<vmem>>, vector<18x16xbf16>
    %50 = arith.extf %49 : vector<18x16xbf16> to vector<18x16xf32>
    %cst_45 = arith.constant dense<0.000000e+00> : vector<216x16xf32>
    %51 = tpu.matmul %48, %50, %cst_45 {dimension_numbers = #tpu.dot_dimension_numbers<[1], [0], [0], [1], [0, 0, 1, 1], [], []>} : vector<216x18xf32>, vector<18x16xf32>, vector<216x16xf32> -> vector<216x16xf32>
    %cst_46 = arith.constant dense<0.000000e+00> : vector<16xf32>
    %52 = vector.multi_reduction <add>, %51, %cst_46 [0] : vector<216x16xf32> to vector<16xf32>
    %53 = vector.shape_cast %52 : vector<16xf32> to vector<1x16xf32>
    %cst_47 = arith.constant 0.00462962966 : f32
    %54 = vector.broadcast %cst_47 : f32 to vector<1x16xf32>
    %55 = arith.mulf %53, %54 : vector<1x16xf32>
    %56 = arith.mulf %51, %51 : vector<216x16xf32>
    %cst_48 = arith.constant dense<0.000000e+00> : vector<16xf32>
    %57 = vector.multi_reduction <add>, %56, %cst_48 [0] : vector<216x16xf32> to vector<16xf32>
    %58 = vector.shape_cast %57 : vector<16xf32> to vector<1x16xf32>
    %cst_49 = arith.constant 0.00462962966 : f32
    %59 = vector.broadcast %cst_49 : f32 to vector<1x16xf32>
    %60 = arith.mulf %58, %59 : vector<1x16xf32>
    %61 = arith.mulf %55, %55 : vector<1x16xf32>
    %62 = arith.subf %60, %61 : vector<1x16xf32>
    %cst_50 = arith.constant 0.000000e+00 : f32
    %63 = vector.broadcast %cst_50 : f32 to vector<1x16xf32>
    %64 = arith.maximumf %62, %63 : vector<1x16xf32>
    %65 = vector.broadcast %55 : vector<1x16xf32> to vector<216x16xf32>
    %66 = arith.subf %51, %65 : vector<216x16xf32>
    %cst_51 = arith.constant 9.99999974E-6 : f32
    %67 = vector.broadcast %cst_51 : f32 to vector<1x16xf32>
    %68 = arith.addf %64, %67 : vector<1x16xf32>
    %69 = math.rsqrt %68 : vector<1x16xf32>
    %70 = vector.broadcast %69 : vector<1x16xf32> to vector<216x16xf32>
    %71 = arith.mulf %66, %70 : vector<216x16xf32>
    %cst_52 = arith.constant 0.000000e+00 : f32
    %72 = vector.broadcast %cst_52 : f32 to vector<216x16xf32>
    %73 = arith.maximumf %71, %72 : vector<216x16xf32>
    %cst_53 = arith.constant 0.000000e+00 : f32
    %74 = vector.broadcast %cst_53 : f32 to vector<11x16xf32>
    %c0_54 = arith.constant 0 : index
    %c0_55 = arith.constant 0 : index
    %75 = vector.load %arg15[%c0_54, %c0_55] : memref<102x16xf32, #tpu.memory_space<vmem>>, vector<11x16xf32>
    tpu.vector_store %arg15[%c0_54, %c0_55], %74 {strides = array<i32>} : memref<102x16xf32, #tpu.memory_space<vmem>>, vector<11x16xf32>,
    %cst_56 = arith.constant 0.000000e+00 : f32
    %76 = vector.broadcast %cst_56 : f32 to vector<11x16xf32>
    %c91 = arith.constant 91 : index
    %c0_57 = arith.constant 0 : index
    %77 = vector.load %arg15[%c91, %c0_57] : memref<102x16xf32, #tpu.memory_space<vmem>>, vector<11x16xf32>
    tpu.vector_store %arg15[%c91, %c0_57], %76 {strides = array<i32>} : memref<102x16xf32, #tpu.memory_space<vmem>>, vector<11x16xf32>,
    %c0_58 = arith.constant 0 : index
    %c0_59 = arith.constant 0 : index
    %78 = vector.load %arg3[%c0_58, %c0_59] : memref<160x108xbf16, #tpu.memory_space<vmem>>, vector<160x108xbf16>
    %79 = arith.extf %78 : vector<160x108xbf16> to vector<160x108xf32>
    %80 = vector.extract_strided_slice %73 {offsets = [0, 0], sizes = [108, 16], strides = [1, 1]} : vector<216x16xf32> to vector<108x16xf32>
    %cst_60 = arith.constant dense<0.000000e+00> : vector<160x16xf32>
    %81 = tpu.matmul %79, %80, %cst_60 {dimension_numbers = #tpu.dot_dimension_numbers<[1], [0], [0], [1], [0, 0, 1, 1], [], []>} : vector<160x108xf32>, vector<108x16xf32>, vector<160x16xf32> -> vector<160x16xf32>
    %82 = vector.extract_strided_slice %81 {offsets = [0, 0], sizes = [40, 16], strides = [1, 1]} : vector<160x16xf32> to vector<40x16xf32>
    %83 = vector.extract_strided_slice %81 {offsets = [40, 0], sizes = [40, 16], strides = [1, 1]} : vector<160x16xf32> to vector<40x16xf32>
    %84 = arith.maximumf %82, %83 : vector<40x16xf32>
    %85 = vector.extract_strided_slice %81 {offsets = [80, 0], sizes = [40, 16], strides = [1, 1]} : vector<160x16xf32> to vector<40x16xf32>
    %86 = vector.extract_strided_slice %81 {offsets = [120, 0], sizes = [40, 16], strides = [1, 1]} : vector<160x16xf32> to vector<40x16xf32>
    %87 = arith.maximumf %85, %86 : vector<40x16xf32>
    %88 = arith.maximumf %84, %87 : vector<40x16xf32>
    %c11 = arith.constant 11 : index
    %c0_61 = arith.constant 0 : index
    %89 = vector.load %arg15[%c11, %c0_61] : memref<102x16xf32, #tpu.memory_space<vmem>>, vector<40x16xf32>
    tpu.vector_store %arg15[%c11, %c0_61], %88 {strides = array<i32>} : memref<102x16xf32, #tpu.memory_space<vmem>>, vector<40x16xf32>,
    %90 = vector.extract_strided_slice %73 {offsets = [108, 0], sizes = [108, 16], strides = [1, 1]} : vector<216x16xf32> to vector<108x16xf32>
    %cst_62 = arith.constant dense<0.000000e+00> : vector<160x16xf32>
    %91 = tpu.matmul %79, %90, %cst_62 {dimension_numbers = #tpu.dot_dimension_numbers<[1], [0], [0], [1], [0, 0, 1, 1], [], []>} : vector<160x108xf32>, vector<108x16xf32>, vector<160x16xf32> -> vector<160x16xf32>
    %92 = vector.extract_strided_slice %91 {offsets = [0, 0], sizes = [40, 16], strides = [1, 1]} : vector<160x16xf32> to vector<40x16xf32>
    %93 = vector.extract_strided_slice %91 {offsets = [40, 0], sizes = [40, 16], strides = [1, 1]} : vector<160x16xf32> to vector<40x16xf32>
    %94 = arith.maximumf %92, %93 : vector<40x16xf32>
    %95 = vector.extract_strided_slice %91 {offsets = [80, 0], sizes = [40, 16], strides = [1, 1]} : vector<160x16xf32> to vector<40x16xf32>
    %96 = vector.extract_strided_slice %91 {offsets = [120, 0], sizes = [40, 16], strides = [1, 1]} : vector<160x16xf32> to vector<40x16xf32>
    %97 = arith.maximumf %95, %96 : vector<40x16xf32>
    %98 = arith.maximumf %94, %97 : vector<40x16xf32>
    %c51 = arith.constant 51 : index
    %c0_63 = arith.constant 0 : index
    %99 = vector.load %arg15[%c51, %c0_63] : memref<102x16xf32, #tpu.memory_space<vmem>>, vector<40x16xf32>
    tpu.vector_store %arg15[%c51, %c0_63], %98 {strides = array<i32>} : memref<102x16xf32, #tpu.memory_space<vmem>>, vector<40x16xf32>,
    %c0_64 = arith.constant 0 : index
    %c0_65 = arith.constant 0 : index
    %100 = vector.load %arg15[%c0_64, %c0_65] : memref<102x16xf32, #tpu.memory_space<vmem>>, vector<80x16xf32>
    %c0_66 = arith.constant 0 : index
    %c0_67 = arith.constant 0 : index
    %101 = vector.load %arg5[%c0_66, %c0_67] : memref<80x9xf32, #tpu.memory_space<vmem>>, vector<80x1xf32>
    %102 = vector.broadcast %101 : vector<80x1xf32> to vector<80x16xf32>
    %103 = arith.mulf %100, %102 : vector<80x16xf32>
    %c0_68 = arith.constant 0 : index
    %c0_69 = arith.constant 0 : index
    %104 = vector.load %arg16[%c0_68, %c0_69] : memref<80x144xf32, #tpu.memory_space<vmem>>, vector<80x16xf32>
    tpu.vector_store %arg16[%c0_68, %c0_69], %103 {strides = array<i32>} : memref<80x144xf32, #tpu.memory_space<vmem>>, vector<80x16xf32>,
    %c1_70 = arith.constant 1 : index
    %c0_71 = arith.constant 0 : index
    %105 = vector.load %arg15[%c1_70, %c0_71] : memref<102x16xf32, #tpu.memory_space<vmem>>, vector<80x16xf32>
    %c0_72 = arith.constant 0 : index
    %c1_73 = arith.constant 1 : index
    %106 = vector.load %arg5[%c0_72, %c1_73] : memref<80x9xf32, #tpu.memory_space<vmem>>, vector<80x1xf32>
    %107 = vector.broadcast %106 : vector<80x1xf32> to vector<80x16xf32>
    %108 = arith.mulf %105, %107 : vector<80x16xf32>
    %c0_74 = arith.constant 0 : index
    %c16_75 = arith.constant 16 : index
    %109 = vector.load %arg16[%c0_74, %c16_75] : memref<80x144xf32, #tpu.memory_space<vmem>>, vector<80x16xf32>
    tpu.vector_store %arg16[%c0_74, %c16_75], %108 {strides = array<i32>} : memref<80x144xf32, #tpu.memory_space<vmem>>, vector<80x16xf32>,
    %c2_76 = arith.constant 2 : index
    %c0_77 = arith.constant 0 : index
    %110 = vector.load %arg15[%c2_76, %c0_77] : memref<102x16xf32, #tpu.memory_space<vmem>>, vector<80x16xf32>
    %c0_78 = arith.constant 0 : index
    %c2_79 = arith.constant 2 : index
    %111 = vector.load %arg5[%c0_78, %c2_79] : memref<80x9xf32, #tpu.memory_space<vmem>>, vector<80x1xf32>
    %112 = vector.broadcast %111 : vector<80x1xf32> to vector<80x16xf32>
    %113 = arith.mulf %110, %112 : vector<80x16xf32>
    %c0_80 = arith.constant 0 : index
    %c32 = arith.constant 32 : index
    %114 = vector.load %arg16[%c0_80, %c32] : memref<80x144xf32, #tpu.memory_space<vmem>>, vector<80x16xf32>
    tpu.vector_store %arg16[%c0_80, %c32], %113 {strides = array<i32>} : memref<80x144xf32, #tpu.memory_space<vmem>>, vector<80x16xf32>,
    %c10_81 = arith.constant 10 : index
    %c0_82 = arith.constant 0 : index
    %115 = vector.load %arg15[%c10_81, %c0_82] : memref<102x16xf32, #tpu.memory_space<vmem>>, vector<80x16xf32>
    %c0_83 = arith.constant 0 : index
    %c3_84 = arith.constant 3 : index
    %116 = vector.load %arg5[%c0_83, %c3_84] : memref<80x9xf32, #tpu.memory_space<vmem>>, vector<80x1xf32>
    %117 = vector.broadcast %116 : vector<80x1xf32> to vector<80x16xf32>
    %118 = arith.mulf %115, %117 : vector<80x16xf32>
    %c0_85 = arith.constant 0 : index
    %c48 = arith.constant 48 : index
    %119 = vector.load %arg16[%c0_85, %c48] : memref<80x144xf32, #tpu.memory_space<vmem>>, vector<80x16xf32>
    tpu.vector_store %arg16[%c0_85, %c48], %118 {strides = array<i32>} : memref<80x144xf32, #tpu.memory_space<vmem>>, vector<80x16xf32>,
    %c11_86 = arith.constant 11 : index
    %c0_87 = arith.constant 0 : index
    %120 = vector.load %arg15[%c11_86, %c0_87] : memref<102x16xf32, #tpu.memory_space<vmem>>, vector<80x16xf32>
    %c0_88 = arith.constant 0 : index
    %c64 = arith.constant 64 : index
    %121 = vector.load %arg16[%c0_88, %c64] : memref<80x144xf32, #tpu.memory_space<vmem>>, vector<80x16xf32>
    tpu.vector_store %arg16[%c0_88, %c64], %120 {strides = array<i32>} : memref<80x144xf32, #tpu.memory_space<vmem>>, vector<80x16xf32>,
    %c12_89 = arith.constant 12 : index
    %c0_90 = arith.constant 0 : index
    %122 = vector.load %arg15[%c12_89, %c0_90] : memref<102x16xf32, #tpu.memory_space<vmem>>, vector<80x16xf32>
    %c0_91 = arith.constant 0 : index
    %c5_92 = arith.constant 5 : index
    %123 = vector.load %arg5[%c0_91, %c5_92] : memref<80x9xf32, #tpu.memory_space<vmem>>, vector<80x1xf32>
    %124 = vector.broadcast %123 : vector<80x1xf32> to vector<80x16xf32>
    %125 = arith.mulf %122, %124 : vector<80x16xf32>
    %c0_93 = arith.constant 0 : index
    %c80 = arith.constant 80 : index
    %126 = vector.load %arg16[%c0_93, %c80] : memref<80x144xf32, #tpu.memory_space<vmem>>, vector<80x16xf32>
    tpu.vector_store %arg16[%c0_93, %c80], %125 {strides = array<i32>} : memref<80x144xf32, #tpu.memory_space<vmem>>, vector<80x16xf32>,
    %c20_94 = arith.constant 20 : index
    %c0_95 = arith.constant 0 : index
    %127 = vector.load %arg15[%c20_94, %c0_95] : memref<102x16xf32, #tpu.memory_space<vmem>>, vector<80x16xf32>
    %c0_96 = arith.constant 0 : index
    %c6_97 = arith.constant 6 : index
    %128 = vector.load %arg5[%c0_96, %c6_97] : memref<80x9xf32, #tpu.memory_space<vmem>>, vector<80x1xf32>
    %129 = vector.broadcast %128 : vector<80x1xf32> to vector<80x16xf32>
    %130 = arith.mulf %127, %129 : vector<80x16xf32>
    %c0_98 = arith.constant 0 : index
    %c96 = arith.constant 96 : index
    %131 = vector.load %arg16[%c0_98, %c96] : memref<80x144xf32, #tpu.memory_space<vmem>>, vector<80x16xf32>
    tpu.vector_store %arg16[%c0_98, %c96], %130 {strides = array<i32>} : memref<80x144xf32, #tpu.memory_space<vmem>>, vector<80x16xf32>,
    %c21 = arith.constant 21 : index
    %c0_99 = arith.constant 0 : index
    %132 = vector.load %arg15[%c21, %c0_99] : memref<102x16xf32, #tpu.memory_space<vmem>>, vector<80x16xf32>
    %c0_100 = arith.constant 0 : index
    %c7_101 = arith.constant 7 : index
    %133 = vector.load %arg5[%c0_100, %c7_101] : memref<80x9xf32, #tpu.memory_space<vmem>>, vector<80x1xf32>
    %134 = vector.broadcast %133 : vector<80x1xf32> to vector<80x16xf32>
    %135 = arith.mulf %132, %134 : vector<80x16xf32>
    %c0_102 = arith.constant 0 : index
    %c112 = arith.constant 112 : index
    %136 = vector.load %arg16[%c0_102, %c112] : memref<80x144xf32, #tpu.memory_space<vmem>>, vector<80x16xf32>
    tpu.vector_store %arg16[%c0_102, %c112], %135 {strides = array<i32>} : memref<80x144xf32, #tpu.memory_space<vmem>>, vector<80x16xf32>,
    %c22 = arith.constant 22 : index
    %c0_103 = arith.constant 0 : index
    %137 = vector.load %arg15[%c22, %c0_103] : memref<102x16xf32, #tpu.memory_space<vmem>>, vector<80x16xf32>
    %c0_104 = arith.constant 0 : index
    %c8_105 = arith.constant 8 : index
    %138 = vector.load %arg5[%c0_104, %c8_105] : memref<80x9xf32, #tpu.memory_space<vmem>>, vector<80x1xf32>
    %139 = vector.broadcast %138 : vector<80x1xf32> to vector<80x16xf32>
    %140 = arith.mulf %137, %139 : vector<80x16xf32>
    %c0_106 = arith.constant 0 : index
    %c128 = arith.constant 128 : index
    %141 = vector.load %arg16[%c0_106, %c128] : memref<80x144xf32, #tpu.memory_space<vmem>>, vector<80x16xf32>
    tpu.vector_store %arg16[%c0_106, %c128], %140 {strides = array<i32>} : memref<80x144xf32, #tpu.memory_space<vmem>>, vector<80x16xf32>,
    %c0_107 = arith.constant 0 : index
    %c0_108 = arith.constant 0 : index
    %142 = vector.load %arg16[%c0_107, %c0_108] : memref<80x144xf32, #tpu.memory_space<vmem>>, vector<80x144xf32>
    %c0_109 = arith.constant 0 : index
    %c0_110 = arith.constant 0 : index
    %143 = vector.load %arg4[%c0_109, %c0_110] : memref<144x32xbf16, #tpu.memory_space<vmem>>, vector<144x32xbf16>
    %144 = arith.extf %143 : vector<144x32xbf16> to vector<144x32xf32>
    %cst_111 = arith.constant dense<0.000000e+00> : vector<80x32xf32>
    %145 = tpu.matmul %142, %144, %cst_111 {dimension_numbers = #tpu.dot_dimension_numbers<[1], [0], [0], [1], [0, 0, 1, 1], [], []>} : vector<80x144xf32>, vector<144x32xf32>, vector<80x32xf32> -> vector<80x32xf32>
    %cst_112 = arith.constant dense<0.000000e+00> : vector<32xf32>
    %146 = vector.multi_reduction <add>, %145, %cst_112 [0] : vector<80x32xf32> to vector<32xf32>
    %147 = vector.shape_cast %146 : vector<32xf32> to vector<1x32xf32>
    %cst_113 = arith.constant 1.250000e-02 : f32
    %148 = vector.broadcast %cst_113 : f32 to vector<1x32xf32>
    %149 = arith.mulf %147, %148 : vector<1x32xf32>
    %150 = arith.mulf %145, %145 : vector<80x32xf32>
    %cst_114 = arith.constant dense<0.000000e+00> : vector<32xf32>
    %151 = vector.multi_reduction <add>, %150, %cst_114 [0] : vector<80x32xf32> to vector<32xf32>
    %152 = vector.shape_cast %151 : vector<32xf32> to vector<1x32xf32>
    %cst_115 = arith.constant 1.250000e-02 : f32
    %153 = vector.broadcast %cst_115 : f32 to vector<1x32xf32>
    %154 = arith.mulf %152, %153 : vector<1x32xf32>
    %155 = arith.mulf %149, %149 : vector<1x32xf32>
    %156 = arith.subf %154, %155 : vector<1x32xf32>
    %cst_116 = arith.constant 0.000000e+00 : f32
    %157 = vector.broadcast %cst_116 : f32 to vector<1x32xf32>
    %158 = arith.maximumf %156, %157 : vector<1x32xf32>
    %159 = vector.broadcast %149 : vector<1x32xf32> to vector<80x32xf32>
    %160 = arith.subf %145, %159 : vector<80x32xf32>
    %cst_117 = arith.constant 9.99999974E-6 : f32
    %161 = vector.broadcast %cst_117 : f32 to vector<1x32xf32>
    %162 = arith.addf %158, %161 : vector<1x32xf32>
    %163 = math.rsqrt %162 : vector<1x32xf32>
    %164 = vector.broadcast %163 : vector<1x32xf32> to vector<80x32xf32>
    %165 = arith.mulf %160, %164 : vector<80x32xf32>
    %cst_118 = arith.constant 0.000000e+00 : f32
    %166 = vector.broadcast %cst_118 : f32 to vector<80x32xf32>
    %167 = arith.maximumf %165, %166 : vector<80x32xf32>
    %cst_119 = arith.constant 0.000000e+00 : f32
    %168 = vector.broadcast %cst_119 : f32 to vector<7x32xf32>
    %c0_120 = arith.constant 0 : index
    %c0_121 = arith.constant 0 : index
    %169 = vector.load %arg17[%c0_120, %c0_121] : memref<50x32xf32, #tpu.memory_space<vmem>>, vector<7x32xf32>
    tpu.vector_store %arg17[%c0_120, %c0_121], %168 {strides = array<i32>} : memref<50x32xf32, #tpu.memory_space<vmem>>, vector<7x32xf32>,
    %cst_122 = arith.constant 0.000000e+00 : f32
    %170 = vector.broadcast %cst_122 : f32 to vector<7x32xf32>
    %c43 = arith.constant 43 : index
    %c0_123 = arith.constant 0 : index
    %171 = vector.load %arg17[%c43, %c0_123] : memref<50x32xf32, #tpu.memory_space<vmem>>, vector<7x32xf32>
    tpu.vector_store %arg17[%c43, %c0_123], %170 {strides = array<i32>} : memref<50x32xf32, #tpu.memory_space<vmem>>, vector<7x32xf32>,
    %c0_124 = arith.constant 0 : index
    %c0_125 = arith.constant 0 : index
    %172 = vector.load %arg6[%c0_124, %c0_125] : memref<72x40xbf16, #tpu.memory_space<vmem>>, vector<72x40xbf16>
    %173 = arith.extf %172 : vector<72x40xbf16> to vector<72x40xf32>
    %174 = vector.extract_strided_slice %167 {offsets = [0, 0], sizes = [40, 32], strides = [1, 1]} : vector<80x32xf32> to vector<40x32xf32>
    %cst_126 = arith.constant dense<0.000000e+00> : vector<72x32xf32>
    %175 = tpu.matmul %173, %174, %cst_126 {dimension_numbers = #tpu.dot_dimension_numbers<[1], [0], [0], [1], [0, 0, 1, 1], [], []>} : vector<72x40xf32>, vector<40x32xf32>, vector<72x32xf32> -> vector<72x32xf32>
    %176 = vector.extract_strided_slice %175 {offsets = [0, 0], sizes = [18, 32], strides = [1, 1]} : vector<72x32xf32> to vector<18x32xf32>
    %177 = vector.extract_strided_slice %175 {offsets = [18, 0], sizes = [18, 32], strides = [1, 1]} : vector<72x32xf32> to vector<18x32xf32>
    %178 = arith.maximumf %176, %177 : vector<18x32xf32>
    %179 = vector.extract_strided_slice %175 {offsets = [36, 0], sizes = [18, 32], strides = [1, 1]} : vector<72x32xf32> to vector<18x32xf32>
    %180 = vector.extract_strided_slice %175 {offsets = [54, 0], sizes = [18, 32], strides = [1, 1]} : vector<72x32xf32> to vector<18x32xf32>
    %181 = arith.maximumf %179, %180 : vector<18x32xf32>
    %182 = arith.maximumf %178, %181 : vector<18x32xf32>
    %c7_127 = arith.constant 7 : index
    %c0_128 = arith.constant 0 : index
    %183 = vector.load %arg17[%c7_127, %c0_128] : memref<50x32xf32, #tpu.memory_space<vmem>>, vector<18x32xf32>
    tpu.vector_store %arg17[%c7_127, %c0_128], %182 {strides = array<i32>} : memref<50x32xf32, #tpu.memory_space<vmem>>, vector<18x32xf32>,
    %184 = vector.extract_strided_slice %167 {offsets = [40, 0], sizes = [40, 32], strides = [1, 1]} : vector<80x32xf32> to vector<40x32xf32>
    %cst_129 = arith.constant dense<0.000000e+00> : vector<72x32xf32>
    %185 = tpu.matmul %173, %184, %cst_129 {dimension_numbers = #tpu.dot_dimension_numbers<[1], [0], [0], [1], [0, 0, 1, 1], [], []>} : vector<72x40xf32>, vector<40x32xf32>, vector<72x32xf32> -> vector<72x32xf32>
    %186 = vector.extract_strided_slice %185 {offsets = [0, 0], sizes = [18, 32], strides = [1, 1]} : vector<72x32xf32> to vector<18x32xf32>
    %187 = vector.extract_strided_slice %185 {offsets = [18, 0], sizes = [18, 32], strides = [1, 1]} : vector<72x32xf32> to vector<18x32xf32>
    %188 = arith.maximumf %186, %187 : vector<18x32xf32>
    %189 = vector.extract_strided_slice %185 {offsets = [36, 0], sizes = [18, 32], strides = [1, 1]} : vector<72x32xf32> to vector<18x32xf32>
    %190 = vector.extract_strided_slice %185 {offsets = [54, 0], sizes = [18, 32], strides = [1, 1]} : vector<72x32xf32> to vector<18x32xf32>
    %191 = arith.maximumf %189, %190 : vector<18x32xf32>
    %192 = arith.maximumf %188, %191 : vector<18x32xf32>
    %c25 = arith.constant 25 : index
    %c0_130 = arith.constant 0 : index
    %193 = vector.load %arg17[%c25, %c0_130] : memref<50x32xf32, #tpu.memory_space<vmem>>, vector<18x32xf32>
    tpu.vector_store %arg17[%c25, %c0_130], %192 {strides = array<i32>} : memref<50x32xf32, #tpu.memory_space<vmem>>, vector<18x32xf32>,
    %c0_131 = arith.constant 0 : index
    %c0_132 = arith.constant 0 : index
    %194 = vector.load %arg17[%c0_131, %c0_132] : memref<50x32xf32, #tpu.memory_space<vmem>>, vector<36x32xf32>
    %c0_133 = arith.constant 0 : index
    %c0_134 = arith.constant 0 : index
    %195 = vector.load %arg8[%c0_133, %c0_134] : memref<36x9xf32, #tpu.memory_space<vmem>>, vector<36x1xf32>
    %196 = vector.broadcast %195 : vector<36x1xf32> to vector<36x32xf32>
    %197 = arith.mulf %194, %196 : vector<36x32xf32>
    %c0_135 = arith.constant 0 : index
    %c0_136 = arith.constant 0 : index
    %198 = vector.load %arg18[%c0_135, %c0_136] : memref<36x288xf32, #tpu.memory_space<vmem>>, vector<36x32xf32>
    tpu.vector_store %arg18[%c0_135, %c0_136], %197 {strides = array<i32>} : memref<36x288xf32, #tpu.memory_space<vmem>>, vector<36x32xf32>,
    %c1_137 = arith.constant 1 : index
    %c0_138 = arith.constant 0 : index
    %199 = vector.load %arg17[%c1_137, %c0_138] : memref<50x32xf32, #tpu.memory_space<vmem>>, vector<36x32xf32>
    %c0_139 = arith.constant 0 : index
    %c1_140 = arith.constant 1 : index
    %200 = vector.load %arg8[%c0_139, %c1_140] : memref<36x9xf32, #tpu.memory_space<vmem>>, vector<36x1xf32>
    %201 = vector.broadcast %200 : vector<36x1xf32> to vector<36x32xf32>
    %202 = arith.mulf %199, %201 : vector<36x32xf32>
    %c0_141 = arith.constant 0 : index
    %c32_142 = arith.constant 32 : index
    %203 = vector.load %arg18[%c0_141, %c32_142] : memref<36x288xf32, #tpu.memory_space<vmem>>, vector<36x32xf32>
    tpu.vector_store %arg18[%c0_141, %c32_142], %202 {strides = array<i32>} : memref<36x288xf32, #tpu.memory_space<vmem>>, vector<36x32xf32>,
    %c2_143 = arith.constant 2 : index
    %c0_144 = arith.constant 0 : index
    %204 = vector.load %arg17[%c2_143, %c0_144] : memref<50x32xf32, #tpu.memory_space<vmem>>, vector<36x32xf32>
    %c0_145 = arith.constant 0 : index
    %c2_146 = arith.constant 2 : index
    %205 = vector.load %arg8[%c0_145, %c2_146] : memref<36x9xf32, #tpu.memory_space<vmem>>, vector<36x1xf32>
    %206 = vector.broadcast %205 : vector<36x1xf32> to vector<36x32xf32>
    %207 = arith.mulf %204, %206 : vector<36x32xf32>
    %c0_147 = arith.constant 0 : index
    %c64_148 = arith.constant 64 : index
    %208 = vector.load %arg18[%c0_147, %c64_148] : memref<36x288xf32, #tpu.memory_space<vmem>>, vector<36x32xf32>
    tpu.vector_store %arg18[%c0_147, %c64_148], %207 {strides = array<i32>} : memref<36x288xf32, #tpu.memory_space<vmem>>, vector<36x32xf32>,
    %c6_149 = arith.constant 6 : index
    %c0_150 = arith.constant 0 : index
    %209 = vector.load %arg17[%c6_149, %c0_150] : memref<50x32xf32, #tpu.memory_space<vmem>>, vector<36x32xf32>
    %c0_151 = arith.constant 0 : index
    %c3_152 = arith.constant 3 : index
    %210 = vector.load %arg8[%c0_151, %c3_152] : memref<36x9xf32, #tpu.memory_space<vmem>>, vector<36x1xf32>
    %211 = vector.broadcast %210 : vector<36x1xf32> to vector<36x32xf32>
    %212 = arith.mulf %209, %211 : vector<36x32xf32>
    %c0_153 = arith.constant 0 : index
    %c96_154 = arith.constant 96 : index
    %213 = vector.load %arg18[%c0_153, %c96_154] : memref<36x288xf32, #tpu.memory_space<vmem>>, vector<36x32xf32>
    tpu.vector_store %arg18[%c0_153, %c96_154], %212 {strides = array<i32>} : memref<36x288xf32, #tpu.memory_space<vmem>>, vector<36x32xf32>,
    %c7_155 = arith.constant 7 : index
    %c0_156 = arith.constant 0 : index
    %214 = vector.load %arg17[%c7_155, %c0_156] : memref<50x32xf32, #tpu.memory_space<vmem>>, vector<36x32xf32>
    %c0_157 = arith.constant 0 : index
    %c128_158 = arith.constant 128 : index
    %215 = vector.load %arg18[%c0_157, %c128_158] : memref<36x288xf32, #tpu.memory_space<vmem>>, vector<36x32xf32>
    tpu.vector_store %arg18[%c0_157, %c128_158], %214 {strides = array<i32>} : memref<36x288xf32, #tpu.memory_space<vmem>>, vector<36x32xf32>,
    %c8_159 = arith.constant 8 : index
    %c0_160 = arith.constant 0 : index
    %216 = vector.load %arg17[%c8_159, %c0_160] : memref<50x32xf32, #tpu.memory_space<vmem>>, vector<36x32xf32>
    %c0_161 = arith.constant 0 : index
    %c5_162 = arith.constant 5 : index
    %217 = vector.load %arg8[%c0_161, %c5_162] : memref<36x9xf32, #tpu.memory_space<vmem>>, vector<36x1xf32>
    %218 = vector.broadcast %217 : vector<36x1xf32> to vector<36x32xf32>
    %219 = arith.mulf %216, %218 : vector<36x32xf32>
    %c0_163 = arith.constant 0 : index
    %c160 = arith.constant 160 : index
    %220 = vector.load %arg18[%c0_163, %c160] : memref<36x288xf32, #tpu.memory_space<vmem>>, vector<36x32xf32>
    tpu.vector_store %arg18[%c0_163, %c160], %219 {strides = array<i32>} : memref<36x288xf32, #tpu.memory_space<vmem>>, vector<36x32xf32>,
    %c12_164 = arith.constant 12 : index
    %c0_165 = arith.constant 0 : index
    %221 = vector.load %arg17[%c12_164, %c0_165] : memref<50x32xf32, #tpu.memory_space<vmem>>, vector<36x32xf32>
    %c0_166 = arith.constant 0 : index
    %c6_167 = arith.constant 6 : index
    %222 = vector.load %arg8[%c0_166, %c6_167] : memref<36x9xf32, #tpu.memory_space<vmem>>, vector<36x1xf32>
    %223 = vector.broadcast %222 : vector<36x1xf32> to vector<36x32xf32>
    %224 = arith.mulf %221, %223 : vector<36x32xf32>
    %c0_168 = arith.constant 0 : index
    %c192 = arith.constant 192 : index
    %225 = vector.load %arg18[%c0_168, %c192] : memref<36x288xf32, #tpu.memory_space<vmem>>, vector<36x32xf32>
    tpu.vector_store %arg18[%c0_168, %c192], %224 {strides = array<i32>} : memref<36x288xf32, #tpu.memory_space<vmem>>, vector<36x32xf32>,
    %c13 = arith.constant 13 : index
    %c0_169 = arith.constant 0 : index
    %226 = vector.load %arg17[%c13, %c0_169] : memref<50x32xf32, #tpu.memory_space<vmem>>, vector<36x32xf32>
    %c0_170 = arith.constant 0 : index
    %c7_171 = arith.constant 7 : index
    %227 = vector.load %arg8[%c0_170, %c7_171] : memref<36x9xf32, #tpu.memory_space<vmem>>, vector<36x1xf32>
    %228 = vector.broadcast %227 : vector<36x1xf32> to vector<36x32xf32>
    %229 = arith.mulf %226, %228 : vector<36x32xf32>
    %c0_172 = arith.constant 0 : index
    %c224 = arith.constant 224 : index
    %230 = vector.load %arg18[%c0_172, %c224] : memref<36x288xf32, #tpu.memory_space<vmem>>, vector<36x32xf32>
    tpu.vector_store %arg18[%c0_172, %c224], %229 {strides = array<i32>} : memref<36x288xf32, #tpu.memory_space<vmem>>, vector<36x32xf32>,
    %c14_173 = arith.constant 14 : index
    %c0_174 = arith.constant 0 : index
    %231 = vector.load %arg17[%c14_173, %c0_174] : memref<50x32xf32, #tpu.memory_space<vmem>>, vector<36x32xf32>
    %c0_175 = arith.constant 0 : index
    %c8_176 = arith.constant 8 : index
    %232 = vector.load %arg8[%c0_175, %c8_176] : memref<36x9xf32, #tpu.memory_space<vmem>>, vector<36x1xf32>
    %233 = vector.broadcast %232 : vector<36x1xf32> to vector<36x32xf32>
    %234 = arith.mulf %231, %233 : vector<36x32xf32>
    %c0_177 = arith.constant 0 : index
    %c256 = arith.constant 256 : index
    %235 = vector.load %arg18[%c0_177, %c256] : memref<36x288xf32, #tpu.memory_space<vmem>>, vector<36x32xf32>
    tpu.vector_store %arg18[%c0_177, %c256], %234 {strides = array<i32>} : memref<36x288xf32, #tpu.memory_space<vmem>>, vector<36x32xf32>,
    %c0_178 = arith.constant 0 : index
    %c0_179 = arith.constant 0 : index
    %236 = vector.load %arg18[%c0_178, %c0_179] : memref<36x288xf32, #tpu.memory_space<vmem>>, vector<36x288xf32>
    %c0_180 = arith.constant 0 : index
    %c0_181 = arith.constant 0 : index
    %237 = vector.load %arg7[%c0_180, %c0_181] : memref<288x64xbf16, #tpu.memory_space<vmem>>, vector<288x64xbf16>
    %238 = arith.extf %237 : vector<288x64xbf16> to vector<288x64xf32>
    %cst_182 = arith.constant dense<0.000000e+00> : vector<36x64xf32>
    %239 = tpu.matmul %236, %238, %cst_182 {dimension_numbers = #tpu.dot_dimension_numbers<[1], [0], [0], [1], [0, 0, 1, 1], [], []>} : vector<36x288xf32>, vector<288x64xf32>, vector<36x64xf32> -> vector<36x64xf32>
    %cst_183 = arith.constant dense<0.000000e+00> : vector<64xf32>
    %240 = vector.multi_reduction <add>, %239, %cst_183 [0] : vector<36x64xf32> to vector<64xf32>
    %241 = vector.shape_cast %240 : vector<64xf32> to vector<1x64xf32>
    %cst_184 = arith.constant 0.027777778 : f32
    %242 = vector.broadcast %cst_184 : f32 to vector<1x64xf32>
    %243 = arith.mulf %241, %242 : vector<1x64xf32>
    %244 = arith.mulf %239, %239 : vector<36x64xf32>
    %cst_185 = arith.constant dense<0.000000e+00> : vector<64xf32>
    %245 = vector.multi_reduction <add>, %244, %cst_185 [0] : vector<36x64xf32> to vector<64xf32>
    %246 = vector.shape_cast %245 : vector<64xf32> to vector<1x64xf32>
    %cst_186 = arith.constant 0.027777778 : f32
    %247 = vector.broadcast %cst_186 : f32 to vector<1x64xf32>
    %248 = arith.mulf %246, %247 : vector<1x64xf32>
    %249 = arith.mulf %243, %243 : vector<1x64xf32>
    %250 = arith.subf %248, %249 : vector<1x64xf32>
    %cst_187 = arith.constant 0.000000e+00 : f32
    %251 = vector.broadcast %cst_187 : f32 to vector<1x64xf32>
    %252 = arith.maximumf %250, %251 : vector<1x64xf32>
    %253 = vector.broadcast %243 : vector<1x64xf32> to vector<36x64xf32>
    %254 = arith.subf %239, %253 : vector<36x64xf32>
    %cst_188 = arith.constant 9.99999974E-6 : f32
    %255 = vector.broadcast %cst_188 : f32 to vector<1x64xf32>
    %256 = arith.addf %252, %255 : vector<1x64xf32>
    %257 = math.rsqrt %256 : vector<1x64xf32>
    %258 = vector.broadcast %257 : vector<1x64xf32> to vector<36x64xf32>
    %259 = arith.mulf %254, %258 : vector<36x64xf32>
    %cst_189 = arith.constant 0.000000e+00 : f32
    %260 = vector.broadcast %cst_189 : f32 to vector<36x64xf32>
    %261 = arith.maximumf %259, %260 : vector<36x64xf32>
    %262 = vector.extract_strided_slice %261 {offsets = [0, 0], sizes = [1, 64], strides = [1, 1]} : vector<36x64xf32> to vector<1x64xf32>
    %c0_190 = arith.constant 0 : index
    %c0_191 = arith.constant 0 : index
    %263 = vector.load %arg19[%c0_190, %c0_191] : memref<2x1152xf32, #tpu.memory_space<vmem>>, vector<1x64xf32>
    tpu.vector_store %arg19[%c0_190, %c0_191], %262 {strides = array<i32>} : memref<2x1152xf32, #tpu.memory_space<vmem>>, vector<1x64xf32>,
    %264 = vector.extract_strided_slice %261 {offsets = [1, 0], sizes = [1, 64], strides = [1, 1]} : vector<36x64xf32> to vector<1x64xf32>
    %c0_192 = arith.constant 0 : index
    %c64_193 = arith.constant 64 : index
    %265 = vector.load %arg19[%c0_192, %c64_193] : memref<2x1152xf32, #tpu.memory_space<vmem>>, vector<1x64xf32>
    tpu.vector_store %arg19[%c0_192, %c64_193], %264 {strides = array<i32>} : memref<2x1152xf32, #tpu.memory_space<vmem>>, vector<1x64xf32>,
    %266 = vector.extract_strided_slice %261 {offsets = [2, 0], sizes = [1, 64], strides = [1, 1]} : vector<36x64xf32> to vector<1x64xf32>
    %c0_194 = arith.constant 0 : index
    %c128_195 = arith.constant 128 : index
    %267 = vector.load %arg19[%c0_194, %c128_195] : memref<2x1152xf32, #tpu.memory_space<vmem>>, vector<1x64xf32>
    tpu.vector_store %arg19[%c0_194, %c128_195], %266 {strides = array<i32>} : memref<2x1152xf32, #tpu.memory_space<vmem>>, vector<1x64xf32>,
    %268 = vector.extract_strided_slice %261 {offsets = [3, 0], sizes = [1, 64], strides = [1, 1]} : vector<36x64xf32> to vector<1x64xf32>
    %c0_196 = arith.constant 0 : index
    %c192_197 = arith.constant 192 : index
    %269 = vector.load %arg19[%c0_196, %c192_197] : memref<2x1152xf32, #tpu.memory_space<vmem>>, vector<1x64xf32>
    tpu.vector_store %arg19[%c0_196, %c192_197], %268 {strides = array<i32>} : memref<2x1152xf32, #tpu.memory_space<vmem>>, vector<1x64xf32>,
    %270 = vector.extract_strided_slice %261 {offsets = [4, 0], sizes = [1, 64], strides = [1, 1]} : vector<36x64xf32> to vector<1x64xf32>
    %c0_198 = arith.constant 0 : index
    %c256_199 = arith.constant 256 : index
    %271 = vector.load %arg19[%c0_198, %c256_199] : memref<2x1152xf32, #tpu.memory_space<vmem>>, vector<1x64xf32>
    tpu.vector_store %arg19[%c0_198, %c256_199], %270 {strides = array<i32>} : memref<2x1152xf32, #tpu.memory_space<vmem>>, vector<1x64xf32>,
    %272 = vector.extract_strided_slice %261 {offsets = [5, 0], sizes = [1, 64], strides = [1, 1]} : vector<36x64xf32> to vector<1x64xf32>
    %c0_200 = arith.constant 0 : index
    %c320 = arith.constant 320 : index
    %273 = vector.load %arg19[%c0_200, %c320] : memref<2x1152xf32, #tpu.memory_space<vmem>>, vector<1x64xf32>
    tpu.vector_store %arg19[%c0_200, %c320], %272 {strides = array<i32>} : memref<2x1152xf32, #tpu.memory_space<vmem>>, vector<1x64xf32>,
    %274 = vector.extract_strided_slice %261 {offsets = [6, 0], sizes = [1, 64], strides = [1, 1]} : vector<36x64xf32> to vector<1x64xf32>
    %c0_201 = arith.constant 0 : index
    %c384 = arith.constant 384 : index
    %275 = vector.load %arg19[%c0_201, %c384] : memref<2x1152xf32, #tpu.memory_space<vmem>>, vector<1x64xf32>
    tpu.vector_store %arg19[%c0_201, %c384], %274 {strides = array<i32>} : memref<2x1152xf32, #tpu.memory_space<vmem>>, vector<1x64xf32>,
    %276 = vector.extract_strided_slice %261 {offsets = [7, 0], sizes = [1, 64], strides = [1, 1]} : vector<36x64xf32> to vector<1x64xf32>
    %c0_202 = arith.constant 0 : index
    %c448 = arith.constant 448 : index
    %277 = vector.load %arg19[%c0_202, %c448] : memref<2x1152xf32, #tpu.memory_space<vmem>>, vector<1x64xf32>
    tpu.vector_store %arg19[%c0_202, %c448], %276 {strides = array<i32>} : memref<2x1152xf32, #tpu.memory_space<vmem>>, vector<1x64xf32>,
    %278 = vector.extract_strided_slice %261 {offsets = [8, 0], sizes = [1, 64], strides = [1, 1]} : vector<36x64xf32> to vector<1x64xf32>
    %c0_203 = arith.constant 0 : index
    %c512 = arith.constant 512 : index
    %279 = vector.load %arg19[%c0_203, %c512] : memref<2x1152xf32, #tpu.memory_space<vmem>>, vector<1x64xf32>
    tpu.vector_store %arg19[%c0_203, %c512], %278 {strides = array<i32>} : memref<2x1152xf32, #tpu.memory_space<vmem>>, vector<1x64xf32>,
    %280 = vector.extract_strided_slice %261 {offsets = [9, 0], sizes = [1, 64], strides = [1, 1]} : vector<36x64xf32> to vector<1x64xf32>
    %c0_204 = arith.constant 0 : index
    %c576 = arith.constant 576 : index
    %281 = vector.load %arg19[%c0_204, %c576] : memref<2x1152xf32, #tpu.memory_space<vmem>>, vector<1x64xf32>
    tpu.vector_store %arg19[%c0_204, %c576], %280 {strides = array<i32>} : memref<2x1152xf32, #tpu.memory_space<vmem>>, vector<1x64xf32>,
    %282 = vector.extract_strided_slice %261 {offsets = [10, 0], sizes = [1, 64], strides = [1, 1]} : vector<36x64xf32> to vector<1x64xf32>
    %c0_205 = arith.constant 0 : index
    %c640 = arith.constant 640 : index
    %283 = vector.load %arg19[%c0_205, %c640] : memref<2x1152xf32, #tpu.memory_space<vmem>>, vector<1x64xf32>
    tpu.vector_store %arg19[%c0_205, %c640], %282 {strides = array<i32>} : memref<2x1152xf32, #tpu.memory_space<vmem>>, vector<1x64xf32>,
    %284 = vector.extract_strided_slice %261 {offsets = [11, 0], sizes = [1, 64], strides = [1, 1]} : vector<36x64xf32> to vector<1x64xf32>
    %c0_206 = arith.constant 0 : index
    %c704 = arith.constant 704 : index
    %285 = vector.load %arg19[%c0_206, %c704] : memref<2x1152xf32, #tpu.memory_space<vmem>>, vector<1x64xf32>
    tpu.vector_store %arg19[%c0_206, %c704], %284 {strides = array<i32>} : memref<2x1152xf32, #tpu.memory_space<vmem>>, vector<1x64xf32>,
    %286 = vector.extract_strided_slice %261 {offsets = [12, 0], sizes = [1, 64], strides = [1, 1]} : vector<36x64xf32> to vector<1x64xf32>
    %c0_207 = arith.constant 0 : index
    %c768 = arith.constant 768 : index
    %287 = vector.load %arg19[%c0_207, %c768] : memref<2x1152xf32, #tpu.memory_space<vmem>>, vector<1x64xf32>
    tpu.vector_store %arg19[%c0_207, %c768], %286 {strides = array<i32>} : memref<2x1152xf32, #tpu.memory_space<vmem>>, vector<1x64xf32>,
    %288 = vector.extract_strided_slice %261 {offsets = [13, 0], sizes = [1, 64], strides = [1, 1]} : vector<36x64xf32> to vector<1x64xf32>
    %c0_208 = arith.constant 0 : index
    %c832 = arith.constant 832 : index
    %289 = vector.load %arg19[%c0_208, %c832] : memref<2x1152xf32, #tpu.memory_space<vmem>>, vector<1x64xf32>
    tpu.vector_store %arg19[%c0_208, %c832], %288 {strides = array<i32>} : memref<2x1152xf32, #tpu.memory_space<vmem>>, vector<1x64xf32>,
    %290 = vector.extract_strided_slice %261 {offsets = [14, 0], sizes = [1, 64], strides = [1, 1]} : vector<36x64xf32> to vector<1x64xf32>
    %c0_209 = arith.constant 0 : index
    %c896 = arith.constant 896 : index
    %291 = vector.load %arg19[%c0_209, %c896] : memref<2x1152xf32, #tpu.memory_space<vmem>>, vector<1x64xf32>
    tpu.vector_store %arg19[%c0_209, %c896], %290 {strides = array<i32>} : memref<2x1152xf32, #tpu.memory_space<vmem>>, vector<1x64xf32>,
    %292 = vector.extract_strided_slice %261 {offsets = [15, 0], sizes = [1, 64], strides = [1, 1]} : vector<36x64xf32> to vector<1x64xf32>
    %c0_210 = arith.constant 0 : index
    %c960 = arith.constant 960 : index
    %293 = vector.load %arg19[%c0_210, %c960] : memref<2x1152xf32, #tpu.memory_space<vmem>>, vector<1x64xf32>
    tpu.vector_store %arg19[%c0_210, %c960], %292 {strides = array<i32>} : memref<2x1152xf32, #tpu.memory_space<vmem>>, vector<1x64xf32>,
    %294 = vector.extract_strided_slice %261 {offsets = [16, 0], sizes = [1, 64], strides = [1, 1]} : vector<36x64xf32> to vector<1x64xf32>
    %c0_211 = arith.constant 0 : index
    %c1024 = arith.constant 1024 : index
    %295 = vector.load %arg19[%c0_211, %c1024] : memref<2x1152xf32, #tpu.memory_space<vmem>>, vector<1x64xf32>
    tpu.vector_store %arg19[%c0_211, %c1024], %294 {strides = array<i32>} : memref<2x1152xf32, #tpu.memory_space<vmem>>, vector<1x64xf32>,
    %296 = vector.extract_strided_slice %261 {offsets = [17, 0], sizes = [1, 64], strides = [1, 1]} : vector<36x64xf32> to vector<1x64xf32>
    %c0_212 = arith.constant 0 : index
    %c1088 = arith.constant 1088 : index
    %297 = vector.load %arg19[%c0_212, %c1088] : memref<2x1152xf32, #tpu.memory_space<vmem>>, vector<1x64xf32>
    tpu.vector_store %arg19[%c0_212, %c1088], %296 {strides = array<i32>} : memref<2x1152xf32, #tpu.memory_space<vmem>>, vector<1x64xf32>,
    %298 = vector.extract_strided_slice %261 {offsets = [18, 0], sizes = [1, 64], strides = [1, 1]} : vector<36x64xf32> to vector<1x64xf32>
    %c1_213 = arith.constant 1 : index
    %c0_214 = arith.constant 0 : index
    %299 = vector.load %arg19[%c1_213, %c0_214] : memref<2x1152xf32, #tpu.memory_space<vmem>>, vector<1x64xf32>
    tpu.vector_store %arg19[%c1_213, %c0_214], %298 {strides = array<i32>} : memref<2x1152xf32, #tpu.memory_space<vmem>>, vector<1x64xf32>,
    %300 = vector.extract_strided_slice %261 {offsets = [19, 0], sizes = [1, 64], strides = [1, 1]} : vector<36x64xf32> to vector<1x64xf32>
    %c1_215 = arith.constant 1 : index
    %c64_216 = arith.constant 64 : index
    %301 = vector.load %arg19[%c1_215, %c64_216] : memref<2x1152xf32, #tpu.memory_space<vmem>>, vector<1x64xf32>
    tpu.vector_store %arg19[%c1_215, %c64_216], %300 {strides = array<i32>} : memref<2x1152xf32, #tpu.memory_space<vmem>>, vector<1x64xf32>,
    %302 = vector.extract_strided_slice %261 {offsets = [20, 0], sizes = [1, 64], strides = [1, 1]} : vector<36x64xf32> to vector<1x64xf32>
    %c1_217 = arith.constant 1 : index
    %c128_218 = arith.constant 128 : index
    %303 = vector.load %arg19[%c1_217, %c128_218] : memref<2x1152xf32, #tpu.memory_space<vmem>>, vector<1x64xf32>
    tpu.vector_store %arg19[%c1_217, %c128_218], %302 {strides = array<i32>} : memref<2x1152xf32, #tpu.memory_space<vmem>>, vector<1x64xf32>,
    %304 = vector.extract_strided_slice %261 {offsets = [21, 0], sizes = [1, 64], strides = [1, 1]} : vector<36x64xf32> to vector<1x64xf32>
    %c1_219 = arith.constant 1 : index
    %c192_220 = arith.constant 192 : index
    %305 = vector.load %arg19[%c1_219, %c192_220] : memref<2x1152xf32, #tpu.memory_space<vmem>>, vector<1x64xf32>
    tpu.vector_store %arg19[%c1_219, %c192_220], %304 {strides = array<i32>} : memref<2x1152xf32, #tpu.memory_space<vmem>>, vector<1x64xf32>,
    %306 = vector.extract_strided_slice %261 {offsets = [22, 0], sizes = [1, 64], strides = [1, 1]} : vector<36x64xf32> to vector<1x64xf32>
    %c1_221 = arith.constant 1 : index
    %c256_222 = arith.constant 256 : index
    %307 = vector.load %arg19[%c1_221, %c256_222] : memref<2x1152xf32, #tpu.memory_space<vmem>>, vector<1x64xf32>
    tpu.vector_store %arg19[%c1_221, %c256_222], %306 {strides = array<i32>} : memref<2x1152xf32, #tpu.memory_space<vmem>>, vector<1x64xf32>,
    %308 = vector.extract_strided_slice %261 {offsets = [23, 0], sizes = [1, 64], strides = [1, 1]} : vector<36x64xf32> to vector<1x64xf32>
    %c1_223 = arith.constant 1 : index
    %c320_224 = arith.constant 320 : index
    %309 = vector.load %arg19[%c1_223, %c320_224] : memref<2x1152xf32, #tpu.memory_space<vmem>>, vector<1x64xf32>
    tpu.vector_store %arg19[%c1_223, %c320_224], %308 {strides = array<i32>} : memref<2x1152xf32, #tpu.memory_space<vmem>>, vector<1x64xf32>,
    %310 = vector.extract_strided_slice %261 {offsets = [24, 0], sizes = [1, 64], strides = [1, 1]} : vector<36x64xf32> to vector<1x64xf32>
    %c1_225 = arith.constant 1 : index
    %c384_226 = arith.constant 384 : index
    %311 = vector.load %arg19[%c1_225, %c384_226] : memref<2x1152xf32, #tpu.memory_space<vmem>>, vector<1x64xf32>
    tpu.vector_store %arg19[%c1_225, %c384_226], %310 {strides = array<i32>} : memref<2x1152xf32, #tpu.memory_space<vmem>>, vector<1x64xf32>,
    %312 = vector.extract_strided_slice %261 {offsets = [25, 0], sizes = [1, 64], strides = [1, 1]} : vector<36x64xf32> to vector<1x64xf32>
    %c1_227 = arith.constant 1 : index
    %c448_228 = arith.constant 448 : index
    %313 = vector.load %arg19[%c1_227, %c448_228] : memref<2x1152xf32, #tpu.memory_space<vmem>>, vector<1x64xf32>
    tpu.vector_store %arg19[%c1_227, %c448_228], %312 {strides = array<i32>} : memref<2x1152xf32, #tpu.memory_space<vmem>>, vector<1x64xf32>,
    %314 = vector.extract_strided_slice %261 {offsets = [26, 0], sizes = [1, 64], strides = [1, 1]} : vector<36x64xf32> to vector<1x64xf32>
    %c1_229 = arith.constant 1 : index
    %c512_230 = arith.constant 512 : index
    %315 = vector.load %arg19[%c1_229, %c512_230] : memref<2x1152xf32, #tpu.memory_space<vmem>>, vector<1x64xf32>
    tpu.vector_store %arg19[%c1_229, %c512_230], %314 {strides = array<i32>} : memref<2x1152xf32, #tpu.memory_space<vmem>>, vector<1x64xf32>,
    %316 = vector.extract_strided_slice %261 {offsets = [27, 0], sizes = [1, 64], strides = [1, 1]} : vector<36x64xf32> to vector<1x64xf32>
    %c1_231 = arith.constant 1 : index
    %c576_232 = arith.constant 576 : index
    %317 = vector.load %arg19[%c1_231, %c576_232] : memref<2x1152xf32, #tpu.memory_space<vmem>>, vector<1x64xf32>
    tpu.vector_store %arg19[%c1_231, %c576_232], %316 {strides = array<i32>} : memref<2x1152xf32, #tpu.memory_space<vmem>>, vector<1x64xf32>,
    %318 = vector.extract_strided_slice %261 {offsets = [28, 0], sizes = [1, 64], strides = [1, 1]} : vector<36x64xf32> to vector<1x64xf32>
    %c1_233 = arith.constant 1 : index
    %c640_234 = arith.constant 640 : index
    %319 = vector.load %arg19[%c1_233, %c640_234] : memref<2x1152xf32, #tpu.memory_space<vmem>>, vector<1x64xf32>
    tpu.vector_store %arg19[%c1_233, %c640_234], %318 {strides = array<i32>} : memref<2x1152xf32, #tpu.memory_space<vmem>>, vector<1x64xf32>,
    %320 = vector.extract_strided_slice %261 {offsets = [29, 0], sizes = [1, 64], strides = [1, 1]} : vector<36x64xf32> to vector<1x64xf32>
    %c1_235 = arith.constant 1 : index
    %c704_236 = arith.constant 704 : index
    %321 = vector.load %arg19[%c1_235, %c704_236] : memref<2x1152xf32, #tpu.memory_space<vmem>>, vector<1x64xf32>
    tpu.vector_store %arg19[%c1_235, %c704_236], %320 {strides = array<i32>} : memref<2x1152xf32, #tpu.memory_space<vmem>>, vector<1x64xf32>,
    %322 = vector.extract_strided_slice %261 {offsets = [30, 0], sizes = [1, 64], strides = [1, 1]} : vector<36x64xf32> to vector<1x64xf32>
    %c1_237 = arith.constant 1 : index
    %c768_238 = arith.constant 768 : index
    %323 = vector.load %arg19[%c1_237, %c768_238] : memref<2x1152xf32, #tpu.memory_space<vmem>>, vector<1x64xf32>
    tpu.vector_store %arg19[%c1_237, %c768_238], %322 {strides = array<i32>} : memref<2x1152xf32, #tpu.memory_space<vmem>>, vector<1x64xf32>,
    %324 = vector.extract_strided_slice %261 {offsets = [31, 0], sizes = [1, 64], strides = [1, 1]} : vector<36x64xf32> to vector<1x64xf32>
    %c1_239 = arith.constant 1 : index
    %c832_240 = arith.constant 832 : index
    %325 = vector.load %arg19[%c1_239, %c832_240] : memref<2x1152xf32, #tpu.memory_space<vmem>>, vector<1x64xf32>
    tpu.vector_store %arg19[%c1_239, %c832_240], %324 {strides = array<i32>} : memref<2x1152xf32, #tpu.memory_space<vmem>>, vector<1x64xf32>,
    %326 = vector.extract_strided_slice %261 {offsets = [32, 0], sizes = [1, 64], strides = [1, 1]} : vector<36x64xf32> to vector<1x64xf32>
    %c1_241 = arith.constant 1 : index
    %c896_242 = arith.constant 896 : index
    %327 = vector.load %arg19[%c1_241, %c896_242] : memref<2x1152xf32, #tpu.memory_space<vmem>>, vector<1x64xf32>
    tpu.vector_store %arg19[%c1_241, %c896_242], %326 {strides = array<i32>} : memref<2x1152xf32, #tpu.memory_space<vmem>>, vector<1x64xf32>,
    %328 = vector.extract_strided_slice %261 {offsets = [33, 0], sizes = [1, 64], strides = [1, 1]} : vector<36x64xf32> to vector<1x64xf32>
    %c1_243 = arith.constant 1 : index
    %c960_244 = arith.constant 960 : index
    %329 = vector.load %arg19[%c1_243, %c960_244] : memref<2x1152xf32, #tpu.memory_space<vmem>>, vector<1x64xf32>
    tpu.vector_store %arg19[%c1_243, %c960_244], %328 {strides = array<i32>} : memref<2x1152xf32, #tpu.memory_space<vmem>>, vector<1x64xf32>,
    %330 = vector.extract_strided_slice %261 {offsets = [34, 0], sizes = [1, 64], strides = [1, 1]} : vector<36x64xf32> to vector<1x64xf32>
    %c1_245 = arith.constant 1 : index
    %c1024_246 = arith.constant 1024 : index
    %331 = vector.load %arg19[%c1_245, %c1024_246] : memref<2x1152xf32, #tpu.memory_space<vmem>>, vector<1x64xf32>
    tpu.vector_store %arg19[%c1_245, %c1024_246], %330 {strides = array<i32>} : memref<2x1152xf32, #tpu.memory_space<vmem>>, vector<1x64xf32>,
    %332 = vector.extract_strided_slice %261 {offsets = [35, 0], sizes = [1, 64], strides = [1, 1]} : vector<36x64xf32> to vector<1x64xf32>
    %c1_247 = arith.constant 1 : index
    %c1088_248 = arith.constant 1088 : index
    %333 = vector.load %arg19[%c1_247, %c1088_248] : memref<2x1152xf32, #tpu.memory_space<vmem>>, vector<1x64xf32>
    tpu.vector_store %arg19[%c1_247, %c1088_248], %332 {strides = array<i32>} : memref<2x1152xf32, #tpu.memory_space<vmem>>, vector<1x64xf32>,
    %c0_249 = arith.constant 0 : index
    %c0_250 = arith.constant 0 : index
    %334 = vector.load %arg19[%c0_249, %c0_250] : memref<2x1152xf32, #tpu.memory_space<vmem>>, vector<2x1152xf32>
    %c0_251 = arith.constant 0 : index
    %c0_252 = arith.constant 0 : index
    %335 = vector.load %arg9[%c0_251, %c0_252] : memref<1152x64xbf16, #tpu.memory_space<vmem>>, vector<1152x64xbf16>
    %336 = arith.extf %335 : vector<1152x64xbf16> to vector<1152x64xf32>
    %cst_253 = arith.constant dense<0.000000e+00> : vector<2x64xf32>
    %337 = tpu.matmul %334, %336, %cst_253 {dimension_numbers = #tpu.dot_dimension_numbers<[1], [0], [0], [1], [0, 0, 1, 1], [], []>} : vector<2x1152xf32>, vector<1152x64xf32>, vector<2x64xf32> -> vector<2x64xf32>
    %c0_254 = arith.constant 0 : index
    %c0_255 = arith.constant 0 : index
    %338 = vector.load %arg10[%c0_254, %c0_255] : memref<1x64xf32, #tpu.memory_space<vmem>>, vector<1x64xf32>
    %339 = vector.broadcast %338 : vector<1x64xf32> to vector<2x64xf32>
    %340 = arith.addf %337, %339 : vector<2x64xf32>
    %cst_256 = arith.constant 0.000000e+00 : f32
    %341 = vector.broadcast %cst_256 : f32 to vector<2x64xf32>
    %342 = arith.maximumf %340, %341 : vector<2x64xf32>
    %c0_257 = arith.constant 0 : index
    %c0_258 = arith.constant 0 : index
    %343 = vector.load %arg11[%c0_257, %c0_258] : memref<1x64xf32, #tpu.memory_space<vmem>>, vector<1x64xf32>
    %344 = vector.broadcast %343 : vector<1x64xf32> to vector<2x64xf32>
    %345 = arith.mulf %342, %344 : vector<2x64xf32>
    %cst_259 = arith.constant dense<0.000000e+00> : vector<2xf32>
    %346 = vector.multi_reduction <add>, %345, %cst_259 [1] : vector<2x64xf32> to vector<2xf32>
    %347 = vector.shape_cast %346 : vector<2xf32> to vector<2x1xf32>
    %c0_260 = arith.constant 0 : index
    %c0_261 = arith.constant 0 : index
    %348 = vector.load %arg12[%c0_260, %c0_261] : memref<2x1xf32, #tpu.memory_space<vmem>>, vector<2x1xf32>
    tpu.vector_store %arg12[%c0_260, %c0_261], %347 {strides = array<i32>} : memref<2x1xf32, #tpu.memory_space<vmem>>, vector<2x1xf32>,
    return
  }
}

</mosaic_0001>

<llo_original>
// kernel: forward.1
$region0: #{forward.1}
  #allocation0 [shape = 'u32[]', space=smem, size = 0x4, offset = 0x4, fixed_abs, tag = 'smem constant byte address 0x4 - core index']
  #allocation1 [shape = 'u32[144,128]{1,0:T(1,128)}', space=vmem, size = 0x12000, scoped, tag = 'internal scratch']
  #allocation2 [shape = 'f32[254,2]{1,0:T(8,128)}', space=vmem, size = 0x20000, scoped, tag = 'scratch operand']
  #allocation3 [shape = 'f32[216,18]{1,0:T(8,128)}', space=vmem, size = 0x1b000, scoped, tag = 'scratch operand']
  #allocation4 [shape = 'f32[102,16]{1,0:T(8,128)}', space=vmem, size = 0xd000, scoped, tag = 'scratch operand']
  #allocation5 [shape = 'f32[80,144]{1,0:T(8,128)}', space=vmem, size = 0x14000, scoped, tag = 'scratch operand']
  #allocation6 [shape = 'f32[50,32]{1,0:T(8,128)}', space=vmem, size = 0x7000, scoped, tag = 'scratch operand']
  #allocation7 [shape = 'f32[36,288]{1,0:T(8,128)}', space=vmem, size = 0xf000, scoped, tag = 'scratch operand']
  #allocation8 [shape = 'f32[2,1152]{1,0:T(2,128)}', space=vmem, size = 0x2400, scoped, tag = 'scratch operand']
  %s0 = inlined_call_operand.vmem [shape: f32[216,2], index: 0, kind: input, shape index: {}]
  %s1 = inlined_call_operand.vmem [shape: bf16[18,16], index: 1, kind: input, shape index: {}]
  %s2 = inlined_call_operand.vmem [shape: f32[216,9], index: 2, kind: input, shape index: {}]
  %s3 = inlined_call_operand.vmem [shape: bf16[160,108], index: 3, kind: input, shape index: {}]
  %s4 = inlined_call_operand.vmem [shape: bf16[144,32], index: 4, kind: input, shape index: {}]
  %s5 = inlined_call_operand.vmem [shape: f32[80,9], index: 5, kind: input, shape index: {}]
  %s6 = inlined_call_operand.vmem [shape: bf16[72,40], index: 6, kind: input, shape index: {}]
  %s7 = inlined_call_operand.vmem [shape: bf16[288,64], index: 7, kind: input, shape index: {}]
  %s8 = inlined_call_operand.vmem [shape: f32[36,9], index: 8, kind: input, shape index: {}]
  %s9 = inlined_call_operand.vmem [shape: bf16[1152,64], index: 9, kind: input, shape index: {}]
  %s10 = inlined_call_operand.vmem [shape: f32[1,64], index: 10, kind: input, shape index: {}]
  %s11 = inlined_call_operand.vmem [shape: f32[1,64], index: 11, kind: input, shape index: {}]
  %s12 = inlined_call_operand.vmem [shape: f32[2,1], index: 12, kind: output, shape index: {}]
  %s13 = sld [smem:[#allocation0]]
  $region58: #{forward.1} parent=0
    _
  %s15 = ssub.s32 1, %s13
  %s16 = scalar_select 0, %s15, %s13
  // Predicated region
  $region2: #{forward.1} parent=0 // pred_check
    _
  $region3: #{forward.1} parent=0 // pred_check_branch
    %18 = sbr.rel (0) target = $region5
  $region4: #{forward.1} parent=0 // pred_region
    _
  $region5: #{forward.1} parent=0 // pred_fallthru
    _
  // Predicated region
  $region6: #{forward.1} parent=0 // pred_check
    _
  $region7: #{forward.1} parent=0 // pred_check_branch
    %20 = sbr.rel (0) target = $region9
  $region8: #{forward.1} parent=0 // pred_region
    _
  $region9: #{forward.1} parent=0 // pred_fallthru
    _
  // Predicated region
  $region10: #{forward.1} parent=0 // pred_check
    _
  $region11: #{forward.1} parent=0 // pred_check_branch
    %22 = sbr.rel (0) target = $region13
  $region12: #{forward.1} parent=0 // pred_region
    _
  $region13: #{forward.1} parent=0 // pred_fallthru
    _
  // Predicated region
  $region14: #{forward.1} parent=0 // pred_check
    _
  $region15: #{forward.1} parent=0 // pred_check_branch
    %24 = sbr.rel (0) target = $region17
  $region16: #{forward.1} parent=0 // pred_region
    _
  $region17: #{forward.1} parent=0 // pred_fallthru
    _
  // Predicated region
  $region18: #{forward.1} parent=0 // pred_check
    _
  $region19: #{forward.1} parent=0 // pred_check_branch
    %26 = sbr.rel (0) target = $region21
  $region20: #{forward.1} parent=0 // pred_region
    _
  $region21: #{forward.1} parent=0 // pred_fallthru
    _
  // Predicated region
  $region22: #{forward.1} parent=0 // pred_check
    _
  $region23: #{forward.1} parent=0 // pred_check_branch
    %28 = sbr.rel (0) target = $region25
  $region24: #{forward.1} parent=0 // pred_region
    _
  $region25: #{forward.1} parent=0 // pred_fallthru
    _
  // Predicated region
  $region26: #{forward.1} parent=0 // pred_check
    _
  $region27: #{forward.1} parent=0 // pred_check_branch
    %30 = sbr.rel (0) target = $region29
  $region28: #{forward.1} parent=0 // pred_region
    _
  $region29: #{forward.1} parent=0 // pred_fallthru
    _
  // Predicated region
  $region30: #{forward.1} parent=0 // pred_check
    _
  $region31: #{forward.1} parent=0 // pred_check_branch
    %32 = sbr.rel (0) target = $region33
  $region32: #{forward.1} parent=0 // pred_region
    _
  $region33: #{forward.1} parent=0 // pred_fallthru
    _
  // Predicated region
  $region34: #{forward.1} parent=0 // pred_check
    _
  $region35: #{forward.1} parent=0 // pred_check_branch
    %34 = sbr.rel (0) target = $region37
  $region36: #{forward.1} parent=0 // pred_region
    _
  $region37: #{forward.1} parent=0 // pred_fallthru
    _
  // Predicated region
  $region38: #{forward.1} parent=0 // pred_check
    _
  $region39: #{forward.1} parent=0 // pred_check_branch
    %36 = sbr.rel (0) target = $region41
  $region40: #{forward.1} parent=0 // pred_region
    _
  $region41: #{forward.1} parent=0 // pred_fallthru
    _
  // Predicated region
  $region42: #{forward.1} parent=0 // pred_check
    _
  $region43: #{forward.1} parent=0 // pred_check_branch
    %38 = sbr.rel (0) target = $region45
  $region44: #{forward.1} parent=0 // pred_region
    _
  $region45: #{forward.1} parent=0 // pred_fallthru
    _
  // Predicated region
  $region46: #{forward.1} parent=0 // pred_check
    _
  $region47: #{forward.1} parent=0 // pred_check_branch
    %40 = sbr.rel (0) target = $region49
  $region48: #{forward.1} parent=0 // pred_region
    _
  $region49: #{forward.1} parent=0 // pred_fallthru
    _
  %vm41 = vcmask 15360
  %42 = vst.msk [vmem:[#allocation2] sm:$0xff] %vm41, 0.0
  %43 = vst.msk [vmem:[#allocation2 + $0x8] sm:$0xff] %vm41, 0.0
  %vm44 = vcmask 10240
  %45 = vst.msk [vmem:[#allocation2 + $0x10] sm:$0x7] %vm44, 0.0
  %46 = vst.msk [vmem:[#allocation2 + $0xeb] sm:$0xff] %vm41, 0.0
  %47 = vst.msk [vmem:[#allocation2 + $0xf3] sm:$0xff] %vm41, 0.0
  %48 = vst.msk [vmem:[#allocation2 + $0xfb] sm:$0x7] %vm44, 0.0
  %v49 = vld [vmem:[%s0] sm:$0xff]
  %v50 = vld [vmem:[%s0 + $0x8] sm:$0xff]
  %v51 = vld [vmem:[%s0 + $0x10] sm:$0xff]
  %v52 = vld [vmem:[%s0 + $0x18] sm:$0xff]
  %v53 = vld [vmem:[%s0 + $0x20] sm:$0xff]
  %v54 = vld [vmem:[%s0 + $0x28] sm:$0xff]
  %v55 = vld [vmem:[%s0 + $0x30] sm:$0xff]
  %v56 = vld [vmem:[%s0 + $0x38] sm:$0xff]
  %v57 = vld [vmem:[%s0 + $0x40] sm:$0xff]
  %v58 = vld [vmem:[%s0 + $0x48] sm:$0xff]
  %v59 = vld [vmem:[%s0 + $0x50] sm:$0xff]
  %v60 = vld [vmem:[%s0 + $0x58] sm:$0xff]
  %v61 = vld [vmem:[%s0 + $0x60] sm:$0xff]
  %v62 = vld [vmem:[%s0 + $0x68] sm:$0xff]
  %v63 = vld [vmem:[%s0 + $0x70] sm:$0xff]
  %v64 = vld [vmem:[%s0 + $0x78] sm:$0xff]
  %v65 = vld [vmem:[%s0 + $0x80] sm:$0xff]
  %v66 = vld [vmem:[%s0 + $0x88] sm:$0xff]
  %v67 = vld [vmem:[%s0 + $0x90] sm:$0xff]
  %v68 = vld [vmem:[%s0 + $0x98] sm:$0xff]
  %v69 = vld [vmem:[%s0 + $0xa0] sm:$0xff]
  %v70 = vld [vmem:[%s0 + $0xa8] sm:$0xff]
  %v71 = vld [vmem:[%s0 + $0xb0] sm:$0xff]
  %v72 = vld [vmem:[%s0 + $0xb8] sm:$0xff]
  %v73 = vld [vmem:[%s0 + $0xc0] sm:$0xff]
  %v74 = vld [vmem:[%s0 + $0xc8] sm:$0xff]
  %v75 = vld [vmem:[%s0 + $0xd0] sm:$0xff]
  %76 = vst.msk [vmem:[#allocation2 + $0x13] sm:$0xff] %vm41, %v49
  %77 = vst.msk [vmem:[#allocation2 + $0x1b] sm:$0xff] %vm41, %v50
  %78 = vst.msk [vmem:[#allocation2 + $0x23] sm:$0xff] %vm41, %v51
  %79 = vst.msk [vmem:[#allocation2 + $0x2b] sm:$0xff] %vm41, %v52
  %80 = vst.msk [vmem:[#allocation2 + $0x33] sm:$0xff] %vm41, %v53
  %81 = vst.msk [vmem:[#allocation2 + $0x3b] sm:$0xff] %vm41, %v54
  %82 = vst.msk [vmem:[#allocation2 + $0x43] sm:$0xff] %vm41, %v55
  %83 = vst.msk [vmem:[#allocation2 + $0x4b] sm:$0xff] %vm41, %v56
  %84 = vst.msk [vmem:[#allocation2 + $0x53] sm:$0xff] %vm41, %v57
  %85 = vst.msk [vmem:[#allocation2 + $0x5b] sm:$0xff] %vm41, %v58
  %86 = vst.msk [vmem:[#allocation2 + $0x63] sm:$0xff] %vm41, %v59
  %87 = vst.msk [vmem:[#allocation2 + $0x6b] sm:$0xff] %vm41, %v60
  %88 = vst.msk [vmem:[#allocation2 + $0x73] sm:$0xff] %vm41, %v61
  %89 = vst.msk [vmem:[#allocation2 + $0x7b] sm:$0xff] %vm41, %v62
  %90 = vst.msk [vmem:[#allocation2 + $0x83] sm:$0xff] %vm41, %v63
  %91 = vst.msk [vmem:[#allocation2 + $0x8b] sm:$0xff] %vm41, %v64
  %92 = vst.msk [vmem:[#allocation2 + $0x93] sm:$0xff] %vm41, %v65
  %93 = vst.msk [vmem:[#allocation2 + $0x9b] sm:$0xff] %vm41, %v66
  %94 = vst.msk [vmem:[#allocation2 + $0xa3] sm:$0xff] %vm41, %v67
  %95 = vst.msk [vmem:[#allocation2 + $0xab] sm:$0xff] %vm41, %v68
  %96 = vst.msk [vmem:[#allocation2 + $0xb3] sm:$0xff] %vm41, %v69
  %97 = vst.msk [vmem:[#allocation2 + $0xbb] sm:$0xff] %vm41, %v70
  %98 = vst.msk [vmem:[#allocation2 + $0xc3] sm:$0xff] %vm41, %v71
  %99 = vst.msk [vmem:[#allocation2 + $0xcb] sm:$0xff] %vm41, %v72
  %100 = vst.msk [vmem:[#allocation2 + $0xd3] sm:$0xff] %vm41, %v73
  %101 = vst.msk [vmem:[#allocation2 + $0xdb] sm:$0xff] %vm41, %v74
  %102 = vst.msk [vmem:[#allocation2 + $0xe3] sm:$0xff] %vm41, %v75
  %v103 = vld [vmem:[#allocation2] sm:$0xff]
  %v104 = vld [vmem:[#allocation2 + $0x8] sm:$0xff]
  %v105 = vld [vmem:[#allocation2 + $0x10] sm:$0xff]
  %v106 = vld [vmem:[#allocation2 + $0x18] sm:$0xff]
  %v107 = vld [vmem:[#allocation2 + $0x20] sm:$0xff]
  %v108 = vld [vmem:[#allocation2 + $0x28] sm:$0xff]
  %v109 = vld [vmem:[#allocation2 + $0x30] sm:$0xff]
  %v110 = vld [vmem:[#allocation2 + $0x38] sm:$0xff]
  %v111 = vld [vmem:[#allocation2 + $0x40] sm:$0xff]
  %v112 = vld [vmem:[#allocation2 + $0x48] sm:$0xff]
  %v113 = vld [vmem:[#allocation2 + $0x50] sm:$0xff]
  %v114 = vld [vmem:[#allocation2 + $0x58] sm:$0xff]
  %v115 = vld [vmem:[#allocation2 + $0x60] sm:$0xff]
  %v116 = vld [vmem:[#allocation2 + $0x68] sm:$0xff]
  %v117 = vld [vmem:[#allocation2 + $0x70] sm:$0xff]
  %v118 = vld [vmem:[#allocation2 + $0x78] sm:$0xff]
  %v119 = vld [vmem:[#allocation2 + $0x80] sm:$0xff]
  %v120 = vld [vmem:[#allocation2 + $0x88] sm:$0xff]
  %v121 = vld [vmem:[#allocation2 + $0x90] sm:$0xff]
  %v122 = vld [vmem:[#allocation2 + $0x98] sm:$0xff]
  %v123 = vld [vmem:[#allocation2 + $0xa0] sm:$0xff]
  %v124 = vld [vmem:[#allocation2 + $0xa8] sm:$0xff]
  %v125 = vld [vmem:[#allocation2 + $0xb0] sm:$0xff]
  %v126 = vld [vmem:[#allocation2 + $0xb8] sm:$0xff]
  %v127 = vld [vmem:[#allocation2 + $0xc0] sm:$0xff]
  %v128 = vld [vmem:[#allocation2 + $0xc8] sm:$0xff]
  %v129 = vld [vmem:[#allocation2 + $0xd0] sm:$0xff]
  %v130 = vld [vmem:[%s2] sm:$0xff]
  %v131 = vld [vmem:[%s2 + $0x8] sm:$0xff]
  %v132 = vld [vmem:[%s2 + $0x10] sm:$0xff]
  %v133 = vld [vmem:[%s2 + $0x18] sm:$0xff]
  %v134 = vld [vmem:[%s2 + $0x20] sm:$0xff]
  %v135 = vld [vmem:[%s2 + $0x28] sm:$0xff]
  %v136 = vld [vmem:[%s2 + $0x30] sm:$0xff]
  %v137 = vld [vmem:[%s2 + $0x38] sm:$0xff]
  %v138 = vld [vmem:[%s2 + $0x40] sm:$0xff]
  %v139 = vld [vmem:[%s2 + $0x48] sm:$0xff]
  %v140 = vld [vmem:[%s2 + $0x50] sm:$0xff]
  %v141 = vld [vmem:[%s2 + $0x58] sm:$0xff]
  %v142 = vld [vmem:[%s2 + $0x60] sm:$0xff]
  %v143 = vld [vmem:[%s2 + $0x68] sm:$0xff]
  %v144 = vld [vmem:[%s2 + $0x70] sm:$0xff]
  %v145 = vld [vmem:[%s2 + $0x78] sm:$0xff]
  %v146 = vld [vmem:[%s2 + $0x80] sm:$0xff]
  %v147 = vld [vmem:[%s2 + $0x88] sm:$0xff]
  %v148 = vld [vmem:[%s2 + $0x90] sm:$0xff]
  %v149 = vld [vmem:[%s2 + $0x98] sm:$0xff]
  %v150 = vld [vmem:[%s2 + $0xa0] sm:$0xff]
  %v151 = vld [vmem:[%s2 + $0xa8] sm:$0xff]
  %v152 = vld [vmem:[%s2 + $0xb0] sm:$0xff]
  %v153 = vld [vmem:[%s2 + $0xb8] sm:$0xff]
  %v154 = vld [vmem:[%s2 + $0xc0] sm:$0xff]
  %v155 = vld [vmem:[%s2 + $0xc8] sm:$0xff]
  %v156 = vld [vmem:[%s2 + $0xd0] sm:$0xff]
  %158 = vset.pattern.permute.xlu0 0
  %159 = vperm.xlu0 %158, %v130
  %v160 = vpop.permute.xlu0 %159
  %163 = vset.pattern.permute.xlu0 0
  %164 = vperm.xlu0 %163, %v131
  %v165 = vpop.permute.xlu0 %164
  %168 = vset.pattern.permute.xlu0 0
  %169 = vperm.xlu0 %168, %v132
  %v170 = vpop.permute.xlu0 %169
  %173 = vset.pattern.permute.xlu0 0
  %174 = vperm.xlu0 %173, %v133
  %v175 = vpop.permute.xlu0 %174
  %178 = vset.pattern.permute.xlu0 0
  %179 = vperm.xlu0 %178, %v134
  %v180 = vpop.permute.xlu0 %179
  %183 = vset.pattern.permute.xlu0 0
  %184 = vperm.xlu0 %183, %v135
  %v185 = vpop.permute.xlu0 %184
  %188 = vset.pattern.permute.xlu0 0
  %189 = vperm.xlu0 %188, %v136
  %v190 = vpop.permute.xlu0 %189
  %193 = vset.pattern.permute.xlu0 0
  %194 = vperm.xlu0 %193, %v137
  %v195 = vpop.permute.xlu0 %194
  %198 = vset.pattern.permute.xlu0 0
  %199 = vperm.xlu0 %198, %v138
  %v200 = vpop.permute.xlu0 %199
  %203 = vset.pattern.permute.xlu0 0
  %204 = vperm.xlu0 %203, %v139
  %v205 = vpop.permute.xlu0 %204
  %208 = vset.pattern.permute.xlu0 0
  %209 = vperm.xlu0 %208, %v140
  %v210 = vpop.permute.xlu0 %209
  %213 = vset.pattern.permute.xlu0 0
  %214 = vperm.xlu0 %213, %v141
  %v215 = vpop.permute.xlu0 %214
  %218 = vset.pattern.permute.xlu0 0
  %219 = vperm.xlu0 %218, %v142
  %v220 = vpop.permute.xlu0 %219
  %223 = vset.pattern.permute.xlu0 0
  %224 = vperm.xlu0 %223, %v143
  %v225 = vpop.permute.xlu0 %224
  %228 = vset.pattern.permute.xlu0 0
  %229 = vperm.xlu0 %228, %v144
  %v230 = vpop.permute.xlu0 %229
  %233 = vset.pattern.permute.xlu0 0
  %234 = vperm.xlu0 %233, %v145
  %v235 = vpop.permute.xlu0 %234
  %238 = vset.pattern.permute.xlu0 0
  %239 = vperm.xlu0 %238, %v146
  %v240 = vpop.permute.xlu0 %239
  %243 = vset.pattern.permute.xlu0 0
  %244 = vperm.xlu0 %243, %v147
  %v245 = vpop.permute.xlu0 %244
  %248 = vset.pattern.permute.xlu0 0
  %249 = vperm.xlu0 %248, %v148
  %v250 = vpop.permute.xlu0 %249
  %253 = vset.pattern.permute.xlu0 0
  %254 = vperm.xlu0 %253, %v149
  %v255 = vpop.permute.xlu0 %254
  %258 = vset.pattern.permute.xlu0 0
  %259 = vperm.xlu0 %258, %v150
  %v260 = vpop.permute.xlu0 %259
  %263 = vset.pattern.permute.xlu0 0
  %264 = vperm.xlu0 %263, %v151
  %v265 = vpop.permute.xlu0 %264
  %268 = vset.pattern.permute.xlu0 0
  %269 = vperm.xlu0 %268, %v152
  %v270 = vpop.permute.xlu0 %269
  %273 = vset.pattern.permute.xlu0 0
  %274 = vperm.xlu0 %273, %v153
  %v275 = vpop.permute.xlu0 %274
  %278 = vset.pattern.permute.xlu0 0
  %279 = vperm.xlu0 %278, %v154
  %v280 = vpop.permute.xlu0 %279
  %283 = vset.pattern.permute.xlu0 0
  %284 = vperm.xlu0 %283, %v155
  %v285 = vpop.permute.xlu0 %284
  %288 = vset.pattern.permute.xlu0 0
  %289 = vperm.xlu0 %288, %v156
  %v290 = vpop.permute.xlu0 %289
  %v292 = vmul.f32 %v103, %v160
  %v293 = vmul.f32 %v104, %v165
  %v294 = vmul.f32 %v105, %v170
  %v295 = vmul.f32 %v106, %v175
  %v296 = vmul.f32 %v107, %v180
  %v297 = vmul.f32 %v108, %v185
  %v298 = vmul.f32 %v109, %v190
  %v299 = vmul.f32 %v110, %v195
  %v300 = vmul.f32 %v111, %v200
  %v301 = vmul.f32 %v112, %v205
  %v302 = vmul.f32 %v113, %v210
  %v303 = vmul.f32 %v114, %v215
  %v304 = vmul.f32 %v115, %v220
  %v305 = vmul.f32 %v116, %v225
  %v306 = vmul.f32 %v117, %v230
  %v307 = vmul.f32 %v118, %v235
  %v308 = vmul.f32 %v119, %v240
  %v309 = vmul.f32 %v120, %v245
  %v310 = vmul.f32 %v121, %v250
  %v311 = vmul.f32 %v122, %v255
  %v312 = vmul.f32 %v123, %v260
  %v313 = vmul.f32 %v124, %v265
  %v314 = vmul.f32 %v125, %v270
  %v315 = vmul.f32 %v126, %v275
  %v316 = vmul.f32 %v127, %v280
  %v317 = vmul.f32 %v128, %v285
  %v318 = vmul.f32 %v129, %v290
  %319 = vst.msk [vmem:[#allocation3] sm:$0xff] %vm41, %v292
  %320 = vst.msk [vmem:[#allocation3 + $0x8] sm:$0xff] %vm41, %v293
  %321 = vst.msk [vmem:[#allocation3 + $0x10] sm:$0xff] %vm41, %v294
  %322 = vst.msk [vmem:[#allocation3 + $0x18] sm:$0xff] %vm41, %v295
  %323 = vst.msk [vmem:[#allocation3 + $0x20] sm:$0xff] %vm41, %v296
  %324 = vst.msk [vmem:[#allocation3 + $0x28] sm:$0xff] %vm41, %v297
  %325 = vst.msk [vmem:[#allocation3 + $0x30] sm:$0xff] %vm41, %v298
  %326 = vst.msk [vmem:[#allocation3 + $0x38] sm:$0xff] %vm41, %v299
  %327 = vst.msk [vmem:[#allocation3 + $0x40] sm:$0xff] %vm41, %v300
  %328 = vst.msk [vmem:[#allocation3 + $0x48] sm:$0xff] %vm41, %v301
  %329 = vst.msk [vmem:[#allocation3 + $0x50] sm:$0xff] %vm41, %v302
  %330 = vst.msk [vmem:[#allocation3 + $0x58] sm:$0xff] %vm41, %v303
  %331 = vst.msk [vmem:[#allocation3 + $0x60] sm:$0xff] %vm41, %v304
  %332 = vst.msk [vmem:[#allocation3 + $0x68] sm:$0xff] %vm41, %v305
  %333 = vst.msk [vmem:[#allocation3 + $0x70] sm:$0xff] %vm41, %v306
  %334 = vst.msk [vmem:[#allocation3 + $0x78] sm:$0xff] %vm41, %v307
  %335 = vst.msk [vmem:[#allocation3 + $0x80] sm:$0xff] %vm41, %v308
  %336 = vst.msk [vmem:[#allocation3 + $0x88] sm:$0xff] %vm41, %v309
  %337 = vst.msk [vmem:[#allocation3 + $0x90] sm:$0xff] %vm41, %v310
  %338 = vst.msk [vmem:[#allocation3 + $0x98] sm:$0xff] %vm41, %v311
  %339 = vst.msk [vmem:[#allocation3 + $0xa0] sm:$0xff] %vm41, %v312
  %340 = vst.msk [vmem:[#allocation3 + $0xa8] sm:$0xff] %vm41, %v313
  %341 = vst.msk [vmem:[#allocation3 + $0xb0] sm:$0xff] %vm41, %v314
  %342 = vst.msk [vmem:[#allocation3 + $0xb8] sm:$0xff] %vm41, %v315
  %343 = vst.msk [vmem:[#allocation3 + $0xc0] sm:$0xff] %vm41, %v316
  %344 = vst.msk [vmem:[#allocation3 + $0xc8] sm:$0xff] %vm41, %v317
  %345 = vst.msk [vmem:[#allocation3 + $0xd0] sm:$0xff] %vm41, %v318
  %v346 = vld [vmem:[#allocation2 + $0x1] sm:$0xff]
  %v347 = vld [vmem:[#allocation2 + $0x9] sm:$0xff]
  %v348 = vld [vmem:[#allocation2 + $0x11] sm:$0xff]
  %v349 = vld [vmem:[#allocation2 + $0x19] sm:$0xff]
  %v350 = vld [vmem:[#allocation2 + $0x21] sm:$0xff]
  %v351 = vld [vmem:[#allocation2 + $0x29] sm:$0xff]
  %v352 = vld [vmem:[#allocation2 + $0x31] sm:$0xff]
  %v353 = vld [vmem:[#allocation2 + $0x39] sm:$0xff]
  %v354 = vld [vmem:[#allocation2 + $0x41] sm:$0xff]
  %v355 = vld [vmem:[#allocation2 + $0x49] sm:$0xff]
  %v356 = vld [vmem:[#allocation2 + $0x51] sm:$0xff]
  %v357 = vld [vmem:[#allocation2 + $0x59] sm:$0xff]
  %v358 = vld [vmem:[#allocation2 + $0x61] sm:$0xff]
  %v359 = vld [vmem:[#allocation2 + $0x69] sm:$0xff]
  %v360 = vld [vmem:[#allocation2 + $0x71] sm:$0xff]
  %v361 = vld [vmem:[#allocation2 + $0x79] sm:$0xff]
  %v362 = vld [vmem:[#allocation2 + $0x81] sm:$0xff]
  %v363 = vld [vmem:[#allocation2 + $0x89] sm:$0xff]
  %v364 = vld [vmem:[#allocation2 + $0x91] sm:$0xff]
  %v365 = vld [vmem:[#allocation2 + $0x99] sm:$0xff]
  %v366 = vld [vmem:[#allocation2 + $0xa1] sm:$0xff]
  %v367 = vld [vmem:[#allocation2 + $0xa9] sm:$0xff]
  %v368 = vld [vmem:[#allocation2 + $0xb1] sm:$0xff]
  %v369 = vld [vmem:[#allocation2 + $0xb9] sm:$0xff]
  %v370 = vld [vmem:[#allocation2 + $0xc1] sm:$0xff]
  %v371 = vld [vmem:[#allocation2 + $0xc9] sm:$0xff]
  %v372 = vld [vmem:[#allocation2 + $0xd1] sm:$0xff]
  %v373 = vld [vmem:[%s2] sm:$0xff]
  %v374 = vld [vmem:[%s2 + $0x8] sm:$0xff]
  %v375 = vld [vmem:[%s2 + $0x10] sm:$0xff]
  %v376 = vld [vmem:[%s2 + $0x18] sm:$0xff]
  %v377 = vld [vmem:[%s2 + $0x20] sm:$0xff]
  %v378 = vld [vmem:[%s2 + $0x28] sm:$0xff]
  %v379 = vld [vmem:[%s2 + $0x30] sm:$0xff]
  %v380 = vld [vmem:[%s2 + $0x38] sm:$0xff]
  %v381 = vld [vmem:[%s2 + $0x40] sm:$0xff]
  %v382 = vld [vmem:[%s2 + $0x48] sm:$0xff]
  %v383 = vld [vmem:[%s2 + $0x50] sm:$0xff]
  %v384 = vld [vmem:[%s2 + $0x58] sm:$0xff]
  %v385 = vld [vmem:[%s2 + $0x60] sm:$0xff]
  %v386 = vld [vmem:[%s2 + $0x68] sm:$0xff]
  %v387 = vld [vmem:[%s2 + $0x70] sm:$0xff]
  %v388 = vld [vmem:[%s2 + $0x78] sm:$0xff]
  %v389 = vld [vmem:[%s2 + $0x80] sm:$0xff]
  %v390 = vld [vmem:[%s2 + $0x88] sm:$0xff]
  %v391 = vld [vmem:[%s2 + $0x90] sm:$0xff]
  %v392 = vld [vmem:[%s2 + $0x98] sm:$0xff]
  %v393 = vld [vmem:[%s2 + $0xa0] sm:$0xff]
  %v394 = vld [vmem:[%s2 + $0xa8] sm:$0xff]
  %v395 = vld [vmem:[%s2 + $0xb0] sm:$0xff]
  %v396 = vld [vmem:[%s2 + $0xb8] sm:$0xff]
  %v397 = vld [vmem:[%s2 + $0xc0] sm:$0xff]
  %v398 = vld [vmem:[%s2 + $0xc8] sm:$0xff]
  %v399 = vld [vmem:[%s2 + $0xd0] sm:$0xff]
  %401 = vset.pattern.permute.xlu0 1
  %402 = vperm.xlu0 %401, %v373
  %v403 = vpop.permute.xlu0 %402
  %406 = vset.pattern.permute.xlu0 1
  %407 = vperm.xlu0 %406, %v374
  %v408 = vpop.permute.xlu0 %407
  %411 = vset.pattern.permute.xlu0 1
  %412 = vperm.xlu0 %411, %v375
  %v413 = vpop.permute.xlu0 %412
  %416 = vset.pattern.permute.xlu0 1
  %417 = vperm.xlu0 %416, %v376
  %v418 = vpop.permute.xlu0 %417
  %421 = vset.pattern.permute.xlu0 1
  %422 = vperm.xlu0 %421, %v377
  %v423 = vpop.permute.xlu0 %422
  %426 = vset.pattern.permute.xlu0 1
  %427 = vperm.xlu0 %426, %v378
  %v428 = vpop.permute.xlu0 %427
  %431 = vset.pattern.permute.xlu0 1
  %432 = vperm.xlu0 %431, %v379
  %v433 = vpop.permute.xlu0 %432
  %436 = vset.pattern.permute.xlu0 1
  %437 = vperm.xlu0 %436, %v380
  %v438 = vpop.permute.xlu0 %437
  %441 = vset.pattern.permute.xlu0 1
  %442 = vperm.xlu0 %441, %v381
  %v443 = vpop.permute.xlu0 %442
  %446 = vset.pattern.permute.xlu0 1
  %447 = vperm.xlu0 %446, %v382
  %v448 = vpop.permute.xlu0 %447
  %451 = vset.pattern.permute.xlu0 1
  %452 = vperm.xlu0 %451, %v383
  %v453 = vpop.permute.xlu0 %452
  %456 = vset.pattern.permute.xlu0 1
  %457 = vperm.xlu0 %456, %v384
  %v458 = vpop.permute.xlu0 %457
  %461 = vset.pattern.permute.xlu0 1
  %462 = vperm.xlu0 %461, %v385
  %v463 = vpop.permute.xlu0 %462
  %466 = vset.pattern.permute.xlu0 1
  %467 = vperm.xlu0 %466, %v386
  %v468 = vpop.permute.xlu0 %467
  %471 = vset.pattern.permute.xlu0 1
  %472 = vperm.xlu0 %471, %v387
  %v473 = vpop.permute.xlu0 %472
  %476 = vset.pattern.permute.xlu0 1
  %477 = vperm.xlu0 %476, %v388
  %v478 = vpop.permute.xlu0 %477
  %481 = vset.pattern.permute.xlu0 1
  %482 = vperm.xlu0 %481, %v389
  %v483 = vpop.permute.xlu0 %482
  %486 = vset.pattern.permute.xlu0 1
  %487 = vperm.xlu0 %486, %v390
  %v488 = vpop.permute.xlu0 %487
  %491 = vset.pattern.permute.xlu0 1
  %492 = vperm.xlu0 %491, %v391
  %v493 = vpop.permute.xlu0 %492
  %496 = vset.pattern.permute.xlu0 1
  %497 = vperm.xlu0 %496, %v392
  %v498 = vpop.permute.xlu0 %497
  %501 = vset.pattern.permute.xlu0 1
  %502 = vperm.xlu0 %501, %v393
  %v503 = vpop.permute.xlu0 %502
  %506 = vset.pattern.permute.xlu0 1
  %507 = vperm.xlu0 %506, %v394
  %v508 = vpop.permute.xlu0 %507
  %511 = vset.pattern.permute.xlu0 1
  %512 = vperm.xlu0 %511, %v395
  %v513 = vpop.permute.xlu0 %512
  %516 = vset.pattern.permute.xlu0 1
  %517 = vperm.xlu0 %516, %v396
  %v518 = vpop.permute.xlu0 %517
  %521 = vset.pattern.permute.xlu0 1
  %522 = vperm.xlu0 %521, %v397
  %v523 = vpop.permute.xlu0 %522
  %526 = vset.pattern.permute.xlu0 1
  %527 = vperm.xlu0 %526, %v398
  %v528 = vpop.permute.xlu0 %527
  %531 = vset.pattern.permute.xlu0 1
  %532 = vperm.xlu0 %531, %v399
  %v533 = vpop.permute.xlu0 %532
  %v535 = vmul.f32 %v346, %v403
  %v536 = vmul.f32 %v347, %v408
  %v537 = vmul.f32 %v348, %v413
  %v538 = vmul.f32 %v349, %v418
  %v539 = vmul.f32 %v350, %v423
  %v540 = vmul.f32 %v351, %v428
  %v541 = vmul.f32 %v352, %v433
  %v542 = vmul.f32 %v353, %v438
  %v543 = vmul.f32 %v354, %v443
  %v544 = vmul.f32 %v355, %v448
  %v545 = vmul.f32 %v356, %v453
  %v546 = vmul.f32 %v357, %v458
  %v547 = vmul.f32 %v358, %v463
  %v548 = vmul.f32 %v359, %v468
  %v549 = vmul.f32 %v360, %v473
  %v550 = vmul.f32 %v361, %v478
  %v551 = vmul.f32 %v362, %v483
  %v552 = vmul.f32 %v363, %v488
  %v553 = vmul.f32 %v364, %v493
  %v554 = vmul.f32 %v365, %v498
  %v555 = vmul.f32 %v366, %v503
  %v556 = vmul.f32 %v367, %v508
  %v557 = vmul.f32 %v368, %v513
  %v558 = vmul.f32 %v369, %v518
  %v559 = vmul.f32 %v370, %v523
  %v560 = vmul.f32 %v371, %v528
  %v561 = vmul.f32 %v372, %v533
  %589 = vrot.lane.b32.xlu0 %v535, 2
  %v590 = vpop.permute.xlu0 %589
  %591 = vrot.lane.b32.xlu0 %v536, 2
  %v592 = vpop.permute.xlu0 %591
  %593 = vrot.lane.b32.xlu0 %v537, 2
  %v594 = vpop.permute.xlu0 %593
  %595 = vrot.lane.b32.xlu0 %v538, 2
  %v596 = vpop.permute.xlu0 %595
  %597 = vrot.lane.b32.xlu0 %v539, 2
  %v598 = vpop.permute.xlu0 %597
  %599 = vrot.lane.b32.xlu0 %v540, 2
  %v600 = vpop.permute.xlu0 %599
  %601 = vrot.lane.b32.xlu0 %v541, 2
  %v602 = vpop.permute.xlu0 %601
  %603 = vrot.lane.b32.xlu0 %v542, 2
  %v604 = vpop.permute.xlu0 %603
  %605 = vrot.lane.b32.xlu0 %v543, 2
  %v606 = vpop.permute.xlu0 %605
  %607 = vrot.lane.b32.xlu0 %v544, 2
  %v608 = vpop.permute.xlu0 %607
  %609 = vrot.lane.b32.xlu0 %v545, 2
  %v610 = vpop.permute.xlu0 %609
  %611 = vrot.lane.b32.xlu0 %v546, 2
  %v612 = vpop.permute.xlu0 %611
  %613 = vrot.lane.b32.xlu0 %v547, 2
  %v614 = vpop.permute.xlu0 %613
  %615 = vrot.lane.b32.xlu0 %v548, 2
  %v616 = vpop.permute.xlu0 %615
  %617 = vrot.lane.b32.xlu0 %v549, 2
  %v618 = vpop.permute.xlu0 %617
  %619 = vrot.lane.b32.xlu0 %v550, 2
  %v620 = vpop.permute.xlu0 %619
  %621 = vrot.lane.b32.xlu0 %v551, 2
  %v622 = vpop.permute.xlu0 %621
  %623 = vrot.lane.b32.xlu0 %v552, 2
  %v624 = vpop.permute.xlu0 %623
  %625 = vrot.lane.b32.xlu0 %v553, 2
  %v626 = vpop.permute.xlu0 %625
  %627 = vrot.lane.b32.xlu0 %v554, 2
  %v628 = vpop.permute.xlu0 %627
  %629 = vrot.lane.b32.xlu0 %v555, 2
  %v630 = vpop.permute.xlu0 %629
  %631 = vrot.lane.b32.xlu0 %v556, 2
  %v632 = vpop.permute.xlu0 %631
  %633 = vrot.lane.b32.xlu0 %v557, 2
  %v634 = vpop.permute.xlu0 %633
  %635 = vrot.lane.b32.xlu0 %v558, 2
  %v636 = vpop.permute.xlu0 %635
  %637 = vrot.lane.b32.xlu0 %v559, 2
  %v638 = vpop.permute.xlu0 %637
  %639 = vrot.lane.b32.xlu0 %v560, 2
  %v640 = vpop.permute.xlu0 %639
  %641 = vrot.lane.b32.xlu0 %v561, 2
  %v642 = vpop.permute.xlu0 %641
  %vm670 = vcmask 31760
  %671 = vst.msk [vmem:[#allocation3] sm:$0xff] %vm670, %v590
  %672 = vst.msk [vmem:[#allocation3 + $0x8] sm:$0xff] %vm670, %v592
  %673 = vst.msk [vmem:[#allocation3 + $0x10] sm:$0xff] %vm670, %v594
  %674 = vst.msk [vmem:[#allocation3 + $0x18] sm:$0xff] %vm670, %v596
  %675 = vst.msk [vmem:[#allocation3 + $0x20] sm:$0xff] %vm670, %v598
  %676 = vst.msk [vmem:[#allocation3 + $0x28] sm:$0xff] %vm670, %v600
  %677 = vst.msk [vmem:[#allocation3 + $0x30] sm:$0xff] %vm670, %v602
  %678 = vst.msk [vmem:[#allocation3 + $0x38] sm:$0xff] %vm670, %v604
  %679 = vst.msk [vmem:[#allocation3 + $0x40] sm:$0xff] %vm670, %v606
  %680 = vst.msk [vmem:[#allocation3 + $0x48] sm:$0xff] %vm670, %v608
  %681 = vst.msk [vmem:[#allocation3 + $0x50] sm:$0xff] %vm670, %v610
  %682 = vst.msk [vmem:[#allocation3 + $0x58] sm:$0xff] %vm670, %v612
  %683 = vst.msk [vmem:[#allocation3 + $0x60] sm:$0xff] %vm670, %v614
  %684 = vst.msk [vmem:[#allocation3 + $0x68] sm:$0xff] %vm670, %v616
  %685 = vst.msk [vmem:[#allocation3 + $0x70] sm:$0xff] %vm670, %v618
  %686 = vst.msk [vmem:[#allocation3 + $0x78] sm:$0xff] %vm670, %v620
  %687 = vst.msk [vmem:[#allocation3 + $0x80] sm:$0xff] %vm670, %v622
  %688 = vst.msk [vmem:[#allocation3 + $0x88] sm:$0xff] %vm670, %v624
  %689 = vst.msk [vmem:[#allocation3 + $0x90] sm:$0xff] %vm670, %v626
  %690 = vst.msk [vmem:[#allocation3 + $0x98] sm:$0xff] %vm670, %v628
  %691 = vst.msk [vmem:[#allocation3 + $0xa0] sm:$0xff] %vm670, %v630
  %692 = vst.msk [vmem:[#allocation3 + $0xa8] sm:$0xff] %vm670, %v632
  %693 = vst.msk [vmem:[#allocation3 + $0xb0] sm:$0xff] %vm670, %v634
  %694 = vst.msk [vmem:[#allocation3 + $0xb8] sm:$0xff] %vm670, %v636
  %695 = vst.msk [vmem:[#allocation3 + $0xc0] sm:$0xff] %vm670, %v638
  %696 = vst.msk [vmem:[#allocation3 + $0xc8] sm:$0xff] %vm670, %v640
  %697 = vst.msk [vmem:[#allocation3 + $0xd0] sm:$0xff] %vm670, %v642
  %v698 = vld [vmem:[#allocation2 + $0x2] sm:$0xff]
  %v699 = vld [vmem:[#allocation2 + $0xa] sm:$0xff]
  %v700 = vld [vmem:[#allocation2 + $0x12] sm:$0xff]
  %v701 = vld [vmem:[#allocation2 + $0x1a] sm:$0xff]
  %v702 = vld [vmem:[#allocation2 + $0x22] sm:$0xff]
  %v703 = vld [vmem:[#allocation2 + $0x2a] sm:$0xff]
  %v704 = vld [vmem:[#allocation2 + $0x32] sm:$0xff]
  %v705 = vld [vmem:[#allocation2 + $0x3a] sm:$0xff]
  %v706 = vld [vmem:[#allocation2 + $0x42] sm:$0xff]
  %v707 = vld [vmem:[#allocation2 + $0x4a] sm:$0xff]
  %v708 = vld [vmem:[#allocation2 + $0x52] sm:$0xff]
  %v709 = vld [vmem:[#allocation2 + $0x5a] sm:$0xff]
  %v710 = vld [vmem:[#allocation2 + $0x62] sm:$0xff]
  %v711 = vld [vmem:[#allocation2 + $0x6a] sm:$0xff]
  %v712 = vld [vmem:[#allocation2 + $0x72] sm:$0xff]
  %v713 = vld [vmem:[#allocation2 + $0x7a] sm:$0xff]
  %v714 = vld [vmem:[#allocation2 + $0x82] sm:$0xff]
  %v715 = vld [vmem:[#allocation2 + $0x8a] sm:$0xff]
  %v716 = vld [vmem:[#allocation2 + $0x92] sm:$0xff]
  %v717 = vld [vmem:[#allocation2 + $0x9a] sm:$0xff]
  %v718 = vld [vmem:[#allocation2 + $0xa2] sm:$0xff]
  %v719 = vld [vmem:[#allocation2 + $0xaa] sm:$0xff]
  %v720 = vld [vmem:[#allocation2 + $0xb2] sm:$0xff]
  %v721 = vld [vmem:[#allocation2 + $0xba] sm:$0xff]
  %v722 = vld [vmem:[#allocation2 + $0xc2] sm:$0xff]
  %v723 = vld [vmem:[#allocation2 + $0xca] sm:$0xff]
  %v724 = vld [vmem:[#allocation2 + $0xd2] sm:$0xff]
  %v725 = vld [vmem:[%s2] sm:$0xff]
  %v726 = vld [vmem:[%s2 + $0x8] sm:$0xff]
  %v727 = vld [vmem:[%s2 + $0x10] sm:$0xff]
  %v728 = vld [vmem:[%s2 + $0x18] sm:$0xff]
  %v729 = vld [vmem:[%s2 + $0x20] sm:$0xff]
  %v730 = vld [vmem:[%s2 + $0x28] sm:$0xff]
  %v731 = vld [vmem:[%s2 + $0x30] sm:$0xff]
  %v732 = vld [vmem:[%s2 + $0x38] sm:$0xff]
  %v733 = vld [vmem:[%s2 + $0x40] sm:$0xff]
  %v734 = vld [vmem:[%s2 + $0x48] sm:$0xff]
  %v735 = vld [vmem:[%s2 + $0x50] sm:$0xff]
  %v736 = vld [vmem:[%s2 + $0x58] sm:$0xff]
  %v737 = vld [vmem:[%s2 + $0x60] sm:$0xff]
  %v738 = vld [vmem:[%s2 + $0x68] sm:$0xff]
  %v739 = vld [vmem:[%s2 + $0x70] sm:$0xff]
  %v740 = vld [vmem:[%s2 + $0x78] sm:$0xff]
  %v741 = vld [vmem:[%s2 + $0x80] sm:$0xff]
  %v742 = vld [vmem:[%s2 + $0x88] sm:$0xff]
  %v743 = vld [vmem:[%s2 + $0x90] sm:$0xff]
  %v744 = vld [vmem:[%s2 + $0x98] sm:$0xff]
  %v745 = vld [vmem:[%s2 + $0xa0] sm:$0xff]
  %v746 = vld [vmem:[%s2 + $0xa8] sm:$0xff]
  %v747 = vld [vmem:[%s2 + $0xb0] sm:$0xff]
  %v748 = vld [vmem:[%s2 + $0xb8] sm:$0xff]
  %v749 = vld [vmem:[%s2 + $0xc0] sm:$0xff]
  %v750 = vld [vmem:[%s2 + $0xc8] sm:$0xff]
  %v751 = vld [vmem:[%s2 + $0xd0] sm:$0xff]
  %753 = vset.pattern.permute.xlu0 2
  %754 = vperm.xlu0 %753, %v725
  %v755 = vpop.permute.xlu0 %754
  %758 = vset.pattern.permute.xlu0 2
  %759 = vperm.xlu0 %758, %v726
  %v760 = vpop.permute.xlu0 %759
  %763 = vset.pattern.permute.xlu0 2
  %764 = vperm.xlu0 %763, %v727
  %v765 = vpop.permute.xlu0 %764
  %768 = vset.pattern.permute.xlu0 2
  %769 = vperm.xlu0 %768, %v728
  %v770 = vpop.permute.xlu0 %769
  %773 = vset.pattern.permute.xlu0 2
  %774 = vperm.xlu0 %773, %v729
  %v775 = vpop.permute.xlu0 %774
  %778 = vset.pattern.permute.xlu0 2
  %779 = vperm.xlu0 %778, %v730
  %v780 = vpop.permute.xlu0 %779
  %783 = vset.pattern.permute.xlu0 2
  %784 = vperm.xlu0 %783, %v731
  %v785 = vpop.permute.xlu0 %784
  %788 = vset.pattern.permute.xlu0 2
  %789 = vperm.xlu0 %788, %v732
  %v790 = vpop.permute.xlu0 %789
  %793 = vset.pattern.permute.xlu0 2
  %794 = vperm.xlu0 %793, %v733
  %v795 = vpop.permute.xlu0 %794
  %798 = vset.pattern.permute.xlu0 2
  %799 = vperm.xlu0 %798, %v734
  %v800 = vpop.permute.xlu0 %799
  %803 = vset.pattern.permute.xlu0 2
  %804 = vperm.xlu0 %803, %v735
  %v805 = vpop.permute.xlu0 %804
  %808 = vset.pattern.permute.xlu0 2
  %809 = vperm.xlu0 %808, %v736
  %v810 = vpop.permute.xlu0 %809
  %813 = vset.pattern.permute.xlu0 2
  %814 = vperm.xlu0 %813, %v737
  %v815 = vpop.permute.xlu0 %814
  %818 = vset.pattern.permute.xlu0 2
  %819 = vperm.xlu0 %818, %v738
  %v820 = vpop.permute.xlu0 %819
  %823 = vset.pattern.permute.xlu0 2
  %824 = vperm.xlu0 %823, %v739
  %v825 = vpop.permute.xlu0 %824
  %828 = vset.pattern.permute.xlu0 2
  %829 = vperm.xlu0 %828, %v740
  %v830 = vpop.permute.xlu0 %829
  %833 = vset.pattern.permute.xlu0 2
  %834 = vperm.xlu0 %833, %v741
  %v835 = vpop.permute.xlu0 %834
  %838 = vset.pattern.permute.xlu0 2
  %839 = vperm.xlu0 %838, %v742
  %v840 = vpop.permute.xlu0 %839
  %843 = vset.pattern.permute.xlu0 2
  %844 = vperm.xlu0 %843, %v743
  %v845 = vpop.permute.xlu0 %844
  %848 = vset.pattern.permute.xlu0 2
  %849 = vperm.xlu0 %848, %v744
  %v850 = vpop.permute.xlu0 %849
  %853 = vset.pattern.permute.xlu0 2
  %854 = vperm.xlu0 %853, %v745
  %v855 = vpop.permute.xlu0 %854
  %858 = vset.pattern.permute.xlu0 2
  %859 = vperm.xlu0 %858, %v746
  %v860 = vpop.permute.xlu0 %859
  %863 = vset.pattern.permute.xlu0 2
  %864 = vperm.xlu0 %863, %v747
  %v865 = vpop.permute.xlu0 %864
  %868 = vset.pattern.permute.xlu0 2
  %869 = vperm.xlu0 %868, %v748
  %v870 = vpop.permute.xlu0 %869
  %873 = vset.pattern.permute.xlu0 2
  %874 = vperm.xlu0 %873, %v749
  %v875 = vpop.permute.xlu0 %874
  %878 = vset.pattern.permute.xlu0 2
  %879 = vperm.xlu0 %878, %v750
  %v880 = vpop.permute.xlu0 %879
  %883 = vset.pattern.permute.xlu0 2
  %884 = vperm.xlu0 %883, %v751
  %v885 = vpop.permute.xlu0 %884
  %v887 = vmul.f32 %v698, %v755
  %v888 = vmul.f32 %v699, %v760
  %v889 = vmul.f32 %v700, %v765
  %v890 = vmul.f32 %v701, %v770
  %v891 = vmul.f32 %v702, %v775
  %v892 = vmul.f32 %v703, %v780
  %v893 = vmul.f32 %v704, %v785
  %v894 = vmul.f32 %v705, %v790
  %v895 = vmul.f32 %v706, %v795
  %v896 = vmul.f32 %v707, %v800
  %v897 = vmul.f32 %v708, %v805
  %v898 = vmul.f32 %v709, %v810
  %v899 = vmul.f32 %v710, %v815
  %v900 = vmul.f32 %v711, %v820
  %v901 = vmul.f32 %v712, %v825
  %v902 = vmul.f32 %v713, %v830
  %v903 = vmul.f32 %v714, %v835
  %v904 = vmul.f32 %v715, %v840
  %v905 = vmul.f32 %v716, %v845
  %v906 = vmul.f32 %v717, %v850
  %v907 = vmul.f32 %v718, %v855
  %v908 = vmul.f32 %v719, %v860
  %v909 = vmul.f32 %v720, %v865
  %v910 = vmul.f32 %v721, %v870
  %v911 = vmul.f32 %v722, %v875
  %v912 = vmul.f32 %v723, %v880
  %v913 = vmul.f32 %v724, %v885
  %941 = vrot.lane.b32.xlu0 %v887, 4
  %v942 = vpop.permute.xlu0 %941
  %943 = vrot.lane.b32.xlu0 %v888, 4
  %v944 = vpop.permute.xlu0 %943
  %945 = vrot.lane.b32.xlu0 %v889, 4
  %v946 = vpop.permute.xlu0 %945
  %947 = vrot.lane.b32.xlu0 %v890, 4
  %v948 = vpop.permute.xlu0 %947
  %949 = vrot.lane.b32.xlu0 %v891, 4
  %v950 = vpop.permute.xlu0 %949
  %951 = vrot.lane.b32.xlu0 %v892, 4
  %v952 = vpop.permute.xlu0 %951
  %953 = vrot.lane.b32.xlu0 %v893, 4
  %v954 = vpop.permute.xlu0 %953
  %955 = vrot.lane.b32.xlu0 %v894, 4
  %v956 = vpop.permute.xlu0 %955
  %957 = vrot.lane.b32.xlu0 %v895, 4
  %v958 = vpop.permute.xlu0 %957
  %959 = vrot.lane.b32.xlu0 %v896, 4
  %v960 = vpop.permute.xlu0 %959
  %961 = vrot.lane.b32.xlu0 %v897, 4
  %v962 = vpop.permute.xlu0 %961
  %963 = vrot.lane.b32.xlu0 %v898, 4
  %v964 = vpop.permute.xlu0 %963
  %965 = vrot.lane.b32.xlu0 %v899, 4
  %v966 = vpop.permute.xlu0 %965
  %967 = vrot.lane.b32.xlu0 %v900, 4
  %v968 = vpop.permute.xlu0 %967
  %969 = vrot.lane.b32.xlu0 %v901, 4
  %v970 = vpop.permute.xlu0 %969
  %971 = vrot.lane.b32.xlu0 %v902, 4
  %v972 = vpop.permute.xlu0 %971
  %973 = vrot.lane.b32.xlu0 %v903, 4
  %v974 = vpop.permute.xlu0 %973
  %975 = vrot.lane.b32.xlu0 %v904, 4
  %v976 = vpop.permute.xlu0 %975
  %977 = vrot.lane.b32.xlu0 %v905, 4
  %v978 = vpop.permute.xlu0 %977
  %979 = vrot.lane.b32.xlu0 %v906, 4
  %v980 = vpop.permute.xlu0 %979
  %981 = vrot.lane.b32.xlu0 %v907, 4
  %v982 = vpop.permute.xlu0 %981
  %983 = vrot.lane.b32.xlu0 %v908, 4
  %v984 = vpop.permute.xlu0 %983
  %985 = vrot.lane.b32.xlu0 %v909, 4
  %v986 = vpop.permute.xlu0 %985
  %987 = vrot.lane.b32.xlu0 %v910, 4
  %v988 = vpop.permute.xlu0 %987
  %989 = vrot.lane.b32.xlu0 %v911, 4
  %v990 = vpop.permute.xlu0 %989
  %991 = vrot.lane.b32.xlu0 %v912, 4
  %v992 = vpop.permute.xlu0 %991
  %993 = vrot.lane.b32.xlu0 %v913, 4
  %v994 = vpop.permute.xlu0 %993
  %vm1022 = vcmask 48160
  %1023 = vst.msk [vmem:[#allocation3] sm:$0xff] %vm1022, %v942
  %1024 = vst.msk [vmem:[#allocation3 + $0x8] sm:$0xff] %vm1022, %v944
  %1025 = vst.msk [vmem:[#allocation3 + $0x10] sm:$0xff] %vm1022, %v946
  %1026 = vst.msk [vmem:[#allocation3 + $0x18] sm:$0xff] %vm1022, %v948
  %1027 = vst.msk [vmem:[#allocation3 + $0x20] sm:$0xff] %vm1022, %v950
  %1028 = vst.msk [vmem:[#allocation3 + $0x28] sm:$0xff] %vm1022, %v952
  %1029 = vst.msk [vmem:[#allocation3 + $0x30] sm:$0xff] %vm1022, %v954
  %1030 = vst.msk [vmem:[#allocation3 + $0x38] sm:$0xff] %vm1022, %v956
  %1031 = vst.msk [vmem:[#allocation3 + $0x40] sm:$0xff] %vm1022, %v958
  %1032 = vst.msk [vmem:[#allocation3 + $0x48] sm:$0xff] %vm1022, %v960
  %1033 = vst.msk [vmem:[#allocation3 + $0x50] sm:$0xff] %vm1022, %v962
  %1034 = vst.msk [vmem:[#allocation3 + $0x58] sm:$0xff] %vm1022, %v964
  %1035 = vst.msk [vmem:[#allocation3 + $0x60] sm:$0xff] %vm1022, %v966
  %1036 = vst.msk [vmem:[#allocation3 + $0x68] sm:$0xff] %vm1022, %v968
  %1037 = vst.msk [vmem:[#allocation3 + $0x70] sm:$0xff] %vm1022, %v970
  %1038 = vst.msk [vmem:[#allocation3 + $0x78] sm:$0xff] %vm1022, %v972
  %1039 = vst.msk [vmem:[#allocation3 + $0x80] sm:$0xff] %vm1022, %v974
  %1040 = vst.msk [vmem:[#allocation3 + $0x88] sm:$0xff] %vm1022, %v976
  %1041 = vst.msk [vmem:[#allocation3 + $0x90] sm:$0xff] %vm1022, %v978
  %1042 = vst.msk [vmem:[#allocation3 + $0x98] sm:$0xff] %vm1022, %v980
  %1043 = vst.msk [vmem:[#allocation3 + $0xa0] sm:$0xff] %vm1022, %v982
  %1044 = vst.msk [vmem:[#allocation3 + $0xa8] sm:$0xff] %vm1022, %v984
  %1045 = vst.msk [vmem:[#allocation3 + $0xb0] sm:$0xff] %vm1022, %v986
  %1046 = vst.msk [vmem:[#allocation3 + $0xb8] sm:$0xff] %vm1022, %v988
  %1047 = vst.msk [vmem:[#allocation3 + $0xc0] sm:$0xff] %vm1022, %v990
  %1048 = vst.msk [vmem:[#allocation3 + $0xc8] sm:$0xff] %vm1022, %v992
  %1049 = vst.msk [vmem:[#allocation3 + $0xd0] sm:$0xff] %vm1022, %v994
  %v1050 = vld [vmem:[#allocation2 + $0x12] sm:$0xff]
  %v1051 = vld [vmem:[#allocation2 + $0x1a] sm:$0xff]
  %v1052 = vld [vmem:[#allocation2 + $0x22] sm:$0xff]
  %v1053 = vld [vmem:[#allocation2 + $0x2a] sm:$0xff]
  %v1054 = vld [vmem:[#allocation2 + $0x32] sm:$0xff]
  %v1055 = vld [vmem:[#allocation2 + $0x3a] sm:$0xff]
  %v1056 = vld [vmem:[#allocation2 + $0x42] sm:$0xff]
  %v1057 = vld [vmem:[#allocation2 + $0x4a] sm:$0xff]
  %v1058 = vld [vmem:[#allocation2 + $0x52] sm:$0xff]
  %v1059 = vld [vmem:[#allocation2 + $0x5a] sm:$0xff]
  %v1060 = vld [vmem:[#allocation2 + $0x62] sm:$0xff]
  %v1061 = vld [vmem:[#allocation2 + $0x6a] sm:$0xff]
  %v1062 = vld [vmem:[#allocation2 + $0x72] sm:$0xff]
  %v1063 = vld [vmem:[#allocation2 + $0x7a] sm:$0xff]
  %v1064 = vld [vmem:[#allocation2 + $0x82] sm:$0xff]
  %v1065 = vld [vmem:[#allocation2 + $0x8a] sm:$0xff]
  %v1066 = vld [vmem:[#allocation2 + $0x92] sm:$0xff]
  %v1067 = vld [vmem:[#allocation2 + $0x9a] sm:$0xff]
  %v1068 = vld [vmem:[#allocation2 + $0xa2] sm:$0xff]
  %v1069 = vld [vmem:[#allocation2 + $0xaa] sm:$0xff]
  %v1070 = vld [vmem:[#allocation2 + $0xb2] sm:$0xff]
  %v1071 = vld [vmem:[#allocation2 + $0xba] sm:$0xff]
  %v1072 = vld [vmem:[#allocation2 + $0xc2] sm:$0xff]
  %v1073 = vld [vmem:[#allocation2 + $0xca] sm:$0xff]
  %v1074 = vld [vmem:[#allocation2 + $0xd2] sm:$0xff]
  %v1075 = vld [vmem:[#allocation2 + $0xda] sm:$0xff]
  %v1076 = vld [vmem:[#allocation2 + $0xe2] sm:$0xff]
  %v1077 = vld [vmem:[%s2] sm:$0xff]
  %v1078 = vld [vmem:[%s2 + $0x8] sm:$0xff]
  %v1079 = vld [vmem:[%s2 + $0x10] sm:$0xff]
  %v1080 = vld [vmem:[%s2 + $0x18] sm:$0xff]
  %v1081 = vld [vmem:[%s2 + $0x20] sm:$0xff]
  %v1082 = vld [vmem:[%s2 + $0x28] sm:$0xff]
  %v1083 = vld [vmem:[%s2 + $0x30] sm:$0xff]
  %v1084 = vld [vmem:[%s2 + $0x38] sm:$0xff]
  %v1085 = vld [vmem:[%s2 + $0x40] sm:$0xff]
  %v1086 = vld [vmem:[%s2 + $0x48] sm:$0xff]
  %v1087 = vld [vmem:[%s2 + $0x50] sm:$0xff]
  %v1088 = vld [vmem:[%s2 + $0x58] sm:$0xff]
  %v1089 = vld [vmem:[%s2 + $0x60] sm:$0xff]
  %v1090 = vld [vmem:[%s2 + $0x68] sm:$0xff]
  %v1091 = vld [vmem:[%s2 + $0x70] sm:$0xff]
  %v1092 = vld [vmem:[%s2 + $0x78] sm:$0xff]
  %v1093 = vld [vmem:[%s2 + $0x80] sm:$0xff]
  %v1094 = vld [vmem:[%s2 + $0x88] sm:$0xff]
  %v1095 = vld [vmem:[%s2 + $0x90] sm:$0xff]
  %v1096 = vld [vmem:[%s2 + $0x98] sm:$0xff]
  %v1097 = vld [vmem:[%s2 + $0xa0] sm:$0xff]
  %v1098 = vld [vmem:[%s2 + $0xa8] sm:$0xff]
  %v1099 = vld [vmem:[%s2 + $0xb0] sm:$0xff]
  %v1100 = vld [vmem:[%s2 + $0xb8] sm:$0xff]
  %v1101 = vld [vmem:[%s2 + $0xc0] sm:$0xff]
  %v1102 = vld [vmem:[%s2 + $0xc8] sm:$0xff]
  %v1103 = vld [vmem:[%s2 + $0xd0] sm:$0xff]
  %1105 = vset.pattern.permute.xlu0 3
  %1106 = vperm.xlu0 %1105, %v1077
  %v1107 = vpop.permute.xlu0 %1106
  %1110 = vset.pattern.permute.xlu0 3
  %1111 = vperm.xlu0 %1110, %v1078
  %v1112 = vpop.permute.xlu0 %1111
  %1115 = vset.pattern.permute.xlu0 3
  %1116 = vperm.xlu0 %1115, %v1079
  %v1117 = vpop.permute.xlu0 %1116
  %1120 = vset.pattern.permute.xlu0 3
  %1121 = vperm.xlu0 %1120, %v1080
  %v1122 = vpop.permute.xlu0 %1121
  %1125 = vset.pattern.permute.xlu0 3
  %1126 = vperm.xlu0 %1125, %v1081
  %v1127 = vpop.permute.xlu0 %1126
  %1130 = vset.pattern.permute.xlu0 3
  %1131 = vperm.xlu0 %1130, %v1082
  %v1132 = vpop.permute.xlu0 %1131
  %1135 = vset.pattern.permute.xlu0 3
  %1136 = vperm.xlu0 %1135, %v1083
  %v1137 = vpop.permute.xlu0 %1136
  %1140 = vset.pattern.permute.xlu0 3
  %1141 = vperm.xlu0 %1140, %v1084
  %v1142 = vpop.permute.xlu0 %1141
  %1145 = vset.pattern.permute.xlu0 3
  %1146 = vperm.xlu0 %1145, %v1085
  %v1147 = vpop.permute.xlu0 %1146
  %1150 = vset.pattern.permute.xlu0 3
  %1151 = vperm.xlu0 %1150, %v1086
  %v1152 = vpop.permute.xlu0 %1151
  %1155 = vset.pattern.permute.xlu0 3
  %1156 = vperm.xlu0 %1155, %v1087
  %v1157 = vpop.permute.xlu0 %1156
  %1160 = vset.pattern.permute.xlu0 3
  %1161 = vperm.xlu0 %1160, %v1088
  %v1162 = vpop.permute.xlu0 %1161
  %1165 = vset.pattern.permute.xlu0 3
  %1166 = vperm.xlu0 %1165, %v1089
  %v1167 = vpop.permute.xlu0 %1166
  %1170 = vset.pattern.permute.xlu0 3
  %1171 = vperm.xlu0 %1170, %v1090
  %v1172 = vpop.permute.xlu0 %1171
  %1175 = vset.pattern.permute.xlu0 3
  %1176 = vperm.xlu0 %1175, %v1091
  %v1177 = vpop.permute.xlu0 %1176
  %1180 = vset.pattern.permute.xlu0 3
  %1181 = vperm.xlu0 %1180, %v1092
  %v1182 = vpop.permute.xlu0 %1181
  %1185 = vset.pattern.permute.xlu0 3
  %1186 = vperm.xlu0 %1185, %v1093
  %v1187 = vpop.permute.xlu0 %1186
  %1190 = vset.pattern.permute.xlu0 3
  %1191 = vperm.xlu0 %1190, %v1094
  %v1192 = vpop.permute.xlu0 %1191
  %1195 = vset.pattern.permute.xlu0 3
  %1196 = vperm.xlu0 %1195, %v1095
  %v1197 = vpop.permute.xlu0 %1196
  %1200 = vset.pattern.permute.xlu0 3
  %1201 = vperm.xlu0 %1200, %v1096
  %v1202 = vpop.permute.xlu0 %1201
  %1205 = vset.pattern.permute.xlu0 3
  %1206 = vperm.xlu0 %1205, %v1097
  %v1207 = vpop.permute.xlu0 %1206
  %1210 = vset.pattern.permute.xlu0 3
  %1211 = vperm.xlu0 %1210, %v1098
  %v1212 = vpop.permute.xlu0 %1211
  %1215 = vset.pattern.permute.xlu0 3
  %1216 = vperm.xlu0 %1215, %v1099
  %v1217 = vpop.permute.xlu0 %1216
  %1220 = vset.pattern.permute.xlu0 3
  %1221 = vperm.xlu0 %1220, %v1100
  %v1222 = vpop.permute.xlu0 %1221
  %1225 = vset.pattern.permute.xlu0 3
  %1226 = vperm.xlu0 %1225, %v1101
  %v1227 = vpop.permute.xlu0 %1226
  %1230 = vset.pattern.permute.xlu0 3
  %1231 = vperm.xlu0 %1230, %v1102
  %v1232 = vpop.permute.xlu0 %1231
  %1235 = vset.pattern.permute.xlu0 3
  %1236 = vperm.xlu0 %1235, %v1103
  %v1237 = vpop.permute.xlu0 %1236
  %v1239 = vmul.f32 %v1050, %v1107
  %v1240 = vmul.f32 %v1051, %v1112
  %v1241 = vmul.f32 %v1052, %v1117
  %v1242 = vmul.f32 %v1053, %v1122
  %v1243 = vmul.f32 %v1054, %v1127
  %v1244 = vmul.f32 %v1055, %v1132
  %v1245 = vmul.f32 %v1056, %v1137
  %v1246 = vmul.f32 %v1057, %v1142
  %v1247 = vmul.f32 %v1058, %v1147
  %v1248 = vmul.f32 %v1059, %v1152
  %v1249 = vmul.f32 %v1060, %v1157
  %v1250 = vmul.f32 %v1061, %v1162
  %v1251 = vmul.f32 %v1062, %v1167
  %v1252 = vmul.f32 %v1063, %v1172
  %v1253 = vmul.f32 %v1064, %v1177
  %v1254 = vmul.f32 %v1065, %v1182
  %v1255 = vmul.f32 %v1066, %v1187
  %v1256 = vmul.f32 %v1067, %v1192
  %v1257 = vmul.f32 %v1068, %v1197
  %v1258 = vmul.f32 %v1069, %v1202
  %v1259 = vmul.f32 %v1070, %v1207
  %v1260 = vmul.f32 %v1071, %v1212
  %v1261 = vmul.f32 %v1072, %v1217
  %v1262 = vmul.f32 %v1073, %v1222
  %v1263 = vmul.f32 %v1074, %v1227
  %v1264 = vmul.f32 %v1075, %v1232
  %v1265 = vmul.f32 %v1076, %v1237
  %1293 = vrot.lane.b32.xlu0 %v1239, 6
  %v1294 = vpop.permute.xlu0 %1293
  %1295 = vrot.lane.b32.xlu0 %v1240, 6
  %v1296 = vpop.permute.xlu0 %1295
  %1297 = vrot.lane.b32.xlu0 %v1241, 6
  %v1298 = vpop.permute.xlu0 %1297
  %1299 = vrot.lane.b32.xlu0 %v1242, 6
  %v1300 = vpop.permute.xlu0 %1299
  %1301 = vrot.lane.b32.xlu0 %v1243, 6
  %v1302 = vpop.permute.xlu0 %1301
  %1303 = vrot.lane.b32.xlu0 %v1244, 6
  %v1304 = vpop.permute.xlu0 %1303
  %1305 = vrot.lane.b32.xlu0 %v1245, 6
  %v1306 = vpop.permute.xlu0 %1305
  %1307 = vrot.lane.b32.xlu0 %v1246, 6
  %v1308 = vpop.permute.xlu0 %1307
  %1309 = vrot.lane.b32.xlu0 %v1247, 6
  %v1310 = vpop.permute.xlu0 %1309
  %1311 = vrot.lane.b32.xlu0 %v1248, 6
  %v1312 = vpop.permute.xlu0 %1311
  %1313 = vrot.lane.b32.xlu0 %v1249, 6
  %v1314 = vpop.permute.xlu0 %1313
  %1315 = vrot.lane.b32.xlu0 %v1250, 6
  %v1316 = vpop.permute.xlu0 %1315
  %1317 = vrot.lane.b32.xlu0 %v1251, 6
  %v1318 = vpop.permute.xlu0 %1317
  %1319 = vrot.lane.b32.xlu0 %v1252, 6
  %v1320 = vpop.permute.xlu0 %1319
  %1321 = vrot.lane.b32.xlu0 %v1253, 6
  %v1322 = vpop.permute.xlu0 %1321
  %1323 = vrot.lane.b32.xlu0 %v1254, 6
  %v1324 = vpop.permute.xlu0 %1323
  %1325 = vrot.lane.b32.xlu0 %v1255, 6
  %v1326 = vpop.permute.xlu0 %1325
  %1327 = vrot.lane.b32.xlu0 %v1256, 6
  %v1328 = vpop.permute.xlu0 %1327
  %1329 = vrot.lane.b32.xlu0 %v1257, 6
  %v1330 = vpop.permute.xlu0 %1329
  %1331 = vrot.lane.b32.xlu0 %v1258, 6
  %v1332 = vpop.permute.xlu0 %1331
  %1333 = vrot.lane.b32.xlu0 %v1259, 6
  %v1334 = vpop.permute.xlu0 %1333
  %1335 = vrot.lane.b32.xlu0 %v1260, 6
  %v1336 = vpop.permute.xlu0 %1335
  %1337 = vrot.lane.b32.xlu0 %v1261, 6
  %v1338 = vpop.permute.xlu0 %1337
  %1339 = vrot.lane.b32.xlu0 %v1262, 6
  %v1340 = vpop.permute.xlu0 %1339
  %1341 = vrot.lane.b32.xlu0 %v1263, 6
  %v1342 = vpop.permute.xlu0 %1341
  %1343 = vrot.lane.b32.xlu0 %v1264, 6
  %v1344 = vpop.permute.xlu0 %1343
  %1345 = vrot.lane.b32.xlu0 %v1265, 6
  %v1346 = vpop.permute.xlu0 %1345
  %vm1374 = vcmask 64560
  %1375 = vst.msk [vmem:[#allocation3] sm:$0xff] %vm1374, %v1294
  %1376 = vst.msk [vmem:[#allocation3 + $0x8] sm:$0xff] %vm1374, %v1296
  %1377 = vst.msk [vmem:[#allocation3 + $0x10] sm:$0xff] %vm1374, %v1298
  %1378 = vst.msk [vmem:[#allocation3 + $0x18] sm:$0xff] %vm1374, %v1300
  %1379 = vst.msk [vmem:[#allocation3 + $0x20] sm:$0xff] %vm1374, %v1302
  %1380 = vst.msk [vmem:[#allocation3 + $0x28] sm:$0xff] %vm1374, %v1304
  %1381 = vst.msk [vmem:[#allocation3 + $0x30] sm:$0xff] %vm1374, %v1306
  %1382 = vst.msk [vmem:[#allocation3 + $0x38] sm:$0xff] %vm1374, %v1308
  %1383 = vst.msk [vmem:[#allocation3 + $0x40] sm:$0xff] %vm1374, %v1310
  %1384 = vst.msk [vmem:[#allocation3 + $0x48] sm:$0xff] %vm1374, %v1312
  %1385 = vst.msk [vmem:[#allocation3 + $0x50] sm:$0xff] %vm1374, %v1314
  %1386 = vst.msk [vmem:[#allocation3 + $0x58] sm:$0xff] %vm1374, %v1316
  %1387 = vst.msk [vmem:[#allocation3 + $0x60] sm:$0xff] %vm1374, %v1318
  %1388 = vst.msk [vmem:[#allocation3 + $0x68] sm:$0xff] %vm1374, %v1320
  %1389 = vst.msk [vmem:[#allocation3 + $0x70] sm:$0xff] %vm1374, %v1322
  %1390 = vst.msk [vmem:[#allocation3 + $0x78] sm:$0xff] %vm1374, %v1324
  %1391 = vst.msk [vmem:[#allocation3 + $0x80] sm:$0xff] %vm1374, %v1326
  %1392 = vst.msk [vmem:[#allocation3 + $0x88] sm:$0xff] %vm1374, %v1328
  %1393 = vst.msk [vmem:[#allocation3 + $0x90] sm:$0xff] %vm1374, %v1330
  %1394 = vst.msk [vmem:[#allocation3 + $0x98] sm:$0xff] %vm1374, %v1332
  %1395 = vst.msk [vmem:[#allocation3 + $0xa0] sm:$0xff] %vm1374, %v1334
  %1396 = vst.msk [vmem:[#allocation3 + $0xa8] sm:$0xff] %vm1374, %v1336
  %1397 = vst.msk [vmem:[#allocation3 + $0xb0] sm:$0xff] %vm1374, %v1338
  %1398 = vst.msk [vmem:[#allocation3 + $0xb8] sm:$0xff] %vm1374, %v1340
  %1399 = vst.msk [vmem:[#allocation3 + $0xc0] sm:$0xff] %vm1374, %v1342
  %1400 = vst.msk [vmem:[#allocation3 + $0xc8] sm:$0xff] %vm1374, %v1344
  %1401 = vst.msk [vmem:[#allocation3 + $0xd0] sm:$0xff] %vm1374, %v1346
  %v1402 = vld [vmem:[#allocation2 + $0x13] sm:$0xff]
  %v1403 = vld [vmem:[#allocation2 + $0x1b] sm:$0xff]
  %v1404 = vld [vmem:[#allocation2 + $0x23] sm:$0xff]
  %v1405 = vld [vmem:[#allocation2 + $0x2b] sm:$0xff]
  %v1406 = vld [vmem:[#allocation2 + $0x33] sm:$0xff]
  %v1407 = vld [vmem:[#allocation2 + $0x3b] sm:$0xff]
  %v1408 = vld [vmem:[#allocation2 + $0x43] sm:$0xff]
  %v1409 = vld [vmem:[#allocation2 + $0x4b] sm:$0xff]
  %v1410 = vld [vmem:[#allocation2 + $0x53] sm:$0xff]
  %v1411 = vld [vmem:[#allocation2 + $0x5b] sm:$0xff]
  %v1412 = vld [vmem:[#allocation2 + $0x63] sm:$0xff]
  %v1413 = vld [vmem:[#allocation2 + $0x6b] sm:$0xff]
  %v1414 = vld [vmem:[#allocation2 + $0x73] sm:$0xff]
  %v1415 = vld [vmem:[#allocation2 + $0x7b] sm:$0xff]
  %v1416 = vld [vmem:[#allocation2 + $0x83] sm:$0xff]
  %v1417 = vld [vmem:[#allocation2 + $0x8b] sm:$0xff]
  %v1418 = vld [vmem:[#allocation2 + $0x93] sm:$0xff]
  %v1419 = vld [vmem:[#allocation2 + $0x9b] sm:$0xff]
  %v1420 = vld [vmem:[#allocation2 + $0xa3] sm:$0xff]
  %v1421 = vld [vmem:[#allocation2 + $0xab] sm:$0xff]
  %v1422 = vld [vmem:[#allocation2 + $0xb3] sm:$0xff]
  %v1423 = vld [vmem:[#allocation2 + $0xbb] sm:$0xff]
  %v1424 = vld [vmem:[#allocation2 + $0xc3] sm:$0xff]
  %v1425 = vld [vmem:[#allocation2 + $0xcb] sm:$0xff]
  %v1426 = vld [vmem:[#allocation2 + $0xd3] sm:$0xff]
  %v1427 = vld [vmem:[#allocation2 + $0xdb] sm:$0xff]
  %v1428 = vld [vmem:[#allocation2 + $0xe3] sm:$0xff]
  %1456 = vrot.lane.b32.xlu0 %v1402, 8
  %v1457 = vpop.permute.xlu0 %1456
  %1458 = vrot.lane.b32.xlu0 %v1403, 8
  %v1459 = vpop.permute.xlu0 %1458
  %1460 = vrot.lane.b32.xlu0 %v1404, 8
  %v1461 = vpop.permute.xlu0 %1460
  %1462 = vrot.lane.b32.xlu0 %v1405, 8
  %v1463 = vpop.permute.xlu0 %1462
  %1464 = vrot.lane.b32.xlu0 %v1406, 8
  %v1465 = vpop.permute.xlu0 %1464
  %1466 = vrot.lane.b32.xlu0 %v1407, 8
  %v1467 = vpop.permute.xlu0 %1466
  %1468 = vrot.lane.b32.xlu0 %v1408, 8
  %v1469 = vpop.permute.xlu0 %1468
  %1470 = vrot.lane.b32.xlu0 %v1409, 8
  %v1471 = vpop.permute.xlu0 %1470
  %1472 = vrot.lane.b32.xlu0 %v1410, 8
  %v1473 = vpop.permute.xlu0 %1472
  %1474 = vrot.lane.b32.xlu0 %v1411, 8
  %v1475 = vpop.permute.xlu0 %1474
  %1476 = vrot.lane.b32.xlu0 %v1412, 8
  %v1477 = vpop.permute.xlu0 %1476
  %1478 = vrot.lane.b32.xlu0 %v1413, 8
  %v1479 = vpop.permute.xlu0 %1478
  %1480 = vrot.lane.b32.xlu0 %v1414, 8
  %v1481 = vpop.permute.xlu0 %1480
  %1482 = vrot.lane.b32.xlu0 %v1415, 8
  %v1483 = vpop.permute.xlu0 %1482
  %1484 = vrot.lane.b32.xlu0 %v1416, 8
  %v1485 = vpop.permute.xlu0 %1484
  %1486 = vrot.lane.b32.xlu0 %v1417, 8
  %v1487 = vpop.permute.xlu0 %1486
  %1488 = vrot.lane.b32.xlu0 %v1418, 8
  %v1489 = vpop.permute.xlu0 %1488
  %1490 = vrot.lane.b32.xlu0 %v1419, 8
  %v1491 = vpop.permute.xlu0 %1490
  %1492 = vrot.lane.b32.xlu0 %v1420, 8
  %v1493 = vpop.permute.xlu0 %1492
  %1494 = vrot.lane.b32.xlu0 %v1421, 8
  %v1495 = vpop.permute.xlu0 %1494
  %1496 = vrot.lane.b32.xlu0 %v1422, 8
  %v1497 = vpop.permute.xlu0 %1496
  %1498 = vrot.lane.b32.xlu0 %v1423, 8
  %v1499 = vpop.permute.xlu0 %1498
  %1500 = vrot.lane.b32.xlu0 %v1424, 8
  %v1501 = vpop.permute.xlu0 %1500
  %1502 = vrot.lane.b32.xlu0 %v1425, 8
  %v1503 = vpop.permute.xlu0 %1502
  %1504 = vrot.lane.b32.xlu0 %v1426, 8
  %v1505 = vpop.permute.xlu0 %1504
  %1506 = vrot.lane.b32.xlu0 %v1427, 8
  %v1507 = vpop.permute.xlu0 %1506
  %1508 = vrot.lane.b32.xlu0 %v1428, 8
  %v1509 = vpop.permute.xlu0 %1508
  %vm1537 = vcmask 80960
  %1538 = vst.msk [vmem:[#allocation3] sm:$0xff] %vm1537, %v1457
  %1539 = vst.msk [vmem:[#allocation3 + $0x8] sm:$0xff] %vm1537, %v1459
  %1540 = vst.msk [vmem:[#allocation3 + $0x10] sm:$0xff] %vm1537, %v1461
  %1541 = vst.msk [vmem:[#allocation3 + $0x18] sm:$0xff] %vm1537, %v1463
  %1542 = vst.msk [vmem:[#allocation3 + $0x20] sm:$0xff] %vm1537, %v1465
  %1543 = vst.msk [vmem:[#allocation3 + $0x28] sm:$0xff] %vm1537, %v1467
  %1544 = vst.msk [vmem:[#allocation3 + $0x30] sm:$0xff] %vm1537, %v1469
  %1545 = vst.msk [vmem:[#allocation3 + $0x38] sm:$0xff] %vm1537, %v1471
  %1546 = vst.msk [vmem:[#allocation3 + $0x40] sm:$0xff] %vm1537, %v1473
  %1547 = vst.msk [vmem:[#allocation3 + $0x48] sm:$0xff] %vm1537, %v1475
  %1548 = vst.msk [vmem:[#allocation3 + $0x50] sm:$0xff] %vm1537, %v1477
  %1549 = vst.msk [vmem:[#allocation3 + $0x58] sm:$0xff] %vm1537, %v1479
  %1550 = vst.msk [vmem:[#allocation3 + $0x60] sm:$0xff] %vm1537, %v1481
  %1551 = vst.msk [vmem:[#allocation3 + $0x68] sm:$0xff] %vm1537, %v1483
  %1552 = vst.msk [vmem:[#allocation3 + $0x70] sm:$0xff] %vm1537, %v1485
  %1553 = vst.msk [vmem:[#allocation3 + $0x78] sm:$0xff] %vm1537, %v1487
  %1554 = vst.msk [vmem:[#allocation3 + $0x80] sm:$0xff] %vm1537, %v1489
  %1555 = vst.msk [vmem:[#allocation3 + $0x88] sm:$0xff] %vm1537, %v1491
  %1556 = vst.msk [vmem:[#allocation3 + $0x90] sm:$0xff] %vm1537, %v1493
  %1557 = vst.msk [vmem:[#allocation3 + $0x98] sm:$0xff] %vm1537, %v1495
  %1558 = vst.msk [vmem:[#allocation3 + $0xa0] sm:$0xff] %vm1537, %v1497
  %1559 = vst.msk [vmem:[#allocation3 + $0xa8] sm:$0xff] %vm1537, %v1499
  %1560 = vst.msk [vmem:[#allocation3 + $0xb0] sm:$0xff] %vm1537, %v1501
  %1561 = vst.msk [vmem:[#allocation3 + $0xb8] sm:$0xff] %vm1537, %v1503
  %1562 = vst.msk [vmem:[#allocation3 + $0xc0] sm:$0xff] %vm1537, %v1505
  %1563 = vst.msk [vmem:[#allocation3 + $0xc8] sm:$0xff] %vm1537, %v1507
  %1564 = vst.msk [vmem:[#allocation3 + $0xd0] sm:$0xff] %vm1537, %v1509
  %v1565 = vld [vmem:[#allocation2 + $0x14] sm:$0xff]
  %v1566 = vld [vmem:[#allocation2 + $0x1c] sm:$0xff]
  %v1567 = vld [vmem:[#allocation2 + $0x24] sm:$0xff]
  %v1568 = vld [vmem:[#allocation2 + $0x2c] sm:$0xff]
  %v1569 = vld [vmem:[#allocation2 + $0x34] sm:$0xff]
  %v1570 = vld [vmem:[#allocation2 + $0x3c] sm:$0xff]
  %v1571 = vld [vmem:[#allocation2 + $0x44] sm:$0xff]
  %v1572 = vld [vmem:[#allocation2 + $0x4c] sm:$0xff]
  %v1573 = vld [vmem:[#allocation2 + $0x54] sm:$0xff]
  %v1574 = vld [vmem:[#allocation2 + $0x5c] sm:$0xff]
  %v1575 = vld [vmem:[#allocation2 + $0x64] sm:$0xff]
  %v1576 = vld [vmem:[#allocation2 + $0x6c] sm:$0xff]
  %v1577 = vld [vmem:[#allocation2 + $0x74] sm:$0xff]
  %v1578 = vld [vmem:[#allocation2 + $0x7c] sm:$0xff]
  %v1579 = vld [vmem:[#allocation2 + $0x84] sm:$0xff]
  %v1580 = vld [vmem:[#allocation2 + $0x8c] sm:$0xff]
  %v1581 = vld [vmem:[#allocation2 + $0x94] sm:$0xff]
  %v1582 = vld [vmem:[#allocation2 + $0x9c] sm:$0xff]
  %v1583 = vld [vmem:[#allocation2 + $0xa4] sm:$0xff]
  %v1584 = vld [vmem:[#allocation2 + $0xac] sm:$0xff]
  %v1585 = vld [vmem:[#allocation2 + $0xb4] sm:$0xff]
  %v1586 = vld [vmem:[#allocation2 + $0xbc] sm:$0xff]
  %v1587 = vld [vmem:[#allocation2 + $0xc4] sm:$0xff]
  %v1588 = vld [vmem:[#allocation2 + $0xcc] sm:$0xff]
  %v1589 = vld [vmem:[#allocation2 + $0xd4] sm:$0xff]
  %v1590 = vld [vmem:[#allocation2 + $0xdc] sm:$0xff]
  %v1591 = vld [vmem:[#allocation2 + $0xe4] sm:$0xff]
  %v1592 = vld [vmem:[%s2] sm:$0xff]
  %v1593 = vld [vmem:[%s2 + $0x8] sm:$0xff]
  %v1594 = vld [vmem:[%s2 + $0x10] sm:$0xff]
  %v1595 = vld [vmem:[%s2 + $0x18] sm:$0xff]
  %v1596 = vld [vmem:[%s2 + $0x20] sm:$0xff]
  %v1597 = vld [vmem:[%s2 + $0x28] sm:$0xff]
  %v1598 = vld [vmem:[%s2 + $0x30] sm:$0xff]
  %v1599 = vld [vmem:[%s2 + $0x38] sm:$0xff]
  %v1600 = vld [vmem:[%s2 + $0x40] sm:$0xff]
  %v1601 = vld [vmem:[%s2 + $0x48] sm:$0xff]
  %v1602 = vld [vmem:[%s2 + $0x50] sm:$0xff]
  %v1603 = vld [vmem:[%s2 + $0x58] sm:$0xff]
  %v1604 = vld [vmem:[%s2 + $0x60] sm:$0xff]
  %v1605 = vld [vmem:[%s2 + $0x68] sm:$0xff]
  %v1606 = vld [vmem:[%s2 + $0x70] sm:$0xff]
  %v1607 = vld [vmem:[%s2 + $0x78] sm:$0xff]
  %v1608 = vld [vmem:[%s2 + $0x80] sm:$0xff]
  %v1609 = vld [vmem:[%s2 + $0x88] sm:$0xff]
  %v1610 = vld [vmem:[%s2 + $0x90] sm:$0xff]
  %v1611 = vld [vmem:[%s2 + $0x98] sm:$0xff]
  %v1612 = vld [vmem:[%s2 + $0xa0] sm:$0xff]
  %v1613 = vld [vmem:[%s2 + $0xa8] sm:$0xff]
  %v1614 = vld [vmem:[%s2 + $0xb0] sm:$0xff]
  %v1615 = vld [vmem:[%s2 + $0xb8] sm:$0xff]
  %v1616 = vld [vmem:[%s2 + $0xc0] sm:$0xff]
  %v1617 = vld [vmem:[%s2 + $0xc8] sm:$0xff]
  %v1618 = vld [vmem:[%s2 + $0xd0] sm:$0xff]
  %1620 = vset.pattern.permute.xlu0 5
  %1621 = vperm.xlu0 %1620, %v1592
  %v1622 = vpop.permute.xlu0 %1621
  %1625 = vset.pattern.permute.xlu0 5
  %1626 = vperm.xlu0 %1625, %v1593
  %v1627 = vpop.permute.xlu0 %1626
  %1630 = vset.pattern.permute.xlu0 5
  %1631 = vperm.xlu0 %1630, %v1594
  %v1632 = vpop.permute.xlu0 %1631
  %1635 = vset.pattern.permute.xlu0 5
  %1636 = vperm.xlu0 %1635, %v1595
  %v1637 = vpop.permute.xlu0 %1636
  %1640 = vset.pattern.permute.xlu0 5
  %1641 = vperm.xlu0 %1640, %v1596
  %v1642 = vpop.permute.xlu0 %1641
  %1645 = vset.pattern.permute.xlu0 5
  %1646 = vperm.xlu0 %1645, %v1597
  %v1647 = vpop.permute.xlu0 %1646
  %1650 = vset.pattern.permute.xlu0 5
  %1651 = vperm.xlu0 %1650, %v1598
  %v1652 = vpop.permute.xlu0 %1651
  %1655 = vset.pattern.permute.xlu0 5
  %1656 = vperm.xlu0 %1655, %v1599
  %v1657 = vpop.permute.xlu0 %1656
  %1660 = vset.pattern.permute.xlu0 5
  %1661 = vperm.xlu0 %1660, %v1600
  %v1662 = vpop.permute.xlu0 %1661
  %1665 = vset.pattern.permute.xlu0 5
  %1666 = vperm.xlu0 %1665, %v1601
  %v1667 = vpop.permute.xlu0 %1666
  %1670 = vset.pattern.permute.xlu0 5
  %1671 = vperm.xlu0 %1670, %v1602
  %v1672 = vpop.permute.xlu0 %1671
  %1675 = vset.pattern.permute.xlu0 5
  %1676 = vperm.xlu0 %1675, %v1603
  %v1677 = vpop.permute.xlu0 %1676
  %1680 = vset.pattern.permute.xlu0 5
  %1681 = vperm.xlu0 %1680, %v1604
  %v1682 = vpop.permute.xlu0 %1681
  %1685 = vset.pattern.permute.xlu0 5
  %1686 = vperm.xlu0 %1685, %v1605
  %v1687 = vpop.permute.xlu0 %1686
  %1690 = vset.pattern.permute.xlu0 5
  %1691 = vperm.xlu0 %1690, %v1606
  %v1692 = vpop.permute.xlu0 %1691
  %1695 = vset.pattern.permute.xlu0 5
  %1696 = vperm.xlu0 %1695, %v1607
  %v1697 = vpop.permute.xlu0 %1696
  %1700 = vset.pattern.permute.xlu0 5
  %1701 = vperm.xlu0 %1700, %v1608
  %v1702 = vpop.permute.xlu0 %1701
  %1705 = vset.pattern.permute.xlu0 5
  %1706 = vperm.xlu0 %1705, %v1609
  %v1707 = vpop.permute.xlu0 %1706
  %1710 = vset.pattern.permute.xlu0 5
  %1711 = vperm.xlu0 %1710, %v1610
  %v1712 = vpop.permute.xlu0 %1711
  %1715 = vset.pattern.permute.xlu0 5
  %1716 = vperm.xlu0 %1715, %v1611
  %v1717 = vpop.permute.xlu0 %1716
  %1720 = vset.pattern.permute.xlu0 5
  %1721 = vperm.xlu0 %1720, %v1612
  %v1722 = vpop.permute.xlu0 %1721
  %1725 = vset.pattern.permute.xlu0 5
  %1726 = vperm.xlu0 %1725, %v1613
  %v1727 = vpop.permute.xlu0 %1726
  %1730 = vset.pattern.permute.xlu0 5
  %1731 = vperm.xlu0 %1730, %v1614
  %v1732 = vpop.permute.xlu0 %1731
  %1735 = vset.pattern.permute.xlu0 5
  %1736 = vperm.xlu0 %1735, %v1615
  %v1737 = vpop.permute.xlu0 %1736
  %1740 = vset.pattern.permute.xlu0 5
  %1741 = vperm.xlu0 %1740, %v1616
  %v1742 = vpop.permute.xlu0 %1741
  %1745 = vset.pattern.permute.xlu0 5
  %1746 = vperm.xlu0 %1745, %v1617
  %v1747 = vpop.permute.xlu0 %1746
  %1750 = vset.pattern.permute.xlu0 5
  %1751 = vperm.xlu0 %1750, %v1618
  %v1752 = vpop.permute.xlu0 %1751
  %v1754 = vmul.f32 %v1565, %v1622
  %v1755 = vmul.f32 %v1566, %v1627
  %v1756 = vmul.f32 %v1567, %v1632
  %v1757 = vmul.f32 %v1568, %v1637
  %v1758 = vmul.f32 %v1569, %v1642
  %v1759 = vmul.f32 %v1570, %v1647
  %v1760 = vmul.f32 %v1571, %v1652
  %v1761 = vmul.f32 %v1572, %v1657
  %v1762 = vmul.f32 %v1573, %v1662
  %v1763 = vmul.f32 %v1574, %v1667
  %v1764 = vmul.f32 %v1575, %v1672
  %v1765 = vmul.f32 %v1576, %v1677
  %v1766 = vmul.f32 %v1577, %v1682
  %v1767 = vmul.f32 %v1578, %v1687
  %v1768 = vmul.f32 %v1579, %v1692
  %v1769 = vmul.f32 %v1580, %v1697
  %v1770 = vmul.f32 %v1581, %v1702
  %v1771 = vmul.f32 %v1582, %v1707
  %v1772 = vmul.f32 %v1583, %v1712
  %v1773 = vmul.f32 %v1584, %v1717
  %v1774 = vmul.f32 %v1585, %v1722
  %v1775 = vmul.f32 %v1586, %v1727
  %v1776 = vmul.f32 %v1587, %v1732
  %v1777 = vmul.f32 %v1588, %v1737
  %v1778 = vmul.f32 %v1589, %v1742
  %v1779 = vmul.f32 %v1590, %v1747
  %v1780 = vmul.f32 %v1591, %v1752
  %1808 = vrot.lane.b32.xlu0 %v1754, 10
  %v1809 = vpop.permute.xlu0 %1808
  %1810 = vrot.lane.b32.xlu0 %v1755, 10
  %v1811 = vpop.permute.xlu0 %1810
  %1812 = vrot.lane.b32.xlu0 %v1756, 10
  %v1813 = vpop.permute.xlu0 %1812
  %1814 = vrot.lane.b32.xlu0 %v1757, 10
  %v1815 = vpop.permute.xlu0 %1814
  %1816 = vrot.lane.b32.xlu0 %v1758, 10
  %v1817 = vpop.permute.xlu0 %1816
  %1818 = vrot.lane.b32.xlu0 %v1759, 10
  %v1819 = vpop.permute.xlu0 %1818
  %1820 = vrot.lane.b32.xlu0 %v1760, 10
  %v1821 = vpop.permute.xlu0 %1820
  %1822 = vrot.lane.b32.xlu0 %v1761, 10
  %v1823 = vpop.permute.xlu0 %1822
  %1824 = vrot.lane.b32.xlu0 %v1762, 10
  %v1825 = vpop.permute.xlu0 %1824
  %1826 = vrot.lane.b32.xlu0 %v1763, 10
  %v1827 = vpop.permute.xlu0 %1826
  %1828 = vrot.lane.b32.xlu0 %v1764, 10
  %v1829 = vpop.permute.xlu0 %1828
  %1830 = vrot.lane.b32.xlu0 %v1765, 10
  %v1831 = vpop.permute.xlu0 %1830
  %1832 = vrot.lane.b32.xlu0 %v1766, 10
  %v1833 = vpop.permute.xlu0 %1832
  %1834 = vrot.lane.b32.xlu0 %v1767, 10
  %v1835 = vpop.permute.xlu0 %1834
  %1836 = vrot.lane.b32.xlu0 %v1768, 10
  %v1837 = vpop.permute.xlu0 %1836
  %1838 = vrot.lane.b32.xlu0 %v1769, 10
  %v1839 = vpop.permute.xlu0 %1838
  %1840 = vrot.lane.b32.xlu0 %v1770, 10
  %v1841 = vpop.permute.xlu0 %1840
  %1842 = vrot.lane.b32.xlu0 %v1771, 10
  %v1843 = vpop.permute.xlu0 %1842
  %1844 = vrot.lane.b32.xlu0 %v1772, 10
  %v1845 = vpop.permute.xlu0 %1844
  %1846 = vrot.lane.b32.xlu0 %v1773, 10
  %v1847 = vpop.permute.xlu0 %1846
  %1848 = vrot.lane.b32.xlu0 %v1774, 10
  %v1849 = vpop.permute.xlu0 %1848
  %1850 = vrot.lane.b32.xlu0 %v1775, 10
  %v1851 = vpop.permute.xlu0 %1850
  %1852 = vrot.lane.b32.xlu0 %v1776, 10
  %v1853 = vpop.permute.xlu0 %1852
  %1854 = vrot.lane.b32.xlu0 %v1777, 10
  %v1855 = vpop.permute.xlu0 %1854
  %1856 = vrot.lane.b32.xlu0 %v1778, 10
  %v1857 = vpop.permute.xlu0 %1856
  %1858 = vrot.lane.b32.xlu0 %v1779, 10
  %v1859 = vpop.permute.xlu0 %1858
  %1860 = vrot.lane.b32.xlu0 %v1780, 10
  %v1861 = vpop.permute.xlu0 %1860
  %vm1889 = vcmask 97360
  %1890 = vst.msk [vmem:[#allocation3] sm:$0xff] %vm1889, %v1809
  %1891 = vst.msk [vmem:[#allocation3 + $0x8] sm:$0xff] %vm1889, %v1811
  %1892 = vst.msk [vmem:[#allocation3 + $0x10] sm:$0xff] %vm1889, %v1813
  %1893 = vst.msk [vmem:[#allocation3 + $0x18] sm:$0xff] %vm1889, %v1815
  %1894 = vst.msk [vmem:[#allocation3 + $0x20] sm:$0xff] %vm1889, %v1817
  %1895 = vst.msk [vmem:[#allocation3 + $0x28] sm:$0xff] %vm1889, %v1819
  %1896 = vst.msk [vmem:[#allocation3 + $0x30] sm:$0xff] %vm1889, %v1821
  %1897 = vst.msk [vmem:[#allocation3 + $0x38] sm:$0xff] %vm1889, %v1823
  %1898 = vst.msk [vmem:[#allocation3 + $0x40] sm:$0xff] %vm1889, %v1825
  %1899 = vst.msk [vmem:[#allocation3 + $0x48] sm:$0xff] %vm1889, %v1827
  %1900 = vst.msk [vmem:[#allocation3 + $0x50] sm:$0xff] %vm1889, %v1829
  %1901 = vst.msk [vmem:[#allocation3 + $0x58] sm:$0xff] %vm1889, %v1831
  %1902 = vst.msk [vmem:[#allocation3 + $0x60] sm:$0xff] %vm1889, %v1833
  %1903 = vst.msk [vmem:[#allocation3 + $0x68] sm:$0xff] %vm1889, %v1835
  %1904 = vst.msk [vmem:[#allocation3 + $0x70] sm:$0xff] %vm1889, %v1837
  %1905 = vst.msk [vmem:[#allocation3 + $0x78] sm:$0xff] %vm1889, %v1839
  %1906 = vst.msk [vmem:[#allocation3 + $0x80] sm:$0xff] %vm1889, %v1841
  %1907 = vst.msk [vmem:[#allocation3 + $0x88] sm:$0xff] %vm1889, %v1843
  %1908 = vst.msk [vmem:[#allocation3 + $0x90] sm:$0xff] %vm1889, %v1845
  %1909 = vst.msk [vmem:[#allocation3 + $0x98] sm:$0xff] %vm1889, %v1847
  %1910 = vst.msk [vmem:[#allocation3 + $0xa0] sm:$0xff] %vm1889, %v1849
  %1911 = vst.msk [vmem:[#allocation3 + $0xa8] sm:$0xff] %vm1889, %v1851
  %1912 = vst.msk [vmem:[#allocation3 + $0xb0] sm:$0xff] %vm1889, %v1853
  %1913 = vst.msk [vmem:[#allocation3 + $0xb8] sm:$0xff] %vm1889, %v1855
  %1914 = vst.msk [vmem:[#allocation3 + $0xc0] sm:$0xff] %vm1889, %v1857
  %1915 = vst.msk [vmem:[#allocation3 + $0xc8] sm:$0xff] %vm1889, %v1859
  %1916 = vst.msk [vmem:[#allocation3 + $0xd0] sm:$0xff] %vm1889, %v1861
  %v1917 = vld [vmem:[#allocation2 + $0x24] sm:$0xff]
  %v1918 = vld [vmem:[#allocation2 + $0x2c] sm:$0xff]
  %v1919 = vld [vmem:[#allocation2 + $0x34] sm:$0xff]
  %v1920 = vld [vmem:[#allocation2 + $0x3c] sm:$0xff]
  %v1921 = vld [vmem:[#allocation2 + $0x44] sm:$0xff]
  %v1922 = vld [vmem:[#allocation2 + $0x4c] sm:$0xff]
  %v1923 = vld [vmem:[#allocation2 + $0x54] sm:$0xff]
  %v1924 = vld [vmem:[#allocation2 + $0x5c] sm:$0xff]
  %v1925 = vld [vmem:[#allocation2 + $0x64] sm:$0xff]
  %v1926 = vld [vmem:[#allocation2 + $0x6c] sm:$0xff]
  %v1927 = vld [vmem:[#allocation2 + $0x74] sm:$0xff]
  %v1928 = vld [vmem:[#allocation2 + $0x7c] sm:$0xff]
  %v1929 = vld [vmem:[#allocation2 + $0x84] sm:$0xff]
  %v1930 = vld [vmem:[#allocation2 + $0x8c] sm:$0xff]
  %v1931 = vld [vmem:[#allocation2 + $0x94] sm:$0xff]
  %v1932 = vld [vmem:[#allocation2 + $0x9c] sm:$0xff]
  %v1933 = vld [vmem:[#allocation2 + $0xa4] sm:$0xff]
  %v1934 = vld [vmem:[#allocation2 + $0xac] sm:$0xff]
  %v1935 = vld [vmem:[#allocation2 + $0xb4] sm:$0xff]
  %v1936 = vld [vmem:[#allocation2 + $0xbc] sm:$0xff]
  %v1937 = vld [vmem:[#allocation2 + $0xc4] sm:$0xff]
  %v1938 = vld [vmem:[#allocation2 + $0xcc] sm:$0xff]
  %v1939 = vld [vmem:[#allocation2 + $0xd4] sm:$0xff]
  %v1940 = vld [vmem:[#allocation2 + $0xdc] sm:$0xff]
  %v1941 = vld [vmem:[#allocation2 + $0xe4] sm:$0xff]
  %v1942 = vld [vmem:[#allocation2 + $0xec] sm:$0xff]
  %v1943 = vld [vmem:[#allocation2 + $0xf4] sm:$0xff]
  %v1944 = vld [vmem:[%s2] sm:$0xff]
  %v1945 = vld [vmem:[%s2 + $0x8] sm:$0xff]
  %v1946 = vld [vmem:[%s2 + $0x10] sm:$0xff]
  %v1947 = vld [vmem:[%s2 + $0x18] sm:$0xff]
  %v1948 = vld [vmem:[%s2 + $0x20] sm:$0xff]
  %v1949 = vld [vmem:[%s2 + $0x28] sm:$0xff]
  %v1950 = vld [vmem:[%s2 + $0x30] sm:$0xff]
  %v1951 = vld [vmem:[%s2 + $0x38] sm:$0xff]
  %v1952 = vld [vmem:[%s2 + $0x40] sm:$0xff]
  %v1953 = vld [vmem:[%s2 + $0x48] sm:$0xff]
  %v1954 = vld [vmem:[%s2 + $0x50] sm:$0xff]
  %v1955 = vld [vmem:[%s2 + $0x58] sm:$0xff]
  %v1956 = vld [vmem:[%s2 + $0x60] sm:$0xff]
  %v1957 = vld [vmem:[%s2 + $0x68] sm:$0xff]
  %v1958 = vld [vmem:[%s2 + $0x70] sm:$0xff]
  %v1959 = vld [vmem:[%s2 + $0x78] sm:$0xff]
  %v1960 = vld [vmem:[%s2 + $0x80] sm:$0xff]
  %v1961 = vld [vmem:[%s2 + $0x88] sm:$0xff]
  %v1962 = vld [vmem:[%s2 + $0x90] sm:$0xff]
  %v1963 = vld [vmem:[%s2 + $0x98] sm:$0xff]
  %v1964 = vld [vmem:[%s2 + $0xa0] sm:$0xff]
  %v1965 = vld [vmem:[%s2 + $0xa8] sm:$0xff]
  %v1966 = vld [vmem:[%s2 + $0xb0] sm:$0xff]
  %v1967 = vld [vmem:[%s2 + $0xb8] sm:$0xff]
  %v1968 = vld [vmem:[%s2 + $0xc0] sm:$0xff]
  %v1969 = vld [vmem:[%s2 + $0xc8] sm:$0xff]
  %v1970 = vld [vmem:[%s2 + $0xd0] sm:$0xff]
  %1972 = vset.pattern.permute.xlu0 6
  %1973 = vperm.xlu0 %1972, %v1944
  %v1974 = vpop.permute.xlu0 %1973
  %1977 = vset.pattern.permute.xlu0 6
  %1978 = vperm.xlu0 %1977, %v1945
  %v1979 = vpop.permute.xlu0 %1978
  %1982 = vset.pattern.permute.xlu0 6
  %1983 = vperm.xlu0 %1982, %v1946
  %v1984 = vpop.permute.xlu0 %1983
  %1987 = vset.pattern.permute.xlu0 6
  %1988 = vperm.xlu0 %1987, %v1947
  %v1989 = vpop.permute.xlu0 %1988
  %1992 = vset.pattern.permute.xlu0 6
  %1993 = vperm.xlu0 %1992, %v1948
  %v1994 = vpop.permute.xlu0 %1993
  %1997 = vset.pattern.permute.xlu0 6
  %1998 = vperm.xlu0 %1997, %v1949
  %v1999 = vpop.permute.xlu0 %1998
  %2002 = vset.pattern.permute.xlu0 6
  %2003 = vperm.xlu0 %2002, %v1950
  %v2004 = vpop.permute.xlu0 %2003
  %2007 = vset.pattern.permute.xlu0 6
  %2008 = vperm.xlu0 %2007, %v1951
  %v2009 = vpop.permute.xlu0 %2008
  %2012 = vset.pattern.permute.xlu0 6
  %2013 = vperm.xlu0 %2012, %v1952
  %v2014 = vpop.permute.xlu0 %2013
  %2017 = vset.pattern.permute.xlu0 6
  %2018 = vperm.xlu0 %2017, %v1953
  %v2019 = vpop.permute.xlu0 %2018
  %2022 = vset.pattern.permute.xlu0 6
  %2023 = vperm.xlu0 %2022, %v1954
  %v2024 = vpop.permute.xlu0 %2023
  %2027 = vset.pattern.permute.xlu0 6
  %2028 = vperm.xlu0 %2027, %v1955
  %v2029 = vpop.permute.xlu0 %2028
  %2032 = vset.pattern.permute.xlu0 6
  %2033 = vperm.xlu0 %2032, %v1956
  %v2034 = vpop.permute.xlu0 %2033
  %2037 = vset.pattern.permute.xlu0 6
  %2038 = vperm.xlu0 %2037, %v1957
  %v2039 = vpop.permute.xlu0 %2038
  %2042 = vset.pattern.permute.xlu0 6
  %2043 = vperm.xlu0 %2042, %v1958
  %v2044 = vpop.permute.xlu0 %2043
  %2047 = vset.pattern.permute.xlu0 6
  %2048 = vperm.xlu0 %2047, %v1959
  %v2049 = vpop.permute.xlu0 %2048
  %2052 = vset.pattern.permute.xlu0 6
  %2053 = vperm.xlu0 %2052, %v1960
  %v2054 = vpop.permute.xlu0 %2053
  %2057 = vset.pattern.permute.xlu0 6
  %2058 = vperm.xlu0 %2057, %v1961
  %v2059 = vpop.permute.xlu0 %2058
  %2062 = vset.pattern.permute.xlu0 6
  %2063 = vperm.xlu0 %2062, %v1962
  %v2064 = vpop.permute.xlu0 %2063
  %2067 = vset.pattern.permute.xlu0 6
  %2068 = vperm.xlu0 %2067, %v1963
  %v2069 = vpop.permute.xlu0 %2068
  %2072 = vset.pattern.permute.xlu0 6
  %2073 = vperm.xlu0 %2072, %v1964
  %v2074 = vpop.permute.xlu0 %2073
  %2077 = vset.pattern.permute.xlu0 6
  %2078 = vperm.xlu0 %2077, %v1965
  %v2079 = vpop.permute.xlu0 %2078
  %2082 = vset.pattern.permute.xlu0 6
  %2083 = vperm.xlu0 %2082, %v1966
  %v2084 = vpop.permute.xlu0 %2083
  %2087 = vset.pattern.permute.xlu0 6
  %2088 = vperm.xlu0 %2087, %v1967
  %v2089 = vpop.permute.xlu0 %2088
  %2092 = vset.pattern.permute.xlu0 6
  %2093 = vperm.xlu0 %2092, %v1968
  %v2094 = vpop.permute.xlu0 %2093
  %2097 = vset.pattern.permute.xlu0 6
  %2098 = vperm.xlu0 %2097, %v1969
  %v2099 = vpop.permute.xlu0 %2098
  %2102 = vset.pattern.permute.xlu0 6
  %2103 = vperm.xlu0 %2102, %v1970
  %v2104 = vpop.permute.xlu0 %2103
  %v2106 = vmul.f32 %v1917, %v1974
  %v2107 = vmul.f32 %v1918, %v1979
  %v2108 = vmul.f32 %v1919, %v1984
  %v2109 = vmul.f32 %v1920, %v1989
  %v2110 = vmul.f32 %v1921, %v1994
  %v2111 = vmul.f32 %v1922, %v1999
  %v2112 = vmul.f32 %v1923, %v2004
  %v2113 = vmul.f32 %v1924, %v2009
  %v2114 = vmul.f32 %v1925, %v2014
  %v2115 = vmul.f32 %v1926, %v2019
  %v2116 = vmul.f32 %v1927, %v2024
  %v2117 = vmul.f32 %v1928, %v2029
  %v2118 = vmul.f32 %v1929, %v2034
  %v2119 = vmul.f32 %v1930, %v2039
  %v2120 = vmul.f32 %v1931, %v2044
  %v2121 = vmul.f32 %v1932, %v2049
  %v2122 = vmul.f32 %v1933, %v2054
  %v2123 = vmul.f32 %v1934, %v2059
  %v2124 = vmul.f32 %v1935, %v2064
  %v2125 = vmul.f32 %v1936, %v2069
  %v2126 = vmul.f32 %v1937, %v2074
  %v2127 = vmul.f32 %v1938, %v2079
  %v2128 = vmul.f32 %v1939, %v2084
  %v2129 = vmul.f32 %v1940, %v2089
  %v2130 = vmul.f32 %v1941, %v2094
  %v2131 = vmul.f32 %v1942, %v2099
  %v2132 = vmul.f32 %v1943, %v2104
  %2160 = vrot.lane.b32.xlu0 %v2106, 12
  %v2161 = vpop.permute.xlu0 %2160
  %2162 = vrot.lane.b32.xlu0 %v2107, 12
  %v2163 = vpop.permute.xlu0 %2162
  %2164 = vrot.lane.b32.xlu0 %v2108, 12
  %v2165 = vpop.permute.xlu0 %2164
  %2166 = vrot.lane.b32.xlu0 %v2109, 12
  %v2167 = vpop.permute.xlu0 %2166
  %2168 = vrot.lane.b32.xlu0 %v2110, 12
  %v2169 = vpop.permute.xlu0 %2168
  %2170 = vrot.lane.b32.xlu0 %v2111, 12
  %v2171 = vpop.permute.xlu0 %2170
  %2172 = vrot.lane.b32.xlu0 %v2112, 12
  %v2173 = vpop.permute.xlu0 %2172
  %2174 = vrot.lane.b32.xlu0 %v2113, 12
  %v2175 = vpop.permute.xlu0 %2174
  %2176 = vrot.lane.b32.xlu0 %v2114, 12
  %v2177 = vpop.permute.xlu0 %2176
  %2178 = vrot.lane.b32.xlu0 %v2115, 12
  %v2179 = vpop.permute.xlu0 %2178
  %2180 = vrot.lane.b32.xlu0 %v2116, 12
  %v2181 = vpop.permute.xlu0 %2180
  %2182 = vrot.lane.b32.xlu0 %v2117, 12
  %v2183 = vpop.permute.xlu0 %2182
  %2184 = vrot.lane.b32.xlu0 %v2118, 12
  %v2185 = vpop.permute.xlu0 %2184
  %2186 = vrot.lane.b32.xlu0 %v2119, 12
  %v2187 = vpop.permute.xlu0 %2186
  %2188 = vrot.lane.b32.xlu0 %v2120, 12
  %v2189 = vpop.permute.xlu0 %2188
  %2190 = vrot.lane.b32.xlu0 %v2121, 12
  %v2191 = vpop.permute.xlu0 %2190
  %2192 = vrot.lane.b32.xlu0 %v2122, 12
  %v2193 = vpop.permute.xlu0 %2192
  %2194 = vrot.lane.b32.xlu0 %v2123, 12
  %v2195 = vpop.permute.xlu0 %2194
  %2196 = vrot.lane.b32.xlu0 %v2124, 12
  %v2197 = vpop.permute.xlu0 %2196
  %2198 = vrot.lane.b32.xlu0 %v2125, 12
  %v2199 = vpop.permute.xlu0 %2198
  %2200 = vrot.lane.b32.xlu0 %v2126, 12
  %v2201 = vpop.permute.xlu0 %2200
  %2202 = vrot.lane.b32.xlu0 %v2127, 12
  %v2203 = vpop.permute.xlu0 %2202
  %2204 = vrot.lane.b32.xlu0 %v2128, 12
  %v2205 = vpop.permute.xlu0 %2204
  %2206 = vrot.lane.b32.xlu0 %v2129, 12
  %v2207 = vpop.permute.xlu0 %2206
  %2208 = vrot.lane.b32.xlu0 %v2130, 12
  %v2209 = vpop.permute.xlu0 %2208
  %2210 = vrot.lane.b32.xlu0 %v2131, 12
  %v2211 = vpop.permute.xlu0 %2210
  %2212 = vrot.lane.b32.xlu0 %v2132, 12
  %v2213 = vpop.permute.xlu0 %2212
  %vm2241 = vcmask 113760
  %2242 = vst.msk [vmem:[#allocation3] sm:$0xff] %vm2241, %v2161
  %2243 = vst.msk [vmem:[#allocation3 + $0x8] sm:$0xff] %vm2241, %v2163
  %2244 = vst.msk [vmem:[#allocation3 + $0x10] sm:$0xff] %vm2241, %v2165
  %2245 = vst.msk [vmem:[#allocation3 + $0x18] sm:$0xff] %vm2241, %v2167
  %2246 = vst.msk [vmem:[#allocation3 + $0x20] sm:$0xff] %vm2241, %v2169
  %2247 = vst.msk [vmem:[#allocation3 + $0x28] sm:$0xff] %vm2241, %v2171
  %2248 = vst.msk [vmem:[#allocation3 + $0x30] sm:$0xff] %vm2241, %v2173
  %2249 = vst.msk [vmem:[#allocation3 + $0x38] sm:$0xff] %vm2241, %v2175
  %2250 = vst.msk [vmem:[#allocation3 + $0x40] sm:$0xff] %vm2241, %v2177
  %2251 = vst.msk [vmem:[#allocation3 + $0x48] sm:$0xff] %vm2241, %v2179
  %2252 = vst.msk [vmem:[#allocation3 + $0x50] sm:$0xff] %vm2241, %v2181
  %2253 = vst.msk [vmem:[#allocation3 + $0x58] sm:$0xff] %vm2241, %v2183
  %2254 = vst.msk [vmem:[#allocation3 + $0x60] sm:$0xff] %vm2241, %v2185
  %2255 = vst.msk [vmem:[#allocation3 + $0x68] sm:$0xff] %vm2241, %v2187
  %2256 = vst.msk [vmem:[#allocation3 + $0x70] sm:$0xff] %vm2241, %v2189
  %2257 = vst.msk [vmem:[#allocation3 + $0x78] sm:$0xff] %vm2241, %v2191
  %2258 = vst.msk [vmem:[#allocation3 + $0x80] sm:$0xff] %vm2241, %v2193
  %2259 = vst.msk [vmem:[#allocation3 + $0x88] sm:$0xff] %vm2241, %v2195
  %2260 = vst.msk [vmem:[#allocation3 + $0x90] sm:$0xff] %vm2241, %v2197
  %2261 = vst.msk [vmem:[#allocation3 + $0x98] sm:$0xff] %vm2241, %v2199
  %2262 = vst.msk [vmem:[#allocation3 + $0xa0] sm:$0xff] %vm2241, %v2201
  %2263 = vst.msk [vmem:[#allocation3 + $0xa8] sm:$0xff] %vm2241, %v2203
  %2264 = vst.msk [vmem:[#allocation3 + $0xb0] sm:$0xff] %vm2241, %v2205
  %2265 = vst.msk [vmem:[#allocation3 + $0xb8] sm:$0xff] %vm2241, %v2207
  %2266 = vst.msk [vmem:[#allocation3 + $0xc0] sm:$0xff] %vm2241, %v2209
  %2267 = vst.msk [vmem:[#allocation3 + $0xc8] sm:$0xff] %vm2241, %v2211
  %2268 = vst.msk [vmem:[#allocation3 + $0xd0] sm:$0xff] %vm2241, %v2213
  %v2269 = vld [vmem:[#allocation2 + $0x25] sm:$0xff]
  %v2270 = vld [vmem:[#allocation2 + $0x2d] sm:$0xff]
  %v2271 = vld [vmem:[#allocation2 + $0x35] sm:$0xff]
  %v2272 = vld [vmem:[#allocation2 + $0x3d] sm:$0xff]
  %v2273 = vld [vmem:[#allocation2 + $0x45] sm:$0xff]
  %v2274 = vld [vmem:[#allocation2 + $0x4d] sm:$0xff]
  %v2275 = vld [vmem:[#allocation2 + $0x55] sm:$0xff]
  %v2276 = vld [vmem:[#allocation2 + $0x5d] sm:$0xff]
  %v2277 = vld [vmem:[#allocation2 + $0x65] sm:$0xff]
  %v2278 = vld [vmem:[#allocation2 + $0x6d] sm:$0xff]
  %v2279 = vld [vmem:[#allocation2 + $0x75] sm:$0xff]
  %v2280 = vld [vmem:[#allocation2 + $0x7d] sm:$0xff]
  %v2281 = vld [vmem:[#allocation2 + $0x85] sm:$0xff]
  %v2282 = vld [vmem:[#allocation2 + $0x8d] sm:$0xff]
  %v2283 = vld [vmem:[#allocation2 + $0x95] sm:$0xff]
  %v2284 = vld [vmem:[#allocation2 + $0x9d] sm:$0xff]
  %v2285 = vld [vmem:[#allocation2 + $0xa5] sm:$0xff]
  %v2286 = vld [vmem:[#allocation2 + $0xad] sm:$0xff]
  %v2287 = vld [vmem:[#allocation2 + $0xb5] sm:$0xff]
  %v2288 = vld [vmem:[#allocation2 + $0xbd] sm:$0xff]
  %v2289 = vld [vmem:[#allocation2 + $0xc5] sm:$0xff]
  %v2290 = vld [vmem:[#allocation2 + $0xcd] sm:$0xff]
  %v2291 = vld [vmem:[#allocation2 + $0xd5] sm:$0xff]
  %v2292 = vld [vmem:[#allocation2 + $0xdd] sm:$0xff]
  %v2293 = vld [vmem:[#allocation2 + $0xe5] sm:$0xff]
  %v2294 = vld [vmem:[#allocation2 + $0xed] sm:$0xff]
  %v2295 = vld [vmem:[#allocation2 + $0xf5] sm:$0xff]
  %v2296 = vld [vmem:[%s2] sm:$0xff]
  %v2297 = vld [vmem:[%s2 + $0x8] sm:$0xff]
  %v2298 = vld [vmem:[%s2 + $0x10] sm:$0xff]
  %v2299 = vld [vmem:[%s2 + $0x18] sm:$0xff]
  %v2300 = vld [vmem:[%s2 + $0x20] sm:$0xff]
  %v2301 = vld [vmem:[%s2 + $0x28] sm:$0xff]
  %v2302 = vld [vmem:[%s2 + $0x30] sm:$0xff]
  %v2303 = vld [vmem:[%s2 + $0x38] sm:$0xff]
  %v2304 = vld [vmem:[%s2 + $0x40] sm:$0xff]
  %v2305 = vld [vmem:[%s2 + $0x48] sm:$0xff]
  %v2306 = vld [vmem:[%s2 + $0x50] sm:$0xff]
  %v2307 = vld [vmem:[%s2 + $0x58] sm:$0xff]
  %v2308 = vld [vmem:[%s2 + $0x60] sm:$0xff]
  %v2309 = vld [vmem:[%s2 + $0x68] sm:$0xff]
  %v2310 = vld [vmem:[%s2 + $0x70] sm:$0xff]
  %v2311 = vld [vmem:[%s2 + $0x78] sm:$0xff]
  %v2312 = vld [vmem:[%s2 + $0x80] sm:$0xff]
  %v2313 = vld [vmem:[%s2 + $0x88] sm:$0xff]
  %v2314 = vld [vmem:[%s2 + $0x90] sm:$0xff]
  %v2315 = vld [vmem:[%s2 + $0x98] sm:$0xff]
  %v2316 = vld [vmem:[%s2 + $0xa0] sm:$0xff]
  %v2317 = vld [vmem:[%s2 + $0xa8] sm:$0xff]
  %v2318 = vld [vmem:[%s2 + $0xb0] sm:$0xff]
  %v2319 = vld [vmem:[%s2 + $0xb8] sm:$0xff]
  %v2320 = vld [vmem:[%s2 + $0xc0] sm:$0xff]
  %v2321 = vld [vmem:[%s2 + $0xc8] sm:$0xff]
  %v2322 = vld [vmem:[%s2 + $0xd0] sm:$0xff]
  %2324 = vset.pattern.permute.xlu0 7
  %2325 = vperm.xlu0 %2324, %v2296
  %v2326 = vpop.permute.xlu0 %2325
  %2329 = vset.pattern.permute.xlu0 7
  %2330 = vperm.xlu0 %2329, %v2297
  %v2331 = vpop.permute.xlu0 %2330
  %2334 = vset.pattern.permute.xlu0 7
  %2335 = vperm.xlu0 %2334, %v2298
  %v2336 = vpop.permute.xlu0 %2335
  %2339 = vset.pattern.permute.xlu0 7
  %2340 = vperm.xlu0 %2339, %v2299
  %v2341 = vpop.permute.xlu0 %2340
  %2344 = vset.pattern.permute.xlu0 7
  %2345 = vperm.xlu0 %2344, %v2300
  %v2346 = vpop.permute.xlu0 %2345
  %2349 = vset.pattern.permute.xlu0 7
  %2350 = vperm.xlu0 %2349, %v2301
  %v2351 = vpop.permute.xlu0 %2350
  %2354 = vset.pattern.permute.xlu0 7
  %2355 = vperm.xlu0 %2354, %v2302
  %v2356 = vpop.permute.xlu0 %2355
  %2359 = vset.pattern.permute.xlu0 7
  %2360 = vperm.xlu0 %2359, %v2303
  %v2361 = vpop.permute.xlu0 %2360
  %2364 = vset.pattern.permute.xlu0 7
  %2365 = vperm.xlu0 %2364, %v2304
  %v2366 = vpop.permute.xlu0 %2365
  %2369 = vset.pattern.permute.xlu0 7
  %2370 = vperm.xlu0 %2369, %v2305
  %v2371 = vpop.permute.xlu0 %2370
  %2374 = vset.pattern.permute.xlu0 7
  %2375 = vperm.xlu0 %2374, %v2306
  %v2376 = vpop.permute.xlu0 %2375
  %2379 = vset.pattern.permute.xlu0 7
  %2380 = vperm.xlu0 %2379, %v2307
  %v2381 = vpop.permute.xlu0 %2380
  %2384 = vset.pattern.permute.xlu0 7
  %2385 = vperm.xlu0 %2384, %v2308
  %v2386 = vpop.permute.xlu0 %2385
  %2389 = vset.pattern.permute.xlu0 7
  %2390 = vperm.xlu0 %2389, %v2309
  %v2391 = vpop.permute.xlu0 %2390
  %2394 = vset.pattern.permute.xlu0 7
  %2395 = vperm.xlu0 %2394, %v2310
  %v2396 = vpop.permute.xlu0 %2395
  %2399 = vset.pattern.permute.xlu0 7
  %2400 = vperm.xlu0 %2399, %v2311
  %v2401 = vpop.permute.xlu0 %2400
  %2404 = vset.pattern.permute.xlu0 7
  %2405 = vperm.xlu0 %2404, %v2312
  %v2406 = vpop.permute.xlu0 %2405
  %2409 = vset.pattern.permute.xlu0 7
  %2410 = vperm.xlu0 %2409, %v2313
  %v2411 = vpop.permute.xlu0 %2410
  %2414 = vset.pattern.permute.xlu0 7
  %2415 = vperm.xlu0 %2414, %v2314
  %v2416 = vpop.permute.xlu0 %2415
  %2419 = vset.pattern.permute.xlu0 7
  %2420 = vperm.xlu0 %2419, %v2315
  %v2421 = vpop.permute.xlu0 %2420
  %2424 = vset.pattern.permute.xlu0 7
  %2425 = vperm.xlu0 %2424, %v2316
  %v2426 = vpop.permute.xlu0 %2425
  %2429 = vset.pattern.permute.xlu0 7
  %2430 = vperm.xlu0 %2429, %v2317
  %v2431 = vpop.permute.xlu0 %2430
  %2434 = vset.pattern.permute.xlu0 7
  %2435 = vperm.xlu0 %2434, %v2318
  %v2436 = vpop.permute.xlu0 %2435
  %2439 = vset.pattern.permute.xlu0 7
  %2440 = vperm.xlu0 %2439, %v2319
  %v2441 = vpop.permute.xlu0 %2440
  %2444 = vset.pattern.permute.xlu0 7
  %2445 = vperm.xlu0 %2444, %v2320
  %v2446 = vpop.permute.xlu0 %2445
  %2449 = vset.pattern.permute.xlu0 7
  %2450 = vperm.xlu0 %2449, %v2321
  %v2451 = vpop.permute.xlu0 %2450
  %2454 = vset.pattern.permute.xlu0 7
  %2455 = vperm.xlu0 %2454, %v2322
  %v2456 = vpop.permute.xlu0 %2455
  %v2458 = vmul.f32 %v2269, %v2326
  %v2459 = vmul.f32 %v2270, %v2331
  %v2460 = vmul.f32 %v2271, %v2336
  %v2461 = vmul.f32 %v2272, %v2341
  %v2462 = vmul.f32 %v2273, %v2346
  %v2463 = vmul.f32 %v2274, %v2351
  %v2464 = vmul.f32 %v2275, %v2356
  %v2465 = vmul.f32 %v2276, %v2361
  %v2466 = vmul.f32 %v2277, %v2366
  %v2467 = vmul.f32 %v2278, %v2371
  %v2468 = vmul.f32 %v2279, %v2376
  %v2469 = vmul.f32 %v2280, %v2381
  %v2470 = vmul.f32 %v2281, %v2386
  %v2471 = vmul.f32 %v2282, %v2391
  %v2472 = vmul.f32 %v2283, %v2396
  %v2473 = vmul.f32 %v2284, %v2401
  %v2474 = vmul.f32 %v2285, %v2406
  %v2475 = vmul.f32 %v2286, %v2411
  %v2476 = vmul.f32 %v2287, %v2416
  %v2477 = vmul.f32 %v2288, %v2421
  %v2478 = vmul.f32 %v2289, %v2426
  %v2479 = vmul.f32 %v2290, %v2431
  %v2480 = vmul.f32 %v2291, %v2436
  %v2481 = vmul.f32 %v2292, %v2441
  %v2482 = vmul.f32 %v2293, %v2446
  %v2483 = vmul.f32 %v2294, %v2451
  %v2484 = vmul.f32 %v2295, %v2456
  %2512 = vrot.lane.b32.xlu0 %v2458, 14
  %v2513 = vpop.permute.xlu0 %2512
  %2514 = vrot.lane.b32.xlu0 %v2459, 14
  %v2515 = vpop.permute.xlu0 %2514
  %2516 = vrot.lane.b32.xlu0 %v2460, 14
  %v2517 = vpop.permute.xlu0 %2516
  %2518 = vrot.lane.b32.xlu0 %v2461, 14
  %v2519 = vpop.permute.xlu0 %2518
  %2520 = vrot.lane.b32.xlu0 %v2462, 14
  %v2521 = vpop.permute.xlu0 %2520
  %2522 = vrot.lane.b32.xlu0 %v2463, 14
  %v2523 = vpop.permute.xlu0 %2522
  %2524 = vrot.lane.b32.xlu0 %v2464, 14
  %v2525 = vpop.permute.xlu0 %2524
  %2526 = vrot.lane.b32.xlu0 %v2465, 14
  %v2527 = vpop.permute.xlu0 %2526
  %2528 = vrot.lane.b32.xlu0 %v2466, 14
  %v2529 = vpop.permute.xlu0 %2528
  %2530 = vrot.lane.b32.xlu0 %v2467, 14
  %v2531 = vpop.permute.xlu0 %2530
  %2532 = vrot.lane.b32.xlu0 %v2468, 14
  %v2533 = vpop.permute.xlu0 %2532
  %2534 = vrot.lane.b32.xlu0 %v2469, 14
  %v2535 = vpop.permute.xlu0 %2534
  %2536 = vrot.lane.b32.xlu0 %v2470, 14
  %v2537 = vpop.permute.xlu0 %2536
  %2538 = vrot.lane.b32.xlu0 %v2471, 14
  %v2539 = vpop.permute.xlu0 %2538
  %2540 = vrot.lane.b32.xlu0 %v2472, 14
  %v2541 = vpop.permute.xlu0 %2540
  %2542 = vrot.lane.b32.xlu0 %v2473, 14
  %v2543 = vpop.permute.xlu0 %2542
  %2544 = vrot.lane.b32.xlu0 %v2474, 14
  %v2545 = vpop.permute.xlu0 %2544
  %2546 = vrot.lane.b32.xlu0 %v2475, 14
  %v2547 = vpop.permute.xlu0 %2546
  %2548 = vrot.lane.b32.xlu0 %v2476, 14
  %v2549 = vpop.permute.xlu0 %2548
  %2550 = vrot.lane.b32.xlu0 %v2477, 14
  %v2551 = vpop.permute.xlu0 %2550
  %2552 = vrot.lane.b32.xlu0 %v2478, 14
  %v2553 = vpop.permute.xlu0 %2552
  %2554 = vrot.lane.b32.xlu0 %v2479, 14
  %v2555 = vpop.permute.xlu0 %2554
  %2556 = vrot.lane.b32.xlu0 %v2480, 14
  %v2557 = vpop.permute.xlu0 %2556
  %2558 = vrot.lane.b32.xlu0 %v2481, 14
  %v2559 = vpop.permute.xlu0 %2558
  %2560 = vrot.lane.b32.xlu0 %v2482, 14
  %v2561 = vpop.permute.xlu0 %2560
  %2562 = vrot.lane.b32.xlu0 %v2483, 14
  %v2563 = vpop.permute.xlu0 %2562
  %2564 = vrot.lane.b32.xlu0 %v2484, 14
  %v2565 = vpop.permute.xlu0 %2564
  %vm2593 = vcmask 130160
  %2594 = vst.msk [vmem:[#allocation3] sm:$0xff] %vm2593, %v2513
  %2595 = vst.msk [vmem:[#allocation3 + $0x8] sm:$0xff] %vm2593, %v2515
  %2596 = vst.msk [vmem:[#allocation3 + $0x10] sm:$0xff] %vm2593, %v2517
  %2597 = vst.msk [vmem:[#allocation3 + $0x18] sm:$0xff] %vm2593, %v2519
  %2598 = vst.msk [vmem:[#allocation3 + $0x20] sm:$0xff] %vm2593, %v2521
  %2599 = vst.msk [vmem:[#allocation3 + $0x28] sm:$0xff] %vm2593, %v2523
  %2600 = vst.msk [vmem:[#allocation3 + $0x30] sm:$0xff] %vm2593, %v2525
  %2601 = vst.msk [vmem:[#allocation3 + $0x38] sm:$0xff] %vm2593, %v2527
  %2602 = vst.msk [vmem:[#allocation3 + $0x40] sm:$0xff] %vm2593, %v2529
  %2603 = vst.msk [vmem:[#allocation3 + $0x48] sm:$0xff] %vm2593, %v2531
  %2604 = vst.msk [vmem:[#allocation3 + $0x50] sm:$0xff] %vm2593, %v2533
  %2605 = vst.msk [vmem:[#allocation3 + $0x58] sm:$0xff] %vm2593, %v2535
  %2606 = vst.msk [vmem:[#allocation3 + $0x60] sm:$0xff] %vm2593, %v2537
  %2607 = vst.msk [vmem:[#allocation3 + $0x68] sm:$0xff] %vm2593, %v2539
  %2608 = vst.msk [vmem:[#allocation3 + $0x70] sm:$0xff] %vm2593, %v2541
  %2609 = vst.msk [vmem:[#allocation3 + $0x78] sm:$0xff] %vm2593, %v2543
  %2610 = vst.msk [vmem:[#allocation3 + $0x80] sm:$0xff] %vm2593, %v2545
  %2611 = vst.msk [vmem:[#allocation3 + $0x88] sm:$0xff] %vm2593, %v2547
  %2612 = vst.msk [vmem:[#allocation3 + $0x90] sm:$0xff] %vm2593, %v2549
  %2613 = vst.msk [vmem:[#allocation3 + $0x98] sm:$0xff] %vm2593, %v2551
  %2614 = vst.msk [vmem:[#allocation3 + $0xa0] sm:$0xff] %vm2593, %v2553
  %2615 = vst.msk [vmem:[#allocation3 + $0xa8] sm:$0xff] %vm2593, %v2555
  %2616 = vst.msk [vmem:[#allocation3 + $0xb0] sm:$0xff] %vm2593, %v2557
  %2617 = vst.msk [vmem:[#allocation3 + $0xb8] sm:$0xff] %vm2593, %v2559
  %2618 = vst.msk [vmem:[#allocation3 + $0xc0] sm:$0xff] %vm2593, %v2561
  %2619 = vst.msk [vmem:[#allocation3 + $0xc8] sm:$0xff] %vm2593, %v2563
  %2620 = vst.msk [vmem:[#allocation3 + $0xd0] sm:$0xff] %vm2593, %v2565
  %v2621 = vld [vmem:[#allocation2 + $0x26] sm:$0xff]
  %v2622 = vld [vmem:[#allocation2 + $0x2e] sm:$0xff]
  %v2623 = vld [vmem:[#allocation2 + $0x36] sm:$0xff]
  %v2624 = vld [vmem:[#allocation2 + $0x3e] sm:$0xff]
  %v2625 = vld [vmem:[#allocation2 + $0x46] sm:$0xff]
  %v2626 = vld [vmem:[#allocation2 + $0x4e] sm:$0xff]
  %v2627 = vld [vmem:[#allocation2 + $0x56] sm:$0xff]
  %v2628 = vld [vmem:[#allocation2 + $0x5e] sm:$0xff]
  %v2629 = vld [vmem:[#allocation2 + $0x66] sm:$0xff]
  %v2630 = vld [vmem:[#allocation2 + $0x6e] sm:$0xff]
  %v2631 = vld [vmem:[#allocation2 + $0x76] sm:$0xff]
  %v2632 = vld [vmem:[#allocation2 + $0x7e] sm:$0xff]
  %v2633 = vld [vmem:[#allocation2 + $0x86] sm:$0xff]
  %v2634 = vld [vmem:[#allocation2 + $0x8e] sm:$0xff]
  %v2635 = vld [vmem:[#allocation2 + $0x96] sm:$0xff]
  %v2636 = vld [vmem:[#allocation2 + $0x9e] sm:$0xff]
  %v2637 = vld [vmem:[#allocation2 + $0xa6] sm:$0xff]
  %v2638 = vld [vmem:[#allocation2 + $0xae] sm:$0xff]
  %v2639 = vld [vmem:[#allocation2 + $0xb6] sm:$0xff]
  %v2640 = vld [vmem:[#allocation2 + $0xbe] sm:$0xff]
  %v2641 = vld [vmem:[#allocation2 + $0xc6] sm:$0xff]
  %v2642 = vld [vmem:[#allocation2 + $0xce] sm:$0xff]
  %v2643 = vld [vmem:[#allocation2 + $0xd6] sm:$0xff]
  %v2644 = vld [vmem:[#allocation2 + $0xde] sm:$0xff]
  %v2645 = vld [vmem:[#allocation2 + $0xe6] sm:$0xff]
  %v2646 = vld [vmem:[#allocation2 + $0xee] sm:$0xff]
  %v2647 = vld [vmem:[#allocation2 + $0xf6] sm:$0xff]
  %v2648 = vld [vmem:[%s2] sm:$0xff]
  %v2649 = vld [vmem:[%s2 + $0x8] sm:$0xff]
  %v2650 = vld [vmem:[%s2 + $0x10] sm:$0xff]
  %v2651 = vld [vmem:[%s2 + $0x18] sm:$0xff]
  %v2652 = vld [vmem:[%s2 + $0x20] sm:$0xff]
  %v2653 = vld [vmem:[%s2 + $0x28] sm:$0xff]
  %v2654 = vld [vmem:[%s2 + $0x30] sm:$0xff]
  %v2655 = vld [vmem:[%s2 + $0x38] sm:$0xff]
  %v2656 = vld [vmem:[%s2 + $0x40] sm:$0xff]
  %v2657 = vld [vmem:[%s2 + $0x48] sm:$0xff]
  %v2658 = vld [vmem:[%s2 + $0x50] sm:$0xff]
  %v2659 = vld [vmem:[%s2 + $0x58] sm:$0xff]
  %v2660 = vld [vmem:[%s2 + $0x60] sm:$0xff]
  %v2661 = vld [vmem:[%s2 + $0x68] sm:$0xff]
  %v2662 = vld [vmem:[%s2 + $0x70] sm:$0xff]
  %v2663 = vld [vmem:[%s2 + $0x78] sm:$0xff]
  %v2664 = vld [vmem:[%s2 + $0x80] sm:$0xff]
  %v2665 = vld [vmem:[%s2 + $0x88] sm:$0xff]
  %v2666 = vld [vmem:[%s2 + $0x90] sm:$0xff]
  %v2667 = vld [vmem:[%s2 + $0x98] sm:$0xff]
  %v2668 = vld [vmem:[%s2 + $0xa0] sm:$0xff]
  %v2669 = vld [vmem:[%s2 + $0xa8] sm:$0xff]
  %v2670 = vld [vmem:[%s2 + $0xb0] sm:$0xff]
  %v2671 = vld [vmem:[%s2 + $0xb8] sm:$0xff]
  %v2672 = vld [vmem:[%s2 + $0xc0] sm:$0xff]
  %v2673 = vld [vmem:[%s2 + $0xc8] sm:$0xff]
  %v2674 = vld [vmem:[%s2 + $0xd0] sm:$0xff]
  %2676 = vset.pattern.permute.xlu0 8
  %2677 = vperm.xlu0 %2676, %v2648
  %v2678 = vpop.permute.xlu0 %2677
  %2681 = vset.pattern.permute.xlu0 8
  %2682 = vperm.xlu0 %2681, %v2649
  %v2683 = vpop.permute.xlu0 %2682
  %2686 = vset.pattern.permute.xlu0 8
  %2687 = vperm.xlu0 %2686, %v2650
  %v2688 = vpop.permute.xlu0 %2687
  %2691 = vset.pattern.permute.xlu0 8
  %2692 = vperm.xlu0 %2691, %v2651
  %v2693 = vpop.permute.xlu0 %2692
  %2696 = vset.pattern.permute.xlu0 8
  %2697 = vperm.xlu0 %2696, %v2652
  %v2698 = vpop.permute.xlu0 %2697
  %2701 = vset.pattern.permute.xlu0 8
  %2702 = vperm.xlu0 %2701, %v2653
  %v2703 = vpop.permute.xlu0 %2702
  %2706 = vset.pattern.permute.xlu0 8
  %2707 = vperm.xlu0 %2706, %v2654
  %v2708 = vpop.permute.xlu0 %2707
  %2711 = vset.pattern.permute.xlu0 8
  %2712 = vperm.xlu0 %2711, %v2655
  %v2713 = vpop.permute.xlu0 %2712
  %2716 = vset.pattern.permute.xlu0 8
  %2717 = vperm.xlu0 %2716, %v2656
  %v2718 = vpop.permute.xlu0 %2717
  %2721 = vset.pattern.permute.xlu0 8
  %2722 = vperm.xlu0 %2721, %v2657
  %v2723 = vpop.permute.xlu0 %2722
  %2726 = vset.pattern.permute.xlu0 8
  %2727 = vperm.xlu0 %2726, %v2658
  %v2728 = vpop.permute.xlu0 %2727
  %2731 = vset.pattern.permute.xlu0 8
  %2732 = vperm.xlu0 %2731, %v2659
  %v2733 = vpop.permute.xlu0 %2732
  %2736 = vset.pattern.permute.xlu0 8
  %2737 = vperm.xlu0 %2736, %v2660
  %v2738 = vpop.permute.xlu0 %2737
  %2741 = vset.pattern.permute.xlu0 8
  %2742 = vperm.xlu0 %2741, %v2661
  %v2743 = vpop.permute.xlu0 %2742
  %2746 = vset.pattern.permute.xlu0 8
  %2747 = vperm.xlu0 %2746, %v2662
  %v2748 = vpop.permute.xlu0 %2747
  %2751 = vset.pattern.permute.xlu0 8
  %2752 = vperm.xlu0 %2751, %v2663
  %v2753 = vpop.permute.xlu0 %2752
  %2756 = vset.pattern.permute.xlu0 8
  %2757 = vperm.xlu0 %2756, %v2664
  %v2758 = vpop.permute.xlu0 %2757
  %2761 = vset.pattern.permute.xlu0 8
  %2762 = vperm.xlu0 %2761, %v2665
  %v2763 = vpop.permute.xlu0 %2762
  %2766 = vset.pattern.permute.xlu0 8
  %2767 = vperm.xlu0 %2766, %v2666
  %v2768 = vpop.permute.xlu0 %2767
  %2771 = vset.pattern.permute.xlu0 8
  %2772 = vperm.xlu0 %2771, %v2667
  %v2773 = vpop.permute.xlu0 %2772
  %2776 = vset.pattern.permute.xlu0 8
  %2777 = vperm.xlu0 %2776, %v2668
  %v2778 = vpop.permute.xlu0 %2777
  %2781 = vset.pattern.permute.xlu0 8
  %2782 = vperm.xlu0 %2781, %v2669
  %v2783 = vpop.permute.xlu0 %2782
  %2786 = vset.pattern.permute.xlu0 8
  %2787 = vperm.xlu0 %2786, %v2670
  %v2788 = vpop.permute.xlu0 %2787
  %2791 = vset.pattern.permute.xlu0 8
  %2792 = vperm.xlu0 %2791, %v2671
  %v2793 = vpop.permute.xlu0 %2792
  %2796 = vset.pattern.permute.xlu0 8
  %2797 = vperm.xlu0 %2796, %v2672
  %v2798 = vpop.permute.xlu0 %2797
  %2801 = vset.pattern.permute.xlu0 8
  %2802 = vperm.xlu0 %2801, %v2673
  %v2803 = vpop.permute.xlu0 %2802
  %2806 = vset.pattern.permute.xlu0 8
  %2807 = vperm.xlu0 %2806, %v2674
  %v2808 = vpop.permute.xlu0 %2807
  %v2810 = vmul.f32 %v2621, %v2678
  %v2811 = vmul.f32 %v2622, %v2683
  %v2812 = vmul.f32 %v2623, %v2688
  %v2813 = vmul.f32 %v2624, %v2693
  %v2814 = vmul.f32 %v2625, %v2698
  %v2815 = vmul.f32 %v2626, %v2703
  %v2816 = vmul.f32 %v2627, %v2708
  %v2817 = vmul.f32 %v2628, %v2713
  %v2818 = vmul.f32 %v2629, %v2718
  %v2819 = vmul.f32 %v2630, %v2723
  %v2820 = vmul.f32 %v2631, %v2728
  %v2821 = vmul.f32 %v2632, %v2733
  %v2822 = vmul.f32 %v2633, %v2738
  %v2823 = vmul.f32 %v2634, %v2743
  %v2824 = vmul.f32 %v2635, %v2748
  %v2825 = vmul.f32 %v2636, %v2753
  %v2826 = vmul.f32 %v2637, %v2758
  %v2827 = vmul.f32 %v2638, %v2763
  %v2828 = vmul.f32 %v2639, %v2768
  %v2829 = vmul.f32 %v2640, %v2773
  %v2830 = vmul.f32 %v2641, %v2778
  %v2831 = vmul.f32 %v2642, %v2783
  %v2832 = vmul.f32 %v2643, %v2788
  %v2833 = vmul.f32 %v2644, %v2793
  %v2834 = vmul.f32 %v2645, %v2798
  %v2835 = vmul.f32 %v2646, %v2803
  %v2836 = vmul.f32 %v2647, %v2808
  %2864 = vrot.lane.b32.xlu0 %v2810, 16
  %v2865 = vpop.permute.xlu0 %2864
  %2866 = vrot.lane.b32.xlu0 %v2811, 16
  %v2867 = vpop.permute.xlu0 %2866
  %2868 = vrot.lane.b32.xlu0 %v2812, 16
  %v2869 = vpop.permute.xlu0 %2868
  %2870 = vrot.lane.b32.xlu0 %v2813, 16
  %v2871 = vpop.permute.xlu0 %2870
  %2872 = vrot.lane.b32.xlu0 %v2814, 16
  %v2873 = vpop.permute.xlu0 %2872
  %2874 = vrot.lane.b32.xlu0 %v2815, 16
  %v2875 = vpop.permute.xlu0 %2874
  %2876 = vrot.lane.b32.xlu0 %v2816, 16
  %v2877 = vpop.permute.xlu0 %2876
  %2878 = vrot.lane.b32.xlu0 %v2817, 16
  %v2879 = vpop.permute.xlu0 %2878
  %2880 = vrot.lane.b32.xlu0 %v2818, 16
  %v2881 = vpop.permute.xlu0 %2880
  %2882 = vrot.lane.b32.xlu0 %v2819, 16
  %v2883 = vpop.permute.xlu0 %2882
  %2884 = vrot.lane.b32.xlu0 %v2820, 16
  %v2885 = vpop.permute.xlu0 %2884
  %2886 = vrot.lane.b32.xlu0 %v2821, 16
  %v2887 = vpop.permute.xlu0 %2886
  %2888 = vrot.lane.b32.xlu0 %v2822, 16
  %v2889 = vpop.permute.xlu0 %2888
  %2890 = vrot.lane.b32.xlu0 %v2823, 16
  %v2891 = vpop.permute.xlu0 %2890
  %2892 = vrot.lane.b32.xlu0 %v2824, 16
  %v2893 = vpop.permute.xlu0 %2892
  %2894 = vrot.lane.b32.xlu0 %v2825, 16
  %v2895 = vpop.permute.xlu0 %2894
  %2896 = vrot.lane.b32.xlu0 %v2826, 16
  %v2897 = vpop.permute.xlu0 %2896
  %2898 = vrot.lane.b32.xlu0 %v2827, 16
  %v2899 = vpop.permute.xlu0 %2898
  %2900 = vrot.lane.b32.xlu0 %v2828, 16
  %v2901 = vpop.permute.xlu0 %2900
  %2902 = vrot.lane.b32.xlu0 %v2829, 16
  %v2903 = vpop.permute.xlu0 %2902
  %2904 = vrot.lane.b32.xlu0 %v2830, 16
  %v2905 = vpop.permute.xlu0 %2904
  %2906 = vrot.lane.b32.xlu0 %v2831, 16
  %v2907 = vpop.permute.xlu0 %2906
  %2908 = vrot.lane.b32.xlu0 %v2832, 16
  %v2909 = vpop.permute.xlu0 %2908
  %2910 = vrot.lane.b32.xlu0 %v2833, 16
  %v2911 = vpop.permute.xlu0 %2910
  %2912 = vrot.lane.b32.xlu0 %v2834, 16
  %v2913 = vpop.permute.xlu0 %2912
  %2914 = vrot.lane.b32.xlu0 %v2835, 16
  %v2915 = vpop.permute.xlu0 %2914
  %2916 = vrot.lane.b32.xlu0 %v2836, 16
  %v2917 = vpop.permute.xlu0 %2916
  %vm2945 = vcmask 146560
  %2946 = vst.msk [vmem:[#allocation3] sm:$0xff] %vm2945, %v2865
  %2947 = vst.msk [vmem:[#allocation3 + $0x8] sm:$0xff] %vm2945, %v2867
  %2948 = vst.msk [vmem:[#allocation3 + $0x10] sm:$0xff] %vm2945, %v2869
  %2949 = vst.msk [vmem:[#allocation3 + $0x18] sm:$0xff] %vm2945, %v2871
  %2950 = vst.msk [vmem:[#allocation3 + $0x20] sm:$0xff] %vm2945, %v2873
  %2951 = vst.msk [vmem:[#allocation3 + $0x28] sm:$0xff] %vm2945, %v2875
  %2952 = vst.msk [vmem:[#allocation3 + $0x30] sm:$0xff] %vm2945, %v2877
  %2953 = vst.msk [vmem:[#allocation3 + $0x38] sm:$0xff] %vm2945, %v2879
  %2954 = vst.msk [vmem:[#allocation3 + $0x40] sm:$0xff] %vm2945, %v2881
  %2955 = vst.msk [vmem:[#allocation3 + $0x48] sm:$0xff] %vm2945, %v2883
  %2956 = vst.msk [vmem:[#allocation3 + $0x50] sm:$0xff] %vm2945, %v2885
  %2957 = vst.msk [vmem:[#allocation3 + $0x58] sm:$0xff] %vm2945, %v2887
  %2958 = vst.msk [vmem:[#allocation3 + $0x60] sm:$0xff] %vm2945, %v2889
  %2959 = vst.msk [vmem:[#allocation3 + $0x68] sm:$0xff] %vm2945, %v2891
  %2960 = vst.msk [vmem:[#allocation3 + $0x70] sm:$0xff] %vm2945, %v2893
  %2961 = vst.msk [vmem:[#allocation3 + $0x78] sm:$0xff] %vm2945, %v2895
  %2962 = vst.msk [vmem:[#allocation3 + $0x80] sm:$0xff] %vm2945, %v2897
  %2963 = vst.msk [vmem:[#allocation3 + $0x88] sm:$0xff] %vm2945, %v2899
  %2964 = vst.msk [vmem:[#allocation3 + $0x90] sm:$0xff] %vm2945, %v2901
  %2965 = vst.msk [vmem:[#allocation3 + $0x98] sm:$0xff] %vm2945, %v2903
  %2966 = vst.msk [vmem:[#allocation3 + $0xa0] sm:$0xff] %vm2945, %v2905
  %2967 = vst.msk [vmem:[#allocation3 + $0xa8] sm:$0xff] %vm2945, %v2907
  %2968 = vst.msk [vmem:[#allocation3 + $0xb0] sm:$0xff] %vm2945, %v2909
  %2969 = vst.msk [vmem:[#allocation3 + $0xb8] sm:$0xff] %vm2945, %v2911
  %2970 = vst.msk [vmem:[#allocation3 + $0xc0] sm:$0xff] %vm2945, %v2913
  %2971 = vst.msk [vmem:[#allocation3 + $0xc8] sm:$0xff] %vm2945, %v2915
  %2972 = vst.msk [vmem:[#allocation3 + $0xd0] sm:$0xff] %vm2945, %v2917
  %v2973 = vld [vmem:[#allocation3] sm:$0xff]
  %v2974 = vld [vmem:[#allocation3 + $0x8] sm:$0xff]
  %v2975 = vld [vmem:[#allocation3 + $0x10] sm:$0xff]
  %v2976 = vld [vmem:[#allocation3 + $0x18] sm:$0xff]
  %v2977 = vld [vmem:[#allocation3 + $0x20] sm:$0xff]
  %v2978 = vld [vmem:[#allocation3 + $0x28] sm:$0xff]
  %v2979 = vld [vmem:[#allocation3 + $0x30] sm:$0xff]
  %v2980 = vld [vmem:[#allocation3 + $0x38] sm:$0xff]
  %v2981 = vld [vmem:[#allocation3 + $0x40] sm:$0xff]
  %v2982 = vld [vmem:[#allocation3 + $0x48] sm:$0xff]
  %v2983 = vld [vmem:[#allocation3 + $0x50] sm:$0xff]
  %v2984 = vld [vmem:[#allocation3 + $0x58] sm:$0xff]
  %v2985 = vld [vmem:[#allocation3 + $0x60] sm:$0xff]
  %v2986 = vld [vmem:[#allocation3 + $0x68] sm:$0xff]
  %v2987 = vld [vmem:[#allocation3 + $0x70] sm:$0xff]
  %v2988 = vld [vmem:[#allocation3 + $0x78] sm:$0xff]
  %v2989 = vld [vmem:[#allocation3 + $0x80] sm:$0xff]
  %v2990 = vld [vmem:[#allocation3 + $0x88] sm:$0xff]
  %v2991 = vld [vmem:[#allocation3 + $0x90] sm:$0xff]
  %v2992 = vld [vmem:[#allocation3 + $0x98] sm:$0xff]
  %v2993 = vld [vmem:[#allocation3 + $0xa0] sm:$0xff]
  %v2994 = vld [vmem:[#allocation3 + $0xa8] sm:$0xff]
  %v2995 = vld [vmem:[#allocation3 + $0xb0] sm:$0xff]
  %v2996 = vld [vmem:[#allocation3 + $0xb8] sm:$0xff]
  %v2997 = vld [vmem:[#allocation3 + $0xc0] sm:$0xff]
  %v2998 = vld [vmem:[#allocation3 + $0xc8] sm:$0xff]
  %v2999 = vld [vmem:[#allocation3 + $0xd0] sm:$0xff]
  %v3000 = vld [vmem:[%s1] sm:$0xf]
  %v3001 = vld [vmem:[%s1 + $0x4] sm:$0xf]
  %v3002 = vld [vmem:[%s1 + $0x8] sm:$0x1]
  %v3003 = vunpack.c.l.bf16 %v3000
  %v3004 = vunpack.c.l.bf16 %v3001
  %v3005 = vunpack.c.l.bf16 %v3002
  %vm3006 = vcmask 146432
  %v3008 = vsel %vm3006, %v2973, 0
  %v3011 = vsel %vm3006, %v2974, 0
  %v3014 = vsel %vm3006, %v2975, 0
  %v3017 = vsel %vm3006, %v2976, 0
  %v3020 = vsel %vm3006, %v2977, 0
  %v3023 = vsel %vm3006, %v2978, 0
  %v3026 = vsel %vm3006, %v2979, 0
  %v3029 = vsel %vm3006, %v2980, 0
  %v3032 = vsel %vm3006, %v2981, 0
  %v3035 = vsel %vm3006, %v2982, 0
  %v3038 = vsel %vm3006, %v2983, 0
  %v3041 = vsel %vm3006, %v2984, 0
  %v3044 = vsel %vm3006, %v2985, 0
  %v3047 = vsel %vm3006, %v2986, 0
  %v3050 = vsel %vm3006, %v2987, 0
  %v3053 = vsel %vm3006, %v2988, 0
  %v3056 = vsel %vm3006, %v2989, 0
  %v3059 = vsel %vm3006, %v2990, 0
  %v3062 = vsel %vm3006, %v2991, 0
  %v3065 = vsel %vm3006, %v2992, 0
  %v3068 = vsel %vm3006, %v2993, 0
  %v3071 = vsel %vm3006, %v2994, 0
  %v3074 = vsel %vm3006, %v2995, 0
  %v3077 = vsel %vm3006, %v2996, 0
  %v3080 = vsel %vm3006, %v2997, 0
  %v3083 = vsel %vm3006, %v2998, 0
  %v3086 = vsel %vm3006, %v2999, 0
  %vm3088 = vcmask 1041408
  %v3090 = vsel %vm3088, %v3005, 0
  %3092 = vmatprep.subr.mxu0 0.0
  %3093 = vmatpush1.msra.mxu0 %v3003
  %3094 = vmatprep.subr.mxu0 0.0
  %3095 = vmatpush1.msra.mxu0 %v3004
  %3096 = vmatprep.subr.mxu0 0.0
  %3097 = vmatpush1.msra.mxu0 %v3090
  %3098 = vmatprep.subr.mxu0 0.0
  %3099 = vmatpush1.msra.mxu0 0.0
  %3100 = vmatprep.subr.mxu0 0.0
  %3101 = vmatpush1.msra.mxu0 0.0
  %3102 = vmatprep.subr.mxu0 0.0
  %3103 = vmatpush1.msra.mxu0 0.0
  %3104 = vmatprep.subr.mxu0 0.0
  %3105 = vmatpush1.msra.mxu0 0.0
  %3106 = vmatprep.subr.mxu0 0.0
  %3107 = vmatpush1.msra.mxu0 0.0
  %3108 = vmatprep.subr.mxu0 0.0
  %3109 = vmatpush1.msra.mxu0 0.0
  %3110 = vmatprep.subr.mxu0 0.0
  %3111 = vmatpush1.msra.mxu0 0.0
  %3112 = vmatprep.subr.mxu0 0.0
  %3113 = vmatpush1.msra.mxu0 0.0
  %3114 = vmatprep.subr.mxu0 0.0
  %3115 = vmatpush1.msra.mxu0 0.0
  %3116 = vmatprep.subr.mxu0 0.0
  %3117 = vmatpush1.msra.mxu0 0.0
  %3118 = vmatprep.subr.mxu0 0.0
  %3119 = vmatpush1.msra.mxu0 0.0
  %3120 = vmatprep.subr.mxu0 0.0
  %3121 = vmatpush1.msra.mxu0 0.0
  %3122 = vmatprep.subr.mxu0 0.0
  %3123 = vmatpush1.msra.mxu0 0.0
  %3124 = vmatprep.subr.mxu0 0.0
  %3125 = vmatpush1.msra.mxu0 0.0
  %3126 = vmatprep.subr.mxu0 0.0
  %3127 = vmatpush1.msra.mxu0 0.0
  %3128 = vmatprep.subr.mxu0 0.0
  %3129 = vmatpush1.msra.mxu0 0.0
  %3130 = vmatprep.subr.mxu0 0.0
  %3131 = vmatpush1.msra.mxu0 0.0
  %3132 = vmatprep.subr.mxu0 0.0
  %3133 = vmatpush1.msra.mxu0 0.0
  %3134 = vmatprep.subr.mxu0 0.0
  %3135 = vmatpush1.msra.mxu0 0.0
  %3136 = vmatprep.subr.mxu0 0.0
  %3137 = vmatpush1.msra.mxu0 0.0
  %3138 = vmatprep.subr.mxu0 0.0
  %3139 = vmatpush1.msra.mxu0 0.0
  %3140 = vmatprep.subr.mxu0 0.0
  %3141 = vmatpush1.msra.mxu0 0.0
  %3142 = vmatprep.subr.mxu0 0.0
  %3143 = vmatpush1.msra.mxu0 0.0
  %3144 = vmatprep.subr.mxu0 0.0
  %3145 = vmatpush1.msra.mxu0 0.0
  %3146 = vmatprep.subr.mxu0 0.0
  %3147 = vmatpush1.msra.mxu0 0.0
  %3148 = vmatprep.subr.mxu0 0.0
  %3149 = vmatpush1.msra.mxu0 0.0
  %3150 = vmatprep.subr.mxu0 0.0
  %3151 = vmatpush1.msra.mxu0 0.0
  %3152 = vmatprep.subr.mxu0 0.0
  %3153 = vmatpush1.msra.mxu0 0.0
  %3154 = vmatprep.subr.mxu0 0.0
  %3155 = vmatpush1.msra.mxu0 0.0
  %3156 = vmatprep.mubr.f32.mxu0 0.0
  %3157 = vmatmul.mubr.f32.gmra.mrb[0].mxu0 %v3008
  %v3158 = vpop.f32.mrb[0].mxu0
  %v3159 = vadd.f32 0.0, %v3158
  %v3160 = vpop.f32.mrb[0].mxu0
  %3161 = vmatprep.mubr.f32.mxu0 0.0
  %3162 = vmatmul.mubr.f32.gmra.mrb[0].mxu0 %v3011
  %v3163 = vpop.f32.mrb[0].mxu0
  %v3164 = vadd.f32 0.0, %v3163
  %v3165 = vpop.f32.mrb[0].mxu0
  %3166 = vmatprep.mubr.f32.mxu0 0.0
  %3167 = vmatmul.mubr.f32.gmra.mrb[0].mxu0 %v3014
  %v3168 = vpop.f32.mrb[0].mxu0
  %v3169 = vadd.f32 0.0, %v3168
  %v3170 = vpop.f32.mrb[0].mxu0
  %3171 = vmatprep.mubr.f32.mxu0 0.0
  %3172 = vmatmul.mubr.f32.gmra.mrb[0].mxu0 %v3017
  %v3173 = vpop.f32.mrb[0].mxu0
  %v3174 = vadd.f32 0.0, %v3173
  %v3175 = vpop.f32.mrb[0].mxu0
  %3176 = vmatprep.mubr.f32.mxu0 0.0
  %3177 = vmatmul.mubr.f32.gmra.mrb[0].mxu0 %v3020
  %v3178 = vpop.f32.mrb[0].mxu0
  %v3179 = vadd.f32 0.0, %v3178
  %v3180 = vpop.f32.mrb[0].mxu0
  %3181 = vmatprep.mubr.f32.mxu0 0.0
  %3182 = vmatmul.mubr.f32.gmra.mrb[0].mxu0 %v3023
  %v3183 = vpop.f32.mrb[0].mxu0
  %v3184 = vadd.f32 0.0, %v3183
  %v3185 = vpop.f32.mrb[0].mxu0
  %3186 = vmatprep.mubr.f32.mxu0 0.0
  %3187 = vmatmul.mubr.f32.gmra.mrb[0].mxu0 %v3026
  %v3188 = vpop.f32.mrb[0].mxu0
  %v3189 = vadd.f32 0.0, %v3188
  %v3190 = vpop.f32.mrb[0].mxu0
  %3191 = vmatprep.mubr.f32.mxu0 0.0
  %3192 = vmatmul.mubr.f32.gmra.mrb[0].mxu0 %v3029
  %v3193 = vpop.f32.mrb[0].mxu0
  %v3194 = vadd.f32 0.0, %v3193
  %v3195 = vpop.f32.mrb[0].mxu0
  %3196 = vmatprep.mubr.f32.mxu0 0.0
  %3197 = vmatmul.mubr.f32.gmra.mrb[0].mxu0 %v3032
  %v3198 = vpop.f32.mrb[0].mxu0
  %v3199 = vadd.f32 0.0, %v3198
  %v3200 = vpop.f32.mrb[0].mxu0
  %3201 = vmatprep.mubr.f32.mxu0 0.0
  %3202 = vmatmul.mubr.f32.gmra.mrb[0].mxu0 %v3035
  %v3203 = vpop.f32.mrb[0].mxu0
  %v3204 = vadd.f32 0.0, %v3203
  %v3205 = vpop.f32.mrb[0].mxu0
  %3206 = vmatprep.mubr.f32.mxu0 0.0
  %3207 = vmatmul.mubr.f32.gmra.mrb[0].mxu0 %v3038
  %v3208 = vpop.f32.mrb[0].mxu0
  %v3209 = vadd.f32 0.0, %v3208
  %v3210 = vpop.f32.mrb[0].mxu0
  %3211 = vmatprep.mubr.f32.mxu0 0.0
  %3212 = vmatmul.mubr.f32.gmra.mrb[0].mxu0 %v3041
  %v3213 = vpop.f32.mrb[0].mxu0
  %v3214 = vadd.f32 0.0, %v3213
  %v3215 = vpop.f32.mrb[0].mxu0
  %3216 = vmatprep.mubr.f32.mxu0 0.0
  %3217 = vmatmul.mubr.f32.gmra.mrb[0].mxu0 %v3044
  %v3218 = vpop.f32.mrb[0].mxu0
  %v3219 = vadd.f32 0.0, %v3218
  %v3220 = vpop.f32.mrb[0].mxu0
  %3221 = vmatprep.mubr.f32.mxu0 0.0
  %3222 = vmatmul.mubr.f32.gmra.mrb[0].mxu0 %v3047
  %v3223 = vpop.f32.mrb[0].mxu0
  %v3224 = vadd.f32 0.0, %v3223
  %v3225 = vpop.f32.mrb[0].mxu0
  %3226 = vmatprep.mubr.f32.mxu0 0.0
  %3227 = vmatmul.mubr.f32.gmra.mrb[0].mxu0 %v3050
  %v3228 = vpop.f32.mrb[0].mxu0
  %v3229 = vadd.f32 0.0, %v3228
  %v3230 = vpop.f32.mrb[0].mxu0
  %3231 = vmatprep.mubr.f32.mxu0 0.0
  %3232 = vmatmul.mubr.f32.gmra.mrb[0].mxu0 %v3053
  %v3233 = vpop.f32.mrb[0].mxu0
  %v3234 = vadd.f32 0.0, %v3233
  %v3235 = vpop.f32.mrb[0].mxu0
  %3236 = vmatprep.mubr.f32.mxu0 0.0
  %3237 = vmatmul.mubr.f32.gmra.mrb[0].mxu0 %v3056
  %v3238 = vpop.f32.mrb[0].mxu0
  %v3239 = vadd.f32 0.0, %v3238
  %v3240 = vpop.f32.mrb[0].mxu0
  %3241 = vmatprep.mubr.f32.mxu0 0.0
  %3242 = vmatmul.mubr.f32.gmra.mrb[0].mxu0 %v3059
  %v3243 = vpop.f32.mrb[0].mxu0
  %v3244 = vadd.f32 0.0, %v3243
  %v3245 = vpop.f32.mrb[0].mxu0
  %3246 = vmatprep.mubr.f32.mxu0 0.0
  %3247 = vmatmul.mubr.f32.gmra.mrb[0].mxu0 %v3062
  %v3248 = vpop.f32.mrb[0].mxu0
  %v3249 = vadd.f32 0.0, %v3248
  %v3250 = vpop.f32.mrb[0].mxu0
  %3251 = vmatprep.mubr.f32.mxu0 0.0
  %3252 = vmatmul.mubr.f32.gmra.mrb[0].mxu0 %v3065
  %v3253 = vpop.f32.mrb[0].mxu0
  %v3254 = vadd.f32 0.0, %v3253
  %v3255 = vpop.f32.mrb[0].mxu0
  %3256 = vmatprep.mubr.f32.mxu0 0.0
  %3257 = vmatmul.mubr.f32.gmra.mrb[0].mxu0 %v3068
  %v3258 = vpop.f32.mrb[0].mxu0
  %v3259 = vadd.f32 0.0, %v3258
  %v3260 = vpop.f32.mrb[0].mxu0
  %3261 = vmatprep.mubr.f32.mxu0 0.0
  %3262 = vmatmul.mubr.f32.gmra.mrb[0].mxu0 %v3071
  %v3263 = vpop.f32.mrb[0].mxu0
  %v3264 = vadd.f32 0.0, %v3263
  %v3265 = vpop.f32.mrb[0].mxu0
  %3266 = vmatprep.mubr.f32.mxu0 0.0
  %3267 = vmatmul.mubr.f32.gmra.mrb[0].mxu0 %v3074
  %v3268 = vpop.f32.mrb[0].mxu0
  %v3269 = vadd.f32 0.0, %v3268
  %v3270 = vpop.f32.mrb[0].mxu0
  %3271 = vmatprep.mubr.f32.mxu0 0.0
  %3272 = vmatmul.mubr.f32.gmra.mrb[0].mxu0 %v3077
  %v3273 = vpop.f32.mrb[0].mxu0
  %v3274 = vadd.f32 0.0, %v3273
  %v3275 = vpop.f32.mrb[0].mxu0
  %3276 = vmatprep.mubr.f32.mxu0 0.0
  %3277 = vmatmul.mubr.f32.gmra.mrb[0].mxu0 %v3080
  %v3278 = vpop.f32.mrb[0].mxu0
  %v3279 = vadd.f32 0.0, %v3278
  %v3280 = vpop.f32.mrb[0].mxu0
  %3281 = vmatprep.mubr.f32.mxu0 0.0
  %3282 = vmatmul.mubr.f32.gmra.mrb[0].mxu0 %v3083
  %v3283 = vpop.f32.mrb[0].mxu0
  %v3284 = vadd.f32 0.0, %v3283
  %v3285 = vpop.f32.mrb[0].mxu0
  %3286 = vmatprep.mubr.f32.mxu0 0.0
  %3287 = vmatmul.mubr.f32.gmra.mrb[0].mxu0 %v3086
  %v3288 = vpop.f32.mrb[0].mxu0
  %v3289 = vadd.f32 0.0, %v3288
  %v3290 = vpop.f32.mrb[0].mxu0
  %3291 = vdwg.mxu0
  %vm3292 = vcmask 130048
  %v3293 = vsel %vm3292, %v3159, 0.0
  %v3294 = vsel %vm3292, %v3164, 0.0
  %v3295 = vadd.f32 %v3293, %v3294
  %v3296 = vsel %vm3292, %v3169, 0.0
  %v3297 = vadd.f32 %v3295, %v3296
  %v3298 = vsel %vm3292, %v3174, 0.0
  %v3299 = vadd.f32 %v3297, %v3298
  %v3300 = vsel %vm3292, %v3179, 0.0
  %v3301 = vadd.f32 %v3299, %v3300
  %v3302 = vsel %vm3292, %v3184, 0.0
  %v3303 = vadd.f32 %v3301, %v3302
  %v3304 = vsel %vm3292, %v3189, 0.0
  %v3305 = vadd.f32 %v3303, %v3304
  %v3306 = vsel %vm3292, %v3194, 0.0
  %v3307 = vadd.f32 %v3305, %v3306
  %v3308 = vsel %vm3292, %v3199, 0.0
  %v3309 = vadd.f32 %v3307, %v3308
  %v3310 = vsel %vm3292, %v3204, 0.0
  %v3311 = vadd.f32 %v3309, %v3310
  %v3312 = vsel %vm3292, %v3209, 0.0
  %v3313 = vadd.f32 %v3311, %v3312
  %v3314 = vsel %vm3292, %v3214, 0.0
  %v3315 = vadd.f32 %v3313, %v3314
  %v3316 = vsel %vm3292, %v3219, 0.0
  %v3317 = vadd.f32 %v3315, %v3316
  %v3318 = vsel %vm3292, %v3224, 0.0
  %v3319 = vadd.f32 %v3317, %v3318
  %v3320 = vsel %vm3292, %v3229, 0.0
  %v3321 = vadd.f32 %v3319, %v3320
  %v3322 = vsel %vm3292, %v3234, 0.0
  %v3323 = vadd.f32 %v3321, %v3322
  %v3324 = vsel %vm3292, %v3239, 0.0
  %v3325 = vadd.f32 %v3323, %v3324
  %v3326 = vsel %vm3292, %v3244, 0.0
  %v3327 = vadd.f32 %v3325, %v3326
  %v3328 = vsel %vm3292, %v3249, 0.0
  %v3329 = vadd.f32 %v3327, %v3328
  %v3330 = vsel %vm3292, %v3254, 0.0
  %v3331 = vadd.f32 %v3329, %v3330
  %v3332 = vsel %vm3292, %v3259, 0.0
  %v3333 = vadd.f32 %v3331, %v3332
  %v3334 = vsel %vm3292, %v3264, 0.0
  %v3335 = vadd.f32 %v3333, %v3334
  %v3336 = vsel %vm3292, %v3269, 0.0
  %v3337 = vadd.f32 %v3335, %v3336
  %v3338 = vsel %vm3292, %v3274, 0.0
  %v3339 = vadd.f32 %v3337, %v3338
  %v3340 = vsel %vm3292, %v3279, 0.0
  %v3341 = vadd.f32 %v3339, %v3340
  %v3342 = vsel %vm3292, %v3284, 0.0
  %v3343 = vadd.f32 %v3341, %v3342
  %v3344 = vsel %vm3292, %v3289, 0.0
  %v3345 = vadd.f32 %v3343, %v3344
  %v3346 = vrot.slane %v3345, 4
  %v3347 = vadd.f32 %v3345, %v3346
  %v3348 = vrot.slane %v3347, 2
  %v3349 = vadd.f32 %v3347, %v3348
  %v3350 = vrot.slane %v3349, 1
  %v3351 = vadd.f32 %v3349, %v3350
  %v3352 = vmul.f32 %v3351, 0.0046296297
  %v3353 = vmul.f32 %v3159, %v3159
  %v3354 = vmul.f32 %v3164, %v3164
  %v3355 = vmul.f32 %v3169, %v3169
  %v3356 = vmul.f32 %v3174, %v3174
  %v3357 = vmul.f32 %v3179, %v3179
  %v3358 = vmul.f32 %v3184, %v3184
  %v3359 = vmul.f32 %v3189, %v3189
  %v3360 = vmul.f32 %v3194, %v3194
  %v3361 = vmul.f32 %v3199, %v3199
  %v3362 = vmul.f32 %v3204, %v3204
  %v3363 = vmul.f32 %v3209, %v3209
  %v3364 = vmul.f32 %v3214, %v3214
  %v3365 = vmul.f32 %v3219, %v3219
  %v3366 = vmul.f32 %v3224, %v3224
  %v3367 = vmul.f32 %v3229, %v3229
  %v3368 = vmul.f32 %v3234, %v3234
  %v3369 = vmul.f32 %v3239, %v3239
  %v3370 = vmul.f32 %v3244, %v3244
  %v3371 = vmul.f32 %v3249, %v3249
  %v3372 = vmul.f32 %v3254, %v3254
  %v3373 = vmul.f32 %v3259, %v3259
  %v3374 = vmul.f32 %v3264, %v3264
  %v3375 = vmul.f32 %v3269, %v3269
  %v3376 = vmul.f32 %v3274, %v3274
  %v3377 = vmul.f32 %v3279, %v3279
  %v3378 = vmul.f32 %v3284, %v3284
  %v3379 = vmul.f32 %v3289, %v3289
  %v3380 = vsel %vm3292, %v3353, 0.0
  %v3381 = vsel %vm3292, %v3354, 0.0
  %v3382 = vadd.f32 %v3380, %v3381
  %v3383 = vsel %vm3292, %v3355, 0.0
  %v3384 = vadd.f32 %v3382, %v3383
  %v3385 = vsel %vm3292, %v3356, 0.0
  %v3386 = vadd.f32 %v3384, %v3385
  %v3387 = vsel %vm3292, %v3357, 0.0
  %v3388 = vadd.f32 %v3386, %v3387
  %v3389 = vsel %vm3292, %v3358, 0.0
  %v3390 = vadd.f32 %v3388, %v3389
  %v3391 = vsel %vm3292, %v3359, 0.0
  %v3392 = vadd.f32 %v3390, %v3391
  %v3393 = vsel %vm3292, %v3360, 0.0
  %v3394 = vadd.f32 %v3392, %v3393
  %v3395 = vsel %vm3292, %v3361, 0.0
  %v3396 = vadd.f32 %v3394, %v3395
  %v3397 = vsel %vm3292, %v3362, 0.0
  %v3398 = vadd.f32 %v3396, %v3397
  %v3399 = vsel %vm3292, %v3363, 0.0
  %v3400 = vadd.f32 %v3398, %v3399
  %v3401 = vsel %vm3292, %v3364, 0.0
  %v3402 = vadd.f32 %v3400, %v3401
  %v3403 = vsel %vm3292, %v3365, 0.0
  %v3404 = vadd.f32 %v3402, %v3403
  %v3405 = vsel %vm3292, %v3366, 0.0
  %v3406 = vadd.f32 %v3404, %v3405
  %v3407 = vsel %vm3292, %v3367, 0.0
  %v3408 = vadd.f32 %v3406, %v3407
  %v3409 = vsel %vm3292, %v3368, 0.0
  %v3410 = vadd.f32 %v3408, %v3409
  %v3411 = vsel %vm3292, %v3369, 0.0
  %v3412 = vadd.f32 %v3410, %v3411
  %v3413 = vsel %vm3292, %v3370, 0.0
  %v3414 = vadd.f32 %v3412, %v3413
  %v3415 = vsel %vm3292, %v3371, 0.0
  %v3416 = vadd.f32 %v3414, %v3415
  %v3417 = vsel %vm3292, %v3372, 0.0
  %v3418 = vadd.f32 %v3416, %v3417
  %v3419 = vsel %vm3292, %v3373, 0.0
  %v3420 = vadd.f32 %v3418, %v3419
  %v3421 = vsel %vm3292, %v3374, 0.0
  %v3422 = vadd.f32 %v3420, %v3421
  %v3423 = vsel %vm3292, %v3375, 0.0
  %v3424 = vadd.f32 %v3422, %v3423
  %v3425 = vsel %vm3292, %v3376, 0.0
  %v3426 = vadd.f32 %v3424, %v3425
  %v3427 = vsel %vm3292, %v3377, 0.0
  %v3428 = vadd.f32 %v3426, %v3427
  %v3429 = vsel %vm3292, %v3378, 0.0
  %v3430 = vadd.f32 %v3428, %v3429
  %v3431 = vsel %vm3292, %v3379, 0.0
  %v3432 = vadd.f32 %v3430, %v3431
  %v3433 = vrot.slane %v3432, 4
  %v3434 = vadd.f32 %v3432, %v3433
  %v3435 = vrot.slane %v3434, 2
  %v3436 = vadd.f32 %v3434, %v3435
  %v3437 = vrot.slane %v3436, 1
  %v3438 = vadd.f32 %v3436, %v3437
  %v3439 = vmul.f32 %v3438, 0.0046296297
  %v3440 = vmul.f32 %v3352, %v3352
  %v3441 = vsub.f32 %v3439, %v3440
  %v3442 = vmax.f32 %v3441, 0.0
  %v3443 = vsub.f32 %v3159, %v3352
  %v3444 = vsub.f32 %v3164, %v3352
  %v3445 = vsub.f32 %v3169, %v3352
  %v3446 = vsub.f32 %v3174, %v3352
  %v3447 = vsub.f32 %v3179, %v3352
  %v3448 = vsub.f32 %v3184, %v3352
  %v3449 = vsub.f32 %v3189, %v3352
  %v3450 = vsub.f32 %v3194, %v3352
  %v3451 = vsub.f32 %v3199, %v3352
  %v3452 = vsub.f32 %v3204, %v3352
  %v3453 = vsub.f32 %v3209, %v3352
  %v3454 = vsub.f32 %v3214, %v3352
  %v3455 = vsub.f32 %v3219, %v3352
  %v3456 = vsub.f32 %v3224, %v3352
  %v3457 = vsub.f32 %v3229, %v3352
  %v3458 = vsub.f32 %v3234, %v3352
  %v3459 = vsub.f32 %v3239, %v3352
  %v3460 = vsub.f32 %v3244, %v3352
  %v3461 = vsub.f32 %v3249, %v3352
  %v3462 = vsub.f32 %v3254, %v3352
  %v3463 = vsub.f32 %v3259, %v3352
  %v3464 = vsub.f32 %v3264, %v3352
  %v3465 = vsub.f32 %v3269, %v3352
  %v3466 = vsub.f32 %v3274, %v3352
  %v3467 = vsub.f32 %v3279, %v3352
  %v3468 = vsub.f32 %v3284, %v3352
  %v3469 = vsub.f32 %v3289, %v3352
  %v3470 = vadd.f32 %v3442, 1e-05
  %v3471 = vrsqrt.pop %v3470
  %v3472 = vmul.f32 %v3443, %v3471
  %v3473 = vmul.f32 %v3444, %v3471
  %v3474 = vmul.f32 %v3445, %v3471
  %v3475 = vmul.f32 %v3446, %v3471
  %v3476 = vmul.f32 %v3447, %v3471
  %v3477 = vmul.f32 %v3448, %v3471
  %v3478 = vmul.f32 %v3449, %v3471
  %v3479 = vmul.f32 %v3450, %v3471
  %v3480 = vmul.f32 %v3451, %v3471
  %v3481 = vmul.f32 %v3452, %v3471
  %v3482 = vmul.f32 %v3453, %v3471
  %v3483 = vmul.f32 %v3454, %v3471
  %v3484 = vmul.f32 %v3455, %v3471
  %v3485 = vmul.f32 %v3456, %v3471
  %v3486 = vmul.f32 %v3457, %v3471
  %v3487 = vmul.f32 %v3458, %v3471
  %v3488 = vmul.f32 %v3459, %v3471
  %v3489 = vmul.f32 %v3460, %v3471
  %v3490 = vmul.f32 %v3461, %v3471
  %v3491 = vmul.f32 %v3462, %v3471
  %v3492 = vmul.f32 %v3463, %v3471
  %v3493 = vmul.f32 %v3464, %v3471
  %v3494 = vmul.f32 %v3465, %v3471
  %v3495 = vmul.f32 %v3466, %v3471
  %v3496 = vmul.f32 %v3467, %v3471
  %v3497 = vmul.f32 %v3468, %v3471
  %v3498 = vmul.f32 %v3469, %v3471
  %v3499 = vmax.f32 %v3472, 0.0
  %v3500 = vmax.f32 %v3473, 0.0
  %v3501 = vmax.f32 %v3474, 0.0
  %v3502 = vmax.f32 %v3475, 0.0
  %v3503 = vmax.f32 %v3476, 0.0
  %v3504 = vmax.f32 %v3477, 0.0
  %v3505 = vmax.f32 %v3478, 0.0
  %v3506 = vmax.f32 %v3479, 0.0
  %v3507 = vmax.f32 %v3480, 0.0
  %v3508 = vmax.f32 %v3481, 0.0
  %v3509 = vmax.f32 %v3482, 0.0
  %v3510 = vmax.f32 %v3483, 0.0
  %v3511 = vmax.f32 %v3484, 0.0
  %v3512 = vmax.f32 %v3485, 0.0
  %v3513 = vmax.f32 %v3486, 0.0
  %v3514 = vmax.f32 %v3487, 0.0
  %v3515 = vmax.f32 %v3488, 0.0
  %v3516 = vmax.f32 %v3489, 0.0
  %v3517 = vmax.f32 %v3490, 0.0
  %v3518 = vmax.f32 %v3491, 0.0
  %v3519 = vmax.f32 %v3492, 0.0
  %v3520 = vmax.f32 %v3493, 0.0
  %v3521 = vmax.f32 %v3494, 0.0
  %v3522 = vmax.f32 %v3495, 0.0
  %v3523 = vmax.f32 %v3496, 0.0
  %v3524 = vmax.f32 %v3497, 0.0
  %v3525 = vmax.f32 %v3498, 0.0
  %3526 = vst.msk [vmem:[#allocation4] sm:$0xff] %vm3292, 0.0
  %vm3527 = vcmask 124928
  %3528 = vst.msk [vmem:[#allocation4 + $0x8] sm:$0x7] %vm3527, 0.0
  %3529 = vst.msk [vmem:[#allocation4 + $0x5b] sm:$0xff] %vm3292, 0.0
  %3530 = vst.msk [vmem:[#allocation4 + $0x63] sm:$0x7] %vm3527, 0.0
  %v3531 = vld [vmem:[%s3] sm:$0xf]
  %v3532 = vld [vmem:[%s3 + $0x4] sm:$0xf]
  %v3533 = vld [vmem:[%s3 + $0x8] sm:$0xf]
  %v3534 = vld [vmem:[%s3 + $0xc] sm:$0xf]
  %v3535 = vld [vmem:[%s3 + $0x10] sm:$0xf]
  %v3536 = vld [vmem:[%s3 + $0x14] sm:$0xf]
  %v3537 = vld [vmem:[%s3 + $0x18] sm:$0xf]
  %v3538 = vld [vmem:[%s3 + $0x1c] sm:$0xf]
  %v3539 = vld [vmem:[%s3 + $0x20] sm:$0xf]
  %v3540 = vld [vmem:[%s3 + $0x24] sm:$0xf]
  %v3541 = vld [vmem:[%s3 + $0x28] sm:$0xf]
  %v3542 = vld [vmem:[%s3 + $0x2c] sm:$0xf]
  %v3543 = vld [vmem:[%s3 + $0x30] sm:$0xf]
  %v3544 = vld [vmem:[%s3 + $0x34] sm:$0xf]
  %v3545 = vld [vmem:[%s3 + $0x38] sm:$0xf]
  %v3546 = vld [vmem:[%s3 + $0x3c] sm:$0xf]
  %v3547 = vld [vmem:[%s3 + $0x40] sm:$0xf]
  %v3548 = vld [vmem:[%s3 + $0x44] sm:$0xf]
  %v3549 = vld [vmem:[%s3 + $0x48] sm:$0xf]
  %v3550 = vld [vmem:[%s3 + $0x4c] sm:$0xf]
  %v3551 = vunpack.c.l.bf16 %v3531
  %v3552 = vunpack.c.l.bf16 %v3532
  %v3553 = vunpack.c.l.bf16 %v3533
  %v3554 = vunpack.c.l.bf16 %v3534
  %v3555 = vunpack.c.l.bf16 %v3535
  %v3556 = vunpack.c.l.bf16 %v3536
  %v3557 = vunpack.c.l.bf16 %v3537
  %v3558 = vunpack.c.l.bf16 %v3538
  %v3559 = vunpack.c.l.bf16 %v3539
  %v3560 = vunpack.c.l.bf16 %v3540
  %v3561 = vunpack.c.l.bf16 %v3541
  %v3562 = vunpack.c.l.bf16 %v3542
  %v3563 = vunpack.c.l.bf16 %v3543
  %v3564 = vunpack.c.l.bf16 %v3544
  %v3565 = vunpack.c.l.bf16 %v3545
  %v3566 = vunpack.c.l.bf16 %v3546
  %v3567 = vunpack.c.l.bf16 %v3547
  %v3568 = vunpack.c.l.bf16 %v3548
  %v3569 = vunpack.c.l.bf16 %v3549
  %v3570 = vunpack.c.l.bf16 %v3550
  %vm3571 = vcmask 883712
  %v3573 = vsel %vm3571, %v3551, 0
  %v3576 = vsel %vm3571, %v3552, 0
  %v3579 = vsel %vm3571, %v3553, 0
  %v3582 = vsel %vm3571, %v3554, 0
  %v3585 = vsel %vm3571, %v3555, 0
  %v3588 = vsel %vm3571, %v3556, 0
  %v3591 = vsel %vm3571, %v3557, 0
  %v3594 = vsel %vm3571, %v3558, 0
  %v3597 = vsel %vm3571, %v3559, 0
  %v3600 = vsel %vm3571, %v3560, 0
  %v3603 = vsel %vm3571, %v3561, 0
  %v3606 = vsel %vm3571, %v3562, 0
  %v3609 = vsel %vm3571, %v3563, 0
  %v3612 = vsel %vm3571, %v3564, 0
  %v3615 = vsel %vm3571, %v3565, 0
  %v3618 = vsel %vm3571, %v3566, 0
  %v3621 = vsel %vm3571, %v3567, 0
  %v3624 = vsel %vm3571, %v3568, 0
  %v3627 = vsel %vm3571, %v3569, 0
  %v3630 = vsel %vm3571, %v3570, 0
  %vm3632 = vcmask 1043456
  %v3634 = vsel %vm3632, %v3512, 0
  %3636 = vmatprep.subr.mxu0 0.0
  %3637 = vmatpush1.msra.mxu0 %v3499
  %3638 = vmatprep.subr.mxu0 0.0
  %3639 = vmatpush1.msra.mxu0 %v3500
  %3640 = vmatprep.subr.mxu0 0.0
  %3641 = vmatpush1.msra.mxu0 %v3501
  %3642 = vmatprep.subr.mxu0 0.0
  %3643 = vmatpush1.msra.mxu0 %v3502
  %3644 = vmatprep.subr.mxu0 0.0
  %3645 = vmatpush1.msra.mxu0 %v3503
  %3646 = vmatprep.subr.mxu0 0.0
  %3647 = vmatpush1.msra.mxu0 %v3504
  %3648 = vmatprep.subr.mxu0 0.0
  %3649 = vmatpush1.msra.mxu0 %v3505
  %3650 = vmatprep.subr.mxu0 0.0
  %3651 = vmatpush1.msra.mxu0 %v3506
  %3652 = vmatprep.subr.mxu0 0.0
  %3653 = vmatpush1.msra.mxu0 %v3507
  %3654 = vmatprep.subr.mxu0 0.0
  %3655 = vmatpush1.msra.mxu0 %v3508
  %3656 = vmatprep.subr.mxu0 0.0
  %3657 = vmatpush1.msra.mxu0 %v3509
  %3658 = vmatprep.subr.mxu0 0.0
  %3659 = vmatpush1.msra.mxu0 %v3510
  %3660 = vmatprep.subr.mxu0 0.0
  %3661 = vmatpush1.msra.mxu0 %v3511
  %3662 = vmatprep.subr.mxu0 0.0
  %3663 = vmatpush1.msra.mxu0 %v3634
  %3664 = vmatprep.subr.mxu0 0.0
  %3665 = vmatpush1.msra.mxu0 0.0
  %3666 = vmatprep.subr.mxu0 0.0
  %3667 = vmatpush1.msra.mxu0 0.0
  %3668 = vmatprep.subr.mxu0 0.0
  %3669 = vmatpush1.msra.mxu0 0.0
  %3670 = vmatprep.subr.mxu0 0.0
  %3671 = vmatpush1.msra.mxu0 0.0
  %3672 = vmatprep.subr.mxu0 0.0
  %3673 = vmatpush1.msra.mxu0 0.0
  %3674 = vmatprep.subr.mxu0 0.0
  %3675 = vmatpush1.msra.mxu0 0.0
  %3676 = vmatprep.subr.mxu0 0.0
  %3677 = vmatpush1.msra.mxu0 0.0
  %3678 = vmatprep.subr.mxu0 0.0
  %3679 = vmatpush1.msra.mxu0 0.0
  %3680 = vmatprep.subr.mxu0 0.0
  %3681 = vmatpush1.msra.mxu0 0.0
  %3682 = vmatprep.subr.mxu0 0.0
  %3683 = vmatpush1.msra.mxu0 0.0
  %3684 = vmatprep.subr.mxu0 0.0
  %3685 = vmatpush1.msra.mxu0 0.0
  %3686 = vmatprep.subr.mxu0 0.0
  %3687 = vmatpush1.msra.mxu0 0.0
  %3688 = vmatprep.subr.mxu0 0.0
  %3689 = vmatpush1.msra.mxu0 0.0
  %3690 = vmatprep.subr.mxu0 0.0
  %3691 = vmatpush1.msra.mxu0 0.0
  %3692 = vmatprep.subr.mxu0 0.0
  %3693 = vmatpush1.msra.mxu0 0.0
  %3694 = vmatprep.subr.mxu0 0.0
  %3695 = vmatpush1.msra.mxu0 0.0
  %3696 = vmatprep.subr.mxu0 0.0
  %3697 = vmatpush1.msra.mxu0 0.0
  %3698 = vmatprep.subr.mxu0 0.0
  %3699 = vmatpush1.msra.mxu0 0.0
  %3700 = vmatprep.mubr.f32.mxu0 0.0
  %3701 = vmatmul.mubr.f32.gmra.mrb[0].mxu0 %v3573
  %v3702 = vpop.f32.mrb[0].mxu0
  %v3703 = vadd.f32 0.0, %v3702
  %v3704 = vpop.f32.mrb[0].mxu0
  %3705 = vmatprep.mubr.f32.mxu0 0.0
  %3706 = vmatmul.mubr.f32.gmra.mrb[0].mxu0 %v3576
  %v3707 = vpop.f32.mrb[0].mxu0
  %v3708 = vadd.f32 0.0, %v3707
  %v3709 = vpop.f32.mrb[0].mxu0
  %3710 = vmatprep.mubr.f32.mxu0 0.0
  %3711 = vmatmul.mubr.f32.gmra.mrb[0].mxu0 %v3579
  %v3712 = vpop.f32.mrb[0].mxu0
  %v3713 = vadd.f32 0.0, %v3712
  %v3714 = vpop.f32.mrb[0].mxu0
  %3715 = vmatprep.mubr.f32.mxu0 0.0
  %3716 = vmatmul.mubr.f32.gmra.mrb[0].mxu0 %v3582
  %v3717 = vpop.f32.mrb[0].mxu0
  %v3718 = vadd.f32 0.0, %v3717
  %v3719 = vpop.f32.mrb[0].mxu0
  %3720 = vmatprep.mubr.f32.mxu0 0.0
  %3721 = vmatmul.mubr.f32.gmra.mrb[0].mxu0 %v3585
  %v3722 = vpop.f32.mrb[0].mxu0
  %v3723 = vadd.f32 0.0, %v3722
  %v3724 = vpop.f32.mrb[0].mxu0
  %3725 = vmatprep.mubr.f32.mxu0 0.0
  %3726 = vmatmul.mubr.f32.gmra.mrb[0].mxu0 %v3588
  %v3727 = vpop.f32.mrb[0].mxu0
  %v3728 = vadd.f32 0.0, %v3727
  %v3729 = vpop.f32.mrb[0].mxu0
  %3730 = vmatprep.mubr.f32.mxu0 0.0
  %3731 = vmatmul.mubr.f32.gmra.mrb[0].mxu0 %v3591
  %v3732 = vpop.f32.mrb[0].mxu0
  %v3733 = vadd.f32 0.0, %v3732
  %v3734 = vpop.f32.mrb[0].mxu0
  %3735 = vmatprep.mubr.f32.mxu0 0.0
  %3736 = vmatmul.mubr.f32.gmra.mrb[0].mxu0 %v3594
  %v3737 = vpop.f32.mrb[0].mxu0
  %v3738 = vadd.f32 0.0, %v3737
  %v3739 = vpop.f32.mrb[0].mxu0
  %3740 = vmatprep.mubr.f32.mxu0 0.0
  %3741 = vmatmul.mubr.f32.gmra.mrb[0].mxu0 %v3597
  %v3742 = vpop.f32.mrb[0].mxu0
  %v3743 = vadd.f32 0.0, %v3742
  %v3744 = vpop.f32.mrb[0].mxu0
  %3745 = vmatprep.mubr.f32.mxu0 0.0
  %3746 = vmatmul.mubr.f32.gmra.mrb[0].mxu0 %v3600
  %v3747 = vpop.f32.mrb[0].mxu0
  %v3748 = vadd.f32 0.0, %v3747
  %v3749 = vpop.f32.mrb[0].mxu0
  %3750 = vmatprep.mubr.f32.mxu0 0.0
  %3751 = vmatmul.mubr.f32.gmra.mrb[0].mxu0 %v3603
  %v3752 = vpop.f32.mrb[0].mxu0
  %v3753 = vadd.f32 0.0, %v3752
  %v3754 = vpop.f32.mrb[0].mxu0
  %3755 = vmatprep.mubr.f32.mxu0 0.0
  %3756 = vmatmul.mubr.f32.gmra.mrb[0].mxu0 %v3606
  %v3757 = vpop.f32.mrb[0].mxu0
  %v3758 = vadd.f32 0.0, %v3757
  %v3759 = vpop.f32.mrb[0].mxu0
  %3760 = vmatprep.mubr.f32.mxu0 0.0
  %3761 = vmatmul.mubr.f32.gmra.mrb[0].mxu0 %v3609
  %v3762 = vpop.f32.mrb[0].mxu0
  %v3763 = vadd.f32 0.0, %v3762
  %v3764 = vpop.f32.mrb[0].mxu0
  %3765 = vmatprep.mubr.f32.mxu0 0.0
  %3766 = vmatmul.mubr.f32.gmra.mrb[0].mxu0 %v3612
  %v3767 = vpop.f32.mrb[0].mxu0
  %v3768 = vadd.f32 0.0, %v3767
  %v3769 = vpop.f32.mrb[0].mxu0
  %3770 = vmatprep.mubr.f32.mxu0 0.0
  %3771 = vmatmul.mubr.f32.gmra.mrb[0].mxu0 %v3615
  %v3772 = vpop.f32.mrb[0].mxu0
  %v3773 = vadd.f32 0.0, %v3772
  %v3774 = vpop.f32.mrb[0].mxu0
  %3775 = vmatprep.mubr.f32.mxu0 0.0
  %3776 = vmatmul.mubr.f32.gmra.mrb[0].mxu0 %v3618
  %v3777 = vpop.f32.mrb[0].mxu0
  %v3778 = vadd.f32 0.0, %v3777
  %v3779 = vpop.f32.mrb[0].mxu0
  %3780 = vmatprep.mubr.f32.mxu0 0.0
  %3781 = vmatmul.mubr.f32.gmra.mrb[0].mxu0 %v3621
  %v3782 = vpop.f32.mrb[0].mxu0
  %v3783 = vadd.f32 0.0, %v3782
  %v3784 = vpop.f32.mrb[0].mxu0
  %3785 = vmatprep.mubr.f32.mxu0 0.0
  %3786 = vmatmul.mubr.f32.gmra.mrb[0].mxu0 %v3624
  %v3787 = vpop.f32.mrb[0].mxu0
  %v3788 = vadd.f32 0.0, %v3787
  %v3789 = vpop.f32.mrb[0].mxu0
  %3790 = vmatprep.mubr.f32.mxu0 0.0
  %3791 = vmatmul.mubr.f32.gmra.mrb[0].mxu0 %v3627
  %v3792 = vpop.f32.mrb[0].mxu0
  %v3793 = vadd.f32 0.0, %v3792
  %v3794 = vpop.f32.mrb[0].mxu0
  %3795 = vmatprep.mubr.f32.mxu0 0.0
  %3796 = vmatmul.mubr.f32.gmra.mrb[0].mxu0 %v3630
  %v3797 = vpop.f32.mrb[0].mxu0
  %v3798 = vadd.f32 0.0, %v3797
  %v3799 = vpop.f32.mrb[0].mxu0
  %3800 = vdwg.mxu0
  %v3801 = vmax.f32 %v3703, %v3728
  %v3802 = vmax.f32 %v3708, %v3733
  %v3803 = vmax.f32 %v3713, %v3738
  %v3804 = vmax.f32 %v3718, %v3743
  %v3805 = vmax.f32 %v3723, %v3748
  %v3806 = vmax.f32 %v3753, %v3778
  %v3807 = vmax.f32 %v3758, %v3783
  %v3808 = vmax.f32 %v3763, %v3788
  %v3809 = vmax.f32 %v3768, %v3793
  %v3810 = vmax.f32 %v3773, %v3798
  %v3811 = vmax.f32 %v3801, %v3806
  %v3812 = vmax.f32 %v3802, %v3807
  %v3813 = vmax.f32 %v3803, %v3808
  %v3814 = vmax.f32 %v3804, %v3809
  %v3815 = vmax.f32 %v3805, %v3810
  %3816 = vst.msk [vmem:[#allocation4 + $0xb] sm:$0xff] %vm3292, %v3811
  %3817 = vst.msk [vmem:[#allocation4 + $0x13] sm:$0xff] %vm3292, %v3812
  %3818 = vst.msk [vmem:[#allocation4 + $0x1b] sm:$0xff] %vm3292, %v3813
  %3819 = vst.msk [vmem:[#allocation4 + $0x23] sm:$0xff] %vm3292, %v3814
  %3820 = vst.msk [vmem:[#allocation4 + $0x2b] sm:$0xff] %vm3292, %v3815
  %v3834 = vrot.slane %v3512, 4
  %v3835 = vrot.slane %v3513, 4
  %v3836 = vsel %vm3632, %v3834, %v3835
  %v3837 = vrot.slane %v3514, 4
  %v3838 = vsel %vm3632, %v3835, %v3837
  %v3839 = vrot.slane %v3515, 4
  %v3840 = vsel %vm3632, %v3837, %v3839
  %v3841 = vrot.slane %v3516, 4
  %v3842 = vsel %vm3632, %v3839, %v3841
  %v3843 = vrot.slane %v3517, 4
  %v3844 = vsel %vm3632, %v3841, %v3843
  %v3845 = vrot.slane %v3518, 4
  %v3846 = vsel %vm3632, %v3843, %v3845
  %v3847 = vrot.slane %v3519, 4
  %v3848 = vsel %vm3632, %v3845, %v3847
  %v3849 = vrot.slane %v3520, 4
  %v3850 = vsel %vm3632, %v3847, %v3849
  %v3851 = vrot.slane %v3521, 4
  %v3852 = vsel %vm3632, %v3849, %v3851
  %v3853 = vrot.slane %v3522, 4
  %v3854 = vsel %vm3632, %v3851, %v3853
  %v3855 = vrot.slane %v3523, 4
  %v3856 = vsel %vm3632, %v3853, %v3855
  %v3857 = vrot.slane %v3524, 4
  %v3858 = vsel %vm3632, %v3855, %v3857
  %v3859 = vrot.slane %v3525, 4
  %v3860 = vsel %vm3632, %v3857, %v3859
  %v3874 = vsel %vm3632, %v3859, 0
  %3876 = vmatprep.subr.mxu0 0.0
  %3877 = vmatpush1.msra.mxu0 %v3836
  %3878 = vmatprep.subr.mxu0 0.0
  %3879 = vmatpush1.msra.mxu0 %v3838
  %3880 = vmatprep.subr.mxu0 0.0
  %3881 = vmatpush1.msra.mxu0 %v3840
  %3882 = vmatprep.subr.mxu0 0.0
  %3883 = vmatpush1.msra.mxu0 %v3842
  %3884 = vmatprep.subr.mxu0 0.0
  %3885 = vmatpush1.msra.mxu0 %v3844
  %3886 = vmatprep.subr.mxu0 0.0
  %3887 = vmatpush1.msra.mxu0 %v3846
  %3888 = vmatprep.subr.mxu0 0.0
  %3889 = vmatpush1.msra.mxu0 %v3848
  %3890 = vmatprep.subr.mxu0 0.0
  %3891 = vmatpush1.msra.mxu0 %v3850
  %3892 = vmatprep.subr.mxu0 0.0
  %3893 = vmatpush1.msra.mxu0 %v3852
  %3894 = vmatprep.subr.mxu0 0.0
  %3895 = vmatpush1.msra.mxu0 %v3854
  %3896 = vmatprep.subr.mxu0 0.0
  %3897 = vmatpush1.msra.mxu0 %v3856
  %3898 = vmatprep.subr.mxu0 0.0
  %3899 = vmatpush1.msra.mxu0 %v3858
  %3900 = vmatprep.subr.mxu0 0.0
  %3901 = vmatpush1.msra.mxu0 %v3860
  %3902 = vmatprep.subr.mxu0 0.0
  %3903 = vmatpush1.msra.mxu0 %v3874
  %3904 = vmatprep.subr.mxu0 0.0
  %3905 = vmatpush1.msra.mxu0 0.0
  %3906 = vmatprep.subr.mxu0 0.0
  %3907 = vmatpush1.msra.mxu0 0.0
  %3908 = vmatprep.subr.mxu0 0.0
  %3909 = vmatpush1.msra.mxu0 0.0
  %3910 = vmatprep.subr.mxu0 0.0
  %3911 = vmatpush1.msra.mxu0 0.0
  %3912 = vmatprep.subr.mxu0 0.0
  %3913 = vmatpush1.msra.mxu0 0.0
  %3914 = vmatprep.subr.mxu0 0.0
  %3915 = vmatpush1.msra.mxu0 0.0
  %3916 = vmatprep.subr.mxu0 0.0
  %3917 = vmatpush1.msra.mxu0 0.0
  %3918 = vmatprep.subr.mxu0 0.0
  %3919 = vmatpush1.msra.mxu0 0.0
  %3920 = vmatprep.subr.mxu0 0.0
  %3921 = vmatpush1.msra.mxu0 0.0
  %3922 = vmatprep.subr.mxu0 0.0
  %3923 = vmatpush1.msra.mxu0 0.0
  %3924 = vmatprep.subr.mxu0 0.0
  %3925 = vmatpush1.msra.mxu0 0.0
  %3926 = vmatprep.subr.mxu0 0.0
  %3927 = vmatpush1.msra.mxu0 0.0
  %3928 = vmatprep.subr.mxu0 0.0
  %3929 = vmatpush1.msra.mxu0 0.0
  %3930 = vmatprep.subr.mxu0 0.0
  %3931 = vmatpush1.msra.mxu0 0.0
  %3932 = vmatprep.subr.mxu0 0.0
  %3933 = vmatpush1.msra.mxu0 0.0
  %3934 = vmatprep.subr.mxu0 0.0
  %3935 = vmatpush1.msra.mxu0 0.0
  %3936 = vmatprep.subr.mxu0 0.0
  %3937 = vmatpush1.msra.mxu0 0.0
  %3938 = vmatprep.subr.mxu0 0.0
  %3939 = vmatpush1.msra.mxu0 0.0
  %3940 = vmatprep.mubr.f32.mxu0 0.0
  %3941 = vmatmul.mubr.f32.gmra.mrb[0].mxu0 %v3573
  %v3942 = vpop.f32.mrb[0].mxu0
  %v3943 = vadd.f32 0.0, %v3942
  %v3944 = vpop.f32.mrb[0].mxu0
  %3945 = vmatprep.mubr.f32.mxu0 0.0
  %3946 = vmatmul.mubr.f32.gmra.mrb[0].mxu0 %v3576
  %v3947 = vpop.f32.mrb[0].mxu0
  %v3948 = vadd.f32 0.0, %v3947
  %v3949 = vpop.f32.mrb[0].mxu0
  %3950 = vmatprep.mubr.f32.mxu0 0.0
  %3951 = vmatmul.mubr.f32.gmra.mrb[0].mxu0 %v3579
  %v3952 = vpop.f32.mrb[0].mxu0
  %v3953 = vadd.f32 0.0, %v3952
  %v3954 = vpop.f32.mrb[0].mxu0
  %3955 = vmatprep.mubr.f32.mxu0 0.0
  %3956 = vmatmul.mubr.f32.gmra.mrb[0].mxu0 %v3582
  %v3957 = vpop.f32.mrb[0].mxu0
  %v3958 = vadd.f32 0.0, %v3957
  %v3959 = vpop.f32.mrb[0].mxu0
  %3960 = vmatprep.mubr.f32.mxu0 0.0
  %3961 = vmatmul.mubr.f32.gmra.mrb[0].mxu0 %v3585
  %v3962 = vpop.f32.mrb[0].mxu0
  %v3963 = vadd.f32 0.0, %v3962
  %v3964 = vpop.f32.mrb[0].mxu0
  %3965 = vmatprep.mubr.f32.mxu0 0.0
  %3966 = vmatmul.mubr.f32.gmra.mrb[0].mxu0 %v3588
  %v3967 = vpop.f32.mrb[0].mxu0
  %v3968 = vadd.f32 0.0, %v3967
  %v3969 = vpop.f32.mrb[0].mxu0
  %3970 = vmatprep.mubr.f32.mxu0 0.0
  %3971 = vmatmul.mubr.f32.gmra.mrb[0].mxu0 %v3591
  %v3972 = vpop.f32.mrb[0].mxu0
  %v3973 = vadd.f32 0.0, %v3972
  %v3974 = vpop.f32.mrb[0].mxu0
  %3975 = vmatprep.mubr.f32.mxu0 0.0
  %3976 = vmatmul.mubr.f32.gmra.mrb[0].mxu0 %v3594
  %v3977 = vpop.f32.mrb[0].mxu0
  %v3978 = vadd.f32 0.0, %v3977
  %v3979 = vpop.f32.mrb[0].mxu0
  %3980 = vmatprep.mubr.f32.mxu0 0.0
  %3981 = vmatmul.mubr.f32.gmra.mrb[0].mxu0 %v3597
  %v3982 = vpop.f32.mrb[0].mxu0
  %v3983 = vadd.f32 0.0, %v3982
  %v3984 = vpop.f32.mrb[0].mxu0
  %3985 = vmatprep.mubr.f32.mxu0 0.0
  %3986 = vmatmul.mubr.f32.gmra.mrb[0].mxu0 %v3600
  %v3987 = vpop.f32.mrb[0].mxu0
  %v3988 = vadd.f32 0.0, %v3987
  %v3989 = vpop.f32.mrb[0].mxu0
  %3990 = vmatprep.mubr.f32.mxu0 0.0
  %3991 = vmatmul.mubr.f32.gmra.mrb[0].mxu0 %v3603
  %v3992 = vpop.f32.mrb[0].mxu0
  %v3993 = vadd.f32 0.0, %v3992
  %v3994 = vpop.f32.mrb[0].mxu0
  %3995 = vmatprep.mubr.f32.mxu0 0.0
  %3996 = vmatmul.mubr.f32.gmra.mrb[0].mxu0 %v3606
  %v3997 = vpop.f32.mrb[0].mxu0
  %v3998 = vadd.f32 0.0, %v3997
  %v3999 = vpop.f32.mrb[0].mxu0
  %4000 = vmatprep.mubr.f32.mxu0 0.0
  %4001 = vmatmul.mubr.f32.gmra.mrb[0].mxu0 %v3609
  %v4002 = vpop.f32.mrb[0].mxu0
  %v4003 = vadd.f32 0.0, %v4002
  %v4004 = vpop.f32.mrb[0].mxu0
  %4005 = vmatprep.mubr.f32.mxu0 0.0
  %4006 = vmatmul.mubr.f32.gmra.mrb[0].mxu0 %v3612
  %v4007 = vpop.f32.mrb[0].mxu0
  %v4008 = vadd.f32 0.0, %v4007
  %v4009 = vpop.f32.mrb[0].mxu0
  %4010 = vmatprep.mubr.f32.mxu0 0.0
  %4011 = vmatmul.mubr.f32.gmra.mrb[0].mxu0 %v3615
  %v4012 = vpop.f32.mrb[0].mxu0
  %v4013 = vadd.f32 0.0, %v4012
  %v4014 = vpop.f32.mrb[0].mxu0
  %4015 = vmatprep.mubr.f32.mxu0 0.0
  %4016 = vmatmul.mubr.f32.gmra.mrb[0].mxu0 %v3618
  %v4017 = vpop.f32.mrb[0].mxu0
  %v4018 = vadd.f32 0.0, %v4017
  %v4019 = vpop.f32.mrb[0].mxu0
  %4020 = vmatprep.mubr.f32.mxu0 0.0
  %4021 = vmatmul.mubr.f32.gmra.mrb[0].mxu0 %v3621
  %v4022 = vpop.f32.mrb[0].mxu0
  %v4023 = vadd.f32 0.0, %v4022
  %v4024 = vpop.f32.mrb[0].mxu0
  %4025 = vmatprep.mubr.f32.mxu0 0.0
  %4026 = vmatmul.mubr.f32.gmra.mrb[0].mxu0 %v3624
  %v4027 = vpop.f32.mrb[0].mxu0
  %v4028 = vadd.f32 0.0, %v4027
  %v4029 = vpop.f32.mrb[0].mxu0
  %4030 = vmatprep.mubr.f32.mxu0 0.0
  %4031 = vmatmul.mubr.f32.gmra.mrb[0].mxu0 %v3627
  %v4032 = vpop.f32.mrb[0].mxu0
  %v4033 = vadd.f32 0.0, %v4032
  %v4034 = vpop.f32.mrb[0].mxu0
  %4035 = vmatprep.mubr.f32.mxu0 0.0
  %4036 = vmatmul.mubr.f32.gmra.mrb[0].mxu0 %v3630
  %v4037 = vpop.f32.mrb[0].mxu0
  %v4038 = vadd.f32 0.0, %v4037
  %v4039 = vpop.f32.mrb[0].mxu0
  %4040 = vdwg.mxu0
  %v4041 = vmax.f32 %v3943, %v3968
  %v4042 = vmax.f32 %v3948, %v3973
  %v4043 = vmax.f32 %v3953, %v3978
  %v4044 = vmax.f32 %v3958, %v3983
  %v4045 = vmax.f32 %v3963, %v3988
  %v4046 = vmax.f32 %v3993, %v4018
  %v4047 = vmax.f32 %v3998, %v4023
  %v4048 = vmax.f32 %v4003, %v4028
  %v4049 = vmax.f32 %v4008, %v4033
  %v4050 = vmax.f32 %v4013, %v4038
  %v4051 = vmax.f32 %v4041, %v4046
  %v4052 = vmax.f32 %v4042, %v4047
  %v4053 = vmax.f32 %v4043, %v4048
  %v4054 = vmax.f32 %v4044, %v4049
  %v4055 = vmax.f32 %v4045, %v4050
  %4056 = vst.msk [vmem:[#allocation4 + $0x33] sm:$0xff] %vm3292, %v4051
  %4057 = vst.msk [vmem:[#allocation4 + $0x3b] sm:$0xff] %vm3292, %v4052
  %4058 = vst.msk [vmem:[#allocation4 + $0x43] sm:$0xff] %vm3292, %v4053
  %4059 = vst.msk [vmem:[#allocation4 + $0x4b] sm:$0xff] %vm3292, %v4054
  %4060 = vst.msk [vmem:[#allocation4 + $0x53] sm:$0xff] %vm3292, %v4055
  %v4061 = vld [vmem:[#allocation4] sm:$0xff]
  %v4062 = vld [vmem:[#allocation4 + $0x8] sm:$0xff]
  %v4063 = vld [vmem:[#allocation4 + $0x10] sm:$0xff]
  %v4064 = vld [vmem:[#allocation4 + $0x18] sm:$0xff]
  %v4065 = vld [vmem:[#allocation4 + $0x20] sm:$0xff]
  %v4066 = vld [vmem:[#allocation4 + $0x28] sm:$0xff]
  %v4067 = vld [vmem:[#allocation4 + $0x30] sm:$0xff]
  %v4068 = vld [vmem:[#allocation4 + $0x38] sm:$0xff]
  %v4069 = vld [vmem:[#allocation4 + $0x40] sm:$0xff]
  %v4070 = vld [vmem:[#allocation4 + $0x48] sm:$0xff]
  %v4071 = vld [vmem:[%s5] sm:$0xff]
  %v4072 = vld [vmem:[%s5 + $0x8] sm:$0xff]
  %v4073 = vld [vmem:[%s5 + $0x10] sm:$0xff]
  %v4074 = vld [vmem:[%s5 + $0x18] sm:$0xff]
  %v4075 = vld [vmem:[%s5 + $0x20] sm:$0xff]
  %v4076 = vld [vmem:[%s5 + $0x28] sm:$0xff]
  %v4077 = vld [vmem:[%s5 + $0x30] sm:$0xff]
  %v4078 = vld [vmem:[%s5 + $0x38] sm:$0xff]
  %v4079 = vld [vmem:[%s5 + $0x40] sm:$0xff]
  %v4080 = vld [vmem:[%s5 + $0x48] sm:$0xff]
  %4082 = vset.pattern.permute.xlu0 0
  %4083 = vperm.xlu0 %4082, %v4071
  %v4084 = vpop.permute.xlu0 %4083
  %4087 = vset.pattern.permute.xlu0 0
  %4088 = vperm.xlu0 %4087, %v4072
  %v4089 = vpop.permute.xlu0 %4088
  %4092 = vset.pattern.permute.xlu0 0
  %4093 = vperm.xlu0 %4092, %v4073
  %v4094 = vpop.permute.xlu0 %4093
  %4097 = vset.pattern.permute.xlu0 0
  %4098 = vperm.xlu0 %4097, %v4074
  %v4099 = vpop.permute.xlu0 %4098
  %4102 = vset.pattern.permute.xlu0 0
  %4103 = vperm.xlu0 %4102, %v4075
  %v4104 = vpop.permute.xlu0 %4103
  %4107 = vset.pattern.permute.xlu0 0
  %4108 = vperm.xlu0 %4107, %v4076
  %v4109 = vpop.permute.xlu0 %4108
  %4112 = vset.pattern.permute.xlu0 0
  %4113 = vperm.xlu0 %4112, %v4077
  %v4114 = vpop.permute.xlu0 %4113
  %4117 = vset.pattern.permute.xlu0 0
  %4118 = vperm.xlu0 %4117, %v4078
  %v4119 = vpop.permute.xlu0 %4118
  %4122 = vset.pattern.permute.xlu0 0
  %4123 = vperm.xlu0 %4122, %v4079
  %v4124 = vpop.permute.xlu0 %4123
  %4127 = vset.pattern.permute.xlu0 0
  %4128 = vperm.xlu0 %4127, %v4080
  %v4129 = vpop.permute.xlu0 %4128
  %v4131 = vmul.f32 %v4061, %v4084
  %v4132 = vmul.f32 %v4062, %v4089
  %v4133 = vmul.f32 %v4063, %v4094
  %v4134 = vmul.f32 %v4064, %v4099
  %v4135 = vmul.f32 %v4065, %v4104
  %v4136 = vmul.f32 %v4066, %v4109
  %v4137 = vmul.f32 %v4067, %v4114
  %v4138 = vmul.f32 %v4068, %v4119
  %v4139 = vmul.f32 %v4069, %v4124
  %v4140 = vmul.f32 %v4070, %v4129
  %4141 = vst.msk [vmem:[#allocation5] sm:$0xff] %vm3292, %v4131
  %4142 = vst.msk [vmem:[#allocation5 + $0x10] sm:$0xff] %vm3292, %v4132
  %4143 = vst.msk [vmem:[#allocation5 + $0x20] sm:$0xff] %vm3292, %v4133
  %4144 = vst.msk [vmem:[#allocation5 + $0x30] sm:$0xff] %vm3292, %v4134
  %4145 = vst.msk [vmem:[#allocation5 + $0x40] sm:$0xff] %vm3292, %v4135
  %4146 = vst.msk [vmem:[#allocation5 + $0x50] sm:$0xff] %vm3292, %v4136
  %4147 = vst.msk [vmem:[#allocation5 + $0x60] sm:$0xff] %vm3292, %v4137
  %4148 = vst.msk [vmem:[#allocation5 + $0x70] sm:$0xff] %vm3292, %v4138
  %4149 = vst.msk [vmem:[#allocation5 + $0x80] sm:$0xff] %vm3292, %v4139
  %4150 = vst.msk [vmem:[#allocation5 + $0x90] sm:$0xff] %vm3292, %v4140
  %v4151 = vld [vmem:[#allocation4 + $0x1] sm:$0xff]
  %v4152 = vld [vmem:[#allocation4 + $0x9] sm:$0xff]
  %v4153 = vld [vmem:[#allocation4 + $0x11] sm:$0xff]
  %v4154 = vld [vmem:[#allocation4 + $0x19] sm:$0xff]
  %v4155 = vld [vmem:[#allocation4 + $0x21] sm:$0xff]
  %v4156 = vld [vmem:[#allocation4 + $0x29] sm:$0xff]
  %v4157 = vld [vmem:[#allocation4 + $0x31] sm:$0xff]
  %v4158 = vld [vmem:[#allocation4 + $0x39] sm:$0xff]
  %v4159 = vld [vmem:[#allocation4 + $0x41] sm:$0xff]
  %v4160 = vld [vmem:[#allocation4 + $0x49] sm:$0xff]
  %v4161 = vld [vmem:[%s5] sm:$0xff]
  %v4162 = vld [vmem:[%s5 + $0x8] sm:$0xff]
  %v4163 = vld [vmem:[%s5 + $0x10] sm:$0xff]
  %v4164 = vld [vmem:[%s5 + $0x18] sm:$0xff]
  %v4165 = vld [vmem:[%s5 + $0x20] sm:$0xff]
  %v4166 = vld [vmem:[%s5 + $0x28] sm:$0xff]
  %v4167 = vld [vmem:[%s5 + $0x30] sm:$0xff]
  %v4168 = vld [vmem:[%s5 + $0x38] sm:$0xff]
  %v4169 = vld [vmem:[%s5 + $0x40] sm:$0xff]
  %v4170 = vld [vmem:[%s5 + $0x48] sm:$0xff]
  %4172 = vset.pattern.permute.xlu0 1
  %4173 = vperm.xlu0 %4172, %v4161
  %v4174 = vpop.permute.xlu0 %4173
  %4177 = vset.pattern.permute.xlu0 1
  %4178 = vperm.xlu0 %4177, %v4162
  %v4179 = vpop.permute.xlu0 %4178
  %4182 = vset.pattern.permute.xlu0 1
  %4183 = vperm.xlu0 %4182, %v4163
  %v4184 = vpop.permute.xlu0 %4183
  %4187 = vset.pattern.permute.xlu0 1
  %4188 = vperm.xlu0 %4187, %v4164
  %v4189 = vpop.permute.xlu0 %4188
  %4192 = vset.pattern.permute.xlu0 1
  %4193 = vperm.xlu0 %4192, %v4165
  %v4194 = vpop.permute.xlu0 %4193
  %4197 = vset.pattern.permute.xlu0 1
  %4198 = vperm.xlu0 %4197, %v4166
  %v4199 = vpop.permute.xlu0 %4198
  %4202 = vset.pattern.permute.xlu0 1
  %4203 = vperm.xlu0 %4202, %v4167
  %v4204 = vpop.permute.xlu0 %4203
  %4207 = vset.pattern.permute.xlu0 1
  %4208 = vperm.xlu0 %4207, %v4168
  %v4209 = vpop.permute.xlu0 %4208
  %4212 = vset.pattern.permute.xlu0 1
  %4213 = vperm.xlu0 %4212, %v4169
  %v4214 = vpop.permute.xlu0 %4213
  %4217 = vset.pattern.permute.xlu0 1
  %4218 = vperm.xlu0 %4217, %v4170
  %v4219 = vpop.permute.xlu0 %4218
  %v4221 = vmul.f32 %v4151, %v4174
  %v4222 = vmul.f32 %v4152, %v4179
  %v4223 = vmul.f32 %v4153, %v4184
  %v4224 = vmul.f32 %v4154, %v4189
  %v4225 = vmul.f32 %v4155, %v4194
  %v4226 = vmul.f32 %v4156, %v4199
  %v4227 = vmul.f32 %v4157, %v4204
  %v4228 = vmul.f32 %v4158, %v4209
  %v4229 = vmul.f32 %v4159, %v4214
  %v4230 = vmul.f32 %v4160, %v4219
  %4241 = vrot.lane.b32.xlu0 %v4221, 16
  %v4242 = vpop.permute.xlu0 %4241
  %4243 = vrot.lane.b32.xlu0 %v4222, 16
  %v4244 = vpop.permute.xlu0 %4243
  %4245 = vrot.lane.b32.xlu0 %v4223, 16
  %v4246 = vpop.permute.xlu0 %4245
  %4247 = vrot.lane.b32.xlu0 %v4224, 16
  %v4248 = vpop.permute.xlu0 %4247
  %4249 = vrot.lane.b32.xlu0 %v4225, 16
  %v4250 = vpop.permute.xlu0 %4249
  %4251 = vrot.lane.b32.xlu0 %v4226, 16
  %v4252 = vpop.permute.xlu0 %4251
  %4253 = vrot.lane.b32.xlu0 %v4227, 16
  %v4254 = vpop.permute.xlu0 %4253
  %4255 = vrot.lane.b32.xlu0 %v4228, 16
  %v4256 = vpop.permute.xlu0 %4255
  %4257 = vrot.lane.b32.xlu0 %v4229, 16
  %v4258 = vpop.permute.xlu0 %4257
  %4259 = vrot.lane.b32.xlu0 %v4230, 16
  %v4260 = vpop.permute.xlu0 %4259
  %vm4271 = vcmask 261248
  %4272 = vst.msk [vmem:[#allocation5] sm:$0xff] %vm4271, %v4242
  %4273 = vst.msk [vmem:[#allocation5 + $0x10] sm:$0xff] %vm4271, %v4244
  %4274 = vst.msk [vmem:[#allocation5 + $0x20] sm:$0xff] %vm4271, %v4246
  %4275 = vst.msk [vmem:[#allocation5 + $0x30] sm:$0xff] %vm4271, %v4248
  %4276 = vst.msk [vmem:[#allocation5 + $0x40] sm:$0xff] %vm4271, %v4250
  %4277 = vst.msk [vmem:[#allocation5 + $0x50] sm:$0xff] %vm4271, %v4252
  %4278 = vst.msk [vmem:[#allocation5 + $0x60] sm:$0xff] %vm4271, %v4254
  %4279 = vst.msk [vmem:[#allocation5 + $0x70] sm:$0xff] %vm4271, %v4256
  %4280 = vst.msk [vmem:[#allocation5 + $0x80] sm:$0xff] %vm4271, %v4258
  %4281 = vst.msk [vmem:[#allocation5 + $0x90] sm:$0xff] %vm4271, %v4260
  %v4282 = vld [vmem:[#allocation4 + $0x2] sm:$0xff]
  %v4283 = vld [vmem:[#allocation4 + $0xa] sm:$0xff]
  %v4284 = vld [vmem:[#allocation4 + $0x12] sm:$0xff]
  %v4285 = vld [vmem:[#allocation4 + $0x1a] sm:$0xff]
  %v4286 = vld [vmem:[#allocation4 + $0x22] sm:$0xff]
  %v4287 = vld [vmem:[#allocation4 + $0x2a] sm:$0xff]
  %v4288 = vld [vmem:[#allocation4 + $0x32] sm:$0xff]
  %v4289 = vld [vmem:[#allocation4 + $0x3a] sm:$0xff]
  %v4290 = vld [vmem:[#allocation4 + $0x42] sm:$0xff]
  %v4291 = vld [vmem:[#allocation4 + $0x4a] sm:$0xff]
  %v4292 = vld [vmem:[%s5] sm:$0xff]
  %v4293 = vld [vmem:[%s5 + $0x8] sm:$0xff]
  %v4294 = vld [vmem:[%s5 + $0x10] sm:$0xff]
  %v4295 = vld [vmem:[%s5 + $0x18] sm:$0xff]
  %v4296 = vld [vmem:[%s5 + $0x20] sm:$0xff]
  %v4297 = vld [vmem:[%s5 + $0x28] sm:$0xff]
  %v4298 = vld [vmem:[%s5 + $0x30] sm:$0xff]
  %v4299 = vld [vmem:[%s5 + $0x38] sm:$0xff]
  %v4300 = vld [vmem:[%s5 + $0x40] sm:$0xff]
  %v4301 = vld [vmem:[%s5 + $0x48] sm:$0xff]
  %4303 = vset.pattern.permute.xlu0 2
  %4304 = vperm.xlu0 %4303, %v4292
  %v4305 = vpop.permute.xlu0 %4304
  %4308 = vset.pattern.permute.xlu0 2
  %4309 = vperm.xlu0 %4308, %v4293
  %v4310 = vpop.permute.xlu0 %4309
  %4313 = vset.pattern.permute.xlu0 2
  %4314 = vperm.xlu0 %4313, %v4294
  %v4315 = vpop.permute.xlu0 %4314
  %4318 = vset.pattern.permute.xlu0 2
  %4319 = vperm.xlu0 %4318, %v4295
  %v4320 = vpop.permute.xlu0 %4319
  %4323 = vset.pattern.permute.xlu0 2
  %4324 = vperm.xlu0 %4323, %v4296
  %v4325 = vpop.permute.xlu0 %4324
  %4328 = vset.pattern.permute.xlu0 2
  %4329 = vperm.xlu0 %4328, %v4297
  %v4330 = vpop.permute.xlu0 %4329
  %4333 = vset.pattern.permute.xlu0 2
  %4334 = vperm.xlu0 %4333, %v4298
  %v4335 = vpop.permute.xlu0 %4334
  %4338 = vset.pattern.permute.xlu0 2
  %4339 = vperm.xlu0 %4338, %v4299
  %v4340 = vpop.permute.xlu0 %4339
  %4343 = vset.pattern.permute.xlu0 2
  %4344 = vperm.xlu0 %4343, %v4300
  %v4345 = vpop.permute.xlu0 %4344
  %4348 = vset.pattern.permute.xlu0 2
  %4349 = vperm.xlu0 %4348, %v4301
  %v4350 = vpop.permute.xlu0 %4349
  %v4352 = vmul.f32 %v4282, %v4305
  %v4353 = vmul.f32 %v4283, %v4310
  %v4354 = vmul.f32 %v4284, %v4315
  %v4355 = vmul.f32 %v4285, %v4320
  %v4356 = vmul.f32 %v4286, %v4325
  %v4357 = vmul.f32 %v4287, %v4330
  %v4358 = vmul.f32 %v4288, %v4335
  %v4359 = vmul.f32 %v4289, %v4340
  %v4360 = vmul.f32 %v4290, %v4345
  %v4361 = vmul.f32 %v4291, %v4350
  %4372 = vrot.lane.b32.xlu0 %v4352, 32
  %v4373 = vpop.permute.xlu0 %4372
  %4374 = vrot.lane.b32.xlu0 %v4353, 32
  %v4375 = vpop.permute.xlu0 %4374
  %4376 = vrot.lane.b32.xlu0 %v4354, 32
  %v4377 = vpop.permute.xlu0 %4376
  %4378 = vrot.lane.b32.xlu0 %v4355, 32
  %v4379 = vpop.permute.xlu0 %4378
  %4380 = vrot.lane.b32.xlu0 %v4356, 32
  %v4381 = vpop.permute.xlu0 %4380
  %4382 = vrot.lane.b32.xlu0 %v4357, 32
  %v4383 = vpop.permute.xlu0 %4382
  %4384 = vrot.lane.b32.xlu0 %v4358, 32
  %v4385 = vpop.permute.xlu0 %4384
  %4386 = vrot.lane.b32.xlu0 %v4359, 32
  %v4387 = vpop.permute.xlu0 %4386
  %4388 = vrot.lane.b32.xlu0 %v4360, 32
  %v4389 = vpop.permute.xlu0 %4388
  %4390 = vrot.lane.b32.xlu0 %v4361, 32
  %v4391 = vpop.permute.xlu0 %4390
  %vm4402 = vcmask 392448
  %4403 = vst.msk [vmem:[#allocation5] sm:$0xff] %vm4402, %v4373
  %4404 = vst.msk [vmem:[#allocation5 + $0x10] sm:$0xff] %vm4402, %v4375
  %4405 = vst.msk [vmem:[#allocation5 + $0x20] sm:$0xff] %vm4402, %v4377
  %4406 = vst.msk [vmem:[#allocation5 + $0x30] sm:$0xff] %vm4402, %v4379
  %4407 = vst.msk [vmem:[#allocation5 + $0x40] sm:$0xff] %vm4402, %v4381
  %4408 = vst.msk [vmem:[#allocation5 + $0x50] sm:$0xff] %vm4402, %v4383
  %4409 = vst.msk [vmem:[#allocation5 + $0x60] sm:$0xff] %vm4402, %v4385
  %4410 = vst.msk [vmem:[#allocation5 + $0x70] sm:$0xff] %vm4402, %v4387
  %4411 = vst.msk [vmem:[#allocation5 + $0x80] sm:$0xff] %vm4402, %v4389
  %4412 = vst.msk [vmem:[#allocation5 + $0x90] sm:$0xff] %vm4402, %v4391
  %v4413 = vld [vmem:[#allocation4 + $0xa] sm:$0xff]
  %v4414 = vld [vmem:[#allocation4 + $0x12] sm:$0xff]
  %v4415 = vld [vmem:[#allocation4 + $0x1a] sm:$0xff]
  %v4416 = vld [vmem:[#allocation4 + $0x22] sm:$0xff]
  %v4417 = vld [vmem:[#allocation4 + $0x2a] sm:$0xff]
  %v4418 = vld [vmem:[#allocation4 + $0x32] sm:$0xff]
  %v4419 = vld [vmem:[#allocation4 + $0x3a] sm:$0xff]
  %v4420 = vld [vmem:[#allocation4 + $0x42] sm:$0xff]
  %v4421 = vld [vmem:[#allocation4 + $0x4a] sm:$0xff]
  %v4422 = vld [vmem:[#allocation4 + $0x52] sm:$0xff]
  %v4423 = vld [vmem:[%s5] sm:$0xff]
  %v4424 = vld [vmem:[%s5 + $0x8] sm:$0xff]
  %v4425 = vld [vmem:[%s5 + $0x10] sm:$0xff]
  %v4426 = vld [vmem:[%s5 + $0x18] sm:$0xff]
  %v4427 = vld [vmem:[%s5 + $0x20] sm:$0xff]
  %v4428 = vld [vmem:[%s5 + $0x28] sm:$0xff]
  %v4429 = vld [vmem:[%s5 + $0x30] sm:$0xff]
  %v4430 = vld [vmem:[%s5 + $0x38] sm:$0xff]
  %v4431 = vld [vmem:[%s5 + $0x40] sm:$0xff]
  %v4432 = vld [vmem:[%s5 + $0x48] sm:$0xff]
  %4434 = vset.pattern.permute.xlu0 3
  %4435 = vperm.xlu0 %4434, %v4423
  %v4436 = vpop.permute.xlu0 %4435
  %4439 = vset.pattern.permute.xlu0 3
  %4440 = vperm.xlu0 %4439, %v4424
  %v4441 = vpop.permute.xlu0 %4440
  %4444 = vset.pattern.permute.xlu0 3
  %4445 = vperm.xlu0 %4444, %v4425
  %v4446 = vpop.permute.xlu0 %4445
  %4449 = vset.pattern.permute.xlu0 3
  %4450 = vperm.xlu0 %4449, %v4426
  %v4451 = vpop.permute.xlu0 %4450
  %4454 = vset.pattern.permute.xlu0 3
  %4455 = vperm.xlu0 %4454, %v4427
  %v4456 = vpop.permute.xlu0 %4455
  %4459 = vset.pattern.permute.xlu0 3
  %4460 = vperm.xlu0 %4459, %v4428
  %v4461 = vpop.permute.xlu0 %4460
  %4464 = vset.pattern.permute.xlu0 3
  %4465 = vperm.xlu0 %4464, %v4429
  %v4466 = vpop.permute.xlu0 %4465
  %4469 = vset.pattern.permute.xlu0 3
  %4470 = vperm.xlu0 %4469, %v4430
  %v4471 = vpop.permute.xlu0 %4470
  %4474 = vset.pattern.permute.xlu0 3
  %4475 = vperm.xlu0 %4474, %v4431
  %v4476 = vpop.permute.xlu0 %4475
  %4479 = vset.pattern.permute.xlu0 3
  %4480 = vperm.xlu0 %4479, %v4432
  %v4481 = vpop.permute.xlu0 %4480
  %v4483 = vmul.f32 %v4413, %v4436
  %v4484 = vmul.f32 %v4414, %v4441
  %v4485 = vmul.f32 %v4415, %v4446
  %v4486 = vmul.f32 %v4416, %v4451
  %v4487 = vmul.f32 %v4417, %v4456
  %v4488 = vmul.f32 %v4418, %v4461
  %v4489 = vmul.f32 %v4419, %v4466
  %v4490 = vmul.f32 %v4420, %v4471
  %v4491 = vmul.f32 %v4421, %v4476
  %v4492 = vmul.f32 %v4422, %v4481
  %4503 = vrot.lane.b32.xlu0 %v4483, 48
  %v4504 = vpop.permute.xlu0 %4503
  %4505 = vrot.lane.b32.xlu0 %v4484, 48
  %v4506 = vpop.permute.xlu0 %4505
  %4507 = vrot.lane.b32.xlu0 %v4485, 48
  %v4508 = vpop.permute.xlu0 %4507
  %4509 = vrot.lane.b32.xlu0 %v4486, 48
  %v4510 = vpop.permute.xlu0 %4509
  %4511 = vrot.lane.b32.xlu0 %v4487, 48
  %v4512 = vpop.permute.xlu0 %4511
  %4513 = vrot.lane.b32.xlu0 %v4488, 48
  %v4514 = vpop.permute.xlu0 %4513
  %4515 = vrot.lane.b32.xlu0 %v4489, 48
  %v4516 = vpop.permute.xlu0 %4515
  %4517 = vrot.lane.b32.xlu0 %v4490, 48
  %v4518 = vpop.permute.xlu0 %4517
  %4519 = vrot.lane.b32.xlu0 %v4491, 48
  %v4520 = vpop.permute.xlu0 %4519
  %4521 = vrot.lane.b32.xlu0 %v4492, 48
  %v4522 = vpop.permute.xlu0 %4521
  %vm4533 = vcmask 523648
  %4534 = vst.msk [vmem:[#allocation5] sm:$0xff] %vm4533, %v4504
  %4535 = vst.msk [vmem:[#allocation5 + $0x10] sm:$0xff] %vm4533, %v4506
  %4536 = vst.msk [vmem:[#allocation5 + $0x20] sm:$0xff] %vm4533, %v4508
  %4537 = vst.msk [vmem:[#allocation5 + $0x30] sm:$0xff] %vm4533, %v4510
  %4538 = vst.msk [vmem:[#allocation5 + $0x40] sm:$0xff] %vm4533, %v4512
  %4539 = vst.msk [vmem:[#allocation5 + $0x50] sm:$0xff] %vm4533, %v4514
  %4540 = vst.msk [vmem:[#allocation5 + $0x60] sm:$0xff] %vm4533, %v4516
  %4541 = vst.msk [vmem:[#allocation5 + $0x70] sm:$0xff] %vm4533, %v4518
  %4542 = vst.msk [vmem:[#allocation5 + $0x80] sm:$0xff] %vm4533, %v4520
  %4543 = vst.msk [vmem:[#allocation5 + $0x90] sm:$0xff] %vm4533, %v4522
  %v4544 = vld [vmem:[#allocation4 + $0xb] sm:$0xff]
  %v4545 = vld [vmem:[#allocation4 + $0x13] sm:$0xff]
  %v4546 = vld [vmem:[#allocation4 + $0x1b] sm:$0xff]
  %v4547 = vld [vmem:[#allocation4 + $0x23] sm:$0xff]
  %v4548 = vld [vmem:[#allocation4 + $0x2b] sm:$0xff]
  %v4549 = vld [vmem:[#allocation4 + $0x33] sm:$0xff]
  %v4550 = vld [vmem:[#allocation4 + $0x3b] sm:$0xff]
  %v4551 = vld [vmem:[#allocation4 + $0x43] sm:$0xff]
  %v4552 = vld [vmem:[#allocation4 + $0x4b] sm:$0xff]
  %v4553 = vld [vmem:[#allocation4 + $0x53] sm:$0xff]
  %4564 = vrot.lane.b32.xlu0 %v4544, 64
  %v4565 = vpop.permute.xlu0 %4564
  %4566 = vrot.lane.b32.xlu0 %v4545, 64
  %v4567 = vpop.permute.xlu0 %4566
  %4568 = vrot.lane.b32.xlu0 %v4546, 64
  %v4569 = vpop.permute.xlu0 %4568
  %4570 = vrot.lane.b32.xlu0 %v4547, 64
  %v4571 = vpop.permute.xlu0 %4570
  %4572 = vrot.lane.b32.xlu0 %v4548, 64
  %v4573 = vpop.permute.xlu0 %4572
  %4574 = vrot.lane.b32.xlu0 %v4549, 64
  %v4575 = vpop.permute.xlu0 %4574
  %4576 = vrot.lane.b32.xlu0 %v4550, 64
  %v4577 = vpop.permute.xlu0 %4576
  %4578 = vrot.lane.b32.xlu0 %v4551, 64
  %v4579 = vpop.permute.xlu0 %4578
  %4580 = vrot.lane.b32.xlu0 %v4552, 64
  %v4581 = vpop.permute.xlu0 %4580
  %4582 = vrot.lane.b32.xlu0 %v4553, 64
  %v4583 = vpop.permute.xlu0 %4582
  %vm4594 = vcmask 654848
  %4595 = vst.msk [vmem:[#allocation5] sm:$0xff] %vm4594, %v4565
  %4596 = vst.msk [vmem:[#allocation5 + $0x10] sm:$0xff] %vm4594, %v4567
  %4597 = vst.msk [vmem:[#allocation5 + $0x20] sm:$0xff] %vm4594, %v4569
  %4598 = vst.msk [vmem:[#allocation5 + $0x30] sm:$0xff] %vm4594, %v4571
  %4599 = vst.msk [vmem:[#allocation5 + $0x40] sm:$0xff] %vm4594, %v4573
  %4600 = vst.msk [vmem:[#allocation5 + $0x50] sm:$0xff] %vm4594, %v4575
  %4601 = vst.msk [vmem:[#allocation5 + $0x60] sm:$0xff] %vm4594, %v4577
  %4602 = vst.msk [vmem:[#allocation5 + $0x70] sm:$0xff] %vm4594, %v4579
  %4603 = vst.msk [vmem:[#allocation5 + $0x80] sm:$0xff] %vm4594, %v4581
  %4604 = vst.msk [vmem:[#allocation5 + $0x90] sm:$0xff] %vm4594, %v4583
  %v4605 = vld [vmem:[#allocation4 + $0xc] sm:$0xff]
  %v4606 = vld [vmem:[#allocation4 + $0x14] sm:$0xff]
  %v4607 = vld [vmem:[#allocation4 + $0x1c] sm:$0xff]
  %v4608 = vld [vmem:[#allocation4 + $0x24] sm:$0xff]
  %v4609 = vld [vmem:[#allocation4 + $0x2c] sm:$0xff]
  %v4610 = vld [vmem:[#allocation4 + $0x34] sm:$0xff]
  %v4611 = vld [vmem:[#allocation4 + $0x3c] sm:$0xff]
  %v4612 = vld [vmem:[#allocation4 + $0x44] sm:$0xff]
  %v4613 = vld [vmem:[#allocation4 + $0x4c] sm:$0xff]
  %v4614 = vld [vmem:[#allocation4 + $0x54] sm:$0xff]
  %v4615 = vld [vmem:[%s5] sm:$0xff]
  %v4616 = vld [vmem:[%s5 + $0x8] sm:$0xff]
  %v4617 = vld [vmem:[%s5 + $0x10] sm:$0xff]
  %v4618 = vld [vmem:[%s5 + $0x18] sm:$0xff]
  %v4619 = vld [vmem:[%s5 + $0x20] sm:$0xff]
  %v4620 = vld [vmem:[%s5 + $0x28] sm:$0xff]
  %v4621 = vld [vmem:[%s5 + $0x30] sm:$0xff]
  %v4622 = vld [vmem:[%s5 + $0x38] sm:$0xff]
  %v4623 = vld [vmem:[%s5 + $0x40] sm:$0xff]
  %v4624 = vld [vmem:[%s5 + $0x48] sm:$0xff]
  %4626 = vset.pattern.permute.xlu0 5
  %4627 = vperm.xlu0 %4626, %v4615
  %v4628 = vpop.permute.xlu0 %4627
  %4631 = vset.pattern.permute.xlu0 5
  %4632 = vperm.xlu0 %4631, %v4616
  %v4633 = vpop.permute.xlu0 %4632
  %4636 = vset.pattern.permute.xlu0 5
  %4637 = vperm.xlu0 %4636, %v4617
  %v4638 = vpop.permute.xlu0 %4637
  %4641 = vset.pattern.permute.xlu0 5
  %4642 = vperm.xlu0 %4641, %v4618
  %v4643 = vpop.permute.xlu0 %4642
  %4646 = vset.pattern.permute.xlu0 5
  %4647 = vperm.xlu0 %4646, %v4619
  %v4648 = vpop.permute.xlu0 %4647
  %4651 = vset.pattern.permute.xlu0 5
  %4652 = vperm.xlu0 %4651, %v4620
  %v4653 = vpop.permute.xlu0 %4652
  %4656 = vset.pattern.permute.xlu0 5
  %4657 = vperm.xlu0 %4656, %v4621
  %v4658 = vpop.permute.xlu0 %4657
  %4661 = vset.pattern.permute.xlu0 5
  %4662 = vperm.xlu0 %4661, %v4622
  %v4663 = vpop.permute.xlu0 %4662
  %4666 = vset.pattern.permute.xlu0 5
  %4667 = vperm.xlu0 %4666, %v4623
  %v4668 = vpop.permute.xlu0 %4667
  %4671 = vset.pattern.permute.xlu0 5
  %4672 = vperm.xlu0 %4671, %v4624
  %v4673 = vpop.permute.xlu0 %4672
  %v4675 = vmul.f32 %v4605, %v4628
  %v4676 = vmul.f32 %v4606, %v4633
  %v4677 = vmul.f32 %v4607, %v4638
  %v4678 = vmul.f32 %v4608, %v4643
  %v4679 = vmul.f32 %v4609, %v4648
  %v4680 = vmul.f32 %v4610, %v4653
  %v4681 = vmul.f32 %v4611, %v4658
  %v4682 = vmul.f32 %v4612, %v4663
  %v4683 = vmul.f32 %v4613, %v4668
  %v4684 = vmul.f32 %v4614, %v4673
  %4695 = vrot.lane.b32.xlu0 %v4675, 80
  %v4696 = vpop.permute.xlu0 %4695
  %4697 = vrot.lane.b32.xlu0 %v4676, 80
  %v4698 = vpop.permute.xlu0 %4697
  %4699 = vrot.lane.b32.xlu0 %v4677, 80
  %v4700 = vpop.permute.xlu0 %4699
  %4701 = vrot.lane.b32.xlu0 %v4678, 80
  %v4702 = vpop.permute.xlu0 %4701
  %4703 = vrot.lane.b32.xlu0 %v4679, 80
  %v4704 = vpop.permute.xlu0 %4703
  %4705 = vrot.lane.b32.xlu0 %v4680, 80
  %v4706 = vpop.permute.xlu0 %4705
  %4707 = vrot.lane.b32.xlu0 %v4681, 80
  %v4708 = vpop.permute.xlu0 %4707
  %4709 = vrot.lane.b32.xlu0 %v4682, 80
  %v4710 = vpop.permute.xlu0 %4709
  %4711 = vrot.lane.b32.xlu0 %v4683, 80
  %v4712 = vpop.permute.xlu0 %4711
  %4713 = vrot.lane.b32.xlu0 %v4684, 80
  %v4714 = vpop.permute.xlu0 %4713
  %vm4725 = vcmask 786048
  %4726 = vst.msk [vmem:[#allocation5] sm:$0xff] %vm4725, %v4696
  %4727 = vst.msk [vmem:[#allocation5 + $0x10] sm:$0xff] %vm4725, %v4698
  %4728 = vst.msk [vmem:[#allocation5 + $0x20] sm:$0xff] %vm4725, %v4700
  %4729 = vst.msk [vmem:[#allocation5 + $0x30] sm:$0xff] %vm4725, %v4702
  %4730 = vst.msk [vmem:[#allocation5 + $0x40] sm:$0xff] %vm4725, %v4704
  %4731 = vst.msk [vmem:[#allocation5 + $0x50] sm:$0xff] %vm4725, %v4706
  %4732 = vst.msk [vmem:[#allocation5 + $0x60] sm:$0xff] %vm4725, %v4708
  %4733 = vst.msk [vmem:[#allocation5 + $0x70] sm:$0xff] %vm4725, %v4710
  %4734 = vst.msk [vmem:[#allocation5 + $0x80] sm:$0xff] %vm4725, %v4712
  %4735 = vst.msk [vmem:[#allocation5 + $0x90] sm:$0xff] %vm4725, %v4714
  %v4736 = vld [vmem:[#allocation4 + $0x14] sm:$0xff]
  %v4737 = vld [vmem:[#allocation4 + $0x1c] sm:$0xff]
  %v4738 = vld [vmem:[#allocation4 + $0x24] sm:$0xff]
  %v4739 = vld [vmem:[#allocation4 + $0x2c] sm:$0xff]
  %v4740 = vld [vmem:[#allocation4 + $0x34] sm:$0xff]
  %v4741 = vld [vmem:[#allocation4 + $0x3c] sm:$0xff]
  %v4742 = vld [vmem:[#allocation4 + $0x44] sm:$0xff]
  %v4743 = vld [vmem:[#allocation4 + $0x4c] sm:$0xff]
  %v4744 = vld [vmem:[#allocation4 + $0x54] sm:$0xff]
  %v4745 = vld [vmem:[#allocation4 + $0x5c] sm:$0xff]
  %v4746 = vld [vmem:[%s5] sm:$0xff]
  %v4747 = vld [vmem:[%s5 + $0x8] sm:$0xff]
  %v4748 = vld [vmem:[%s5 + $0x10] sm:$0xff]
  %v4749 = vld [vmem:[%s5 + $0x18] sm:$0xff]
  %v4750 = vld [vmem:[%s5 + $0x20] sm:$0xff]
  %v4751 = vld [vmem:[%s5 + $0x28] sm:$0xff]
  %v4752 = vld [vmem:[%s5 + $0x30] sm:$0xff]
  %v4753 = vld [vmem:[%s5 + $0x38] sm:$0xff]
  %v4754 = vld [vmem:[%s5 + $0x40] sm:$0xff]
  %v4755 = vld [vmem:[%s5 + $0x48] sm:$0xff]
  %4757 = vset.pattern.permute.xlu0 6
  %4758 = vperm.xlu0 %4757, %v4746
  %v4759 = vpop.permute.xlu0 %4758
  %4762 = vset.pattern.permute.xlu0 6
  %4763 = vperm.xlu0 %4762, %v4747
  %v4764 = vpop.permute.xlu0 %4763
  %4767 = vset.pattern.permute.xlu0 6
  %4768 = vperm.xlu0 %4767, %v4748
  %v4769 = vpop.permute.xlu0 %4768
  %4772 = vset.pattern.permute.xlu0 6
  %4773 = vperm.xlu0 %4772, %v4749
  %v4774 = vpop.permute.xlu0 %4773
  %4777 = vset.pattern.permute.xlu0 6
  %4778 = vperm.xlu0 %4777, %v4750
  %v4779 = vpop.permute.xlu0 %4778
  %4782 = vset.pattern.permute.xlu0 6
  %4783 = vperm.xlu0 %4782, %v4751
  %v4784 = vpop.permute.xlu0 %4783
  %4787 = vset.pattern.permute.xlu0 6
  %4788 = vperm.xlu0 %4787, %v4752
  %v4789 = vpop.permute.xlu0 %4788
  %4792 = vset.pattern.permute.xlu0 6
  %4793 = vperm.xlu0 %4792, %v4753
  %v4794 = vpop.permute.xlu0 %4793
  %4797 = vset.pattern.permute.xlu0 6
  %4798 = vperm.xlu0 %4797, %v4754
  %v4799 = vpop.permute.xlu0 %4798
  %4802 = vset.pattern.permute.xlu0 6
  %4803 = vperm.xlu0 %4802, %v4755
  %v4804 = vpop.permute.xlu0 %4803
  %v4806 = vmul.f32 %v4736, %v4759
  %v4807 = vmul.f32 %v4737, %v4764
  %v4808 = vmul.f32 %v4738, %v4769
  %v4809 = vmul.f32 %v4739, %v4774
  %v4810 = vmul.f32 %v4740, %v4779
  %v4811 = vmul.f32 %v4741, %v4784
  %v4812 = vmul.f32 %v4742, %v4789
  %v4813 = vmul.f32 %v4743, %v4794
  %v4814 = vmul.f32 %v4744, %v4799
  %v4815 = vmul.f32 %v4745, %v4804
  %4826 = vrot.lane.b32.xlu0 %v4806, 96
  %v4827 = vpop.permute.xlu0 %4826
  %4828 = vrot.lane.b32.xlu0 %v4807, 96
  %v4829 = vpop.permute.xlu0 %4828
  %4830 = vrot.lane.b32.xlu0 %v4808, 96
  %v4831 = vpop.permute.xlu0 %4830
  %4832 = vrot.lane.b32.xlu0 %v4809, 96
  %v4833 = vpop.permute.xlu0 %4832
  %4834 = vrot.lane.b32.xlu0 %v4810, 96
  %v4835 = vpop.permute.xlu0 %4834
  %4836 = vrot.lane.b32.xlu0 %v4811, 96
  %v4837 = vpop.permute.xlu0 %4836
  %4838 = vrot.lane.b32.xlu0 %v4812, 96
  %v4839 = vpop.permute.xlu0 %4838
  %4840 = vrot.lane.b32.xlu0 %v4813, 96
  %v4841 = vpop.permute.xlu0 %4840
  %4842 = vrot.lane.b32.xlu0 %v4814, 96
  %v4843 = vpop.permute.xlu0 %4842
  %4844 = vrot.lane.b32.xlu0 %v4815, 96
  %v4845 = vpop.permute.xlu0 %4844
  %vm4856 = vcmask 917248
  %4857 = vst.msk [vmem:[#allocation5] sm:$0xff] %vm4856, %v4827
  %4858 = vst.msk [vmem:[#allocation5 + $0x10] sm:$0xff] %vm4856, %v4829
  %4859 = vst.msk [vmem:[#allocation5 + $0x20] sm:$0xff] %vm4856, %v4831
  %4860 = vst.msk [vmem:[#allocation5 + $0x30] sm:$0xff] %vm4856, %v4833
  %4861 = vst.msk [vmem:[#allocation5 + $0x40] sm:$0xff] %vm4856, %v4835
  %4862 = vst.msk [vmem:[#allocation5 + $0x50] sm:$0xff] %vm4856, %v4837
  %4863 = vst.msk [vmem:[#allocation5 + $0x60] sm:$0xff] %vm4856, %v4839
  %4864 = vst.msk [vmem:[#allocation5 + $0x70] sm:$0xff] %vm4856, %v4841
  %4865 = vst.msk [vmem:[#allocation5 + $0x80] sm:$0xff] %vm4856, %v4843
  %4866 = vst.msk [vmem:[#allocation5 + $0x90] sm:$0xff] %vm4856, %v4845
  %v4867 = vld [vmem:[#allocation4 + $0x15] sm:$0xff]
  %v4868 = vld [vmem:[#allocation4 + $0x1d] sm:$0xff]
  %v4869 = vld [vmem:[#allocation4 + $0x25] sm:$0xff]
  %v4870 = vld [vmem:[#allocation4 + $0x2d] sm:$0xff]
  %v4871 = vld [vmem:[#allocation4 + $0x35] sm:$0xff]
  %v4872 = vld [vmem:[#allocation4 + $0x3d] sm:$0xff]
  %v4873 = vld [vmem:[#allocation4 + $0x45] sm:$0xff]
  %v4874 = vld [vmem:[#allocation4 + $0x4d] sm:$0xff]
  %v4875 = vld [vmem:[#allocation4 + $0x55] sm:$0xff]
  %v4876 = vld [vmem:[#allocation4 + $0x5d] sm:$0xff]
  %v4877 = vld [vmem:[%s5] sm:$0xff]
  %v4878 = vld [vmem:[%s5 + $0x8] sm:$0xff]
  %v4879 = vld [vmem:[%s5 + $0x10] sm:$0xff]
  %v4880 = vld [vmem:[%s5 + $0x18] sm:$0xff]
  %v4881 = vld [vmem:[%s5 + $0x20] sm:$0xff]
  %v4882 = vld [vmem:[%s5 + $0x28] sm:$0xff]
  %v4883 = vld [vmem:[%s5 + $0x30] sm:$0xff]
  %v4884 = vld [vmem:[%s5 + $0x38] sm:$0xff]
  %v4885 = vld [vmem:[%s5 + $0x40] sm:$0xff]
  %v4886 = vld [vmem:[%s5 + $0x48] sm:$0xff]
  %4888 = vset.pattern.permute.xlu0 7
  %4889 = vperm.xlu0 %4888, %v4877
  %v4890 = vpop.permute.xlu0 %4889
  %4893 = vset.pattern.permute.xlu0 7
  %4894 = vperm.xlu0 %4893, %v4878
  %v4895 = vpop.permute.xlu0 %4894
  %4898 = vset.pattern.permute.xlu0 7
  %4899 = vperm.xlu0 %4898, %v4879
  %v4900 = vpop.permute.xlu0 %4899
  %4903 = vset.pattern.permute.xlu0 7
  %4904 = vperm.xlu0 %4903, %v4880
  %v4905 = vpop.permute.xlu0 %4904
  %4908 = vset.pattern.permute.xlu0 7
  %4909 = vperm.xlu0 %4908, %v4881
  %v4910 = vpop.permute.xlu0 %4909
  %4913 = vset.pattern.permute.xlu0 7
  %4914 = vperm.xlu0 %4913, %v4882
  %v4915 = vpop.permute.xlu0 %4914
  %4918 = vset.pattern.permute.xlu0 7
  %4919 = vperm.xlu0 %4918, %v4883
  %v4920 = vpop.permute.xlu0 %4919
  %4923 = vset.pattern.permute.xlu0 7
  %4924 = vperm.xlu0 %4923, %v4884
  %v4925 = vpop.permute.xlu0 %4924
  %4928 = vset.pattern.permute.xlu0 7
  %4929 = vperm.xlu0 %4928, %v4885
  %v4930 = vpop.permute.xlu0 %4929
  %4933 = vset.pattern.permute.xlu0 7
  %4934 = vperm.xlu0 %4933, %v4886
  %v4935 = vpop.permute.xlu0 %4934
  %v4937 = vmul.f32 %v4867, %v4890
  %v4938 = vmul.f32 %v4868, %v4895
  %v4939 = vmul.f32 %v4869, %v4900
  %v4940 = vmul.f32 %v4870, %v4905
  %v4941 = vmul.f32 %v4871, %v4910
  %v4942 = vmul.f32 %v4872, %v4915
  %v4943 = vmul.f32 %v4873, %v4920
  %v4944 = vmul.f32 %v4874, %v4925
  %v4945 = vmul.f32 %v4875, %v4930
  %v4946 = vmul.f32 %v4876, %v4935
  %4957 = vrot.lane.b32.xlu0 %v4937, 112
  %v4958 = vpop.permute.xlu0 %4957
  %4959 = vrot.lane.b32.xlu0 %v4938, 112
  %v4960 = vpop.permute.xlu0 %4959
  %4961 = vrot.lane.b32.xlu0 %v4939, 112
  %v4962 = vpop.permute.xlu0 %4961
  %4963 = vrot.lane.b32.xlu0 %v4940, 112
  %v4964 = vpop.permute.xlu0 %4963
  %4965 = vrot.lane.b32.xlu0 %v4941, 112
  %v4966 = vpop.permute.xlu0 %4965
  %4967 = vrot.lane.b32.xlu0 %v4942, 112
  %v4968 = vpop.permute.xlu0 %4967
  %4969 = vrot.lane.b32.xlu0 %v4943, 112
  %v4970 = vpop.permute.xlu0 %4969
  %4971 = vrot.lane.b32.xlu0 %v4944, 112
  %v4972 = vpop.permute.xlu0 %4971
  %4973 = vrot.lane.b32.xlu0 %v4945, 112
  %v4974 = vpop.permute.xlu0 %4973
  %4975 = vrot.lane.b32.xlu0 %v4946, 112
  %v4976 = vpop.permute.xlu0 %4975
  %vm4987 = vcmask 1048448
  %4988 = vst.msk [vmem:[#allocation5] sm:$0xff] %vm4987, %v4958
  %4989 = vst.msk [vmem:[#allocation5 + $0x10] sm:$0xff] %vm4987, %v4960
  %4990 = vst.msk [vmem:[#allocation5 + $0x20] sm:$0xff] %vm4987, %v4962
  %4991 = vst.msk [vmem:[#allocation5 + $0x30] sm:$0xff] %vm4987, %v4964
  %4992 = vst.msk [vmem:[#allocation5 + $0x40] sm:$0xff] %vm4987, %v4966
  %4993 = vst.msk [vmem:[#allocation5 + $0x50] sm:$0xff] %vm4987, %v4968
  %4994 = vst.msk [vmem:[#allocation5 + $0x60] sm:$0xff] %vm4987, %v4970
  %4995 = vst.msk [vmem:[#allocation5 + $0x70] sm:$0xff] %vm4987, %v4972
  %4996 = vst.msk [vmem:[#allocation5 + $0x80] sm:$0xff] %vm4987, %v4974
  %4997 = vst.msk [vmem:[#allocation5 + $0x90] sm:$0xff] %vm4987, %v4976
  %v4998 = vld [vmem:[#allocation4 + $0x16] sm:$0xff]
  %v4999 = vld [vmem:[#allocation4 + $0x1e] sm:$0xff]
  %v5000 = vld [vmem:[#allocation4 + $0x26] sm:$0xff]
  %v5001 = vld [vmem:[#allocation4 + $0x2e] sm:$0xff]
  %v5002 = vld [vmem:[#allocation4 + $0x36] sm:$0xff]
  %v5003 = vld [vmem:[#allocation4 + $0x3e] sm:$0xff]
  %v5004 = vld [vmem:[#allocation4 + $0x46] sm:$0xff]
  %v5005 = vld [vmem:[#allocation4 + $0x4e] sm:$0xff]
  %v5006 = vld [vmem:[#allocation4 + $0x56] sm:$0xff]
  %v5007 = vld [vmem:[#allocation4 + $0x5e] sm:$0xff]
  %v5008 = vld [vmem:[%s5] sm:$0xff]
  %v5009 = vld [vmem:[%s5 + $0x8] sm:$0xff]
  %v5010 = vld [vmem:[%s5 + $0x10] sm:$0xff]
  %v5011 = vld [vmem:[%s5 + $0x18] sm:$0xff]
  %v5012 = vld [vmem:[%s5 + $0x20] sm:$0xff]
  %v5013 = vld [vmem:[%s5 + $0x28] sm:$0xff]
  %v5014 = vld [vmem:[%s5 + $0x30] sm:$0xff]
  %v5015 = vld [vmem:[%s5 + $0x38] sm:$0xff]
  %v5016 = vld [vmem:[%s5 + $0x40] sm:$0xff]
  %v5017 = vld [vmem:[%s5 + $0x48] sm:$0xff]
  %5019 = vset.pattern.permute.xlu0 8
  %5020 = vperm.xlu0 %5019, %v5008
  %v5021 = vpop.permute.xlu0 %5020
  %5024 = vset.pattern.permute.xlu0 8
  %5025 = vperm.xlu0 %5024, %v5009
  %v5026 = vpop.permute.xlu0 %5025
  %5029 = vset.pattern.permute.xlu0 8
  %5030 = vperm.xlu0 %5029, %v5010
  %v5031 = vpop.permute.xlu0 %5030
  %5034 = vset.pattern.permute.xlu0 8
  %5035 = vperm.xlu0 %5034, %v5011
  %v5036 = vpop.permute.xlu0 %5035
  %5039 = vset.pattern.permute.xlu0 8
  %5040 = vperm.xlu0 %5039, %v5012
  %v5041 = vpop.permute.xlu0 %5040
  %5044 = vset.pattern.permute.xlu0 8
  %5045 = vperm.xlu0 %5044, %v5013
  %v5046 = vpop.permute.xlu0 %5045
  %5049 = vset.pattern.permute.xlu0 8
  %5050 = vperm.xlu0 %5049, %v5014
  %v5051 = vpop.permute.xlu0 %5050
  %5054 = vset.pattern.permute.xlu0 8
  %5055 = vperm.xlu0 %5054, %v5015
  %v5056 = vpop.permute.xlu0 %5055
  %5059 = vset.pattern.permute.xlu0 8
  %5060 = vperm.xlu0 %5059, %v5016
  %v5061 = vpop.permute.xlu0 %5060
  %5064 = vset.pattern.permute.xlu0 8
  %5065 = vperm.xlu0 %5064, %v5017
  %v5066 = vpop.permute.xlu0 %5065
  %v5068 = vmul.f32 %v4998, %v5021
  %v5069 = vmul.f32 %v4999, %v5026
  %v5070 = vmul.f32 %v5000, %v5031
  %v5071 = vmul.f32 %v5001, %v5036
  %v5072 = vmul.f32 %v5002, %v5041
  %v5073 = vmul.f32 %v5003, %v5046
  %v5074 = vmul.f32 %v5004, %v5051
  %v5075 = vmul.f32 %v5005, %v5056
  %v5076 = vmul.f32 %v5006, %v5061
  %v5077 = vmul.f32 %v5007, %v5066
  %5078 = vst.msk [vmem:[#allocation5 + $0x8] sm:$0xff] %vm3292, %v5068
  %5079 = vst.msk [vmem:[#allocation5 + $0x18] sm:$0xff] %vm3292, %v5069
  %5080 = vst.msk [vmem:[#allocation5 + $0x28] sm:$0xff] %vm3292, %v5070
  %5081 = vst.msk [vmem:[#allocation5 + $0x38] sm:$0xff] %vm3292, %v5071
  %5082 = vst.msk [vmem:[#allocation5 + $0x48] sm:$0xff] %vm3292, %v5072
  %5083 = vst.msk [vmem:[#allocation5 + $0x58] sm:$0xff] %vm3292, %v5073
  %5084 = vst.msk [vmem:[#allocation5 + $0x68] sm:$0xff] %vm3292, %v5074
  %5085 = vst.msk [vmem:[#allocation5 + $0x78] sm:$0xff] %vm3292, %v5075
  %5086 = vst.msk [vmem:[#allocation5 + $0x88] sm:$0xff] %vm3292, %v5076
  %5087 = vst.msk [vmem:[#allocation5 + $0x98] sm:$0xff] %vm3292, %v5077
  %v5088 = vld [vmem:[#allocation5] sm:$0xff]
  %v5089 = vld [vmem:[#allocation5 + $0x8] sm:$0xff]
  %v5090 = vld [vmem:[#allocation5 + $0x10] sm:$0xff]
  %v5091 = vld [vmem:[#allocation5 + $0x18] sm:$0xff]
  %v5092 = vld [vmem:[#allocation5 + $0x20] sm:$0xff]
  %v5093 = vld [vmem:[#allocation5 + $0x28] sm:$0xff]
  %v5094 = vld [vmem:[#allocation5 + $0x30] sm:$0xff]
  %v5095 = vld [vmem:[#allocation5 + $0x38] sm:$0xff]
  %v5096 = vld [vmem:[#allocation5 + $0x40] sm:$0xff]
  %v5097 = vld [vmem:[#allocation5 + $0x48] sm:$0xff]
  %v5098 = vld [vmem:[#allocation5 + $0x50] sm:$0xff]
  %v5099 = vld [vmem:[#allocation5 + $0x58] sm:$0xff]
  %v5100 = vld [vmem:[#allocation5 + $0x60] sm:$0xff]
  %v5101 = vld [vmem:[#allocation5 + $0x68] sm:$0xff]
  %v5102 = vld [vmem:[#allocation5 + $0x70] sm:$0xff]
  %v5103 = vld [vmem:[#allocation5 + $0x78] sm:$0xff]
  %v5104 = vld [vmem:[#allocation5 + $0x80] sm:$0xff]
  %v5105 = vld [vmem:[#allocation5 + $0x88] sm:$0xff]
  %v5106 = vld [vmem:[#allocation5 + $0x90] sm:$0xff]
  %v5107 = vld [vmem:[#allocation5 + $0x98] sm:$0xff]
  %v5108 = vld [vmem:[%s4] sm:$0xf]
  %v5109 = vld [vmem:[%s4 + $0x4] sm:$0xf]
  %v5110 = vld [vmem:[%s4 + $0x8] sm:$0xf]
  %v5111 = vld [vmem:[%s4 + $0xc] sm:$0xf]
  %v5112 = vld [vmem:[%s4 + $0x10] sm:$0xf]
  %v5113 = vld [vmem:[%s4 + $0x14] sm:$0xf]
  %v5114 = vld [vmem:[%s4 + $0x18] sm:$0xf]
  %v5115 = vld [vmem:[%s4 + $0x1c] sm:$0xf]
  %v5116 = vld [vmem:[%s4 + $0x20] sm:$0xf]
  %v5117 = vld [vmem:[%s4 + $0x24] sm:$0xf]
  %v5118 = vld [vmem:[%s4 + $0x28] sm:$0xf]
  %v5119 = vld [vmem:[%s4 + $0x2c] sm:$0xf]
  %v5120 = vld [vmem:[%s4 + $0x30] sm:$0xf]
  %v5121 = vld [vmem:[%s4 + $0x34] sm:$0xf]
  %v5122 = vld [vmem:[%s4 + $0x38] sm:$0xf]
  %v5123 = vld [vmem:[%s4 + $0x3c] sm:$0xf]
  %v5124 = vld [vmem:[%s4 + $0x40] sm:$0xf]
  %v5125 = vld [vmem:[%s4 + $0x44] sm:$0xf]
  %v5126 = vunpack.c.l.bf16 %v5108
  %v5127 = vunpack.c.l.bf16 %v5109
  %v5128 = vunpack.c.l.bf16 %v5110
  %v5129 = vunpack.c.l.bf16 %v5111
  %v5130 = vunpack.c.l.bf16 %v5112
  %v5131 = vunpack.c.l.bf16 %v5113
  %v5132 = vunpack.c.l.bf16 %v5114
  %v5133 = vunpack.c.l.bf16 %v5115
  %v5134 = vunpack.c.l.bf16 %v5116
  %v5135 = vunpack.c.l.bf16 %v5117
  %v5136 = vunpack.c.l.bf16 %v5118
  %v5137 = vunpack.c.l.bf16 %v5119
  %v5138 = vunpack.c.l.bf16 %v5120
  %v5139 = vunpack.c.l.bf16 %v5121
  %v5140 = vunpack.c.l.bf16 %v5122
  %v5141 = vunpack.c.l.bf16 %v5123
  %v5142 = vunpack.c.l.bf16 %v5124
  %v5143 = vunpack.c.l.bf16 %v5125
  %v5145 = vsel %vm3292, %v5089, 0
  %v5148 = vsel %vm3292, %v5091, 0
  %v5151 = vsel %vm3292, %v5093, 0
  %v5154 = vsel %vm3292, %v5095, 0
  %v5157 = vsel %vm3292, %v5097, 0
  %v5160 = vsel %vm3292, %v5099, 0
  %v5163 = vsel %vm3292, %v5101, 0
  %v5166 = vsel %vm3292, %v5103, 0
  %v5169 = vsel %vm3292, %v5105, 0
  %v5172 = vsel %vm3292, %v5107, 0
  %5174 = vmatprep.subr.mxu0 0.0
  %5175 = vmatpush1.msra.mxu0 %v5126
  %5176 = vmatprep.subr.mxu0 0.0
  %5177 = vmatpush1.msra.mxu0 %v5127
  %5178 = vmatprep.subr.mxu0 0.0
  %5179 = vmatpush1.msra.mxu0 %v5128
  %5180 = vmatprep.subr.mxu0 0.0
  %5181 = vmatpush1.msra.mxu0 %v5129
  %5182 = vmatprep.subr.mxu0 0.0
  %5183 = vmatpush1.msra.mxu0 %v5130
  %5184 = vmatprep.subr.mxu0 0.0
  %5185 = vmatpush1.msra.mxu0 %v5131
  %5186 = vmatprep.subr.mxu0 0.0
  %5187 = vmatpush1.msra.mxu0 %v5132
  %5188 = vmatprep.subr.mxu0 0.0
  %5189 = vmatpush1.msra.mxu0 %v5133
  %5190 = vmatprep.subr.mxu0 0.0
  %5191 = vmatpush1.msra.mxu0 %v5134
  %5192 = vmatprep.subr.mxu0 0.0
  %5193 = vmatpush1.msra.mxu0 %v5135
  %5194 = vmatprep.subr.mxu0 0.0
  %5195 = vmatpush1.msra.mxu0 %v5136
  %5196 = vmatprep.subr.mxu0 0.0
  %5197 = vmatpush1.msra.mxu0 %v5137
  %5198 = vmatprep.subr.mxu0 0.0
  %5199 = vmatpush1.msra.mxu0 %v5138
  %5200 = vmatprep.subr.mxu0 0.0
  %5201 = vmatpush1.msra.mxu0 %v5139
  %5202 = vmatprep.subr.mxu0 0.0
  %5203 = vmatpush1.msra.mxu0 %v5140
  %5204 = vmatprep.subr.mxu0 0.0
  %5205 = vmatpush1.msra.mxu0 %v5141
  %5206 = vmatprep.subr.mxu0 0.0
  %5207 = vmatpush1.msra.mxu0 %v5142
  %5208 = vmatprep.subr.mxu0 0.0
  %5209 = vmatpush1.msra.mxu0 %v5143
  %5210 = vmatprep.subr.mxu0 0.0
  %5211 = vmatpush1.msra.mxu0 0.0
  %5212 = vmatprep.subr.mxu0 0.0
  %5213 = vmatpush1.msra.mxu0 0.0
  %5214 = vmatprep.subr.mxu0 0.0
  %5215 = vmatpush1.msra.mxu0 0.0
  %5216 = vmatprep.subr.mxu0 0.0
  %5217 = vmatpush1.msra.mxu0 0.0
  %5218 = vmatprep.subr.mxu0 0.0
  %5219 = vmatpush1.msra.mxu0 0.0
  %5220 = vmatprep.subr.mxu0 0.0
  %5221 = vmatpush1.msra.mxu0 0.0
  %5222 = vmatprep.subr.mxu0 0.0
  %5223 = vmatpush1.msra.mxu0 0.0
  %5224 = vmatprep.subr.mxu0 0.0
  %5225 = vmatpush1.msra.mxu0 0.0
  %5226 = vmatprep.subr.mxu0 0.0
  %5227 = vmatpush1.msra.mxu0 0.0
  %5228 = vmatprep.subr.mxu0 0.0
  %5229 = vmatpush1.msra.mxu0 0.0
  %5230 = vmatprep.subr.mxu0 0.0
  %5231 = vmatpush1.msra.mxu0 0.0
  %5232 = vmatprep.subr.mxu0 0.0
  %5233 = vmatpush1.msra.mxu0 0.0
  %5234 = vmatprep.subr.mxu0 0.0
  %5235 = vmatpush1.msra.mxu0 0.0
  %5236 = vmatprep.subr.mxu0 0.0
  %5237 = vmatpush1.msra.mxu0 0.0
  %5238 = vmatprep.mubr.f32.mxu0 %v5145
  %5239 = vmatmul.mubr.f32.gmra.mrb[0].mxu0 %v5088
  %v5240 = vpop.f32.mrb[0].mxu0
  %v5241 = vadd.f32 0.0, %v5240
  %v5242 = vpop.f32.mrb[0].mxu0
  %5243 = vmatprep.mubr.f32.mxu0 %v5148
  %5244 = vmatmul.mubr.f32.gmra.mrb[0].mxu0 %v5090
  %v5245 = vpop.f32.mrb[0].mxu0
  %v5246 = vadd.f32 0.0, %v5245
  %v5247 = vpop.f32.mrb[0].mxu0
  %5248 = vmatprep.mubr.f32.mxu0 %v5151
  %5249 = vmatmul.mubr.f32.gmra.mrb[0].mxu0 %v5092
  %v5250 = vpop.f32.mrb[0].mxu0
  %v5251 = vadd.f32 0.0, %v5250
  %v5252 = vpop.f32.mrb[0].mxu0
  %5253 = vmatprep.mubr.f32.mxu0 %v5154
  %5254 = vmatmul.mubr.f32.gmra.mrb[0].mxu0 %v5094
  %v5255 = vpop.f32.mrb[0].mxu0
  %v5256 = vadd.f32 0.0, %v5255
  %v5257 = vpop.f32.mrb[0].mxu0
  %5258 = vmatprep.mubr.f32.mxu0 %v5157
  %5259 = vmatmul.mubr.f32.gmra.mrb[0].mxu0 %v5096
  %v5260 = vpop.f32.mrb[0].mxu0
  %v5261 = vadd.f32 0.0, %v5260
  %v5262 = vpop.f32.mrb[0].mxu0
  %5263 = vmatprep.mubr.f32.mxu0 %v5160
  %5264 = vmatmul.mubr.f32.gmra.mrb[0].mxu0 %v5098
  %v5265 = vpop.f32.mrb[0].mxu0
  %v5266 = vadd.f32 0.0, %v5265
  %v5267 = vpop.f32.mrb[0].mxu0
  %5268 = vmatprep.mubr.f32.mxu0 %v5163
  %5269 = vmatmul.mubr.f32.gmra.mrb[0].mxu0 %v5100
  %v5270 = vpop.f32.mrb[0].mxu0
  %v5271 = vadd.f32 0.0, %v5270
  %v5272 = vpop.f32.mrb[0].mxu0
  %5273 = vmatprep.mubr.f32.mxu0 %v5166
  %5274 = vmatmul.mubr.f32.gmra.mrb[0].mxu0 %v5102
  %v5275 = vpop.f32.mrb[0].mxu0
  %v5276 = vadd.f32 0.0, %v5275
  %v5277 = vpop.f32.mrb[0].mxu0
  %5278 = vmatprep.mubr.f32.mxu0 %v5169
  %5279 = vmatmul.mubr.f32.gmra.mrb[0].mxu0 %v5104
  %v5280 = vpop.f32.mrb[0].mxu0
  %v5281 = vadd.f32 0.0, %v5280
  %v5282 = vpop.f32.mrb[0].mxu0
  %5283 = vmatprep.mubr.f32.mxu0 %v5172
  %5284 = vmatmul.mubr.f32.gmra.mrb[0].mxu0 %v5106
  %v5285 = vpop.f32.mrb[0].mxu0
  %v5286 = vadd.f32 0.0, %v5285
  %v5287 = vpop.f32.mrb[0].mxu0
  %5288 = vdwg.mxu0
  %vm5289 = vcmask 261120
  %v5290 = vsel %vm5289, %v5241, 0.0
  %v5291 = vsel %vm5289, %v5246, 0.0
  %v5292 = vadd.f32 %v5290, %v5291
  %v5293 = vsel %vm5289, %v5251, 0.0
  %v5294 = vadd.f32 %v5292, %v5293
  %v5295 = vsel %vm5289, %v5256, 0.0
  %v5296 = vadd.f32 %v5294, %v5295
  %v5297 = vsel %vm5289, %v5261, 0.0
  %v5298 = vadd.f32 %v5296, %v5297
  %v5299 = vsel %vm5289, %v5266, 0.0
  %v5300 = vadd.f32 %v5298, %v5299
  %v5301 = vsel %vm5289, %v5271, 0.0
  %v5302 = vadd.f32 %v5300, %v5301
  %v5303 = vsel %vm5289, %v5276, 0.0
  %v5304 = vadd.f32 %v5302, %v5303
  %v5305 = vsel %vm5289, %v5281, 0.0
  %v5306 = vadd.f32 %v5304, %v5305
  %v5307 = vsel %vm5289, %v5286, 0.0
  %v5308 = vadd.f32 %v5306, %v5307
  %v5309 = vrot.slane %v5308, 4
  %v5310 = vadd.f32 %v5308, %v5309
  %v5311 = vrot.slane %v5310, 2
  %v5312 = vadd.f32 %v5310, %v5311
  %v5313 = vrot.slane %v5312, 1
  %v5314 = vadd.f32 %v5312, %v5313
  %v5315 = vmul.f32 %v5314, 0.0125
  %v5316 = vmul.f32 %v5241, %v5241
  %v5317 = vmul.f32 %v5246, %v5246
  %v5318 = vmul.f32 %v5251, %v5251
  %v5319 = vmul.f32 %v5256, %v5256
  %v5320 = vmul.f32 %v5261, %v5261
  %v5321 = vmul.f32 %v5266, %v5266
  %v5322 = vmul.f32 %v5271, %v5271
  %v5323 = vmul.f32 %v5276, %v5276
  %v5324 = vmul.f32 %v5281, %v5281
  %v5325 = vmul.f32 %v5286, %v5286
  %v5326 = vsel %vm5289, %v5316, 0.0
  %v5327 = vsel %vm5289, %v5317, 0.0
  %v5328 = vadd.f32 %v5326, %v5327
  %v5329 = vsel %vm5289, %v5318, 0.0
  %v5330 = vadd.f32 %v5328, %v5329
  %v5331 = vsel %vm5289, %v5319, 0.0
  %v5332 = vadd.f32 %v5330, %v5331
  %v5333 = vsel %vm5289, %v5320, 0.0
  %v5334 = vadd.f32 %v5332, %v5333
  %v5335 = vsel %vm5289, %v5321, 0.0
  %v5336 = vadd.f32 %v5334, %v5335
  %v5337 = vsel %vm5289, %v5322, 0.0
  %v5338 = vadd.f32 %v5336, %v5337
  %v5339 = vsel %vm5289, %v5323, 0.0
  %v5340 = vadd.f32 %v5338, %v5339
  %v5341 = vsel %vm5289, %v5324, 0.0
  %v5342 = vadd.f32 %v5340, %v5341
  %v5343 = vsel %vm5289, %v5325, 0.0
  %v5344 = vadd.f32 %v5342, %v5343
  %v5345 = vrot.slane %v5344, 4
  %v5346 = vadd.f32 %v5344, %v5345
  %v5347 = vrot.slane %v5346, 2
  %v5348 = vadd.f32 %v5346, %v5347
  %v5349 = vrot.slane %v5348, 1
  %v5350 = vadd.f32 %v5348, %v5349
  %v5351 = vmul.f32 %v5350, 0.0125
  %v5352 = vmul.f32 %v5315, %v5315
  %v5353 = vsub.f32 %v5351, %v5352
  %v5354 = vmax.f32 %v5353, 0.0
  %v5355 = vsub.f32 %v5241, %v5315
  %v5356 = vsub.f32 %v5246, %v5315
  %v5357 = vsub.f32 %v5251, %v5315
  %v5358 = vsub.f32 %v5256, %v5315
  %v5359 = vsub.f32 %v5261, %v5315
  %v5360 = vsub.f32 %v5266, %v5315
  %v5361 = vsub.f32 %v5271, %v5315
  %v5362 = vsub.f32 %v5276, %v5315
  %v5363 = vsub.f32 %v5281, %v5315
  %v5364 = vsub.f32 %v5286, %v5315
  %v5365 = vadd.f32 %v5354, 1e-05
  %v5366 = vrsqrt.pop %v5365
  %v5367 = vmul.f32 %v5355, %v5366
  %v5368 = vmul.f32 %v5356, %v5366
  %v5369 = vmul.f32 %v5357, %v5366
  %v5370 = vmul.f32 %v5358, %v5366
  %v5371 = vmul.f32 %v5359, %v5366
  %v5372 = vmul.f32 %v5360, %v5366
  %v5373 = vmul.f32 %v5361, %v5366
  %v5374 = vmul.f32 %v5362, %v5366
  %v5375 = vmul.f32 %v5363, %v5366
  %v5376 = vmul.f32 %v5364, %v5366
  %v5377 = vmax.f32 %v5367, 0.0
  %v5378 = vmax.f32 %v5368, 0.0
  %v5379 = vmax.f32 %v5369, 0.0
  %v5380 = vmax.f32 %v5370, 0.0
  %v5381 = vmax.f32 %v5371, 0.0
  %v5382 = vmax.f32 %v5372, 0.0
  %v5383 = vmax.f32 %v5373, 0.0
  %v5384 = vmax.f32 %v5374, 0.0
  %v5385 = vmax.f32 %v5375, 0.0
  %v5386 = vmax.f32 %v5376, 0.0
  %vm5387 = vcmask 260096
  %5388 = vst.msk [vmem:[#allocation6] sm:$0x7f] %vm5387, 0.0
  %5389 = vst.msk [vmem:[#allocation6 + $0x2b] sm:$0x7f] %vm5387, 0.0
  %v5390 = vld [vmem:[%s6] sm:$0xf]
  %v5391 = vld [vmem:[%s6 + $0x4] sm:$0xf]
  %v5392 = vld [vmem:[%s6 + $0x8] sm:$0xf]
  %v5393 = vld [vmem:[%s6 + $0xc] sm:$0xf]
  %v5394 = vld [vmem:[%s6 + $0x10] sm:$0xf]
  %v5395 = vld [vmem:[%s6 + $0x14] sm:$0xf]
  %v5396 = vld [vmem:[%s6 + $0x18] sm:$0xf]
  %v5397 = vld [vmem:[%s6 + $0x1c] sm:$0xf]
  %v5398 = vld [vmem:[%s6 + $0x20] sm:$0xf]
  %v5399 = vunpack.c.l.bf16 %v5390
  %v5400 = vunpack.c.l.bf16 %v5391
  %v5401 = vunpack.c.l.bf16 %v5392
  %v5402 = vunpack.c.l.bf16 %v5393
  %v5403 = vunpack.c.l.bf16 %v5394
  %v5404 = vunpack.c.l.bf16 %v5395
  %v5405 = vunpack.c.l.bf16 %v5396
  %v5406 = vunpack.c.l.bf16 %v5397
  %v5407 = vunpack.c.l.bf16 %v5398
  %vm5408 = vcmask 326656
  %v5410 = vsel %vm5408, %v5399, 0
  %v5413 = vsel %vm5408, %v5400, 0
  %v5416 = vsel %vm5408, %v5401, 0
  %v5419 = vsel %vm5408, %v5402, 0
  %v5422 = vsel %vm5408, %v5403, 0
  %v5425 = vsel %vm5408, %v5404, 0
  %v5428 = vsel %vm5408, %v5405, 0
  %v5431 = vsel %vm5408, %v5406, 0
  %v5434 = vsel %vm5408, %v5407, 0
  %5436 = vmatprep.subr.mxu0 0.0
  %5437 = vmatpush1.msra.mxu0 %v5377
  %5438 = vmatprep.subr.mxu0 0.0
  %5439 = vmatpush1.msra.mxu0 %v5378
  %5440 = vmatprep.subr.mxu0 0.0
  %5441 = vmatpush1.msra.mxu0 %v5379
  %5442 = vmatprep.subr.mxu0 0.0
  %5443 = vmatpush1.msra.mxu0 %v5380
  %5444 = vmatprep.subr.mxu0 0.0
  %5445 = vmatpush1.msra.mxu0 %v5381
  %5446 = vmatprep.subr.mxu0 0.0
  %5447 = vmatpush1.msra.mxu0 0.0
  %5448 = vmatprep.subr.mxu0 0.0
  %5449 = vmatpush1.msra.mxu0 0.0
  %5450 = vmatprep.subr.mxu0 0.0
  %5451 = vmatpush1.msra.mxu0 0.0
  %5452 = vmatprep.subr.mxu0 0.0
  %5453 = vmatpush1.msra.mxu0 0.0
  %5454 = vmatprep.subr.mxu0 0.0
  %5455 = vmatpush1.msra.mxu0 0.0
  %5456 = vmatprep.subr.mxu0 0.0
  %5457 = vmatpush1.msra.mxu0 0.0
  %5458 = vmatprep.subr.mxu0 0.0
  %5459 = vmatpush1.msra.mxu0 0.0
  %5460 = vmatprep.subr.mxu0 0.0
  %5461 = vmatpush1.msra.mxu0 0.0
  %5462 = vmatprep.subr.mxu0 0.0
  %5463 = vmatpush1.msra.mxu0 0.0
  %5464 = vmatprep.subr.mxu0 0.0
  %5465 = vmatpush1.msra.mxu0 0.0
  %5466 = vmatprep.subr.mxu0 0.0
  %5467 = vmatpush1.msra.mxu0 0.0
  %5468 = vmatprep.subr.mxu0 0.0
  %5469 = vmatpush1.msra.mxu0 0.0
  %5470 = vmatprep.subr.mxu0 0.0
  %5471 = vmatpush1.msra.mxu0 0.0
  %5472 = vmatprep.subr.mxu0 0.0
  %5473 = vmatpush1.msra.mxu0 0.0
  %5474 = vmatprep.subr.mxu0 0.0
  %5475 = vmatpush1.msra.mxu0 0.0
  %5476 = vmatprep.subr.mxu0 0.0
  %5477 = vmatpush1.msra.mxu0 0.0
  %5478 = vmatprep.subr.mxu0 0.0
  %5479 = vmatpush1.msra.mxu0 0.0
  %5480 = vmatprep.subr.mxu0 0.0
  %5481 = vmatpush1.msra.mxu0 0.0
  %5482 = vmatprep.subr.mxu0 0.0
  %5483 = vmatpush1.msra.mxu0 0.0
  %5484 = vmatprep.subr.mxu0 0.0
  %5485 = vmatpush1.msra.mxu0 0.0
  %5486 = vmatprep.subr.mxu0 0.0
  %5487 = vmatpush1.msra.mxu0 0.0
  %5488 = vmatprep.subr.mxu0 0.0
  %5489 = vmatpush1.msra.mxu0 0.0
  %5490 = vmatprep.subr.mxu0 0.0
  %5491 = vmatpush1.msra.mxu0 0.0
  %5492 = vmatprep.subr.mxu0 0.0
  %5493 = vmatpush1.msra.mxu0 0.0
  %5494 = vmatprep.subr.mxu0 0.0
  %5495 = vmatpush1.msra.mxu0 0.0
  %5496 = vmatprep.subr.mxu0 0.0
  %5497 = vmatpush1.msra.mxu0 0.0
  %5498 = vmatprep.subr.mxu0 0.0
  %5499 = vmatpush1.msra.mxu0 0.0
  %5500 = vmatprep.mubr.f32.mxu0 0.0
  %5501 = vmatmul.mubr.f32.gmra.mrb[0].mxu0 %v5410
  %v5502 = vpop.f32.mrb[0].mxu0
  %v5503 = vadd.f32 0.0, %v5502
  %v5504 = vpop.f32.mrb[0].mxu0
  %5505 = vmatprep.mubr.f32.mxu0 0.0
  %5506 = vmatmul.mubr.f32.gmra.mrb[0].mxu0 %v5413
  %v5507 = vpop.f32.mrb[0].mxu0
  %v5508 = vadd.f32 0.0, %v5507
  %v5509 = vpop.f32.mrb[0].mxu0
  %5510 = vmatprep.mubr.f32.mxu0 0.0
  %5511 = vmatmul.mubr.f32.gmra.mrb[0].mxu0 %v5416
  %v5512 = vpop.f32.mrb[0].mxu0
  %v5513 = vadd.f32 0.0, %v5512
  %v5514 = vpop.f32.mrb[0].mxu0
  %5515 = vmatprep.mubr.f32.mxu0 0.0
  %5516 = vmatmul.mubr.f32.gmra.mrb[0].mxu0 %v5419
  %v5517 = vpop.f32.mrb[0].mxu0
  %v5518 = vadd.f32 0.0, %v5517
  %v5519 = vpop.f32.mrb[0].mxu0
  %5520 = vmatprep.mubr.f32.mxu0 0.0
  %5521 = vmatmul.mubr.f32.gmra.mrb[0].mxu0 %v5422
  %v5522 = vpop.f32.mrb[0].mxu0
  %v5523 = vadd.f32 0.0, %v5522
  %v5524 = vpop.f32.mrb[0].mxu0
  %5525 = vmatprep.mubr.f32.mxu0 0.0
  %5526 = vmatmul.mubr.f32.gmra.mrb[0].mxu0 %v5425
  %v5527 = vpop.f32.mrb[0].mxu0
  %v5528 = vadd.f32 0.0, %v5527
  %v5529 = vpop.f32.mrb[0].mxu0
  %5530 = vmatprep.mubr.f32.mxu0 0.0
  %5531 = vmatmul.mubr.f32.gmra.mrb[0].mxu0 %v5428
  %v5532 = vpop.f32.mrb[0].mxu0
  %v5533 = vadd.f32 0.0, %v5532
  %v5534 = vpop.f32.mrb[0].mxu0
  %5535 = vmatprep.mubr.f32.mxu0 0.0
  %5536 = vmatmul.mubr.f32.gmra.mrb[0].mxu0 %v5431
  %v5537 = vpop.f32.mrb[0].mxu0
  %v5538 = vadd.f32 0.0, %v5537
  %v5539 = vpop.f32.mrb[0].mxu0
  %5540 = vmatprep.mubr.f32.mxu0 0.0
  %5541 = vmatmul.mubr.f32.gmra.mrb[0].mxu0 %v5434
  %v5542 = vpop.f32.mrb[0].mxu0
  %v5543 = vadd.f32 0.0, %v5542
  %v5544 = vpop.f32.mrb[0].mxu0
  %5545 = vdwg.mxu0
  %vm5549 = vcmask 1045504
  %v5550 = vrot.slane %v5513, 2
  %v5551 = vrot.slane %v5518, 2
  %v5552 = vsel %vm5549, %v5550, %v5551
  %v5553 = vrot.slane %v5523, 2
  %v5554 = vsel %vm5549, %v5551, %v5553
  %v5558 = vmax.f32 %v5503, %v5552
  %v5559 = vmax.f32 %v5508, %v5554
  %v5560 = vmax.f32 %v5513, %v5553
  %v5564 = vrot.slane %v5533, 2
  %v5565 = vrot.slane %v5538, 2
  %v5566 = vsel %vm5549, %v5564, %v5565
  %v5567 = vrot.slane %v5543, 2
  %v5568 = vsel %vm5549, %v5565, %v5567
  %v5572 = vmax.f32 %v5523, %v5566
  %v5573 = vmax.f32 %v5528, %v5568
  %v5574 = vmax.f32 %v5533, %v5567
  %v5578 = vrot.slane %v5572, 4
  %v5579 = vrot.slane %v5573, 4
  %v5580 = vsel %vm3632, %v5578, %v5579
  %v5581 = vrot.slane %v5574, 4
  %v5582 = vsel %vm3632, %v5579, %v5581
  %v5586 = vmax.f32 %v5558, %v5580
  %v5587 = vmax.f32 %v5559, %v5582
  %v5588 = vmax.f32 %v5560, %v5581
  %5589 = vst.msk [vmem:[#allocation6 + $0x7] sm:$0xff] %vm5289, %v5586
  %5590 = vst.msk [vmem:[#allocation6 + $0xf] sm:$0xff] %vm5289, %v5587
  %vm5591 = vcmask 254976
  %5592 = vst.msk [vmem:[#allocation6 + $0x17] sm:$0x3] %vm5591, %v5588
  %5593 = vmatprep.subr.mxu0 0.0
  %5594 = vmatpush1.msra.mxu0 %v5382
  %5595 = vmatprep.subr.mxu0 0.0
  %5596 = vmatpush1.msra.mxu0 %v5383
  %5597 = vmatprep.subr.mxu0 0.0
  %5598 = vmatpush1.msra.mxu0 %v5384
  %5599 = vmatprep.subr.mxu0 0.0
  %5600 = vmatpush1.msra.mxu0 %v5385
  %5601 = vmatprep.subr.mxu0 0.0
  %5602 = vmatpush1.msra.mxu0 %v5386
  %5603 = vmatprep.subr.mxu0 0.0
  %5604 = vmatpush1.msra.mxu0 0.0
  %5605 = vmatprep.subr.mxu0 0.0
  %5606 = vmatpush1.msra.mxu0 0.0
  %5607 = vmatprep.subr.mxu0 0.0
  %5608 = vmatpush1.msra.mxu0 0.0
  %5609 = vmatprep.subr.mxu0 0.0
  %5610 = vmatpush1.msra.mxu0 0.0
  %5611 = vmatprep.subr.mxu0 0.0
  %5612 = vmatpush1.msra.mxu0 0.0
  %5613 = vmatprep.subr.mxu0 0.0
  %5614 = vmatpush1.msra.mxu0 0.0
  %5615 = vmatprep.subr.mxu0 0.0
  %5616 = vmatpush1.msra.mxu0 0.0
  %5617 = vmatprep.subr.mxu0 0.0
  %5618 = vmatpush1.msra.mxu0 0.0
  %5619 = vmatprep.subr.mxu0 0.0
  %5620 = vmatpush1.msra.mxu0 0.0
  %5621 = vmatprep.subr.mxu0 0.0
  %5622 = vmatpush1.msra.mxu0 0.0
  %5623 = vmatprep.subr.mxu0 0.0
  %5624 = vmatpush1.msra.mxu0 0.0
  %5625 = vmatprep.subr.mxu0 0.0
  %5626 = vmatpush1.msra.mxu0 0.0
  %5627 = vmatprep.subr.mxu0 0.0
  %5628 = vmatpush1.msra.mxu0 0.0
  %5629 = vmatprep.subr.mxu0 0.0
  %5630 = vmatpush1.msra.mxu0 0.0
  %5631 = vmatprep.subr.mxu0 0.0
  %5632 = vmatpush1.msra.mxu0 0.0
  %5633 = vmatprep.subr.mxu0 0.0
  %5634 = vmatpush1.msra.mxu0 0.0
  %5635 = vmatprep.subr.mxu0 0.0
  %5636 = vmatpush1.msra.mxu0 0.0
  %5637 = vmatprep.subr.mxu0 0.0
  %5638 = vmatpush1.msra.mxu0 0.0
  %5639 = vmatprep.subr.mxu0 0.0
  %5640 = vmatpush1.msra.mxu0 0.0
  %5641 = vmatprep.subr.mxu0 0.0
  %5642 = vmatpush1.msra.mxu0 0.0
  %5643 = vmatprep.subr.mxu0 0.0
  %5644 = vmatpush1.msra.mxu0 0.0
  %5645 = vmatprep.subr.mxu0 0.0
  %5646 = vmatpush1.msra.mxu0 0.0
  %5647 = vmatprep.subr.mxu0 0.0
  %5648 = vmatpush1.msra.mxu0 0.0
  %5649 = vmatprep.subr.mxu0 0.0
  %5650 = vmatpush1.msra.mxu0 0.0
  %5651 = vmatprep.subr.mxu0 0.0
  %5652 = vmatpush1.msra.mxu0 0.0
  %5653 = vmatprep.subr.mxu0 0.0
  %5654 = vmatpush1.msra.mxu0 0.0
  %5655 = vmatprep.subr.mxu0 0.0
  %5656 = vmatpush1.msra.mxu0 0.0
  %5657 = vmatprep.mubr.f32.mxu0 0.0
  %5658 = vmatmul.mubr.f32.gmra.mrb[0].mxu0 %v5410
  %v5659 = vpop.f32.mrb[0].mxu0
  %v5660 = vadd.f32 0.0, %v5659
  %v5661 = vpop.f32.mrb[0].mxu0
  %5662 = vmatprep.mubr.f32.mxu0 0.0
  %5663 = vmatmul.mubr.f32.gmra.mrb[0].mxu0 %v5413
  %v5664 = vpop.f32.mrb[0].mxu0
  %v5665 = vadd.f32 0.0, %v5664
  %v5666 = vpop.f32.mrb[0].mxu0
  %5667 = vmatprep.mubr.f32.mxu0 0.0
  %5668 = vmatmul.mubr.f32.gmra.mrb[0].mxu0 %v5416
  %v5669 = vpop.f32.mrb[0].mxu0
  %v5670 = vadd.f32 0.0, %v5669
  %v5671 = vpop.f32.mrb[0].mxu0
  %5672 = vmatprep.mubr.f32.mxu0 0.0
  %5673 = vmatmul.mubr.f32.gmra.mrb[0].mxu0 %v5419
  %v5674 = vpop.f32.mrb[0].mxu0
  %v5675 = vadd.f32 0.0, %v5674
  %v5676 = vpop.f32.mrb[0].mxu0
  %5677 = vmatprep.mubr.f32.mxu0 0.0
  %5678 = vmatmul.mubr.f32.gmra.mrb[0].mxu0 %v5422
  %v5679 = vpop.f32.mrb[0].mxu0
  %v5680 = vadd.f32 0.0, %v5679
  %v5681 = vpop.f32.mrb[0].mxu0
  %5682 = vmatprep.mubr.f32.mxu0 0.0
  %5683 = vmatmul.mubr.f32.gmra.mrb[0].mxu0 %v5425
  %v5684 = vpop.f32.mrb[0].mxu0
  %v5685 = vadd.f32 0.0, %v5684
  %v5686 = vpop.f32.mrb[0].mxu0
  %5687 = vmatprep.mubr.f32.mxu0 0.0
  %5688 = vmatmul.mubr.f32.gmra.mrb[0].mxu0 %v5428
  %v5689 = vpop.f32.mrb[0].mxu0
  %v5690 = vadd.f32 0.0, %v5689
  %v5691 = vpop.f32.mrb[0].mxu0
  %5692 = vmatprep.mubr.f32.mxu0 0.0
  %5693 = vmatmul.mubr.f32.gmra.mrb[0].mxu0 %v5431
  %v5694 = vpop.f32.mrb[0].mxu0
  %v5695 = vadd.f32 0.0, %v5694
  %v5696 = vpop.f32.mrb[0].mxu0
  %5697 = vmatprep.mubr.f32.mxu0 0.0
  %5698 = vmatmul.mubr.f32.gmra.mrb[0].mxu0 %v5434
  %v5699 = vpop.f32.mrb[0].mxu0
  %v5700 = vadd.f32 0.0, %v5699
  %v5701 = vpop.f32.mrb[0].mxu0
  %5702 = vdwg.mxu0
  %v5706 = vrot.slane %v5670, 2
  %v5707 = vrot.slane %v5675, 2
  %v5708 = vsel %vm5549, %v5706, %v5707
  %v5709 = vrot.slane %v5680, 2
  %v5710 = vsel %vm5549, %v5707, %v5709
  %v5714 = vmax.f32 %v5660, %v5708
  %v5715 = vmax.f32 %v5665, %v5710
  %v5716 = vmax.f32 %v5670, %v5709
  %v5720 = vrot.slane %v5690, 2
  %v5721 = vrot.slane %v5695, 2
  %v5722 = vsel %vm5549, %v5720, %v5721
  %v5723 = vrot.slane %v5700, 2
  %v5724 = vsel %vm5549, %v5721, %v5723
  %v5728 = vmax.f32 %v5680, %v5722
  %v5729 = vmax.f32 %v5685, %v5724
  %v5730 = vmax.f32 %v5690, %v5723
  %v5734 = vrot.slane %v5728, 4
  %v5735 = vrot.slane %v5729, 4
  %v5736 = vsel %vm3632, %v5734, %v5735
  %v5737 = vrot.slane %v5730, 4
  %v5738 = vsel %vm3632, %v5735, %v5737
  %v5742 = vmax.f32 %v5714, %v5736
  %v5743 = vmax.f32 %v5715, %v5738
  %v5744 = vmax.f32 %v5716, %v5737
  %5745 = vst.msk [vmem:[#allocation6 + $0x19] sm:$0xff] %vm5289, %v5742
  %5746 = vst.msk [vmem:[#allocation6 + $0x21] sm:$0xff] %vm5289, %v5743
  %5747 = vst.msk [vmem:[#allocation6 + $0x29] sm:$0x3] %vm5591, %v5744
  %v5748 = vld [vmem:[#allocation6] sm:$0xff]
  %v5749 = vld [vmem:[#allocation6 + $0x8] sm:$0xff]
  %v5750 = vld [vmem:[#allocation6 + $0x10] sm:$0xff]
  %v5751 = vld [vmem:[#allocation6 + $0x18] sm:$0xff]
  %v5752 = vld [vmem:[#allocation6 + $0x20] sm:$0xf]
  %v5753 = vld [vmem:[%s8] sm:$0xff]
  %v5754 = vld [vmem:[%s8 + $0x8] sm:$0xff]
  %v5755 = vld [vmem:[%s8 + $0x10] sm:$0xff]
  %v5756 = vld [vmem:[%s8 + $0x18] sm:$0xff]
  %v5757 = vld [vmem:[%s8 + $0x20] sm:$0xf]
  %5759 = vset.pattern.permute.xlu0 0
  %5760 = vperm.xlu0 %5759, %v5753
  %v5761 = vpop.permute.xlu0 %5760
  %5764 = vset.pattern.permute.xlu0 0
  %5765 = vperm.xlu0 %5764, %v5754
  %v5766 = vpop.permute.xlu0 %5765
  %5769 = vset.pattern.permute.xlu0 0
  %5770 = vperm.xlu0 %5769, %v5755
  %v5771 = vpop.permute.xlu0 %5770
  %5774 = vset.pattern.permute.xlu0 0
  %5775 = vperm.xlu0 %5774, %v5756
  %v5776 = vpop.permute.xlu0 %5775
  %5779 = vset.pattern.permute.xlu0 0
  %5780 = vperm.xlu0 %5779, %v5757
  %v5781 = vpop.permute.xlu0 %5780
  %v5783 = vmul.f32 %v5748, %v5761
  %v5784 = vmul.f32 %v5749, %v5766
  %v5785 = vmul.f32 %v5750, %v5771
  %v5786 = vmul.f32 %v5751, %v5776
  %v5787 = vmul.f32 %v5752, %v5781
  %5788 = vst.msk [vmem:[#allocation7] sm:$0xff] %vm5289, %v5783
  %5789 = vst.msk [vmem:[#allocation7 + $0x18] sm:$0xff] %vm5289, %v5784
  %5790 = vst.msk [vmem:[#allocation7 + $0x30] sm:$0xff] %vm5289, %v5785
  %5791 = vst.msk [vmem:[#allocation7 + $0x48] sm:$0xff] %vm5289, %v5786
  %vm5792 = vcmask 257024
  %5793 = vst.msk [vmem:[#allocation7 + $0x60] sm:$0xf] %vm5792, %v5787
  %v5794 = vld [vmem:[#allocation6 + $0x1] sm:$0xff]
  %v5795 = vld [vmem:[#allocation6 + $0x9] sm:$0xff]
  %v5796 = vld [vmem:[#allocation6 + $0x11] sm:$0xff]
  %v5797 = vld [vmem:[#allocation6 + $0x19] sm:$0xff]
  %v5798 = vld [vmem:[#allocation6 + $0x21] sm:$0xf]
  %v5799 = vld [vmem:[%s8] sm:$0xff]
  %v5800 = vld [vmem:[%s8 + $0x8] sm:$0xff]
  %v5801 = vld [vmem:[%s8 + $0x10] sm:$0xff]
  %v5802 = vld [vmem:[%s8 + $0x18] sm:$0xff]
  %v5803 = vld [vmem:[%s8 + $0x20] sm:$0xf]
  %5805 = vset.pattern.permute.xlu0 1
  %5806 = vperm.xlu0 %5805, %v5799
  %v5807 = vpop.permute.xlu0 %5806
  %5810 = vset.pattern.permute.xlu0 1
  %5811 = vperm.xlu0 %5810, %v5800
  %v5812 = vpop.permute.xlu0 %5811
  %5815 = vset.pattern.permute.xlu0 1
  %5816 = vperm.xlu0 %5815, %v5801
  %v5817 = vpop.permute.xlu0 %5816
  %5820 = vset.pattern.permute.xlu0 1
  %5821 = vperm.xlu0 %5820, %v5802
  %v5822 = vpop.permute.xlu0 %5821
  %5825 = vset.pattern.permute.xlu0 1
  %5826 = vperm.xlu0 %5825, %v5803
  %v5827 = vpop.permute.xlu0 %5826
  %v5829 = vmul.f32 %v5794, %v5807
  %v5830 = vmul.f32 %v5795, %v5812
  %v5831 = vmul.f32 %v5796, %v5817
  %v5832 = vmul.f32 %v5797, %v5822
  %v5833 = vmul.f32 %v5798, %v5827
  %5839 = vrot.lane.b32.xlu0 %v5829, 32
  %v5840 = vpop.permute.xlu0 %5839
  %5841 = vrot.lane.b32.xlu0 %v5830, 32
  %v5842 = vpop.permute.xlu0 %5841
  %5843 = vrot.lane.b32.xlu0 %v5831, 32
  %v5844 = vpop.permute.xlu0 %5843
  %5845 = vrot.lane.b32.xlu0 %v5832, 32
  %v5846 = vpop.permute.xlu0 %5845
  %5847 = vrot.lane.b32.xlu0 %v5833, 32
  %v5848 = vpop.permute.xlu0 %5847
  %vm5854 = vcmask 523520
  %5855 = vst.msk [vmem:[#allocation7] sm:$0xff] %vm5854, %v5840
  %5856 = vst.msk [vmem:[#allocation7 + $0x18] sm:$0xff] %vm5854, %v5842
  %5857 = vst.msk [vmem:[#allocation7 + $0x30] sm:$0xff] %vm5854, %v5844
  %5858 = vst.msk [vmem:[#allocation7 + $0x48] sm:$0xff] %vm5854, %v5846
  %vm5859 = vcmask 519424
  %5860 = vst.msk [vmem:[#allocation7 + $0x60] sm:$0xf] %vm5859, %v5848
  %v5861 = vld [vmem:[#allocation6 + $0x2] sm:$0xff]
  %v5862 = vld [vmem:[#allocation6 + $0xa] sm:$0xff]
  %v5863 = vld [vmem:[#allocation6 + $0x12] sm:$0xff]
  %v5864 = vld [vmem:[#allocation6 + $0x1a] sm:$0xff]
  %v5865 = vld [vmem:[#allocation6 + $0x22] sm:$0xf]
  %v5866 = vld [vmem:[%s8] sm:$0xff]
  %v5867 = vld [vmem:[%s8 + $0x8] sm:$0xff]
  %v5868 = vld [vmem:[%s8 + $0x10] sm:$0xff]
  %v5869 = vld [vmem:[%s8 + $0x18] sm:$0xff]
  %v5870 = vld [vmem:[%s8 + $0x20] sm:$0xf]
  %5872 = vset.pattern.permute.xlu0 2
  %5873 = vperm.xlu0 %5872, %v5866
  %v5874 = vpop.permute.xlu0 %5873
  %5877 = vset.pattern.permute.xlu0 2
  %5878 = vperm.xlu0 %5877, %v5867
  %v5879 = vpop.permute.xlu0 %5878
  %5882 = vset.pattern.permute.xlu0 2
  %5883 = vperm.xlu0 %5882, %v5868
  %v5884 = vpop.permute.xlu0 %5883
  %5887 = vset.pattern.permute.xlu0 2
  %5888 = vperm.xlu0 %5887, %v5869
  %v5889 = vpop.permute.xlu0 %5888
  %5892 = vset.pattern.permute.xlu0 2
  %5893 = vperm.xlu0 %5892, %v5870
  %v5894 = vpop.permute.xlu0 %5893
  %v5896 = vmul.f32 %v5861, %v5874
  %v5897 = vmul.f32 %v5862, %v5879
  %v5898 = vmul.f32 %v5863, %v5884
  %v5899 = vmul.f32 %v5864, %v5889
  %v5900 = vmul.f32 %v5865, %v5894
  %5906 = vrot.lane.b32.xlu0 %v5896, 64
  %v5907 = vpop.permute.xlu0 %5906
  %5908 = vrot.lane.b32.xlu0 %v5897, 64
  %v5909 = vpop.permute.xlu0 %5908
  %5910 = vrot.lane.b32.xlu0 %v5898, 64
  %v5911 = vpop.permute.xlu0 %5910
  %5912 = vrot.lane.b32.xlu0 %v5899, 64
  %v5913 = vpop.permute.xlu0 %5912
  %5914 = vrot.lane.b32.xlu0 %v5900, 64
  %v5915 = vpop.permute.xlu0 %5914
  %vm5921 = vcmask 785920
  %5922 = vst.msk [vmem:[#allocation7] sm:$0xff] %vm5921, %v5907
  %5923 = vst.msk [vmem:[#allocation7 + $0x18] sm:$0xff] %vm5921, %v5909
  %5924 = vst.msk [vmem:[#allocation7 + $0x30] sm:$0xff] %vm5921, %v5911
  %5925 = vst.msk [vmem:[#allocation7 + $0x48] sm:$0xff] %vm5921, %v5913
  %vm5926 = vcmask 781824
  %5927 = vst.msk [vmem:[#allocation7 + $0x60] sm:$0xf] %vm5926, %v5915
  %v5928 = vld [vmem:[#allocation6 + $0x6] sm:$0xff]
  %v5929 = vld [vmem:[#allocation6 + $0xe] sm:$0xff]
  %v5930 = vld [vmem:[#allocation6 + $0x16] sm:$0xff]
  %v5931 = vld [vmem:[#allocation6 + $0x1e] sm:$0xff]
  %v5932 = vld [vmem:[#allocation6 + $0x26] sm:$0xf]
  %v5933 = vld [vmem:[%s8] sm:$0xff]
  %v5934 = vld [vmem:[%s8 + $0x8] sm:$0xff]
  %v5935 = vld [vmem:[%s8 + $0x10] sm:$0xff]
  %v5936 = vld [vmem:[%s8 + $0x18] sm:$0xff]
  %v5937 = vld [vmem:[%s8 + $0x20] sm:$0xf]
  %5939 = vset.pattern.permute.xlu0 3
  %5940 = vperm.xlu0 %5939, %v5933
  %v5941 = vpop.permute.xlu0 %5940
  %5944 = vset.pattern.permute.xlu0 3
  %5945 = vperm.xlu0 %5944, %v5934
  %v5946 = vpop.permute.xlu0 %5945
  %5949 = vset.pattern.permute.xlu0 3
  %5950 = vperm.xlu0 %5949, %v5935
  %v5951 = vpop.permute.xlu0 %5950
  %5954 = vset.pattern.permute.xlu0 3
  %5955 = vperm.xlu0 %5954, %v5936
  %v5956 = vpop.permute.xlu0 %5955
  %5959 = vset.pattern.permute.xlu0 3
  %5960 = vperm.xlu0 %5959, %v5937
  %v5961 = vpop.permute.xlu0 %5960
  %v5963 = vmul.f32 %v5928, %v5941
  %v5964 = vmul.f32 %v5929, %v5946
  %v5965 = vmul.f32 %v5930, %v5951
  %v5966 = vmul.f32 %v5931, %v5956
  %v5967 = vmul.f32 %v5932, %v5961
  %5973 = vrot.lane.b32.xlu0 %v5963, 96
  %v5974 = vpop.permute.xlu0 %5973
  %5975 = vrot.lane.b32.xlu0 %v5964, 96
  %v5976 = vpop.permute.xlu0 %5975
  %5977 = vrot.lane.b32.xlu0 %v5965, 96
  %v5978 = vpop.permute.xlu0 %5977
  %5979 = vrot.lane.b32.xlu0 %v5966, 96
  %v5980 = vpop.permute.xlu0 %5979
  %5981 = vrot.lane.b32.xlu0 %v5967, 96
  %v5982 = vpop.permute.xlu0 %5981
  %vm5988 = vcmask 1048320
  %5989 = vst.msk [vmem:[#allocation7] sm:$0xff] %vm5988, %v5974
  %5990 = vst.msk [vmem:[#allocation7 + $0x18] sm:$0xff] %vm5988, %v5976
  %5991 = vst.msk [vmem:[#allocation7 + $0x30] sm:$0xff] %vm5988, %v5978
  %5992 = vst.msk [vmem:[#allocation7 + $0x48] sm:$0xff] %vm5988, %v5980
  %vm5993 = vcmask 1044224
  %5994 = vst.msk [vmem:[#allocation7 + $0x60] sm:$0xf] %vm5993, %v5982
  %v5995 = vld [vmem:[#allocation6 + $0x7] sm:$0xff]
  %v5996 = vld [vmem:[#allocation6 + $0xf] sm:$0xff]
  %v5997 = vld [vmem:[#allocation6 + $0x17] sm:$0xff]
  %v5998 = vld [vmem:[#allocation6 + $0x1f] sm:$0xff]
  %v5999 = vld [vmem:[#allocation6 + $0x27] sm:$0xf]
  %6000 = vst.msk [vmem:[#allocation7 + $0x8] sm:$0xff] %vm5289, %v5995
  %6001 = vst.msk [vmem:[#allocation7 + $0x20] sm:$0xff] %vm5289, %v5996
  %6002 = vst.msk [vmem:[#allocation7 + $0x38] sm:$0xff] %vm5289, %v5997
  %6003 = vst.msk [vmem:[#allocation7 + $0x50] sm:$0xff] %vm5289, %v5998
  %6004 = vst.msk [vmem:[#allocation7 + $0x68] sm:$0xf] %vm5792, %v5999
  %v6005 = vld [vmem:[#allocation6 + $0x8] sm:$0xff]
  %v6006 = vld [vmem:[#allocation6 + $0x10] sm:$0xff]
  %v6007 = vld [vmem:[#allocation6 + $0x18] sm:$0xff]
  %v6008 = vld [vmem:[#allocation6 + $0x20] sm:$0xff]
  %v6009 = vld [vmem:[#allocation6 + $0x28] sm:$0xf]
  %v6010 = vld [vmem:[%s8] sm:$0xff]
  %v6011 = vld [vmem:[%s8 + $0x8] sm:$0xff]
  %v6012 = vld [vmem:[%s8 + $0x10] sm:$0xff]
  %v6013 = vld [vmem:[%s8 + $0x18] sm:$0xff]
  %v6014 = vld [vmem:[%s8 + $0x20] sm:$0xf]
  %6016 = vset.pattern.permute.xlu0 5
  %6017 = vperm.xlu0 %6016, %v6010
  %v6018 = vpop.permute.xlu0 %6017
  %6021 = vset.pattern.permute.xlu0 5
  %6022 = vperm.xlu0 %6021, %v6011
  %v6023 = vpop.permute.xlu0 %6022
  %6026 = vset.pattern.permute.xlu0 5
  %6027 = vperm.xlu0 %6026, %v6012
  %v6028 = vpop.permute.xlu0 %6027
  %6031 = vset.pattern.permute.xlu0 5
  %6032 = vperm.xlu0 %6031, %v6013
  %v6033 = vpop.permute.xlu0 %6032
  %6036 = vset.pattern.permute.xlu0 5
  %6037 = vperm.xlu0 %6036, %v6014
  %v6038 = vpop.permute.xlu0 %6037
  %v6040 = vmul.f32 %v6005, %v6018
  %v6041 = vmul.f32 %v6006, %v6023
  %v6042 = vmul.f32 %v6007, %v6028
  %v6043 = vmul.f32 %v6008, %v6033
  %v6044 = vmul.f32 %v6009, %v6038
  %6050 = vrot.lane.b32.xlu0 %v6040, 32
  %v6051 = vpop.permute.xlu0 %6050
  %6052 = vrot.lane.b32.xlu0 %v6041, 32
  %v6053 = vpop.permute.xlu0 %6052
  %6054 = vrot.lane.b32.xlu0 %v6042, 32
  %v6055 = vpop.permute.xlu0 %6054
  %6056 = vrot.lane.b32.xlu0 %v6043, 32
  %v6057 = vpop.permute.xlu0 %6056
  %6058 = vrot.lane.b32.xlu0 %v6044, 32
  %v6059 = vpop.permute.xlu0 %6058
  %6065 = vst.msk [vmem:[#allocation7 + $0x8] sm:$0xff] %vm5854, %v6051
  %6066 = vst.msk [vmem:[#allocation7 + $0x20] sm:$0xff] %vm5854, %v6053
  %6067 = vst.msk [vmem:[#allocation7 + $0x38] sm:$0xff] %vm5854, %v6055
  %6068 = vst.msk [vmem:[#allocation7 + $0x50] sm:$0xff] %vm5854, %v6057
  %6069 = vst.msk [vmem:[#allocation7 + $0x68] sm:$0xf] %vm5859, %v6059
  %v6070 = vld [vmem:[#allocation6 + $0xc] sm:$0xff]
  %v6071 = vld [vmem:[#allocation6 + $0x14] sm:$0xff]
  %v6072 = vld [vmem:[#allocation6 + $0x1c] sm:$0xff]
  %v6073 = vld [vmem:[#allocation6 + $0x24] sm:$0xff]
  %v6074 = vld [vmem:[#allocation6 + $0x2c] sm:$0xf]
  %v6075 = vld [vmem:[%s8] sm:$0xff]
  %v6076 = vld [vmem:[%s8 + $0x8] sm:$0xff]
  %v6077 = vld [vmem:[%s8 + $0x10] sm:$0xff]
  %v6078 = vld [vmem:[%s8 + $0x18] sm:$0xff]
  %v6079 = vld [vmem:[%s8 + $0x20] sm:$0xf]
  %6081 = vset.pattern.permute.xlu0 6
  %6082 = vperm.xlu0 %6081, %v6075
  %v6083 = vpop.permute.xlu0 %6082
  %6086 = vset.pattern.permute.xlu0 6
  %6087 = vperm.xlu0 %6086, %v6076
  %v6088 = vpop.permute.xlu0 %6087
  %6091 = vset.pattern.permute.xlu0 6
  %6092 = vperm.xlu0 %6091, %v6077
  %v6093 = vpop.permute.xlu0 %6092
  %6096 = vset.pattern.permute.xlu0 6
  %6097 = vperm.xlu0 %6096, %v6078
  %v6098 = vpop.permute.xlu0 %6097
  %6101 = vset.pattern.permute.xlu0 6
  %6102 = vperm.xlu0 %6101, %v6079
  %v6103 = vpop.permute.xlu0 %6102
  %v6105 = vmul.f32 %v6070, %v6083
  %v6106 = vmul.f32 %v6071, %v6088
  %v6107 = vmul.f32 %v6072, %v6093
  %v6108 = vmul.f32 %v6073, %v6098
  %v6109 = vmul.f32 %v6074, %v6103
  %6115 = vrot.lane.b32.xlu0 %v6105, 64
  %v6116 = vpop.permute.xlu0 %6115
  %6117 = vrot.lane.b32.xlu0 %v6106, 64
  %v6118 = vpop.permute.xlu0 %6117
  %6119 = vrot.lane.b32.xlu0 %v6107, 64
  %v6120 = vpop.permute.xlu0 %6119
  %6121 = vrot.lane.b32.xlu0 %v6108, 64
  %v6122 = vpop.permute.xlu0 %6121
  %6123 = vrot.lane.b32.xlu0 %v6109, 64
  %v6124 = vpop.permute.xlu0 %6123
  %6130 = vst.msk [vmem:[#allocation7 + $0x8] sm:$0xff] %vm5921, %v6116
  %6131 = vst.msk [vmem:[#allocation7 + $0x20] sm:$0xff] %vm5921, %v6118
  %6132 = vst.msk [vmem:[#allocation7 + $0x38] sm:$0xff] %vm5921, %v6120
  %6133 = vst.msk [vmem:[#allocation7 + $0x50] sm:$0xff] %vm5921, %v6122
  %6134 = vst.msk [vmem:[#allocation7 + $0x68] sm:$0xf] %vm5926, %v6124
  %v6135 = vld [vmem:[#allocation6 + $0xd] sm:$0xff]
  %v6136 = vld [vmem:[#allocation6 + $0x15] sm:$0xff]
  %v6137 = vld [vmem:[#allocation6 + $0x1d] sm:$0xff]
  %v6138 = vld [vmem:[#allocation6 + $0x25] sm:$0xff]
  %v6139 = vld [vmem:[#allocation6 + $0x2d] sm:$0xf]
  %v6140 = vld [vmem:[%s8] sm:$0xff]
  %v6141 = vld [vmem:[%s8 + $0x8] sm:$0xff]
  %v6142 = vld [vmem:[%s8 + $0x10] sm:$0xff]
  %v6143 = vld [vmem:[%s8 + $0x18] sm:$0xff]
  %v6144 = vld [vmem:[%s8 + $0x20] sm:$0xf]
  %6146 = vset.pattern.permute.xlu0 7
  %6147 = vperm.xlu0 %6146, %v6140
  %v6148 = vpop.permute.xlu0 %6147
  %6151 = vset.pattern.permute.xlu0 7
  %6152 = vperm.xlu0 %6151, %v6141
  %v6153 = vpop.permute.xlu0 %6152
  %6156 = vset.pattern.permute.xlu0 7
  %6157 = vperm.xlu0 %6156, %v6142
  %v6158 = vpop.permute.xlu0 %6157
  %6161 = vset.pattern.permute.xlu0 7
  %6162 = vperm.xlu0 %6161, %v6143
  %v6163 = vpop.permute.xlu0 %6162
  %6166 = vset.pattern.permute.xlu0 7
  %6167 = vperm.xlu0 %6166, %v6144
  %v6168 = vpop.permute.xlu0 %6167
  %v6170 = vmul.f32 %v6135, %v6148
  %v6171 = vmul.f32 %v6136, %v6153
  %v6172 = vmul.f32 %v6137, %v6158
  %v6173 = vmul.f32 %v6138, %v6163
  %v6174 = vmul.f32 %v6139, %v6168
  %6180 = vrot.lane.b32.xlu0 %v6170, 96
  %v6181 = vpop.permute.xlu0 %6180
  %6182 = vrot.lane.b32.xlu0 %v6171, 96
  %v6183 = vpop.permute.xlu0 %6182
  %6184 = vrot.lane.b32.xlu0 %v6172, 96
  %v6185 = vpop.permute.xlu0 %6184
  %6186 = vrot.lane.b32.xlu0 %v6173, 96
  %v6187 = vpop.permute.xlu0 %6186
  %6188 = vrot.lane.b32.xlu0 %v6174, 96
  %v6189 = vpop.permute.xlu0 %6188
  %6195 = vst.msk [vmem:[#allocation7 + $0x8] sm:$0xff] %vm5988, %v6181
  %6196 = vst.msk [vmem:[#allocation7 + $0x20] sm:$0xff] %vm5988, %v6183
  %6197 = vst.msk [vmem:[#allocation7 + $0x38] sm:$0xff] %vm5988, %v6185
  %6198 = vst.msk [vmem:[#allocation7 + $0x50] sm:$0xff] %vm5988, %v6187
  %6199 = vst.msk [vmem:[#allocation7 + $0x68] sm:$0xf] %vm5993, %v6189
  %v6200 = vld [vmem:[#allocation6 + $0xe] sm:$0xff]
  %v6201 = vld [vmem:[#allocation6 + $0x16] sm:$0xff]
  %v6202 = vld [vmem:[#allocation6 + $0x1e] sm:$0xff]
  %v6203 = vld [vmem:[#allocation6 + $0x26] sm:$0xff]
  %v6204 = vld [vmem:[#allocation6 + $0x2e] sm:$0xf]
  %v6205 = vld [vmem:[%s8] sm:$0xff]
  %v6206 = vld [vmem:[%s8 + $0x8] sm:$0xff]
  %v6207 = vld [vmem:[%s8 + $0x10] sm:$0xff]
  %v6208 = vld [vmem:[%s8 + $0x18] sm:$0xff]
  %v6209 = vld [vmem:[%s8 + $0x20] sm:$0xf]
  %6211 = vset.pattern.permute.xlu0 8
  %6212 = vperm.xlu0 %6211, %v6205
  %v6213 = vpop.permute.xlu0 %6212
  %6216 = vset.pattern.permute.xlu0 8
  %6217 = vperm.xlu0 %6216, %v6206
  %v6218 = vpop.permute.xlu0 %6217
  %6221 = vset.pattern.permute.xlu0 8
  %6222 = vperm.xlu0 %6221, %v6207
  %v6223 = vpop.permute.xlu0 %6222
  %6226 = vset.pattern.permute.xlu0 8
  %6227 = vperm.xlu0 %6226, %v6208
  %v6228 = vpop.permute.xlu0 %6227
  %6231 = vset.pattern.permute.xlu0 8
  %6232 = vperm.xlu0 %6231, %v6209
  %v6233 = vpop.permute.xlu0 %6232
  %v6235 = vmul.f32 %v6200, %v6213
  %v6236 = vmul.f32 %v6201, %v6218
  %v6237 = vmul.f32 %v6202, %v6223
  %v6238 = vmul.f32 %v6203, %v6228
  %v6239 = vmul.f32 %v6204, %v6233
  %6240 = vst.msk [vmem:[#allocation7 + $0x10] sm:$0xff] %vm5289, %v6235
  %6241 = vst.msk [vmem:[#allocation7 + $0x28] sm:$0xff] %vm5289, %v6236
  %6242 = vst.msk [vmem:[#allocation7 + $0x40] sm:$0xff] %vm5289, %v6237
  %6243 = vst.msk [vmem:[#allocation7 + $0x58] sm:$0xff] %vm5289, %v6238
  %6244 = vst.msk [vmem:[#allocation7 + $0x70] sm:$0xf] %vm5792, %v6239
  %v6245 = vld [vmem:[#allocation7] sm:$0xff]
  %v6246 = vld [vmem:[#allocation7 + $0x8] sm:$0xff]
  %v6247 = vld [vmem:[#allocation7 + $0x10] sm:$0xff]
  %v6248 = vld [vmem:[#allocation7 + $0x18] sm:$0xff]
  %v6249 = vld [vmem:[#allocation7 + $0x20] sm:$0xff]
  %v6250 = vld [vmem:[#allocation7 + $0x28] sm:$0xff]
  %v6251 = vld [vmem:[#allocation7 + $0x30] sm:$0xff]
  %v6252 = vld [vmem:[#allocation7 + $0x38] sm:$0xff]
  %v6253 = vld [vmem:[#allocation7 + $0x40] sm:$0xff]
  %v6254 = vld [vmem:[#allocation7 + $0x48] sm:$0xff]
  %v6255 = vld [vmem:[#allocation7 + $0x50] sm:$0xff]
  %v6256 = vld [vmem:[#allocation7 + $0x58] sm:$0xff]
  %v6257 = vld [vmem:[#allocation7 + $0x60] sm:$0xf]
  %v6258 = vld [vmem:[#allocation7 + $0x68] sm:$0xf]
  %v6259 = vld [vmem:[#allocation7 + $0x70] sm:$0xf]
  %v6260 = vld [vmem:[%s7] sm:$0xf]
  %v6261 = vld [vmem:[%s7 + $0x4] sm:$0xf]
  %v6262 = vld [vmem:[%s7 + $0x8] sm:$0xf]
  %v6263 = vld [vmem:[%s7 + $0xc] sm:$0xf]
  %v6264 = vld [vmem:[%s7 + $0x10] sm:$0xf]
  %v6265 = vld [vmem:[%s7 + $0x14] sm:$0xf]
  %v6266 = vld [vmem:[%s7 + $0x18] sm:$0xf]
  %v6267 = vld [vmem:[%s7 + $0x1c] sm:$0xf]
  %v6268 = vld [vmem:[%s7 + $0x20] sm:$0xf]
  %v6269 = vld [vmem:[%s7 + $0x24] sm:$0xf]
  %v6270 = vld [vmem:[%s7 + $0x28] sm:$0xf]
  %v6271 = vld [vmem:[%s7 + $0x2c] sm:$0xf]
  %v6272 = vld [vmem:[%s7 + $0x30] sm:$0xf]
  %v6273 = vld [vmem:[%s7 + $0x34] sm:$0xf]
  %v6274 = vld [vmem:[%s7 + $0x38] sm:$0xf]
  %v6275 = vld [vmem:[%s7 + $0x3c] sm:$0xf]
  %v6276 = vld [vmem:[%s7 + $0x40] sm:$0xf]
  %v6277 = vld [vmem:[%s7 + $0x44] sm:$0xf]
  %v6278 = vld [vmem:[%s7 + $0x48] sm:$0xf]
  %v6279 = vld [vmem:[%s7 + $0x4c] sm:$0xf]
  %v6280 = vld [vmem:[%s7 + $0x50] sm:$0xf]
  %v6281 = vld [vmem:[%s7 + $0x54] sm:$0xf]
  %v6282 = vld [vmem:[%s7 + $0x58] sm:$0xf]
  %v6283 = vld [vmem:[%s7 + $0x5c] sm:$0xf]
  %v6284 = vld [vmem:[%s7 + $0x60] sm:$0xf]
  %v6285 = vld [vmem:[%s7 + $0x64] sm:$0xf]
  %v6286 = vld [vmem:[%s7 + $0x68] sm:$0xf]
  %v6287 = vld [vmem:[%s7 + $0x6c] sm:$0xf]
  %v6288 = vld [vmem:[%s7 + $0x70] sm:$0xf]
  %v6289 = vld [vmem:[%s7 + $0x74] sm:$0xf]
  %v6290 = vld [vmem:[%s7 + $0x78] sm:$0xf]
  %v6291 = vld [vmem:[%s7 + $0x7c] sm:$0xf]
  %v6292 = vld [vmem:[%s7 + $0x80] sm:$0xf]
  %v6293 = vld [vmem:[%s7 + $0x84] sm:$0xf]
  %v6294 = vld [vmem:[%s7 + $0x88] sm:$0xf]
  %v6295 = vld [vmem:[%s7 + $0x8c] sm:$0xf]
  %v6296 = vunpack.c.l.bf16 %v6260
  %v6297 = vunpack.c.l.bf16 %v6261
  %v6298 = vunpack.c.l.bf16 %v6262
  %v6299 = vunpack.c.l.bf16 %v6263
  %v6300 = vunpack.c.l.bf16 %v6264
  %v6301 = vunpack.c.l.bf16 %v6265
  %v6302 = vunpack.c.l.bf16 %v6266
  %v6303 = vunpack.c.l.bf16 %v6267
  %v6304 = vunpack.c.l.bf16 %v6268
  %v6305 = vunpack.c.l.bf16 %v6269
  %v6306 = vunpack.c.l.bf16 %v6270
  %v6307 = vunpack.c.l.bf16 %v6271
  %v6308 = vunpack.c.l.bf16 %v6272
  %v6309 = vunpack.c.l.bf16 %v6273
  %v6310 = vunpack.c.l.bf16 %v6274
  %v6311 = vunpack.c.l.bf16 %v6275
  %v6312 = vunpack.c.l.bf16 %v6276
  %v6313 = vunpack.c.l.bf16 %v6277
  %v6314 = vunpack.c.l.bf16 %v6278
  %v6315 = vunpack.c.l.bf16 %v6279
  %v6316 = vunpack.c.l.bf16 %v6280
  %v6317 = vunpack.c.l.bf16 %v6281
  %v6318 = vunpack.c.l.bf16 %v6282
  %v6319 = vunpack.c.l.bf16 %v6283
  %v6320 = vunpack.c.l.bf16 %v6284
  %v6321 = vunpack.c.l.bf16 %v6285
  %v6322 = vunpack.c.l.bf16 %v6286
  %v6323 = vunpack.c.l.bf16 %v6287
  %v6324 = vunpack.c.l.bf16 %v6288
  %v6325 = vunpack.c.l.bf16 %v6289
  %v6326 = vunpack.c.l.bf16 %v6290
  %v6327 = vunpack.c.l.bf16 %v6291
  %v6328 = vunpack.c.l.bf16 %v6292
  %v6329 = vunpack.c.l.bf16 %v6293
  %v6330 = vunpack.c.l.bf16 %v6294
  %v6331 = vunpack.c.l.bf16 %v6295
  %v6333 = vsel %vm5289, %v6247, 0
  %v6336 = vsel %vm5289, %v6250, 0
  %v6339 = vsel %vm5289, %v6253, 0
  %v6342 = vsel %vm5289, %v6256, 0
  %v6345 = vsel %vm5289, %v6259, 0
  %6347 = vmatprep.subr.mxu0 0.0
  %6348 = vmatpush1.msra.mxu0 %v6296
  %6349 = vmatprep.subr.mxu0 0.0
  %6350 = vmatpush1.msra.mxu0 %v6297
  %6351 = vmatprep.subr.mxu0 0.0
  %6352 = vmatpush1.msra.mxu0 %v6298
  %6353 = vmatprep.subr.mxu0 0.0
  %6354 = vmatpush1.msra.mxu0 %v6299
  %6355 = vmatprep.subr.mxu0 0.0
  %6356 = vmatpush1.msra.mxu0 %v6300
  %6357 = vmatprep.subr.mxu0 0.0
  %6358 = vmatpush1.msra.mxu0 %v6301
  %6359 = vmatprep.subr.mxu0 0.0
  %6360 = vmatpush1.msra.mxu0 %v6302
  %6361 = vmatprep.subr.mxu0 0.0
  %6362 = vmatpush1.msra.mxu0 %v6303
  %6363 = vmatprep.subr.mxu0 0.0
  %6364 = vmatpush1.msra.mxu0 %v6304
  %6365 = vmatprep.subr.mxu0 0.0
  %6366 = vmatpush1.msra.mxu0 %v6305
  %6367 = vmatprep.subr.mxu0 0.0
  %6368 = vmatpush1.msra.mxu0 %v6306
  %6369 = vmatprep.subr.mxu0 0.0
  %6370 = vmatpush1.msra.mxu0 %v6307
  %6371 = vmatprep.subr.mxu0 0.0
  %6372 = vmatpush1.msra.mxu0 %v6308
  %6373 = vmatprep.subr.mxu0 0.0
  %6374 = vmatpush1.msra.mxu0 %v6309
  %6375 = vmatprep.subr.mxu0 0.0
  %6376 = vmatpush1.msra.mxu0 %v6310
  %6377 = vmatprep.subr.mxu0 0.0
  %6378 = vmatpush1.msra.mxu0 %v6311
  %6379 = vmatprep.subr.mxu0 0.0
  %6380 = vmatpush1.msra.mxu0 %v6312
  %6381 = vmatprep.subr.mxu0 0.0
  %6382 = vmatpush1.msra.mxu0 %v6313
  %6383 = vmatprep.subr.mxu0 0.0
  %6384 = vmatpush1.msra.mxu0 %v6314
  %6385 = vmatprep.subr.mxu0 0.0
  %6386 = vmatpush1.msra.mxu0 %v6315
  %6387 = vmatprep.subr.mxu0 0.0
  %6388 = vmatpush1.msra.mxu0 %v6316
  %6389 = vmatprep.subr.mxu0 0.0
  %6390 = vmatpush1.msra.mxu0 %v6317
  %6391 = vmatprep.subr.mxu0 0.0
  %6392 = vmatpush1.msra.mxu0 %v6318
  %6393 = vmatprep.subr.mxu0 0.0
  %6394 = vmatpush1.msra.mxu0 %v6319
  %6395 = vmatprep.subr.mxu0 0.0
  %6396 = vmatpush1.msra.mxu0 %v6320
  %6397 = vmatprep.subr.mxu0 0.0
  %6398 = vmatpush1.msra.mxu0 %v6321
  %6399 = vmatprep.subr.mxu0 0.0
  %6400 = vmatpush1.msra.mxu0 %v6322
  %6401 = vmatprep.subr.mxu0 0.0
  %6402 = vmatpush1.msra.mxu0 %v6323
  %6403 = vmatprep.subr.mxu0 0.0
  %6404 = vmatpush1.msra.mxu0 %v6324
  %6405 = vmatprep.subr.mxu0 0.0
  %6406 = vmatpush1.msra.mxu0 %v6325
  %6407 = vmatprep.subr.mxu0 0.0
  %6408 = vmatpush1.msra.mxu0 %v6326
  %6409 = vmatprep.subr.mxu0 0.0
  %6410 = vmatpush1.msra.mxu0 %v6327
  %6411 = vmatprep.mubr.f32.mxu0 %v6246
  %6412 = vmatmul.mubr.f32.gmra.mrb[0].mxu0 %v6245
  %v6413 = vpop.f32.mrb[0].mxu0
  %v6414 = vadd.f32 0.0, %v6413
  %v6415 = vpop.f32.mrb[0].mxu0
  %6416 = vmatprep.mubr.f32.mxu0 %v6249
  %6417 = vmatmul.mubr.f32.gmra.mrb[0].mxu0 %v6248
  %v6418 = vpop.f32.mrb[0].mxu0
  %v6419 = vadd.f32 0.0, %v6418
  %v6420 = vpop.f32.mrb[0].mxu0
  %6421 = vmatprep.mubr.f32.mxu0 %v6252
  %6422 = vmatmul.mubr.f32.gmra.mrb[0].mxu0 %v6251
  %v6423 = vpop.f32.mrb[0].mxu0
  %v6424 = vadd.f32 0.0, %v6423
  %v6425 = vpop.f32.mrb[0].mxu0
  %6426 = vmatprep.mubr.f32.mxu0 %v6255
  %6427 = vmatmul.mubr.f32.gmra.mrb[0].mxu0 %v6254
  %v6428 = vpop.f32.mrb[0].mxu0
  %v6429 = vadd.f32 0.0, %v6428
  %v6430 = vpop.f32.mrb[0].mxu0
  %6431 = vmatprep.mubr.f32.mxu0 %v6258
  %6432 = vmatmul.mubr.f32.gmra.mrb[0].mxu0 %v6257
  %v6433 = vpop.f32.mrb[0].mxu0
  %v6434 = vadd.f32 0.0, %v6433
  %v6435 = vpop.f32.mrb[0].mxu0
  %6436 = vdwg.mxu0
  %6437 = vmatprep.subr.mxu0 0.0
  %6438 = vmatpush1.msra.mxu0 %v6328
  %6439 = vmatprep.subr.mxu0 0.0
  %6440 = vmatpush1.msra.mxu0 %v6329
  %6441 = vmatprep.subr.mxu0 0.0
  %6442 = vmatpush1.msra.mxu0 %v6330
  %6443 = vmatprep.subr.mxu0 0.0
  %6444 = vmatpush1.msra.mxu0 %v6331
  %6445 = vmatprep.subr.mxu0 0.0
  %6446 = vmatpush1.msra.mxu0 0.0
  %6447 = vmatprep.subr.mxu0 0.0
  %6448 = vmatpush1.msra.mxu0 0.0
  %6449 = vmatprep.subr.mxu0 0.0
  %6450 = vmatpush1.msra.mxu0 0.0
  %6451 = vmatprep.subr.mxu0 0.0
  %6452 = vmatpush1.msra.mxu0 0.0
  %6453 = vmatprep.subr.mxu0 0.0
  %6454 = vmatpush1.msra.mxu0 0.0
  %6455 = vmatprep.subr.mxu0 0.0
  %6456 = vmatpush1.msra.mxu0 0.0
  %6457 = vmatprep.subr.mxu0 0.0
  %6458 = vmatpush1.msra.mxu0 0.0
  %6459 = vmatprep.subr.mxu0 0.0
  %6460 = vmatpush1.msra.mxu0 0.0
  %6461 = vmatprep.subr.mxu0 0.0
  %6462 = vmatpush1.msra.mxu0 0.0
  %6463 = vmatprep.subr.mxu0 0.0
  %6464 = vmatpush1.msra.mxu0 0.0
  %6465 = vmatprep.subr.mxu0 0.0
  %6466 = vmatpush1.msra.mxu0 0.0
  %6467 = vmatprep.subr.mxu0 0.0
  %6468 = vmatpush1.msra.mxu0 0.0
  %6469 = vmatprep.subr.mxu0 0.0
  %6470 = vmatpush1.msra.mxu0 0.0
  %6471 = vmatprep.subr.mxu0 0.0
  %6472 = vmatpush1.msra.mxu0 0.0
  %6473 = vmatprep.subr.mxu0 0.0
  %6474 = vmatpush1.msra.mxu0 0.0
  %6475 = vmatprep.subr.mxu0 0.0
  %6476 = vmatpush1.msra.mxu0 0.0
  %6477 = vmatprep.subr.mxu0 0.0
  %6478 = vmatpush1.msra.mxu0 0.0
  %6479 = vmatprep.subr.mxu0 0.0
  %6480 = vmatpush1.msra.mxu0 0.0
  %6481 = vmatprep.subr.mxu0 0.0
  %6482 = vmatpush1.msra.mxu0 0.0
  %6483 = vmatprep.subr.mxu0 0.0
  %6484 = vmatpush1.msra.mxu0 0.0
  %6485 = vmatprep.subr.mxu0 0.0
  %6486 = vmatpush1.msra.mxu0 0.0
  %6487 = vmatprep.subr.mxu0 0.0
  %6488 = vmatpush1.msra.mxu0 0.0
  %6489 = vmatprep.subr.mxu0 0.0
  %6490 = vmatpush1.msra.mxu0 0.0
  %6491 = vmatprep.subr.mxu0 0.0
  %6492 = vmatpush1.msra.mxu0 0.0
  %6493 = vmatprep.subr.mxu0 0.0
  %6494 = vmatpush1.msra.mxu0 0.0
  %6495 = vmatprep.subr.mxu0 0.0
  %6496 = vmatpush1.msra.mxu0 0.0
  %6497 = vmatprep.subr.mxu0 0.0
  %6498 = vmatpush1.msra.mxu0 0.0
  %6499 = vmatprep.subr.mxu0 0.0
  %6500 = vmatpush1.msra.mxu0 0.0
  %6501 = vmatprep.mubr.f32.mxu0 0.0
  %6502 = vmatmul.mubr.f32.gmra.mrb[0].mxu0 %v6333
  %v6503 = vpop.f32.mrb[0].mxu0
  %v6504 = vadd.f32 %v6414, %v6503
  %v6505 = vpop.f32.mrb[0].mxu0
  %6506 = vmatprep.mubr.f32.mxu0 0.0
  %6507 = vmatmul.mubr.f32.gmra.mrb[0].mxu0 %v6336
  %v6508 = vpop.f32.mrb[0].mxu0
  %v6509 = vadd.f32 %v6419, %v6508
  %v6510 = vpop.f32.mrb[0].mxu0
  %6511 = vmatprep.mubr.f32.mxu0 0.0
  %6512 = vmatmul.mubr.f32.gmra.mrb[0].mxu0 %v6339
  %v6513 = vpop.f32.mrb[0].mxu0
  %v6514 = vadd.f32 %v6424, %v6513
  %v6515 = vpop.f32.mrb[0].mxu0
  %6516 = vmatprep.mubr.f32.mxu0 0.0
  %6517 = vmatmul.mubr.f32.gmra.mrb[0].mxu0 %v6342
  %v6518 = vpop.f32.mrb[0].mxu0
  %v6519 = vadd.f32 %v6429, %v6518
  %v6520 = vpop.f32.mrb[0].mxu0
  %6521 = vmatprep.mubr.f32.mxu0 0.0
  %6522 = vmatmul.mubr.f32.gmra.mrb[0].mxu0 %v6345
  %v6523 = vpop.f32.mrb[0].mxu0
  %v6524 = vadd.f32 %v6434, %v6523
  %v6525 = vpop.f32.mrb[0].mxu0
  %6526 = vdwg.mxu0
  %vm6527 = vcmask 523264
  %v6528 = vsel %vm6527, %v6504, 0.0
  %v6529 = vsel %vm6527, %v6509, 0.0
  %v6530 = vadd.f32 %v6528, %v6529
  %v6531 = vsel %vm6527, %v6514, 0.0
  %v6532 = vadd.f32 %v6530, %v6531
  %v6533 = vsel %vm6527, %v6519, 0.0
  %v6534 = vadd.f32 %v6532, %v6533
  %vm6535 = vcmask 519168
  %v6536 = vsel %vm6535, %v6524, 0.0
  %v6537 = vadd.f32 %v6534, %v6536
  %v6538 = vrot.slane %v6537, 4
  %v6539 = vadd.f32 %v6537, %v6538
  %v6540 = vrot.slane %v6539, 2
  %v6541 = vadd.f32 %v6539, %v6540
  %v6542 = vrot.slane %v6541, 1
  %v6543 = vadd.f32 %v6541, %v6542
  %v6544 = vmul.f32 %v6543, 0.027777778
  %v6545 = vmul.f32 %v6504, %v6504
  %v6546 = vmul.f32 %v6509, %v6509
  %v6547 = vmul.f32 %v6514, %v6514
  %v6548 = vmul.f32 %v6519, %v6519
  %v6549 = vmul.f32 %v6524, %v6524
  %v6550 = vsel %vm6527, %v6545, 0.0
  %v6551 = vsel %vm6527, %v6546, 0.0
  %v6552 = vadd.f32 %v6550, %v6551
  %v6553 = vsel %vm6527, %v6547, 0.0
  %v6554 = vadd.f32 %v6552, %v6553
  %v6555 = vsel %vm6527, %v6548, 0.0
  %v6556 = vadd.f32 %v6554, %v6555
  %v6557 = vsel %vm6535, %v6549, 0.0
  %v6558 = vadd.f32 %v6556, %v6557
  %v6559 = vrot.slane %v6558, 4
  %v6560 = vadd.f32 %v6558, %v6559
  %v6561 = vrot.slane %v6560, 2
  %v6562 = vadd.f32 %v6560, %v6561
  %v6563 = vrot.slane %v6562, 1
  %v6564 = vadd.f32 %v6562, %v6563
  %v6565 = vmul.f32 %v6564, 0.027777778
  %v6566 = vmul.f32 %v6544, %v6544
  %v6567 = vsub.f32 %v6565, %v6566
  %v6568 = vmax.f32 %v6567, 0.0
  %v6569 = vsub.f32 %v6504, %v6544
  %v6570 = vsub.f32 %v6509, %v6544
  %v6571 = vsub.f32 %v6514, %v6544
  %v6572 = vsub.f32 %v6519, %v6544
  %v6573 = vsub.f32 %v6524, %v6544
  %v6574 = vadd.f32 %v6568, 1e-05
  %v6575 = vrsqrt.pop %v6574
  %v6576 = vmul.f32 %v6569, %v6575
  %v6577 = vmul.f32 %v6570, %v6575
  %v6578 = vmul.f32 %v6571, %v6575
  %v6579 = vmul.f32 %v6572, %v6575
  %v6580 = vmul.f32 %v6573, %v6575
  %v6581 = vmax.f32 %v6576, 0.0
  %v6582 = vmax.f32 %v6577, 0.0
  %v6583 = vmax.f32 %v6578, 0.0
  %v6584 = vmax.f32 %v6579, 0.0
  %v6585 = vmax.f32 %v6580, 0.0
  %vm6586 = vcmask 516096
  %6587 = vst.msk [vmem:[#allocation8] sm:$0x1] %vm6586, %v6581
  %v6590 = vunpack.c.l.s4 1983009808
  %v6591 = vunpack.c.0.s8 %v6590
  %v6592 = vlaneseq
  %v6593 = vshrl.u32 %v6592, 7
  %v6594 = vsub.s32 %v6591, %v6593
  %v6595 = vrot.slane %v6581, %v6594
  %v6596 = vrot.slane %v6595, 7
  %v6597 = vrot.slane %v6596, 2
  %6598 = vrot.lane.b32.xlu0 %v6597, 64
  %v6599 = vpop.permute.xlu0 %6598
  %vm6601 = vcmask 1040896
  %6602 = vst.msk [vmem:[#allocation8] sm:$0x1] %vm6601, %v6599
  %v6603 = vcombine.high %v6595, %v6595
  %6605 = vst.msk [vmem:[#allocation8 + $0x2] sm:$0x1] %vm6586, %v6603
  %v6606 = vrot.slane %v6603, 7
  %v6607 = vrot.slane %v6606, 2
  %6608 = vrot.lane.b32.xlu0 %v6607, 64
  %v6609 = vpop.permute.xlu0 %6608
  %6611 = vst.msk [vmem:[#allocation8 + $0x2] sm:$0x1] %vm6601, %v6609
  %v6612 = vcombine.high %v6581, %v6581
  %v6614 = vunpack.c.l.s4 1983009808
  %v6615 = vunpack.c.0.s8 %v6614
  %v6616 = vlaneseq
  %v6617 = vshrl.u32 %v6616, 7
  %v6618 = vsub.s32 %v6615, %v6617
  %v6619 = vrot.slane %v6612, %v6618
  %6621 = vst.msk [vmem:[#allocation8 + $0x4] sm:$0x1] %vm6586, %v6619
  %v6622 = vrot.slane %v6619, 7
  %v6623 = vrot.slane %v6622, 2
  %6624 = vrot.lane.b32.xlu0 %v6623, 64
  %v6625 = vpop.permute.xlu0 %6624
  %6627 = vst.msk [vmem:[#allocation8 + $0x4] sm:$0x1] %vm6601, %v6625
  %v6628 = vcombine.high %v6619, %v6619
  %6630 = vst.msk [vmem:[#allocation8 + $0x6] sm:$0x1] %vm6586, %v6628
  %v6631 = vrot.slane %v6628, 7
  %v6632 = vrot.slane %v6631, 2
  %6633 = vrot.lane.b32.xlu0 %v6632, 64
  %v6634 = vpop.permute.xlu0 %6633
  %6636 = vst.msk [vmem:[#allocation8 + $0x6] sm:$0x1] %vm6601, %v6634
  %6637 = vst.msk [vmem:[#allocation8 + $0x8] sm:$0x1] %vm6586, %v6582
  %v6640 = vunpack.c.l.s4 1983009808
  %v6641 = vunpack.c.0.s8 %v6640
  %v6642 = vlaneseq
  %v6643 = vshrl.u32 %v6642, 7
  %v6644 = vsub.s32 %v6641, %v6643
  %v6645 = vrot.slane %v6582, %v6644
  %v6646 = vrot.slane %v6645, 7
  %v6647 = vrot.slane %v6646, 2
  %6648 = vrot.lane.b32.xlu0 %v6647, 64
  %v6649 = vpop.permute.xlu0 %6648
  %6651 = vst.msk [vmem:[#allocation8 + $0x8] sm:$0x1] %vm6601, %v6649
  %v6652 = vcombine.high %v6645, %v6645
  %6654 = vst.msk [vmem:[#allocation8 + $0xa] sm:$0x1] %vm6586, %v6652
  %v6655 = vrot.slane %v6652, 7
  %v6656 = vrot.slane %v6655, 2
  %6657 = vrot.lane.b32.xlu0 %v6656, 64
  %v6658 = vpop.permute.xlu0 %6657
  %6660 = vst.msk [vmem:[#allocation8 + $0xa] sm:$0x1] %vm6601, %v6658
  %v6661 = vcombine.high %v6582, %v6582
  %v6663 = vunpack.c.l.s4 1983009808
  %v6664 = vunpack.c.0.s8 %v6663
  %v6665 = vlaneseq
  %v6666 = vshrl.u32 %v6665, 7
  %v6667 = vsub.s32 %v6664, %v6666
  %v6668 = vrot.slane %v6661, %v6667
  %6670 = vst.msk [vmem:[#allocation8 + $0xc] sm:$0x1] %vm6586, %v6668
  %v6671 = vrot.slane %v6668, 7
  %v6672 = vrot.slane %v6671, 2
  %6673 = vrot.lane.b32.xlu0 %v6672, 64
  %v6674 = vpop.permute.xlu0 %6673
  %6676 = vst.msk [vmem:[#allocation8 + $0xc] sm:$0x1] %vm6601, %v6674
  %v6677 = vcombine.high %v6668, %v6668
  %6679 = vst.msk [vmem:[#allocation8 + $0xe] sm:$0x1] %vm6586, %v6677
  %v6680 = vrot.slane %v6677, 7
  %v6681 = vrot.slane %v6680, 2
  %6682 = vrot.lane.b32.xlu0 %v6681, 64
  %v6683 = vpop.permute.xlu0 %6682
  %6685 = vst.msk [vmem:[#allocation8 + $0xe] sm:$0x1] %vm6601, %v6683
  %6686 = vst.msk [vmem:[#allocation8 + $0x10] sm:$0x1] %vm6586, %v6583
  %v6689 = vunpack.c.l.s4 1983009808
  %v6690 = vunpack.c.0.s8 %v6689
  %v6691 = vlaneseq
  %v6692 = vshrl.u32 %v6691, 7
  %v6693 = vsub.s32 %v6690, %v6692
  %v6694 = vrot.slane %v6583, %v6693
  %v6695 = vrot.slane %v6694, 7
  %v6696 = vrot.slane %v6695, 2
  %6697 = vrot.lane.b32.xlu0 %v6696, 64
  %v6698 = vpop.permute.xlu0 %6697
  %6700 = vst.msk [vmem:[#allocation8 + $0x10] sm:$0x1] %vm6601, %v6698
  %v6701 = vcombine.high %v6694, %v6694
  %6703 = vst.msk [vmem:[#allocation8 + $0x1] sm:$0x1] %vm6586, %v6701
  %v6704 = vrot.slane %v6701, 7
  %v6705 = vrot.slane %v6704, 2
  %6706 = vrot.lane.b32.xlu0 %v6705, 64
  %v6707 = vpop.permute.xlu0 %6706
  %6709 = vst.msk [vmem:[#allocation8 + $0x1] sm:$0x1] %vm6601, %v6707
  %v6710 = vcombine.high %v6583, %v6583
  %v6712 = vunpack.c.l.s4 1983009808
  %v6713 = vunpack.c.0.s8 %v6712
  %v6714 = vlaneseq
  %v6715 = vshrl.u32 %v6714, 7
  %v6716 = vsub.s32 %v6713, %v6715
  %v6717 = vrot.slane %v6710, %v6716
  %6719 = vst.msk [vmem:[#allocation8 + $0x3] sm:$0x1] %vm6586, %v6717
  %v6720 = vrot.slane %v6717, 7
  %v6721 = vrot.slane %v6720, 2
  %6722 = vrot.lane.b32.xlu0 %v6721, 64
  %v6723 = vpop.permute.xlu0 %6722
  %6725 = vst.msk [vmem:[#allocation8 + $0x3] sm:$0x1] %vm6601, %v6723
  %v6726 = vcombine.high %v6717, %v6717
  %6728 = vst.msk [vmem:[#allocation8 + $0x5] sm:$0x1] %vm6586, %v6726
  %v6729 = vrot.slane %v6726, 7
  %v6730 = vrot.slane %v6729, 2
  %6731 = vrot.lane.b32.xlu0 %v6730, 64
  %v6732 = vpop.permute.xlu0 %6731
  %6734 = vst.msk [vmem:[#allocation8 + $0x5] sm:$0x1] %vm6601, %v6732
  %6735 = vst.msk [vmem:[#allocation8 + $0x7] sm:$0x1] %vm6586, %v6584
  %v6738 = vunpack.c.l.s4 1983009808
  %v6739 = vunpack.c.0.s8 %v6738
  %v6740 = vlaneseq
  %v6741 = vshrl.u32 %v6740, 7
  %v6742 = vsub.s32 %v6739, %v6741
  %v6743 = vrot.slane %v6584, %v6742
  %v6744 = vrot.slane %v6743, 7
  %v6745 = vrot.slane %v6744, 2
  %6746 = vrot.lane.b32.xlu0 %v6745, 64
  %v6747 = vpop.permute.xlu0 %6746
  %6749 = vst.msk [vmem:[#allocation8 + $0x7] sm:$0x1] %vm6601, %v6747
  %v6750 = vcombine.high %v6743, %v6743
  %6752 = vst.msk [vmem:[#allocation8 + $0x9] sm:$0x1] %vm6586, %v6750
  %v6753 = vrot.slane %v6750, 7
  %v6754 = vrot.slane %v6753, 2
  %6755 = vrot.lane.b32.xlu0 %v6754, 64
  %v6756 = vpop.permute.xlu0 %6755
  %6758 = vst.msk [vmem:[#allocation8 + $0x9] sm:$0x1] %vm6601, %v6756
  %v6759 = vcombine.high %v6584, %v6584
  %v6761 = vunpack.c.l.s4 1983009808
  %v6762 = vunpack.c.0.s8 %v6761
  %v6763 = vlaneseq
  %v6764 = vshrl.u32 %v6763, 7
  %v6765 = vsub.s32 %v6762, %v6764
  %v6766 = vrot.slane %v6759, %v6765
  %6768 = vst.msk [vmem:[#allocation8 + $0xb] sm:$0x1] %vm6586, %v6766
  %v6769 = vrot.slane %v6766, 7
  %v6770 = vrot.slane %v6769, 2
  %6771 = vrot.lane.b32.xlu0 %v6770, 64
  %v6772 = vpop.permute.xlu0 %6771
  %6774 = vst.msk [vmem:[#allocation8 + $0xb] sm:$0x1] %vm6601, %v6772
  %v6775 = vcombine.high %v6766, %v6766
  %6777 = vst.msk [vmem:[#allocation8 + $0xd] sm:$0x1] %vm6586, %v6775
  %v6778 = vrot.slane %v6775, 7
  %v6779 = vrot.slane %v6778, 2
  %6780 = vrot.lane.b32.xlu0 %v6779, 64
  %v6781 = vpop.permute.xlu0 %6780
  %6783 = vst.msk [vmem:[#allocation8 + $0xd] sm:$0x1] %vm6601, %v6781
  %6784 = vst.msk [vmem:[#allocation8 + $0xf] sm:$0x1] %vm6586, %v6585
  %v6787 = vunpack.c.l.s4 1983009808
  %v6788 = vunpack.c.0.s8 %v6787
  %v6789 = vlaneseq
  %v6790 = vshrl.u32 %v6789, 7
  %v6791 = vsub.s32 %v6788, %v6790
  %v6792 = vrot.slane %v6585, %v6791
  %v6793 = vrot.slane %v6792, 7
  %v6794 = vrot.slane %v6793, 2
  %6795 = vrot.lane.b32.xlu0 %v6794, 64
  %v6796 = vpop.permute.xlu0 %6795
  %6798 = vst.msk [vmem:[#allocation8 + $0xf] sm:$0x1] %vm6601, %v6796
  %v6799 = vcombine.high %v6792, %v6792
  %6801 = vst.msk [vmem:[#allocation8 + $0x11] sm:$0x1] %vm6586, %v6799
  %v6802 = vrot.slane %v6799, 7
  %v6803 = vrot.slane %v6802, 2
  %6804 = vrot.lane.b32.xlu0 %v6803, 64
  %v6805 = vpop.permute.xlu0 %6804
  %6807 = vst.msk [vmem:[#allocation8 + $0x11] sm:$0x1] %vm6601, %v6805
  %v6808 = vld [vmem:[#allocation8] sm:$0xff]
  %v6809 = vld [vmem:[#allocation8 + $0x8] sm:$0xff]
  %v6810 = vld [vmem:[#allocation8 + $0x10] sm:$0x3]
  %v6811 = vld [vmem:[%s9] sm:$0xf]
  %v6812 = vld [vmem:[%s9 + $0x4] sm:$0xf]
  %v6813 = vld [vmem:[%s9 + $0x8] sm:$0xf]
  %v6814 = vld [vmem:[%s9 + $0xc] sm:$0xf]
  %v6815 = vld [vmem:[%s9 + $0x10] sm:$0xf]
  %v6816 = vld [vmem:[%s9 + $0x14] sm:$0xf]
  %v6817 = vld [vmem:[%s9 + $0x18] sm:$0xf]
  %v6818 = vld [vmem:[%s9 + $0x1c] sm:$0xf]
  %v6819 = vld [vmem:[%s9 + $0x20] sm:$0xf]
  %v6820 = vld [vmem:[%s9 + $0x24] sm:$0xf]
  %v6821 = vld [vmem:[%s9 + $0x28] sm:$0xf]
  %v6822 = vld [vmem:[%s9 + $0x2c] sm:$0xf]
  %v6823 = vld [vmem:[%s9 + $0x30] sm:$0xf]
  %v6824 = vld [vmem:[%s9 + $0x34] sm:$0xf]
  %v6825 = vld [vmem:[%s9 + $0x38] sm:$0xf]
  %v6826 = vld [vmem:[%s9 + $0x3c] sm:$0xf]
  %v6827 = vld [vmem:[%s9 + $0x40] sm:$0xf]
  %v6828 = vld [vmem:[%s9 + $0x44] sm:$0xf]
  %v6829 = vld [vmem:[%s9 + $0x48] sm:$0xf]
  %v6830 = vld [vmem:[%s9 + $0x4c] sm:$0xf]
  %v6831 = vld [vmem:[%s9 + $0x50] sm:$0xf]
  %v6832 = vld [vmem:[%s9 + $0x54] sm:$0xf]
  %v6833 = vld [vmem:[%s9 + $0x58] sm:$0xf]
  %v6834 = vld [vmem:[%s9 + $0x5c] sm:$0xf]
  %v6835 = vld [vmem:[%s9 + $0x60] sm:$0xf]
  %v6836 = vld [vmem:[%s9 + $0x64] sm:$0xf]
  %v6837 = vld [vmem:[%s9 + $0x68] sm:$0xf]
  %v6838 = vld [vmem:[%s9 + $0x6c] sm:$0xf]
  %v6839 = vld [vmem:[%s9 + $0x70] sm:$0xf]
  %v6840 = vld [vmem:[%s9 + $0x74] sm:$0xf]
  %v6841 = vld [vmem:[%s9 + $0x78] sm:$0xf]
  %v6842 = vld [vmem:[%s9 + $0x7c] sm:$0xf]
  %v6843 = vld [vmem:[%s9 + $0x80] sm:$0xf]
  %v6844 = vld [vmem:[%s9 + $0x84] sm:$0xf]
  %v6845 = vld [vmem:[%s9 + $0x88] sm:$0xf]
  %v6846 = vld [vmem:[%s9 + $0x8c] sm:$0xf]
  %v6847 = vld [vmem:[%s9 + $0x90] sm:$0xf]
  %v6848 = vld [vmem:[%s9 + $0x94] sm:$0xf]
  %v6849 = vld [vmem:[%s9 + $0x98] sm:$0xf]
  %v6850 = vld [vmem:[%s9 + $0x9c] sm:$0xf]
  %v6851 = vld [vmem:[%s9 + $0xa0] sm:$0xf]
  %v6852 = vld [vmem:[%s9 + $0xa4] sm:$0xf]
  %v6853 = vld [vmem:[%s9 + $0xa8] sm:$0xf]
  %v6854 = vld [vmem:[%s9 + $0xac] sm:$0xf]
  %v6855 = vld [vmem:[%s9 + $0xb0] sm:$0xf]
  %v6856 = vld [vmem:[%s9 + $0xb4] sm:$0xf]
  %v6857 = vld [vmem:[%s9 + $0xb8] sm:$0xf]
  %v6858 = vld [vmem:[%s9 + $0xbc] sm:$0xf]
  %v6859 = vld [vmem:[%s9 + $0xc0] sm:$0xf]
  %v6860 = vld [vmem:[%s9 + $0xc4] sm:$0xf]
  %v6861 = vld [vmem:[%s9 + $0xc8] sm:$0xf]
  %v6862 = vld [vmem:[%s9 + $0xcc] sm:$0xf]
  %v6863 = vld [vmem:[%s9 + $0xd0] sm:$0xf]
  %v6864 = vld [vmem:[%s9 + $0xd4] sm:$0xf]
  %v6865 = vld [vmem:[%s9 + $0xd8] sm:$0xf]
  %v6866 = vld [vmem:[%s9 + $0xdc] sm:$0xf]
  %v6867 = vld [vmem:[%s9 + $0xe0] sm:$0xf]
  %v6868 = vld [vmem:[%s9 + $0xe4] sm:$0xf]
  %v6869 = vld [vmem:[%s9 + $0xe8] sm:$0xf]
  %v6870 = vld [vmem:[%s9 + $0xec] sm:$0xf]
  %v6871 = vld [vmem:[%s9 + $0xf0] sm:$0xf]
  %v6872 = vld [vmem:[%s9 + $0xf4] sm:$0xf]
  %v6873 = vld [vmem:[%s9 + $0xf8] sm:$0xf]
  %v6874 = vld [vmem:[%s9 + $0xfc] sm:$0xf]
  %v6875 = vld [vmem:[%s9 + $0x100] sm:$0xf]
  %v6876 = vld [vmem:[%s9 + $0x104] sm:$0xf]
  %v6877 = vld [vmem:[%s9 + $0x108] sm:$0xf]
  %v6878 = vld [vmem:[%s9 + $0x10c] sm:$0xf]
  %v6879 = vld [vmem:[%s9 + $0x110] sm:$0xf]
  %v6880 = vld [vmem:[%s9 + $0x114] sm:$0xf]
  %v6881 = vld [vmem:[%s9 + $0x118] sm:$0xf]
  %v6882 = vld [vmem:[%s9 + $0x11c] sm:$0xf]
  %v6883 = vld [vmem:[%s9 + $0x120] sm:$0xf]
  %v6884 = vld [vmem:[%s9 + $0x124] sm:$0xf]
  %v6885 = vld [vmem:[%s9 + $0x128] sm:$0xf]
  %v6886 = vld [vmem:[%s9 + $0x12c] sm:$0xf]
  %v6887 = vld [vmem:[%s9 + $0x130] sm:$0xf]
  %v6888 = vld [vmem:[%s9 + $0x134] sm:$0xf]
  %v6889 = vld [vmem:[%s9 + $0x138] sm:$0xf]
  %v6890 = vld [vmem:[%s9 + $0x13c] sm:$0xf]
  %v6891 = vld [vmem:[%s9 + $0x140] sm:$0xf]
  %v6892 = vld [vmem:[%s9 + $0x144] sm:$0xf]
  %v6893 = vld [vmem:[%s9 + $0x148] sm:$0xf]
  %v6894 = vld [vmem:[%s9 + $0x14c] sm:$0xf]
  %v6895 = vld [vmem:[%s9 + $0x150] sm:$0xf]
  %v6896 = vld [vmem:[%s9 + $0x154] sm:$0xf]
  %v6897 = vld [vmem:[%s9 + $0x158] sm:$0xf]
  %v6898 = vld [vmem:[%s9 + $0x15c] sm:$0xf]
  %v6899 = vld [vmem:[%s9 + $0x160] sm:$0xf]
  %v6900 = vld [vmem:[%s9 + $0x164] sm:$0xf]
  %v6901 = vld [vmem:[%s9 + $0x168] sm:$0xf]
  %v6902 = vld [vmem:[%s9 + $0x16c] sm:$0xf]
  %v6903 = vld [vmem:[%s9 + $0x170] sm:$0xf]
  %v6904 = vld [vmem:[%s9 + $0x174] sm:$0xf]
  %v6905 = vld [vmem:[%s9 + $0x178] sm:$0xf]
  %v6906 = vld [vmem:[%s9 + $0x17c] sm:$0xf]
  %v6907 = vld [vmem:[%s9 + $0x180] sm:$0xf]
  %v6908 = vld [vmem:[%s9 + $0x184] sm:$0xf]
  %v6909 = vld [vmem:[%s9 + $0x188] sm:$0xf]
  %v6910 = vld [vmem:[%s9 + $0x18c] sm:$0xf]
  %v6911 = vld [vmem:[%s9 + $0x190] sm:$0xf]
  %v6912 = vld [vmem:[%s9 + $0x194] sm:$0xf]
  %v6913 = vld [vmem:[%s9 + $0x198] sm:$0xf]
  %v6914 = vld [vmem:[%s9 + $0x19c] sm:$0xf]
  %v6915 = vld [vmem:[%s9 + $0x1a0] sm:$0xf]
  %v6916 = vld [vmem:[%s9 + $0x1a4] sm:$0xf]
  %v6917 = vld [vmem:[%s9 + $0x1a8] sm:$0xf]
  %v6918 = vld [vmem:[%s9 + $0x1ac] sm:$0xf]
  %v6919 = vld [vmem:[%s9 + $0x1b0] sm:$0xf]
  %v6920 = vld [vmem:[%s9 + $0x1b4] sm:$0xf]
  %v6921 = vld [vmem:[%s9 + $0x1b8] sm:$0xf]
  %v6922 = vld [vmem:[%s9 + $0x1bc] sm:$0xf]
  %v6923 = vld [vmem:[%s9 + $0x1c0] sm:$0xf]
  %v6924 = vld [vmem:[%s9 + $0x1c4] sm:$0xf]
  %v6925 = vld [vmem:[%s9 + $0x1c8] sm:$0xf]
  %v6926 = vld [vmem:[%s9 + $0x1cc] sm:$0xf]
  %v6927 = vld [vmem:[%s9 + $0x1d0] sm:$0xf]
  %v6928 = vld [vmem:[%s9 + $0x1d4] sm:$0xf]
  %v6929 = vld [vmem:[%s9 + $0x1d8] sm:$0xf]
  %v6930 = vld [vmem:[%s9 + $0x1dc] sm:$0xf]
  %v6931 = vld [vmem:[%s9 + $0x1e0] sm:$0xf]
  %v6932 = vld [vmem:[%s9 + $0x1e4] sm:$0xf]
  %v6933 = vld [vmem:[%s9 + $0x1e8] sm:$0xf]
  %v6934 = vld [vmem:[%s9 + $0x1ec] sm:$0xf]
  %v6935 = vld [vmem:[%s9 + $0x1f0] sm:$0xf]
  %v6936 = vld [vmem:[%s9 + $0x1f4] sm:$0xf]
  %v6937 = vld [vmem:[%s9 + $0x1f8] sm:$0xf]
  %v6938 = vld [vmem:[%s9 + $0x1fc] sm:$0xf]
  %v6939 = vld [vmem:[%s9 + $0x200] sm:$0xf]
  %v6940 = vld [vmem:[%s9 + $0x204] sm:$0xf]
  %v6941 = vld [vmem:[%s9 + $0x208] sm:$0xf]
  %v6942 = vld [vmem:[%s9 + $0x20c] sm:$0xf]
  %v6943 = vld [vmem:[%s9 + $0x210] sm:$0xf]
  %v6944 = vld [vmem:[%s9 + $0x214] sm:$0xf]
  %v6945 = vld [vmem:[%s9 + $0x218] sm:$0xf]
  %v6946 = vld [vmem:[%s9 + $0x21c] sm:$0xf]
  %v6947 = vld [vmem:[%s9 + $0x220] sm:$0xf]
  %v6948 = vld [vmem:[%s9 + $0x224] sm:$0xf]
  %v6949 = vld [vmem:[%s9 + $0x228] sm:$0xf]
  %v6950 = vld [vmem:[%s9 + $0x22c] sm:$0xf]
  %v6951 = vld [vmem:[%s9 + $0x230] sm:$0xf]
  %v6952 = vld [vmem:[%s9 + $0x234] sm:$0xf]
  %v6953 = vld [vmem:[%s9 + $0x238] sm:$0xf]
  %v6954 = vld [vmem:[%s9 + $0x23c] sm:$0xf]
  %v6955 = vunpack.c.l.bf16 %v6811
  %v6956 = vunpack.c.l.bf16 %v6812
  %v6957 = vunpack.c.l.bf16 %v6813
  %v6958 = vunpack.c.l.bf16 %v6814
  %v6959 = vunpack.c.l.bf16 %v6815
  %v6960 = vunpack.c.l.bf16 %v6816
  %v6961 = vunpack.c.l.bf16 %v6817
  %v6962 = vunpack.c.l.bf16 %v6818
  %v6963 = vunpack.c.l.bf16 %v6819
  %v6964 = vunpack.c.l.bf16 %v6820
  %v6965 = vunpack.c.l.bf16 %v6821
  %v6966 = vunpack.c.l.bf16 %v6822
  %v6967 = vunpack.c.l.bf16 %v6823
  %v6968 = vunpack.c.l.bf16 %v6824
  %v6969 = vunpack.c.l.bf16 %v6825
  %v6970 = vunpack.c.l.bf16 %v6826
  %v6971 = vunpack.c.l.bf16 %v6827
  %v6972 = vunpack.c.l.bf16 %v6828
  %v6973 = vunpack.c.l.bf16 %v6829
  %v6974 = vunpack.c.l.bf16 %v6830
  %v6975 = vunpack.c.l.bf16 %v6831
  %v6976 = vunpack.c.l.bf16 %v6832
  %v6977 = vunpack.c.l.bf16 %v6833
  %v6978 = vunpack.c.l.bf16 %v6834
  %v6979 = vunpack.c.l.bf16 %v6835
  %v6980 = vunpack.c.l.bf16 %v6836
  %v6981 = vunpack.c.l.bf16 %v6837
  %v6982 = vunpack.c.l.bf16 %v6838
  %v6983 = vunpack.c.l.bf16 %v6839
  %v6984 = vunpack.c.l.bf16 %v6840
  %v6985 = vunpack.c.l.bf16 %v6841
  %v6986 = vunpack.c.l.bf16 %v6842
  %v6987 = vunpack.c.l.bf16 %v6843
  %v6988 = vunpack.c.l.bf16 %v6844
  %v6989 = vunpack.c.l.bf16 %v6845
  %v6990 = vunpack.c.l.bf16 %v6846
  %v6991 = vunpack.c.l.bf16 %v6847
  %v6992 = vunpack.c.l.bf16 %v6848
  %v6993 = vunpack.c.l.bf16 %v6849
  %v6994 = vunpack.c.l.bf16 %v6850
  %v6995 = vunpack.c.l.bf16 %v6851
  %v6996 = vunpack.c.l.bf16 %v6852
  %v6997 = vunpack.c.l.bf16 %v6853
  %v6998 = vunpack.c.l.bf16 %v6854
  %v6999 = vunpack.c.l.bf16 %v6855
  %v7000 = vunpack.c.l.bf16 %v6856
  %v7001 = vunpack.c.l.bf16 %v6857
  %v7002 = vunpack.c.l.bf16 %v6858
  %v7003 = vunpack.c.l.bf16 %v6859
  %v7004 = vunpack.c.l.bf16 %v6860
  %v7005 = vunpack.c.l.bf16 %v6861
  %v7006 = vunpack.c.l.bf16 %v6862
  %v7007 = vunpack.c.l.bf16 %v6863
  %v7008 = vunpack.c.l.bf16 %v6864
  %v7009 = vunpack.c.l.bf16 %v6865
  %v7010 = vunpack.c.l.bf16 %v6866
  %v7011 = vunpack.c.l.bf16 %v6867
  %v7012 = vunpack.c.l.bf16 %v6868
  %v7013 = vunpack.c.l.bf16 %v6869
  %v7014 = vunpack.c.l.bf16 %v6870
  %v7015 = vunpack.c.l.bf16 %v6871
  %v7016 = vunpack.c.l.bf16 %v6872
  %v7017 = vunpack.c.l.bf16 %v6873
  %v7018 = vunpack.c.l.bf16 %v6874
  %v7019 = vunpack.c.l.bf16 %v6875
  %v7020 = vunpack.c.l.bf16 %v6876
  %v7021 = vunpack.c.l.bf16 %v6877
  %v7022 = vunpack.c.l.bf16 %v6878
  %v7023 = vunpack.c.l.bf16 %v6879
  %v7024 = vunpack.c.l.bf16 %v6880
  %v7025 = vunpack.c.l.bf16 %v6881
  %v7026 = vunpack.c.l.bf16 %v6882
  %v7027 = vunpack.c.l.bf16 %v6883
  %v7028 = vunpack.c.l.bf16 %v6884
  %v7029 = vunpack.c.l.bf16 %v6885
  %v7030 = vunpack.c.l.bf16 %v6886
  %v7031 = vunpack.c.l.bf16 %v6887
  %v7032 = vunpack.c.l.bf16 %v6888
  %v7033 = vunpack.c.l.bf16 %v6889
  %v7034 = vunpack.c.l.bf16 %v6890
  %v7035 = vunpack.c.l.bf16 %v6891
  %v7036 = vunpack.c.l.bf16 %v6892
  %v7037 = vunpack.c.l.bf16 %v6893
  %v7038 = vunpack.c.l.bf16 %v6894
  %v7039 = vunpack.c.l.bf16 %v6895
  %v7040 = vunpack.c.l.bf16 %v6896
  %v7041 = vunpack.c.l.bf16 %v6897
  %v7042 = vunpack.c.l.bf16 %v6898
  %v7043 = vunpack.c.l.bf16 %v6899
  %v7044 = vunpack.c.l.bf16 %v6900
  %v7045 = vunpack.c.l.bf16 %v6901
  %v7046 = vunpack.c.l.bf16 %v6902
  %v7047 = vunpack.c.l.bf16 %v6903
  %v7048 = vunpack.c.l.bf16 %v6904
  %v7049 = vunpack.c.l.bf16 %v6905
  %v7050 = vunpack.c.l.bf16 %v6906
  %v7051 = vunpack.c.l.bf16 %v6907
  %v7052 = vunpack.c.l.bf16 %v6908
  %v7053 = vunpack.c.l.bf16 %v6909
  %v7054 = vunpack.c.l.bf16 %v6910
  %v7055 = vunpack.c.l.bf16 %v6911
  %v7056 = vunpack.c.l.bf16 %v6912
  %v7057 = vunpack.c.l.bf16 %v6913
  %v7058 = vunpack.c.l.bf16 %v6914
  %v7059 = vunpack.c.l.bf16 %v6915
  %v7060 = vunpack.c.l.bf16 %v6916
  %v7061 = vunpack.c.l.bf16 %v6917
  %v7062 = vunpack.c.l.bf16 %v6918
  %v7063 = vunpack.c.l.bf16 %v6919
  %v7064 = vunpack.c.l.bf16 %v6920
  %v7065 = vunpack.c.l.bf16 %v6921
  %v7066 = vunpack.c.l.bf16 %v6922
  %v7067 = vunpack.c.l.bf16 %v6923
  %v7068 = vunpack.c.l.bf16 %v6924
  %v7069 = vunpack.c.l.bf16 %v6925
  %v7070 = vunpack.c.l.bf16 %v6926
  %v7071 = vunpack.c.l.bf16 %v6927
  %v7072 = vunpack.c.l.bf16 %v6928
  %v7073 = vunpack.c.l.bf16 %v6929
  %v7074 = vunpack.c.l.bf16 %v6930
  %v7075 = vunpack.c.l.bf16 %v6931
  %v7076 = vunpack.c.l.bf16 %v6932
  %v7077 = vunpack.c.l.bf16 %v6933
  %v7078 = vunpack.c.l.bf16 %v6934
  %v7079 = vunpack.c.l.bf16 %v6935
  %v7080 = vunpack.c.l.bf16 %v6936
  %v7081 = vunpack.c.l.bf16 %v6937
  %v7082 = vunpack.c.l.bf16 %v6938
  %v7083 = vunpack.c.l.bf16 %v6939
  %v7084 = vunpack.c.l.bf16 %v6940
  %v7085 = vunpack.c.l.bf16 %v6941
  %v7086 = vunpack.c.l.bf16 %v6942
  %v7087 = vunpack.c.l.bf16 %v6943
  %v7088 = vunpack.c.l.bf16 %v6944
  %v7089 = vunpack.c.l.bf16 %v6945
  %v7090 = vunpack.c.l.bf16 %v6946
  %v7091 = vunpack.c.l.bf16 %v6947
  %v7092 = vunpack.c.l.bf16 %v6948
  %v7093 = vunpack.c.l.bf16 %v6949
  %v7094 = vunpack.c.l.bf16 %v6950
  %v7095 = vunpack.c.l.bf16 %v6951
  %v7096 = vunpack.c.l.bf16 %v6952
  %v7097 = vunpack.c.l.bf16 %v6953
  %v7098 = vunpack.c.l.bf16 %v6954
  %v7099 = vld [vmem:[%s10] sm:$0x1]
  %v7101 = vlaneseq
  %v7102 = vshrl.u32 %v7101, 7
  %v7103 = vsub.s32 0, %v7102
  %v7104 = vrot.slane %v7099, %v7103
  %v7109 = vcombine.high %v6808, %v6808
  %v7111 = vunpack.c.l.s4 1983009808
  %v7112 = vunpack.c.0.s8 %v7111
  %v7113 = vlaneseq
  %v7114 = vshrl.u32 %v7113, 7
  %v7115 = vsub.s32 %v7112, %v7114
  %v7116 = vrot.slane %v6808, %v7115
  %v7118 = vunpack.c.l.s4 1983009808
  %v7119 = vunpack.c.0.s8 %v7118
  %v7120 = vlaneseq
  %v7121 = vshrl.u32 %v7120, 7
  %v7122 = vsub.s32 %v7119, %v7121
  %v7123 = vrot.slane %v7109, %v7122
  %v7124 = vcombine.high %v7116, %v7116
  %v7125 = vcombine.high %v7123, %v7123
  %v7126 = vcombine.high %v6809, %v6809
  %v7128 = vunpack.c.l.s4 1983009808
  %v7129 = vunpack.c.0.s8 %v7128
  %v7130 = vlaneseq
  %v7131 = vshrl.u32 %v7130, 7
  %v7132 = vsub.s32 %v7129, %v7131
  %v7133 = vrot.slane %v6809, %v7132
  %v7135 = vunpack.c.l.s4 1983009808
  %v7136 = vunpack.c.0.s8 %v7135
  %v7137 = vlaneseq
  %v7138 = vshrl.u32 %v7137, 7
  %v7139 = vsub.s32 %v7136, %v7138
  %v7140 = vrot.slane %v7126, %v7139
  %v7141 = vcombine.high %v7133, %v7133
  %v7142 = vcombine.high %v7140, %v7140
  %v7144 = vunpack.c.l.s4 1983009808
  %v7145 = vunpack.c.0.s8 %v7144
  %v7146 = vlaneseq
  %v7147 = vshrl.u32 %v7146, 7
  %v7148 = vsub.s32 %v7145, %v7147
  %v7149 = vrot.slane %v6810, %v7148
  %7159 = vmatprep.subr.mxu0 0.0
  %7160 = vmatpush1.msra.mxu0 %v6955
  %7161 = vmatprep.subr.mxu0 0.0
  %7162 = vmatpush1.msra.mxu0 %v6956
  %7163 = vmatprep.subr.mxu0 0.0
  %7164 = vmatpush1.msra.mxu0 %v6957
  %7165 = vmatprep.subr.mxu0 0.0
  %7166 = vmatpush1.msra.mxu0 %v6958
  %7167 = vmatprep.subr.mxu0 0.0
  %7168 = vmatpush1.msra.mxu0 %v6959
  %7169 = vmatprep.subr.mxu0 0.0
  %7170 = vmatpush1.msra.mxu0 %v6960
  %7171 = vmatprep.subr.mxu0 0.0
  %7172 = vmatpush1.msra.mxu0 %v6961
  %7173 = vmatprep.subr.mxu0 0.0
  %7174 = vmatpush1.msra.mxu0 %v6962
  %7175 = vmatprep.subr.mxu0 0.0
  %7176 = vmatpush1.msra.mxu0 %v6963
  %7177 = vmatprep.subr.mxu0 0.0
  %7178 = vmatpush1.msra.mxu0 %v6964
  %7179 = vmatprep.subr.mxu0 0.0
  %7180 = vmatpush1.msra.mxu0 %v6965
  %7181 = vmatprep.subr.mxu0 0.0
  %7182 = vmatpush1.msra.mxu0 %v6966
  %7183 = vmatprep.subr.mxu0 0.0
  %7184 = vmatpush1.msra.mxu0 %v6967
  %7185 = vmatprep.subr.mxu0 0.0
  %7186 = vmatpush1.msra.mxu0 %v6968
  %7187 = vmatprep.subr.mxu0 0.0
  %7188 = vmatpush1.msra.mxu0 %v6969
  %7189 = vmatprep.subr.mxu0 0.0
  %7190 = vmatpush1.msra.mxu0 %v6970
  %7191 = vmatprep.subr.mxu0 0.0
  %7192 = vmatpush1.msra.mxu0 %v6971
  %7193 = vmatprep.subr.mxu0 0.0
  %7194 = vmatpush1.msra.mxu0 %v6972
  %7195 = vmatprep.subr.mxu0 0.0
  %7196 = vmatpush1.msra.mxu0 %v6973
  %7197 = vmatprep.subr.mxu0 0.0
  %7198 = vmatpush1.msra.mxu0 %v6974
  %7199 = vmatprep.subr.mxu0 0.0
  %7200 = vmatpush1.msra.mxu0 %v6975
  %7201 = vmatprep.subr.mxu0 0.0
  %7202 = vmatpush1.msra.mxu0 %v6976
  %7203 = vmatprep.subr.mxu0 0.0
  %7204 = vmatpush1.msra.mxu0 %v6977
  %7205 = vmatprep.subr.mxu0 0.0
  %7206 = vmatpush1.msra.mxu0 %v6978
  %7207 = vmatprep.subr.mxu0 0.0
  %7208 = vmatpush1.msra.mxu0 %v6979
  %7209 = vmatprep.subr.mxu0 0.0
  %7210 = vmatpush1.msra.mxu0 %v6980
  %7211 = vmatprep.subr.mxu0 0.0
  %7212 = vmatpush1.msra.mxu0 %v6981
  %7213 = vmatprep.subr.mxu0 0.0
  %7214 = vmatpush1.msra.mxu0 %v6982
  %7215 = vmatprep.subr.mxu0 0.0
  %7216 = vmatpush1.msra.mxu0 %v6983
  %7217 = vmatprep.subr.mxu0 0.0
  %7218 = vmatpush1.msra.mxu0 %v6984
  %7219 = vmatprep.subr.mxu0 0.0
  %7220 = vmatpush1.msra.mxu0 %v6985
  %7221 = vmatprep.subr.mxu0 0.0
  %7222 = vmatpush1.msra.mxu0 %v6986
  %7223 = vmatprep.mubr.f32.mxu0 %v7124
  %7224 = vmatmul.mubr.f32.gmra.mrb[0].mxu0 %v7116
  %v7225 = vpop.f32.mrb[0].mxu0
  %v7226 = vadd.f32 %v7104, %v7225
  %v7227 = vpop.f32.mrb[0].mxu0
  %7228 = vdwg.mxu0
  %7229 = vmatprep.subr.mxu0 0.0
  %7230 = vmatpush1.msra.mxu0 %v6987
  %7231 = vmatprep.subr.mxu0 0.0
  %7232 = vmatpush1.msra.mxu0 %v6988
  %7233 = vmatprep.subr.mxu0 0.0
  %7234 = vmatpush1.msra.mxu0 %v6989
  %7235 = vmatprep.subr.mxu0 0.0
  %7236 = vmatpush1.msra.mxu0 %v6990
  %7237 = vmatprep.subr.mxu0 0.0
  %7238 = vmatpush1.msra.mxu0 %v6991
  %7239 = vmatprep.subr.mxu0 0.0
  %7240 = vmatpush1.msra.mxu0 %v6992
  %7241 = vmatprep.subr.mxu0 0.0
  %7242 = vmatpush1.msra.mxu0 %v6993
  %7243 = vmatprep.subr.mxu0 0.0
  %7244 = vmatpush1.msra.mxu0 %v6994
  %7245 = vmatprep.subr.mxu0 0.0
  %7246 = vmatpush1.msra.mxu0 %v6995
  %7247 = vmatprep.subr.mxu0 0.0
  %7248 = vmatpush1.msra.mxu0 %v6996
  %7249 = vmatprep.subr.mxu0 0.0
  %7250 = vmatpush1.msra.mxu0 %v6997
  %7251 = vmatprep.subr.mxu0 0.0
  %7252 = vmatpush1.msra.mxu0 %v6998
  %7253 = vmatprep.subr.mxu0 0.0
  %7254 = vmatpush1.msra.mxu0 %v6999
  %7255 = vmatprep.subr.mxu0 0.0
  %7256 = vmatpush1.msra.mxu0 %v7000
  %7257 = vmatprep.subr.mxu0 0.0
  %7258 = vmatpush1.msra.mxu0 %v7001
  %7259 = vmatprep.subr.mxu0 0.0
  %7260 = vmatpush1.msra.mxu0 %v7002
  %7261 = vmatprep.subr.mxu0 0.0
  %7262 = vmatpush1.msra.mxu0 %v7003
  %7263 = vmatprep.subr.mxu0 0.0
  %7264 = vmatpush1.msra.mxu0 %v7004
  %7265 = vmatprep.subr.mxu0 0.0
  %7266 = vmatpush1.msra.mxu0 %v7005
  %7267 = vmatprep.subr.mxu0 0.0
  %7268 = vmatpush1.msra.mxu0 %v7006
  %7269 = vmatprep.subr.mxu0 0.0
  %7270 = vmatpush1.msra.mxu0 %v7007
  %7271 = vmatprep.subr.mxu0 0.0
  %7272 = vmatpush1.msra.mxu0 %v7008
  %7273 = vmatprep.subr.mxu0 0.0
  %7274 = vmatpush1.msra.mxu0 %v7009
  %7275 = vmatprep.subr.mxu0 0.0
  %7276 = vmatpush1.msra.mxu0 %v7010
  %7277 = vmatprep.subr.mxu0 0.0
  %7278 = vmatpush1.msra.mxu0 %v7011
  %7279 = vmatprep.subr.mxu0 0.0
  %7280 = vmatpush1.msra.mxu0 %v7012
  %7281 = vmatprep.subr.mxu0 0.0
  %7282 = vmatpush1.msra.mxu0 %v7013
  %7283 = vmatprep.subr.mxu0 0.0
  %7284 = vmatpush1.msra.mxu0 %v7014
  %7285 = vmatprep.subr.mxu0 0.0
  %7286 = vmatpush1.msra.mxu0 %v7015
  %7287 = vmatprep.subr.mxu0 0.0
  %7288 = vmatpush1.msra.mxu0 %v7016
  %7289 = vmatprep.subr.mxu0 0.0
  %7290 = vmatpush1.msra.mxu0 %v7017
  %7291 = vmatprep.subr.mxu0 0.0
  %7292 = vmatpush1.msra.mxu0 %v7018
  %7293 = vmatprep.mubr.f32.mxu0 %v7125
  %7294 = vmatmul.mubr.f32.gmra.mrb[0].mxu0 %v7123
  %v7295 = vpop.f32.mrb[0].mxu0
  %v7296 = vadd.f32 %v7226, %v7295
  %v7297 = vpop.f32.mrb[0].mxu0
  %7298 = vdwg.mxu0
  %7299 = vmatprep.subr.mxu0 0.0
  %7300 = vmatpush1.msra.mxu0 %v7019
  %7301 = vmatprep.subr.mxu0 0.0
  %7302 = vmatpush1.msra.mxu0 %v7020
  %7303 = vmatprep.subr.mxu0 0.0
  %7304 = vmatpush1.msra.mxu0 %v7021
  %7305 = vmatprep.subr.mxu0 0.0
  %7306 = vmatpush1.msra.mxu0 %v7022
  %7307 = vmatprep.subr.mxu0 0.0
  %7308 = vmatpush1.msra.mxu0 %v7023
  %7309 = vmatprep.subr.mxu0 0.0
  %7310 = vmatpush1.msra.mxu0 %v7024
  %7311 = vmatprep.subr.mxu0 0.0
  %7312 = vmatpush1.msra.mxu0 %v7025
  %7313 = vmatprep.subr.mxu0 0.0
  %7314 = vmatpush1.msra.mxu0 %v7026
  %7315 = vmatprep.subr.mxu0 0.0
  %7316 = vmatpush1.msra.mxu0 %v7027
  %7317 = vmatprep.subr.mxu0 0.0
  %7318 = vmatpush1.msra.mxu0 %v7028
  %7319 = vmatprep.subr.mxu0 0.0
  %7320 = vmatpush1.msra.mxu0 %v7029
  %7321 = vmatprep.subr.mxu0 0.0
  %7322 = vmatpush1.msra.mxu0 %v7030
  %7323 = vmatprep.subr.mxu0 0.0
  %7324 = vmatpush1.msra.mxu0 %v7031
  %7325 = vmatprep.subr.mxu0 0.0
  %7326 = vmatpush1.msra.mxu0 %v7032
  %7327 = vmatprep.subr.mxu0 0.0
  %7328 = vmatpush1.msra.mxu0 %v7033
  %7329 = vmatprep.subr.mxu0 0.0
  %7330 = vmatpush1.msra.mxu0 %v7034
  %7331 = vmatprep.subr.mxu0 0.0
  %7332 = vmatpush1.msra.mxu0 %v7035
  %7333 = vmatprep.subr.mxu0 0.0
  %7334 = vmatpush1.msra.mxu0 %v7036
  %7335 = vmatprep.subr.mxu0 0.0
  %7336 = vmatpush1.msra.mxu0 %v7037
  %7337 = vmatprep.subr.mxu0 0.0
  %7338 = vmatpush1.msra.mxu0 %v7038
  %7339 = vmatprep.subr.mxu0 0.0
  %7340 = vmatpush1.msra.mxu0 %v7039
  %7341 = vmatprep.subr.mxu0 0.0
  %7342 = vmatpush1.msra.mxu0 %v7040
  %7343 = vmatprep.subr.mxu0 0.0
  %7344 = vmatpush1.msra.mxu0 %v7041
  %7345 = vmatprep.subr.mxu0 0.0
  %7346 = vmatpush1.msra.mxu0 %v7042
  %7347 = vmatprep.subr.mxu0 0.0
  %7348 = vmatpush1.msra.mxu0 %v7043
  %7349 = vmatprep.subr.mxu0 0.0
  %7350 = vmatpush1.msra.mxu0 %v7044
  %7351 = vmatprep.subr.mxu0 0.0
  %7352 = vmatpush1.msra.mxu0 %v7045
  %7353 = vmatprep.subr.mxu0 0.0
  %7354 = vmatpush1.msra.mxu0 %v7046
  %7355 = vmatprep.subr.mxu0 0.0
  %7356 = vmatpush1.msra.mxu0 %v7047
  %7357 = vmatprep.subr.mxu0 0.0
  %7358 = vmatpush1.msra.mxu0 %v7048
  %7359 = vmatprep.subr.mxu0 0.0
  %7360 = vmatpush1.msra.mxu0 %v7049
  %7361 = vmatprep.subr.mxu0 0.0
  %7362 = vmatpush1.msra.mxu0 %v7050
  %7363 = vmatprep.mubr.f32.mxu0 %v7141
  %7364 = vmatmul.mubr.f32.gmra.mrb[0].mxu0 %v7133
  %v7365 = vpop.f32.mrb[0].mxu0
  %v7366 = vadd.f32 %v7296, %v7365
  %v7367 = vpop.f32.mrb[0].mxu0
  %7368 = vdwg.mxu0
  %7369 = vmatprep.subr.mxu0 0.0
  %7370 = vmatpush1.msra.mxu0 %v7051
  %7371 = vmatprep.subr.mxu0 0.0
  %7372 = vmatpush1.msra.mxu0 %v7052
  %7373 = vmatprep.subr.mxu0 0.0
  %7374 = vmatpush1.msra.mxu0 %v7053
  %7375 = vmatprep.subr.mxu0 0.0
  %7376 = vmatpush1.msra.mxu0 %v7054
  %7377 = vmatprep.subr.mxu0 0.0
  %7378 = vmatpush1.msra.mxu0 %v7055
  %7379 = vmatprep.subr.mxu0 0.0
  %7380 = vmatpush1.msra.mxu0 %v7056
  %7381 = vmatprep.subr.mxu0 0.0
  %7382 = vmatpush1.msra.mxu0 %v7057
  %7383 = vmatprep.subr.mxu0 0.0
  %7384 = vmatpush1.msra.mxu0 %v7058
  %7385 = vmatprep.subr.mxu0 0.0
  %7386 = vmatpush1.msra.mxu0 %v7059
  %7387 = vmatprep.subr.mxu0 0.0
  %7388 = vmatpush1.msra.mxu0 %v7060
  %7389 = vmatprep.subr.mxu0 0.0
  %7390 = vmatpush1.msra.mxu0 %v7061
  %7391 = vmatprep.subr.mxu0 0.0
  %7392 = vmatpush1.msra.mxu0 %v7062
  %7393 = vmatprep.subr.mxu0 0.0
  %7394 = vmatpush1.msra.mxu0 %v7063
  %7395 = vmatprep.subr.mxu0 0.0
  %7396 = vmatpush1.msra.mxu0 %v7064
  %7397 = vmatprep.subr.mxu0 0.0
  %7398 = vmatpush1.msra.mxu0 %v7065
  %7399 = vmatprep.subr.mxu0 0.0
  %7400 = vmatpush1.msra.mxu0 %v7066
  %7401 = vmatprep.subr.mxu0 0.0
  %7402 = vmatpush1.msra.mxu0 %v7067
  %7403 = vmatprep.subr.mxu0 0.0
  %7404 = vmatpush1.msra.mxu0 %v7068
  %7405 = vmatprep.subr.mxu0 0.0
  %7406 = vmatpush1.msra.mxu0 %v7069
  %7407 = vmatprep.subr.mxu0 0.0
  %7408 = vmatpush1.msra.mxu0 %v7070
  %7409 = vmatprep.subr.mxu0 0.0
  %7410 = vmatpush1.msra.mxu0 %v7071
  %7411 = vmatprep.subr.mxu0 0.0
  %7412 = vmatpush1.msra.mxu0 %v7072
  %7413 = vmatprep.subr.mxu0 0.0
  %7414 = vmatpush1.msra.mxu0 %v7073
  %7415 = vmatprep.subr.mxu0 0.0
  %7416 = vmatpush1.msra.mxu0 %v7074
  %7417 = vmatprep.subr.mxu0 0.0
  %7418 = vmatpush1.msra.mxu0 %v7075
  %7419 = vmatprep.subr.mxu0 0.0
  %7420 = vmatpush1.msra.mxu0 %v7076
  %7421 = vmatprep.subr.mxu0 0.0
  %7422 = vmatpush1.msra.mxu0 %v7077
  %7423 = vmatprep.subr.mxu0 0.0
  %7424 = vmatpush1.msra.mxu0 %v7078
  %7425 = vmatprep.subr.mxu0 0.0
  %7426 = vmatpush1.msra.mxu0 %v7079
  %7427 = vmatprep.subr.mxu0 0.0
  %7428 = vmatpush1.msra.mxu0 %v7080
  %7429 = vmatprep.subr.mxu0 0.0
  %7430 = vmatpush1.msra.mxu0 %v7081
  %7431 = vmatprep.subr.mxu0 0.0
  %7432 = vmatpush1.msra.mxu0 %v7082
  %7433 = vmatprep.mubr.f32.mxu0 %v7142
  %7434 = vmatmul.mubr.f32.gmra.mrb[0].mxu0 %v7140
  %v7435 = vpop.f32.mrb[0].mxu0
  %v7436 = vadd.f32 %v7366, %v7435
  %v7437 = vpop.f32.mrb[0].mxu0
  %7438 = vdwg.mxu0
  %7439 = vmatprep.subr.mxu0 0.0
  %7440 = vmatpush1.msra.mxu0 %v7083
  %7441 = vmatprep.subr.mxu0 0.0
  %7442 = vmatpush1.msra.mxu0 %v7084
  %7443 = vmatprep.subr.mxu0 0.0
  %7444 = vmatpush1.msra.mxu0 %v7085
  %7445 = vmatprep.subr.mxu0 0.0
  %7446 = vmatpush1.msra.mxu0 %v7086
  %7447 = vmatprep.subr.mxu0 0.0
  %7448 = vmatpush1.msra.mxu0 %v7087
  %7449 = vmatprep.subr.mxu0 0.0
  %7450 = vmatpush1.msra.mxu0 %v7088
  %7451 = vmatprep.subr.mxu0 0.0
  %7452 = vmatpush1.msra.mxu0 %v7089
  %7453 = vmatprep.subr.mxu0 0.0
  %7454 = vmatpush1.msra.mxu0 %v7090
  %7455 = vmatprep.subr.mxu0 0.0
  %7456 = vmatpush1.msra.mxu0 %v7091
  %7457 = vmatprep.subr.mxu0 0.0
  %7458 = vmatpush1.msra.mxu0 %v7092
  %7459 = vmatprep.subr.mxu0 0.0
  %7460 = vmatpush1.msra.mxu0 %v7093
  %7461 = vmatprep.subr.mxu0 0.0
  %7462 = vmatpush1.msra.mxu0 %v7094
  %7463 = vmatprep.subr.mxu0 0.0
  %7464 = vmatpush1.msra.mxu0 %v7095
  %7465 = vmatprep.subr.mxu0 0.0
  %7466 = vmatpush1.msra.mxu0 %v7096
  %7467 = vmatprep.subr.mxu0 0.0
  %7468 = vmatpush1.msra.mxu0 %v7097
  %7469 = vmatprep.subr.mxu0 0.0
  %7470 = vmatpush1.msra.mxu0 %v7098
  %7471 = vmatprep.subr.mxu0 0.0
  %7472 = vmatpush1.msra.mxu0 0.0
  %7473 = vmatprep.subr.mxu0 0.0
  %7474 = vmatpush1.msra.mxu0 0.0
  %7475 = vmatprep.subr.mxu0 0.0
  %7476 = vmatpush1.msra.mxu0 0.0
  %7477 = vmatprep.subr.mxu0 0.0
  %7478 = vmatpush1.msra.mxu0 0.0
  %7479 = vmatprep.subr.mxu0 0.0
  %7480 = vmatpush1.msra.mxu0 0.0
  %7481 = vmatprep.subr.mxu0 0.0
  %7482 = vmatpush1.msra.mxu0 0.0
  %7483 = vmatprep.subr.mxu0 0.0
  %7484 = vmatpush1.msra.mxu0 0.0
  %7485 = vmatprep.subr.mxu0 0.0
  %7486 = vmatpush1.msra.mxu0 0.0
  %7487 = vmatprep.subr.mxu0 0.0
  %7488 = vmatpush1.msra.mxu0 0.0
  %7489 = vmatprep.subr.mxu0 0.0
  %7490 = vmatpush1.msra.mxu0 0.0
  %7491 = vmatprep.subr.mxu0 0.0
  %7492 = vmatpush1.msra.mxu0 0.0
  %7493 = vmatprep.subr.mxu0 0.0
  %7494 = vmatpush1.msra.mxu0 0.0
  %7495 = vmatprep.subr.mxu0 0.0
  %7496 = vmatpush1.msra.mxu0 0.0
  %7497 = vmatprep.subr.mxu0 0.0
  %7498 = vmatpush1.msra.mxu0 0.0
  %7499 = vmatprep.subr.mxu0 0.0
  %7500 = vmatpush1.msra.mxu0 0.0
  %7501 = vmatprep.subr.mxu0 0.0
  %7502 = vmatpush1.msra.mxu0 0.0
  %7503 = vmatprep.mubr.f32.mxu0 0.0
  %7504 = vmatmul.mubr.f32.gmra.mrb[0].mxu0 %v7149
  %v7505 = vpop.f32.mrb[0].mxu0
  %v7506 = vadd.f32 %v7436, %v7505
  %v7507 = vpop.f32.mrb[0].mxu0
  %7508 = vdwg.mxu0
  %v7509 = vmax.f32 %v7506, 0.0
  %v7510 = vld [vmem:[%s11] sm:$0x1]
  %v7512 = vlaneseq
  %v7513 = vshrl.u32 %v7512, 7
  %v7514 = vsub.s32 0, %v7513
  %v7515 = vrot.slane %v7510, %v7514
  %v7517 = vmul.f32 %v7509, %v7515
  %vm7518 = vcmask 517120
  %v7519 = vsel %vm7518, %v7517, 0.0
  %7520 = vadd.xlane.f32.xlu0 %v7519
  %v7521 = vpop.xlane.xlu0 %7520
  %vm7522 = vcmask 1024
  %7523 = vst.msk [vmem:[%s12] sm:$0x3] %vm7522, %v7521
  // Predicated region
  $region50: #{forward.1} parent=0 // pred_check
    _
  $region51: #{forward.1} parent=0 // pred_check_branch
    %7525 = sbr.rel (0) target = $region53
  $region52: #{forward.1} parent=0 // pred_region
    _
  $region53: #{forward.1} parent=0 // pred_fallthru
    _
  // Predicated region
  $region54: #{forward.1} parent=0 // pred_check
    _
  $region55: #{forward.1} parent=0 // pred_check_branch
    %7527 = sbr.rel (0) target = $region57
  $region56: #{forward.1} parent=0 // pred_region
    _
  $region57: #{forward.1} parent=0 // pred_fallthru
    _

</llo_original>
